<compile_context>
chip_gen: v7x
topology: tpu7x:2x2x1
jax: 0.10.0
libtpu: 0.0.40
codegen_flags: <defaults>
</compile_context>

<pallas_src>
import jax
import jax.numpy as jnp
from jax.experimental import pallas as pl
from jax.experimental.pallas import tpu as pltpu

_POOL_KERNELS = (32, 16, 8, 4)   # hard-coded by the PyTorch module


def _round_up(x, m):
    return ((x + m - 1) // m) * m


def _spec(shape, index_map, buffers=None):
    """BlockSpec with optional explicit buffer count (falls back gracefully)."""
    if buffers is None:
        return pl.BlockSpec(shape, index_map)
    try:
        return pl.BlockSpec(shape, index_map, pipeline_mode=pl.Buffered(buffers))
    except (TypeError, AttributeError):
        return pl.BlockSpec(shape, index_map)


def _make_kernel(hws):
    inv_hw = tuple(1.0 / float(h) for h in hws)

    def kernel(f1, f2, f3, f4, w1, b1, w2, b2, w3, b3, w4, b4, wf, bf, out):
        def branch(f_ref, w_ref, b_ref, inv, j):
            # fused avg-pool + Linear: f32 feature block cast to bf16 on the VPU
            # (hidden under DMA), single bf16 MXU matmul with f32 accumulation.
            x = f_ref[...].astype(jnp.bfloat16)
            h = jnp.dot(x, w_ref[...], preferred_element_type=jnp.float32)
            # 1/HW scale folded into the f32 bias/ReLU epilogue (not baked into
            # the bf16 weights -> better numerics, one free VPU multiply).
            h = jnp.maximum(h * inv + b_ref[...], 0.0)            # (TN, 128) f32
            # this branch's contribution to the final Linear(512, 1):
            wf_j = wf[pl.ds(128 * j, 128), :]                      # static slice
            return jnp.dot(h, wf_j, preferred_element_type=jnp.float32)

        res = bf[...]                                              # (1, 1) bias
        res = res + branch(f1, w1, b1, inv_hw[0], 0)
        res = res + branch(f2, w2, b2, inv_hw[1], 1)
        res = res + branch(f3, w3, b3, inv_hw[2], 2)
        res = res + branch(f4, w4, b4, inv_hw[3], 3)
        out[...] = res.astype(out.dtype)                           # (TN, 1)

    return kernel


def prepare_params(params, spatials=_POOL_KERNELS, weight_dtype=jnp.bfloat16):
    """One-time (parameter-load-time) packing.

    Each branch weight (C_i, 128) is expanded to (C_i*HW_i, 128) -- rows
    repeated HW_i times, at ORIGINAL magnitude (1/HW applied in-kernel) -- so
    flat_feature(N, C_i*HW_i) @ W_exp * (1/HW_i) == mean_pool(feature) @ W.
    Done once; the expanded bf16 tensors are the stored parameters.
    """
    assert len(params) == 5
    packed = {"w": [], "b": [], "hw": []}
    for (w, b), k in zip(params[:4], spatials):
        hw = k * k
        c, o = w.shape
        w_exp = jnp.broadcast_to(
            w.astype(weight_dtype)[:, None, :], (c, hw, o)).reshape(c * hw, o)
        packed["w"].append(w_exp)
        packed["b"].append(b.reshape(1, -1).astype(jnp.float32))
        packed["hw"].append(hw)
    wf, bf = params[4]
    packed["wf"] = wf.astype(jnp.float32).reshape(-1, 1)           # (512, 1)
    packed["bf"] = bf.astype(jnp.float32).reshape(1, 1)
    return packed


def loss_prediction_forward(features, packed):
    """features: 4 NCHW f32 arrays whose spatial sizes equal the module's
    hard-coded pooling kernels (32, 16, 8, 4).  packed: output of
    prepare_params (load-time expanded weights)."""
    assert len(features) == 4
    for f, k in zip(features, _POOL_KERNELS):
        assert f.ndim == 4 and f.shape[2] == k and f.shape[3] == k, \
            "spatial size must equal the module's hard-coded pooling kernel"

    N = features[0].shape[0]
    ws, bs, hws = packed["w"], packed["b"], packed["hw"]
    wf, bf = packed["wf"], packed["bf"]
    ks = [w.shape[0] for w in ws]
    k_total = sum(ks)
    out_width = wf.shape[0] // 4                                   # 128

    feat_isz = 4                                   # f32 feature blocks in VMEM
    try:
        vmem_cap = int(pltpu.get_tpu_info().vmem_capacity_bytes)
    except Exception:
        vmem_cap = 64 * 1024 * 1024                # conservative (v7x per-TC)
    usable = int(0.9 * vmem_cap)

    # single-buffered resident operands: bf16 branch weights + f32 biases/wf/bf
    resident = sum(int(w.size) * w.dtype.itemsize for w in ws)
    resident += sum(int(b.size) * b.dtype.itemsize for b in bs)
    resident += int(wf.size) * 4 + int(bf.size) * 4
    slack = 8 * 1024 * 1024

    def fits(tn_, nbuf):
        return nbuf * tn_ * k_total * feat_isz + resident + slack <= usable

    # batch tile: cap at ceil(N/2) (rounded to 8) so grid >= 2 and both v7x
    # TensorCores engage; allow 256-wide tiles on 128 MiB-VMEM parts (v5e/v6e).
    tn_cap = 256 if vmem_cap >= 96 * 1024 * 1024 else 128
    tn = min(tn_cap, max(8, _round_up(pl.cdiv(N, 2), 8)))
    while tn > 8 and not fits(tn, 2):
        tn = _round_up(tn // 2, 8)
    n_pad = _round_up(N, tn)
    grid = (n_pad // tn,)
    # deepen feature pipeline only when VMEM allows and there are enough steps
    feat_buffers = 3 if (grid[0] >= 3 and fits(tn, 3)) else None   # None -> default (2)

    # features stay f32 (cast to bf16 in-kernel); NCHW->(N, C*H*W) is metadata-only
    flat = []
    for f in features:
        x = f.reshape(f.shape[0], -1)
        if x.dtype != jnp.float32:
            x = x.astype(jnp.float32)
        if n_pad != N:
            x = jnp.pad(x, ((0, n_pad - N), (0, 0)))
        flat.append(x)

    # argument / spec order must match the kernel signature
    args = list(flat)
    in_specs = [_spec((tn, k), lambda i: (i, 0), feat_buffers) for k in ks]
    for w_e, b_e in zip(ws, bs):
        args += [w_e, b_e]
        in_specs.append(_spec(w_e.shape, lambda i: (0, 0), 1))     # resident
        in_specs.append(_spec(b_e.shape, lambda i: (0, 0), 1))     # resident
    args += [wf, bf]
    in_specs.append(_spec(wf.shape, lambda i: (0, 0), 1))          # resident
    in_specs.append(_spec(bf.shape, lambda i: (0, 0), 1))          # resident

    nbuf = feat_buffers if feat_buffers is not None else 2
    need = nbuf * tn * k_total * feat_isz + resident + slack
    vmem_limit = int(min(max(need, 32 * 1024 * 1024), vmem_cap - 2 * 1024 * 1024))

    flops = 2 * n_pad * (k_total * out_width + 4 * out_width)
    bytes_accessed = int(sum(int(a.size) * a.dtype.itemsize for a in args) + n_pad * 4)
    cost = pl.CostEstimate(flops=flops, transcendentals=0,
                           bytes_accessed=bytes_accessed)

    out = pl.pallas_call(
        _make_kernel(hws),
        out_shape=jax.ShapeDtypeStruct((n_pad, 1), jnp.float32),
        grid=grid,
        in_specs=in_specs,
        out_specs=pl.BlockSpec((tn, 1), lambda i: (i, 0)),
        compiler_params=pltpu.CompilerParams(
            dimension_semantics=("parallel",),
            vmem_limit_bytes=vmem_limit),
        cost_estimate=cost,
    )(*args)
    return out[:N]


def _reference_forward(features, params):
    """Pure-JAX f32 reference mirroring the PyTorch forward."""
    outs = []
    for f, (w, b) in zip(features, params[:4]):
        pooled = jnp.mean(f.astype(jnp.float32), axis=(2, 3))   # avg_pool2d + squeeze
        outs.append(jax.nn.relu(pooled @ w + b))                # Linear + ReLU
    cat = jnp.concatenate(outs, axis=1)                         # (N, 512)
    wf, bf = params[4]
    return cat @ wf + bf                                        # Linear(512, 1)


def _linear_init(kw, kb, fan_in, fan_out):
    # PyTorch nn.Linear default init: U(-1/sqrt(fan_in), 1/sqrt(fan_in))
    bound = 1.0 / (fan_in ** 0.5)
    w = jax.random.uniform(kw, (fan_in, fan_out), jnp.float32, -bound, bound)
    b = jax.random.uniform(kb, (fan_out,), jnp.float32, -bound, bound)
    return w, b


if __name__ == "__main__":
    key = jax.random.PRNGKey(0)
    channels = [8, 16, 32, 64]       # small channels[0..3] of the module
    spatials = list(_POOL_KERNELS)   # must equal the hard-coded pooling kernels
    N = 16

    keys = jax.random.split(key, 14)

    features = [
        jax.random.normal(keys[i], (N, c, s, s), jnp.float32)
        for i, (c, s) in enumerate(zip(channels, spatials))
    ]

    params = []
    ki = 4
    for c in channels:
        params.append(_linear_init(keys[ki], keys[ki + 1], c, 128))
        ki += 2
    params.append(_linear_init(keys[ki], keys[ki + 1], 512, 1))

    packed = prepare_params(params)            # one-time, parameter-load-time
    out = loss_prediction_forward(features, packed)
    out = jax.block_until_ready(out)

    ref = _reference_forward(features, params)
    assert out.shape == (N, 1)
    # bf16 MXU operands with f32 accumulation + f32 epilogue -> tight tolerance.
    assert jnp.allclose(out, ref, atol=2e-2, rtol=2e-2), \
        f"max abs diff {float(jnp.max(jnp.abs(out - ref)))}"

    print("KERNEL_OK")
</pallas_src>

<mosaic_0001>
module attributes {stable_mosaic.version = 11 : i64} {
  func.func @kernel(%arg0: i32, %arg1: memref<8x8192xf32, #tpu.memory_space<vmem>>, %arg2: memref<8x4096xf32, #tpu.memory_space<vmem>>, %arg3: memref<8x2048xf32, #tpu.memory_space<vmem>>, %arg4: memref<8x1024xf32, #tpu.memory_space<vmem>>, %arg5: memref<8192x128xbf16, #tpu.memory_space<vmem>>, %arg6: memref<1x128xf32, #tpu.memory_space<vmem>>, %arg7: memref<4096x128xbf16, #tpu.memory_space<vmem>>, %arg8: memref<1x128xf32, #tpu.memory_space<vmem>>, %arg9: memref<2048x128xbf16, #tpu.memory_space<vmem>>, %arg10: memref<1x128xf32, #tpu.memory_space<vmem>>, %arg11: memref<1024x128xbf16, #tpu.memory_space<vmem>>, %arg12: memref<1x128xf32, #tpu.memory_space<vmem>>, %arg13: memref<512x1xf32, #tpu.memory_space<vmem>>, %arg14: memref<1x1xf32, #tpu.memory_space<vmem>>, %arg15: memref<8x1xf32, #tpu.memory_space<vmem>>) attributes {dimension_semantics = [#tpu.dimension_semantics<parallel>], iteration_bounds = array<i64: 2>, scalar_prefetch = 0 : i64, scratch_operands = 0 : i64, tpu.core_type = #tpu.core_type<tc>, window_params = [{transform_indices = @transform_0, window_bounds = array<i64: 8, 8192>}, {transform_indices = @transform_1, window_bounds = array<i64: 8, 4096>}, {transform_indices = @transform_2, window_bounds = array<i64: 8, 2048>}, {transform_indices = @transform_3, window_bounds = array<i64: 8, 1024>}, {pipeline_mode = #tpu.pipeline_mode<synchronous>, transform_indices = @transform_4, window_bounds = array<i64: 8192, 128>}, {pipeline_mode = #tpu.pipeline_mode<synchronous>, transform_indices = @transform_5, window_bounds = array<i64: 1, 128>}, {pipeline_mode = #tpu.pipeline_mode<synchronous>, transform_indices = @transform_6, window_bounds = array<i64: 4096, 128>}, {pipeline_mode = #tpu.pipeline_mode<synchronous>, transform_indices = @transform_7, window_bounds = array<i64: 1, 128>}, {pipeline_mode = #tpu.pipeline_mode<synchronous>, transform_indices = @transform_8, window_bounds = array<i64: 2048, 128>}, {pipeline_mode = #tpu.pipeline_mode<synchronous>, transform_indices = @transform_9, window_bounds = array<i64: 1, 128>}, {pipeline_mode = #tpu.pipeline_mode<synchronous>, transform_indices = @transform_10, window_bounds = array<i64: 1024, 128>}, {pipeline_mode = #tpu.pipeline_mode<synchronous>, transform_indices = @transform_11, window_bounds = array<i64: 1, 128>}, {pipeline_mode = #tpu.pipeline_mode<synchronous>, transform_indices = @transform_12, window_bounds = array<i64: 512, 1>}, {pipeline_mode = #tpu.pipeline_mode<synchronous>, transform_indices = @transform_13, window_bounds = array<i64: 1, 1>}, {transform_indices = @transform_14, window_bounds = array<i64: 8, 1>}]} {
    %c0 = arith.constant 0 : index
    %c0_0 = arith.constant 0 : index
    %0 = vector.load %arg14[%c0, %c0_0] : memref<1x1xf32, #tpu.memory_space<vmem>>, vector<1x1xf32>
    %c0_1 = arith.constant 0 : index
    %c0_2 = arith.constant 0 : index
    %1 = vector.load %arg1[%c0_1, %c0_2] : memref<8x8192xf32, #tpu.memory_space<vmem>>, vector<8x8192xf32>
    %2 = arith.truncf %1 : vector<8x8192xf32> to vector<8x8192xbf16>
    %c0_3 = arith.constant 0 : index
    %c0_4 = arith.constant 0 : index
    %3 = vector.load %arg5[%c0_3, %c0_4] : memref<8192x128xbf16, #tpu.memory_space<vmem>>, vector<8192x128xbf16>
    %cst = arith.constant dense<0.000000e+00> : vector<8x128xf32>
    %4 = tpu.matmul %2, %3, %cst {dimension_numbers = #tpu.dot_dimension_numbers<[1], [0], [0], [1], [0, 0, 1, 1], [], []>} : vector<8x8192xbf16>, vector<8192x128xbf16>, vector<8x128xf32> -> vector<8x128xf32>
    %cst_5 = arith.constant 9.765625E-4 : f32
    %5 = vector.broadcast %cst_5 : f32 to vector<8x128xf32>
    %6 = arith.mulf %4, %5 : vector<8x128xf32>
    %c0_6 = arith.constant 0 : index
    %c0_7 = arith.constant 0 : index
    %7 = vector.load %arg6[%c0_6, %c0_7] : memref<1x128xf32, #tpu.memory_space<vmem>>, vector<1x128xf32>
    %8 = vector.broadcast %7 : vector<1x128xf32> to vector<8x128xf32>
    %9 = arith.addf %6, %8 : vector<8x128xf32>
    %cst_8 = arith.constant 0.000000e+00 : f32
    %10 = vector.broadcast %cst_8 : f32 to vector<8x128xf32>
    %11 = arith.maximumf %9, %10 : vector<8x128xf32>
    %c0_9 = arith.constant 0 : index
    %c0_10 = arith.constant 0 : index
    %12 = vector.load %arg13[%c0_9, %c0_10] : memref<512x1xf32, #tpu.memory_space<vmem>>, vector<128x1xf32>
    %cst_11 = arith.constant dense<0.000000e+00> : vector<8x1xf32>
    %13 = tpu.matmul %11, %12, %cst_11 {dimension_numbers = #tpu.dot_dimension_numbers<[1], [0], [0], [1], [0, 0, 1, 1], [], []>} : vector<8x128xf32>, vector<128x1xf32>, vector<8x1xf32> -> vector<8x1xf32>
    %14 = vector.broadcast %0 : vector<1x1xf32> to vector<8x1xf32>
    %15 = arith.addf %14, %13 : vector<8x1xf32>
    %c0_12 = arith.constant 0 : index
    %c0_13 = arith.constant 0 : index
    %16 = vector.load %arg2[%c0_12, %c0_13] : memref<8x4096xf32, #tpu.memory_space<vmem>>, vector<8x4096xf32>
    %17 = arith.truncf %16 : vector<8x4096xf32> to vector<8x4096xbf16>
    %c0_14 = arith.constant 0 : index
    %c0_15 = arith.constant 0 : index
    %18 = vector.load %arg7[%c0_14, %c0_15] : memref<4096x128xbf16, #tpu.memory_space<vmem>>, vector<4096x128xbf16>
    %cst_16 = arith.constant dense<0.000000e+00> : vector<8x128xf32>
    %19 = tpu.matmul %17, %18, %cst_16 {dimension_numbers = #tpu.dot_dimension_numbers<[1], [0], [0], [1], [0, 0, 1, 1], [], []>} : vector<8x4096xbf16>, vector<4096x128xbf16>, vector<8x128xf32> -> vector<8x128xf32>
    %cst_17 = arith.constant 3.906250e-03 : f32
    %20 = vector.broadcast %cst_17 : f32 to vector<8x128xf32>
    %21 = arith.mulf %19, %20 : vector<8x128xf32>
    %c0_18 = arith.constant 0 : index
    %c0_19 = arith.constant 0 : index
    %22 = vector.load %arg8[%c0_18, %c0_19] : memref<1x128xf32, #tpu.memory_space<vmem>>, vector<1x128xf32>
    %23 = vector.broadcast %22 : vector<1x128xf32> to vector<8x128xf32>
    %24 = arith.addf %21, %23 : vector<8x128xf32>
    %cst_20 = arith.constant 0.000000e+00 : f32
    %25 = vector.broadcast %cst_20 : f32 to vector<8x128xf32>
    %26 = arith.maximumf %24, %25 : vector<8x128xf32>
    %c128 = arith.constant 128 : index
    %c0_21 = arith.constant 0 : index
    %27 = vector.load %arg13[%c128, %c0_21] : memref<512x1xf32, #tpu.memory_space<vmem>>, vector<128x1xf32>
    %cst_22 = arith.constant dense<0.000000e+00> : vector<8x1xf32>
    %28 = tpu.matmul %26, %27, %cst_22 {dimension_numbers = #tpu.dot_dimension_numbers<[1], [0], [0], [1], [0, 0, 1, 1], [], []>} : vector<8x128xf32>, vector<128x1xf32>, vector<8x1xf32> -> vector<8x1xf32>
    %29 = arith.addf %15, %28 : vector<8x1xf32>
    %c0_23 = arith.constant 0 : index
    %c0_24 = arith.constant 0 : index
    %30 = vector.load %arg3[%c0_23, %c0_24] : memref<8x2048xf32, #tpu.memory_space<vmem>>, vector<8x2048xf32>
    %31 = arith.truncf %30 : vector<8x2048xf32> to vector<8x2048xbf16>
    %c0_25 = arith.constant 0 : index
    %c0_26 = arith.constant 0 : index
    %32 = vector.load %arg9[%c0_25, %c0_26] : memref<2048x128xbf16, #tpu.memory_space<vmem>>, vector<2048x128xbf16>
    %cst_27 = arith.constant dense<0.000000e+00> : vector<8x128xf32>
    %33 = tpu.matmul %31, %32, %cst_27 {dimension_numbers = #tpu.dot_dimension_numbers<[1], [0], [0], [1], [0, 0, 1, 1], [], []>} : vector<8x2048xbf16>, vector<2048x128xbf16>, vector<8x128xf32> -> vector<8x128xf32>
    %cst_28 = arith.constant 1.562500e-02 : f32
    %34 = vector.broadcast %cst_28 : f32 to vector<8x128xf32>
    %35 = arith.mulf %33, %34 : vector<8x128xf32>
    %c0_29 = arith.constant 0 : index
    %c0_30 = arith.constant 0 : index
    %36 = vector.load %arg10[%c0_29, %c0_30] : memref<1x128xf32, #tpu.memory_space<vmem>>, vector<1x128xf32>
    %37 = vector.broadcast %36 : vector<1x128xf32> to vector<8x128xf32>
    %38 = arith.addf %35, %37 : vector<8x128xf32>
    %cst_31 = arith.constant 0.000000e+00 : f32
    %39 = vector.broadcast %cst_31 : f32 to vector<8x128xf32>
    %40 = arith.maximumf %38, %39 : vector<8x128xf32>
    %c256 = arith.constant 256 : index
    %c0_32 = arith.constant 0 : index
    %41 = vector.load %arg13[%c256, %c0_32] : memref<512x1xf32, #tpu.memory_space<vmem>>, vector<128x1xf32>
    %cst_33 = arith.constant dense<0.000000e+00> : vector<8x1xf32>
    %42 = tpu.matmul %40, %41, %cst_33 {dimension_numbers = #tpu.dot_dimension_numbers<[1], [0], [0], [1], [0, 0, 1, 1], [], []>} : vector<8x128xf32>, vector<128x1xf32>, vector<8x1xf32> -> vector<8x1xf32>
    %43 = arith.addf %29, %42 : vector<8x1xf32>
    %c0_34 = arith.constant 0 : index
    %c0_35 = arith.constant 0 : index
    %44 = vector.load %arg4[%c0_34, %c0_35] : memref<8x1024xf32, #tpu.memory_space<vmem>>, vector<8x1024xf32>
    %45 = arith.truncf %44 : vector<8x1024xf32> to vector<8x1024xbf16>
    %c0_36 = arith.constant 0 : index
    %c0_37 = arith.constant 0 : index
    %46 = vector.load %arg11[%c0_36, %c0_37] : memref<1024x128xbf16, #tpu.memory_space<vmem>>, vector<1024x128xbf16>
    %cst_38 = arith.constant dense<0.000000e+00> : vector<8x128xf32>
    %47 = tpu.matmul %45, %46, %cst_38 {dimension_numbers = #tpu.dot_dimension_numbers<[1], [0], [0], [1], [0, 0, 1, 1], [], []>} : vector<8x1024xbf16>, vector<1024x128xbf16>, vector<8x128xf32> -> vector<8x128xf32>
    %cst_39 = arith.constant 6.250000e-02 : f32
    %48 = vector.broadcast %cst_39 : f32 to vector<8x128xf32>
    %49 = arith.mulf %47, %48 : vector<8x128xf32>
    %c0_40 = arith.constant 0 : index
    %c0_41 = arith.constant 0 : index
    %50 = vector.load %arg12[%c0_40, %c0_41] : memref<1x128xf32, #tpu.memory_space<vmem>>, vector<1x128xf32>
    %51 = vector.broadcast %50 : vector<1x128xf32> to vector<8x128xf32>
    %52 = arith.addf %49, %51 : vector<8x128xf32>
    %cst_42 = arith.constant 0.000000e+00 : f32
    %53 = vector.broadcast %cst_42 : f32 to vector<8x128xf32>
    %54 = arith.maximumf %52, %53 : vector<8x128xf32>
    %c384 = arith.constant 384 : index
    %c0_43 = arith.constant 0 : index
    %55 = vector.load %arg13[%c384, %c0_43] : memref<512x1xf32, #tpu.memory_space<vmem>>, vector<128x1xf32>
    %cst_44 = arith.constant dense<0.000000e+00> : vector<8x1xf32>
    %56 = tpu.matmul %54, %55, %cst_44 {dimension_numbers = #tpu.dot_dimension_numbers<[1], [0], [0], [1], [0, 0, 1, 1], [], []>} : vector<8x128xf32>, vector<128x1xf32>, vector<8x1xf32> -> vector<8x1xf32>
    %57 = arith.addf %43, %56 : vector<8x1xf32>
    %c0_45 = arith.constant 0 : index
    %c0_46 = arith.constant 0 : index
    %58 = vector.load %arg15[%c0_45, %c0_46] : memref<8x1xf32, #tpu.memory_space<vmem>>, vector<8x1xf32>
    tpu.vector_store %arg15[%c0_45, %c0_46], %57 {strides = array<i32>} : memref<8x1xf32, #tpu.memory_space<vmem>>, vector<8x1xf32>,
    return
  }
  func.func @transform_0(%arg0: i32) -> (i32, i32) {
    %c0_i32 = arith.constant 0 : i32
    %c0_i32_0 = arith.constant 0 : i32
    return %arg0, %c0_i32 : i32, i32
  }
  func.func @transform_1(%arg0: i32) -> (i32, i32) {
    %c0_i32 = arith.constant 0 : i32
    %c0_i32_0 = arith.constant 0 : i32
    return %arg0, %c0_i32 : i32, i32
  }
  func.func @transform_2(%arg0: i32) -> (i32, i32) {
    %c0_i32 = arith.constant 0 : i32
    %c0_i32_0 = arith.constant 0 : i32
    return %arg0, %c0_i32 : i32, i32
  }
  func.func @transform_3(%arg0: i32) -> (i32, i32) {
    %c0_i32 = arith.constant 0 : i32
    %c0_i32_0 = arith.constant 0 : i32
    return %arg0, %c0_i32 : i32, i32
  }
  func.func @transform_4(%arg0: i32) -> (i32, i32) {
    %c0_i32 = arith.constant 0 : i32
    %c0_i32_0 = arith.constant 0 : i32
    %c0_i32_1 = arith.constant 0 : i32
    return %c0_i32, %c0_i32_0 : i32, i32
  }
  func.func @transform_5(%arg0: i32) -> (i32, i32) {
    %c0_i32 = arith.constant 0 : i32
    %c0_i32_0 = arith.constant 0 : i32
    %c0_i32_1 = arith.constant 0 : i32
    return %c0_i32, %c0_i32_0 : i32, i32
  }
  func.func @transform_6(%arg0: i32) -> (i32, i32) {
    %c0_i32 = arith.constant 0 : i32
    %c0_i32_0 = arith.constant 0 : i32
    %c0_i32_1 = arith.constant 0 : i32
    return %c0_i32, %c0_i32_0 : i32, i32
  }
  func.func @transform_7(%arg0: i32) -> (i32, i32) {
    %c0_i32 = arith.constant 0 : i32
    %c0_i32_0 = arith.constant 0 : i32
    %c0_i32_1 = arith.constant 0 : i32
    return %c0_i32, %c0_i32_0 : i32, i32
  }
  func.func @transform_8(%arg0: i32) -> (i32, i32) {
    %c0_i32 = arith.constant 0 : i32
    %c0_i32_0 = arith.constant 0 : i32
    %c0_i32_1 = arith.constant 0 : i32
    return %c0_i32, %c0_i32_0 : i32, i32
  }
  func.func @transform_9(%arg0: i32) -> (i32, i32) {
    %c0_i32 = arith.constant 0 : i32
    %c0_i32_0 = arith.constant 0 : i32
    %c0_i32_1 = arith.constant 0 : i32
    return %c0_i32, %c0_i32_0 : i32, i32
  }
  func.func @transform_10(%arg0: i32) -> (i32, i32) {
    %c0_i32 = arith.constant 0 : i32
    %c0_i32_0 = arith.constant 0 : i32
    %c0_i32_1 = arith.constant 0 : i32
    return %c0_i32, %c0_i32_0 : i32, i32
  }
  func.func @transform_11(%arg0: i32) -> (i32, i32) {
    %c0_i32 = arith.constant 0 : i32
    %c0_i32_0 = arith.constant 0 : i32
    %c0_i32_1 = arith.constant 0 : i32
    return %c0_i32, %c0_i32_0 : i32, i32
  }
  func.func @transform_12(%arg0: i32) -> (i32, i32) {
    %c0_i32 = arith.constant 0 : i32
    %c0_i32_0 = arith.constant 0 : i32
    %c0_i32_1 = arith.constant 0 : i32
    return %c0_i32, %c0_i32_0 : i32, i32
  }
  func.func @transform_13(%arg0: i32) -> (i32, i32) {
    %c0_i32 = arith.constant 0 : i32
    %c0_i32_0 = arith.constant 0 : i32
    %c0_i32_1 = arith.constant 0 : i32
    return %c0_i32, %c0_i32_0 : i32, i32
  }
  func.func @transform_14(%arg0: i32) -> (i32, i32) {
    %c0_i32 = arith.constant 0 : i32
    %c0_i32_0 = arith.constant 0 : i32
    return %arg0, %c0_i32 : i32, i32
  }
}

</mosaic_0001>

<llo_original>
// kernel: tpu_custom_call.1
$region0: #{tpu_custom_call.1}
  #allocation0 [shape = 'u32[]', space=smem, size = 0x4, offset = 0x4, fixed_abs, tag = 'smem constant byte address 0x4 - core index']
  #allocation1 [shape = 'u32[144,128]{1,0:T(1,128)}', space=vmem, size = 0x12000, scoped, tag = 'internal scratch']
  #allocation2 [shape = 'f32[1,1]{1,0:T(1,128)S(1)}', space=vmem, size = 0x200, scoped, tag = 'scoped memory for tpu_custom_call.1']
  %s0 = inlined_call_operand.hbm [shape: f32[16,8192], index: 0, kind: input, shape index: {}]
  %s1 = inlined_call_operand.hbm [shape: f32[16,4096], index: 1, kind: input, shape index: {}]
  %s2 = inlined_call_operand.hbm [shape: f32[16,2048], index: 2, kind: input, shape index: {}]
  %s3 = inlined_call_operand.hbm [shape: f32[16,1024], index: 3, kind: input, shape index: {}]
  %s4 = inlined_call_operand.hbm [shape: bf16[8192,128], index: 4, kind: input, shape index: {}]
  %s5 = inlined_call_operand.hbm [shape: f32[1,128], index: 5, kind: input, shape index: {}]
  %s6 = inlined_call_operand.hbm [shape: bf16[4096,128], index: 6, kind: input, shape index: {}]
  %s7 = inlined_call_operand.hbm [shape: f32[1,128], index: 7, kind: input, shape index: {}]
  %s8 = inlined_call_operand.hbm [shape: bf16[2048,128], index: 8, kind: input, shape index: {}]
  %s9 = inlined_call_operand.hbm [shape: f32[1,128], index: 9, kind: input, shape index: {}]
  %s10 = inlined_call_operand.hbm [shape: bf16[1024,128], index: 10, kind: input, shape index: {}]
  %s11 = inlined_call_operand.hbm [shape: f32[1,128], index: 11, kind: input, shape index: {}]
  %s12 = inlined_call_operand.vmem [shape: f32[512,1], index: 12, kind: input, shape index: {}]
  %s13 = inlined_call_operand.<no memory space> [shape: f32[1,1], index: 13, kind: input, shape index: {}]
  %s14 = inlined_call_operand.vmem [shape: f32[16,1], index: 14, kind: output, shape index: {}]
  %s15 = sld [smem:[#allocation0]]
  $region137: #{tpu_custom_call.1} parent=0
    _
  %s17 = ssub.s32 1, %s15
  %s18 = scalar_select 0, %s17, %s15
  %v19 = vstv %s13
  %20 = vst [vmem:[#allocation2] sm:$0x1] %v19
  $region1: #{tpu_custom_call.1} parent=0
    #allocation3 [shape = 'u8[524288]{0}', space=vmem, size = 0x80000, scoped, tag = 'input window, operand 0']
    #allocation4 [shape = 's32[2]{0}', space=sflag, size = 0x8, scoped, tag = 'scoped memory for tpu_custom_call.1']
    #allocation5 [shape = 'u8[262144]{0}', space=vmem, size = 0x40000, scoped, tag = 'input window, operand 1']
    #allocation6 [shape = 's32[2]{0}', space=sflag, size = 0x8, scoped, tag = 'scoped memory for tpu_custom_call.1']
    #allocation7 [shape = 'u8[131072]{0}', space=vmem, size = 0x20000, scoped, tag = 'input window, operand 2']
    #allocation8 [shape = 'u8[65536]{0}', space=vmem, size = 0x10000, scoped, tag = 'input window, operand 3']
    #allocation9 [shape = 's32[2]{0}', space=sflag, size = 0x8, scoped, tag = 'scoped memory for tpu_custom_call.1']
    #allocation10 [shape = 'u8[2097152]{0}', space=vmem, size = 0x200000, scoped, tag = 'input window, operand 4, single buffered']
    #allocation11 [shape = 'u8[512]{0}', space=vmem, size = 0x400, scoped, tag = 'input window, operand 5, single buffered']
    #allocation12 [shape = 's32[1]{0}', space=sflag, size = 0x4, scoped, tag = 'scoped memory for tpu_custom_call.1']
    #allocation13 [shape = 'u8[1048576]{0}', space=vmem, size = 0x100000, scoped, tag = 'input window, operand 6, single buffered']
    #allocation14 [shape = 'u8[512]{0}', space=vmem, size = 0x400, scoped, tag = 'input window, operand 7, single buffered']
    #allocation15 [shape = 's32[1]{0}', space=sflag, size = 0x4, scoped, tag = 'scoped memory for tpu_custom_call.1']
    #allocation16 [shape = 'u8[524288]{0}', space=vmem, size = 0x80000, scoped, tag = 'input window, operand 8, single buffered']
    #allocation17 [shape = 'u8[512]{0}', space=vmem, size = 0x400, scoped, tag = 'input window, operand 9, single buffered']
    #allocation18 [shape = 's32[1]{0}', space=sflag, size = 0x4, scoped, tag = 'scoped memory for tpu_custom_call.1']
    #allocation19 [shape = 'u8[262144]{0}', space=vmem, size = 0x40000, scoped, tag = 'input window, operand 10, single buffered']
    #allocation20 [shape = 'u8[512]{0}', space=vmem, size = 0x400, scoped, tag = 'input window, operand 11, single buffered']
    #allocation21 [shape = 's32[1]{0}', space=sflag, size = 0x4, scoped, tag = 'scoped memory for tpu_custom_call.1']
    %21 = vsyncpa [#allocation4], 0
    %s22 = scalar_lea.sflag [#allocation4], 1
    %23 = vsyncpa %s22, 0
    %24 = vsyncpa [#allocation6], 0
    %s25 = scalar_lea.sflag [#allocation6], 1
    %26 = vsyncpa %s25, 0
    %27 = vsyncpa [#allocation9], 0
    %s28 = scalar_lea.sflag [#allocation9], 1
    %29 = vsyncpa %s28, 0
    %30 = vsyncpa [#allocation12], 0
    %31 = vsyncpa [#allocation15], 0
    %32 = vsyncpa [#allocation18], 0
    %33 = vsyncpa [#allocation21], 0
    loop: start=0, step=1, limit=4
    $region2: #{tpu_custom_call.1} parent=1 // loop_pre_header
      _
    $region3: #{tpu_custom_call.1} parent=1 // loop_header
      %s35 = sphi 0, %s39
      %p36 = scmp.ge.s32.totalorder %s35, 4
      %s45 = sphi 0, %s47
      %s48 = sphi 0, %s45
      %s49 = sphi 0, %s48
      %s65 = sphi 0, %s49
      %s71 = sphi 0, %s73
      %s74 = sphi 0, %s71
      %s75 = sphi 0, %s74
      %s91 = sphi 0, %s75
      %s97 = sphi 0, %s99
      %s100 = sphi 0, %s97
      %s101 = sphi 0, %s100
      %s117 = sphi 0, %s101
      %s123 = sphi 0, %s125
      %s126 = sphi 0, %s123
      %s127 = sphi 0, %s126
      %s143 = sphi 0, %s127
      %s147 = sphi 0, %s147
      %s149 = sphi 0, %s147
      %s150 = sphi 0, %s149
      %s164 = sphi 0, %s150
      %s168 = sphi 0, %s168
      %s170 = sphi 0, %s168
      %s171 = sphi 0, %s170
      %s185 = sphi 0, %s171
      %s189 = sphi 0, %s189
      %s191 = sphi 0, %s189
      %s192 = sphi 0, %s191
      %s206 = sphi 0, %s192
      %s210 = sphi 0, %s210
      %s212 = sphi 0, %s210
      %s213 = sphi 0, %s212
      %s227 = sphi 0, %s213
      %s231 = sphi 0, %s231
      %s233 = sphi 0, %s231
      %s234 = sphi 0, %s233
      %s248 = sphi 0, %s234
      %s252 = sphi 0, %s252
      %s254 = sphi 0, %s252
      %s255 = sphi 0, %s254
      %s269 = sphi 0, %s255
      %s273 = sphi 0, %s273
      %s275 = sphi 0, %s273
      %s276 = sphi 0, %s275
      %s290 = sphi 0, %s276
      %s294 = sphi 0, %s294
      %s296 = sphi 0, %s294
      %s297 = sphi 0, %s296
      %s311 = sphi 0, %s297
      %s315 = sphi 0, %s315
      %s317 = sphi 0, %s315
      %s318 = sphi 0, %s317
      %s332 = sphi 0, %s318
      %s336 = sphi 0, %s336
      %s338 = sphi 0, %s336
      %s339 = sphi 0, %s338
      %s353 = sphi 0, %s339
      %s359 = sphi 0, %s361
      %s362 = sphi 0, %s359
      %s363 = sphi 0, %s362
      %s379 = sphi 0, %s363
    $region4: #{tpu_custom_call.1} parent=1 // loop_header_branch
      %38 = sbr.rel (%p36) target = $region8
    $region5: #{tpu_custom_call.1} parent=1 // loop_body
      %s40 = ssub.s32 %s35, 1
      %s41 = ssub.s32 %s35, 2
      %s42 = sadd.s32 %s35, 1
      %s43 = ssub.s32 %s35, %s42
      %p44 = scmp.eq.s32.totalorder %s43, 0
      %s46 = sadd.s32 %s45, 1
      %s47 = scalar_select %p44, %s45, %s46
      %p50 = pneg %p44
      %p51 = scmp.eq.s32.totalorder %s35, 1
      %p52 = por %p50, %p51
      %p53 = scmp.ne.s32.totalorder %s45, %s48
      %p54 = scmp.eq.s32.totalorder %s35, 0
      %p55 = por %p53, %p54
      %p56 = scmp.ne.s32.totalorder %s45, %s48
      %p57 = scmp.eq.s32.totalorder %s40, 1
      %p58 = por %p56, %p57
      %p59 = scmp.ne.s32.totalorder %s48, %s49
      %p60 = scmp.eq.s32.totalorder %s40, 0
      %p61 = por %p59, %p60
      %p62 = scmp.ne.s32.totalorder %s48, %s49
      %p63 = scmp.eq.s32.totalorder %s41, 1
      %p64 = por %p62, %p63
      %p66 = scmp.ne.s32.totalorder %s49, %s65
      %p67 = scmp.eq.s32.totalorder %s41, 0
      %p68 = por %p66, %p67
      %s69 = ssub.s32 %s35, %s42
      %p70 = scmp.eq.s32.totalorder %s69, 0
      %s72 = sadd.s32 %s71, 1
      %s73 = scalar_select %p70, %s71, %s72
      %p76 = pneg %p70
      %p77 = scmp.eq.s32.totalorder %s35, 1
      %p78 = por %p76, %p77
      %p79 = scmp.ne.s32.totalorder %s71, %s74
      %p80 = scmp.eq.s32.totalorder %s35, 0
      %p81 = por %p79, %p80
      %p82 = scmp.ne.s32.totalorder %s71, %s74
      %p83 = scmp.eq.s32.totalorder %s40, 1
      %p84 = por %p82, %p83
      %p85 = scmp.ne.s32.totalorder %s74, %s75
      %p86 = scmp.eq.s32.totalorder %s40, 0
      %p87 = por %p85, %p86
      %p88 = scmp.ne.s32.totalorder %s74, %s75
      %p89 = scmp.eq.s32.totalorder %s41, 1
      %p90 = por %p88, %p89
      %p92 = scmp.ne.s32.totalorder %s75, %s91
      %p93 = scmp.eq.s32.totalorder %s41, 0
      %p94 = por %p92, %p93
      %s95 = ssub.s32 %s35, %s42
      %p96 = scmp.eq.s32.totalorder %s95, 0
      %s98 = sadd.s32 %s97, 1
      %s99 = scalar_select %p96, %s97, %s98
      %p102 = pneg %p96
      %p103 = scmp.eq.s32.totalorder %s35, 1
      %p104 = por %p102, %p103
      %p105 = scmp.ne.s32.totalorder %s97, %s100
      %p106 = scmp.eq.s32.totalorder %s35, 0
      %p107 = por %p105, %p106
      %p108 = scmp.ne.s32.totalorder %s97, %s100
      %p109 = scmp.eq.s32.totalorder %s40, 1
      %p110 = por %p108, %p109
      %p111 = scmp.ne.s32.totalorder %s100, %s101
      %p112 = scmp.eq.s32.totalorder %s40, 0
      %p113 = por %p111, %p112
      %p114 = scmp.ne.s32.totalorder %s100, %s101
      %p115 = scmp.eq.s32.totalorder %s41, 1
      %p116 = por %p114, %p115
      %p118 = scmp.ne.s32.totalorder %s101, %s117
      %p119 = scmp.eq.s32.totalorder %s41, 0
      %p120 = por %p118, %p119
      %s121 = ssub.s32 %s35, %s42
      %p122 = scmp.eq.s32.totalorder %s121, 0
      %s124 = sadd.s32 %s123, 1
      %s125 = scalar_select %p122, %s123, %s124
      %p128 = pneg %p122
      %p129 = scmp.eq.s32.totalorder %s35, 1
      %p130 = por %p128, %p129
      %p131 = scmp.ne.s32.totalorder %s123, %s126
      %p132 = scmp.eq.s32.totalorder %s35, 0
      %p133 = por %p131, %p132
      %p134 = scmp.ne.s32.totalorder %s123, %s126
      %p135 = scmp.eq.s32.totalorder %s40, 1
      %p136 = por %p134, %p135
      %p137 = scmp.ne.s32.totalorder %s126, %s127
      %p138 = scmp.eq.s32.totalorder %s40, 0
      %p139 = por %p137, %p138
      %p140 = scmp.ne.s32.totalorder %s126, %s127
      %p141 = scmp.eq.s32.totalorder %s41, 1
      %p142 = por %p140, %p141
      %p144 = scmp.ne.s32.totalorder %s127, %s143
      %p145 = scmp.eq.s32.totalorder %s41, 0
      %p146 = por %p144, %p145
      %s148 = sadd.s32 %s147, 1
      %p151 = scmp.eq.s32.totalorder %s35, 1
      %p152 = scmp.ne.s32.totalorder %s147, %s149
      %p153 = scmp.eq.s32.totalorder %s35, 0
      %p154 = por %p152, %p153
      %p155 = scmp.ne.s32.totalorder %s147, %s149
      %p156 = scmp.eq.s32.totalorder %s40, 1
      %p157 = por %p155, %p156
      %p158 = scmp.ne.s32.totalorder %s149, %s150
      %p159 = scmp.eq.s32.totalorder %s40, 0
      %p160 = por %p158, %p159
      %p161 = scmp.ne.s32.totalorder %s149, %s150
      %p162 = scmp.eq.s32.totalorder %s41, 1
      %p163 = por %p161, %p162
      %p165 = scmp.ne.s32.totalorder %s150, %s164
      %p166 = scmp.eq.s32.totalorder %s41, 0
      %p167 = por %p165, %p166
      %s169 = sadd.s32 %s168, 1
      %p172 = scmp.eq.s32.totalorder %s35, 1
      %p173 = scmp.ne.s32.totalorder %s168, %s170
      %p174 = scmp.eq.s32.totalorder %s35, 0
      %p175 = por %p173, %p174
      %p176 = scmp.ne.s32.totalorder %s168, %s170
      %p177 = scmp.eq.s32.totalorder %s40, 1
      %p178 = por %p176, %p177
      %p179 = scmp.ne.s32.totalorder %s170, %s171
      %p180 = scmp.eq.s32.totalorder %s40, 0
      %p181 = por %p179, %p180
      %p182 = scmp.ne.s32.totalorder %s170, %s171
      %p183 = scmp.eq.s32.totalorder %s41, 1
      %p184 = por %p182, %p183
      %p186 = scmp.ne.s32.totalorder %s171, %s185
      %p187 = scmp.eq.s32.totalorder %s41, 0
      %p188 = por %p186, %p187
      %s190 = sadd.s32 %s189, 1
      %p193 = scmp.eq.s32.totalorder %s35, 1
      %p194 = scmp.ne.s32.totalorder %s189, %s191
      %p195 = scmp.eq.s32.totalorder %s35, 0
      %p196 = por %p194, %p195
      %p197 = scmp.ne.s32.totalorder %s189, %s191
      %p198 = scmp.eq.s32.totalorder %s40, 1
      %p199 = por %p197, %p198
      %p200 = scmp.ne.s32.totalorder %s191, %s192
      %p201 = scmp.eq.s32.totalorder %s40, 0
      %p202 = por %p200, %p201
      %p203 = scmp.ne.s32.totalorder %s191, %s192
      %p204 = scmp.eq.s32.totalorder %s41, 1
      %p205 = por %p203, %p204
      %p207 = scmp.ne.s32.totalorder %s192, %s206
      %p208 = scmp.eq.s32.totalorder %s41, 0
      %p209 = por %p207, %p208
      %s211 = sadd.s32 %s210, 1
      %p214 = scmp.eq.s32.totalorder %s35, 1
      %p215 = scmp.ne.s32.totalorder %s210, %s212
      %p216 = scmp.eq.s32.totalorder %s35, 0
      %p217 = por %p215, %p216
      %p218 = scmp.ne.s32.totalorder %s210, %s212
      %p219 = scmp.eq.s32.totalorder %s40, 1
      %p220 = por %p218, %p219
      %p221 = scmp.ne.s32.totalorder %s212, %s213
      %p222 = scmp.eq.s32.totalorder %s40, 0
      %p223 = por %p221, %p222
      %p224 = scmp.ne.s32.totalorder %s212, %s213
      %p225 = scmp.eq.s32.totalorder %s41, 1
      %p226 = por %p224, %p225
      %p228 = scmp.ne.s32.totalorder %s213, %s227
      %p229 = scmp.eq.s32.totalorder %s41, 0
      %p230 = por %p228, %p229
      %s232 = sadd.s32 %s231, 1
      %p235 = scmp.eq.s32.totalorder %s35, 1
      %p236 = scmp.ne.s32.totalorder %s231, %s233
      %p237 = scmp.eq.s32.totalorder %s35, 0
      %p238 = por %p236, %p237
      %p239 = scmp.ne.s32.totalorder %s231, %s233
      %p240 = scmp.eq.s32.totalorder %s40, 1
      %p241 = por %p239, %p240
      %p242 = scmp.ne.s32.totalorder %s233, %s234
      %p243 = scmp.eq.s32.totalorder %s40, 0
      %p244 = por %p242, %p243
      %p245 = scmp.ne.s32.totalorder %s233, %s234
      %p246 = scmp.eq.s32.totalorder %s41, 1
      %p247 = por %p245, %p246
      %p249 = scmp.ne.s32.totalorder %s234, %s248
      %p250 = scmp.eq.s32.totalorder %s41, 0
      %p251 = por %p249, %p250
      %s253 = sadd.s32 %s252, 1
      %p256 = scmp.eq.s32.totalorder %s35, 1
      %p257 = scmp.ne.s32.totalorder %s252, %s254
      %p258 = scmp.eq.s32.totalorder %s35, 0
      %p259 = por %p257, %p258
      %p260 = scmp.ne.s32.totalorder %s252, %s254
      %p261 = scmp.eq.s32.totalorder %s40, 1
      %p262 = por %p260, %p261
      %p263 = scmp.ne.s32.totalorder %s254, %s255
      %p264 = scmp.eq.s32.totalorder %s40, 0
      %p265 = por %p263, %p264
      %p266 = scmp.ne.s32.totalorder %s254, %s255
      %p267 = scmp.eq.s32.totalorder %s41, 1
      %p268 = por %p266, %p267
      %p270 = scmp.ne.s32.totalorder %s255, %s269
      %p271 = scmp.eq.s32.totalorder %s41, 0
      %p272 = por %p270, %p271
      %s274 = sadd.s32 %s273, 1
      %p277 = scmp.eq.s32.totalorder %s35, 1
      %p278 = scmp.ne.s32.totalorder %s273, %s275
      %p279 = scmp.eq.s32.totalorder %s35, 0
      %p280 = por %p278, %p279
      %p281 = scmp.ne.s32.totalorder %s273, %s275
      %p282 = scmp.eq.s32.totalorder %s40, 1
      %p283 = por %p281, %p282
      %p284 = scmp.ne.s32.totalorder %s275, %s276
      %p285 = scmp.eq.s32.totalorder %s40, 0
      %p286 = por %p284, %p285
      %p287 = scmp.ne.s32.totalorder %s275, %s276
      %p288 = scmp.eq.s32.totalorder %s41, 1
      %p289 = por %p287, %p288
      %p291 = scmp.ne.s32.totalorder %s276, %s290
      %p292 = scmp.eq.s32.totalorder %s41, 0
      %p293 = por %p291, %p292
      %s295 = sadd.s32 %s294, 1
      %p298 = scmp.eq.s32.totalorder %s35, 1
      %p299 = scmp.ne.s32.totalorder %s294, %s296
      %p300 = scmp.eq.s32.totalorder %s35, 0
      %p301 = por %p299, %p300
      %p302 = scmp.ne.s32.totalorder %s294, %s296
      %p303 = scmp.eq.s32.totalorder %s40, 1
      %p304 = por %p302, %p303
      %p305 = scmp.ne.s32.totalorder %s296, %s297
      %p306 = scmp.eq.s32.totalorder %s40, 0
      %p307 = por %p305, %p306
      %p308 = scmp.ne.s32.totalorder %s296, %s297
      %p309 = scmp.eq.s32.totalorder %s41, 1
      %p310 = por %p308, %p309
      %p312 = scmp.ne.s32.totalorder %s297, %s311
      %p313 = scmp.eq.s32.totalorder %s41, 0
      %p314 = por %p312, %p313
      %s316 = sadd.s32 %s315, 1
      %p319 = scmp.eq.s32.totalorder %s35, 1
      %p320 = scmp.ne.s32.totalorder %s315, %s317
      %p321 = scmp.eq.s32.totalorder %s35, 0
      %p322 = por %p320, %p321
      %p323 = scmp.ne.s32.totalorder %s315, %s317
      %p324 = scmp.eq.s32.totalorder %s40, 1
      %p325 = por %p323, %p324
      %p326 = scmp.ne.s32.totalorder %s317, %s318
      %p327 = scmp.eq.s32.totalorder %s40, 0
      %p328 = por %p326, %p327
      %p329 = scmp.ne.s32.totalorder %s317, %s318
      %p330 = scmp.eq.s32.totalorder %s41, 1
      %p331 = por %p329, %p330
      %p333 = scmp.ne.s32.totalorder %s318, %s332
      %p334 = scmp.eq.s32.totalorder %s41, 0
      %p335 = por %p333, %p334
      %s337 = sadd.s32 %s336, 1
      %p340 = scmp.eq.s32.totalorder %s35, 1
      %p341 = scmp.ne.s32.totalorder %s336, %s338
      %p342 = scmp.eq.s32.totalorder %s35, 0
      %p343 = por %p341, %p342
      %p344 = scmp.ne.s32.totalorder %s336, %s338
      %p345 = scmp.eq.s32.totalorder %s40, 1
      %p346 = por %p344, %p345
      %p347 = scmp.ne.s32.totalorder %s338, %s339
      %p348 = scmp.eq.s32.totalorder %s40, 0
      %p349 = por %p347, %p348
      %p350 = scmp.ne.s32.totalorder %s338, %s339
      %p351 = scmp.eq.s32.totalorder %s41, 1
      %p352 = por %p350, %p351
      %p354 = scmp.ne.s32.totalorder %s339, %s353
      %p355 = scmp.eq.s32.totalorder %s41, 0
      %p356 = por %p354, %p355
      %s357 = ssub.s32 %s35, %s42
      %p358 = scmp.eq.s32.totalorder %s357, 0
      %s360 = sadd.s32 %s359, 1
      %s361 = scalar_select %p358, %s359, %s360
      %p364 = pneg %p358
      %p365 = scmp.eq.s32.totalorder %s35, 1
      %p366 = por %p364, %p365
      %p367 = scmp.ne.s32.totalorder %s359, %s362
      %p368 = scmp.eq.s32.totalorder %s35, 0
      %p369 = por %p367, %p368
      %p370 = scmp.ne.s32.totalorder %s359, %s362
      %p371 = scmp.eq.s32.totalorder %s40, 1
      %p372 = por %p370, %p371
      %p373 = scmp.ne.s32.totalorder %s362, %s363
      %p374 = scmp.eq.s32.totalorder %s40, 0
      %p375 = por %p373, %p374
      %p376 = scmp.ne.s32.totalorder %s362, %s363
      %p377 = scmp.eq.s32.totalorder %s41, 1
      %p378 = por %p376, %p377
      %p380 = scmp.ne.s32.totalorder %s363, %s379
      %p381 = scmp.eq.s32.totalorder %s41, 0
      %p382 = por %p380, %p381
      %p383 = scmp.le.s32.totalorder 1, %s35
      %p384 = scmp.lt.s32.totalorder %s35, 3
      %p385 = pnand %p383, %p384
      %p386 = pneg %p385
      // Predicated region
      $region9: #{tpu_custom_call.1} parent=5 // pred_check
        _
      $region10: #{tpu_custom_call.1} parent=5 // pred_check_branch
        %388 = sbr.rel (%p385) target = $region12
      $region11: #{tpu_custom_call.1} parent=5 // pred_region
        %s389 = ssub.s32 %s35, 1
        // Predicated region
        $region13: #{tpu_custom_call.1} parent=11 // pred_check
          %p390 = pneg %p160
        $region14: #{tpu_custom_call.1} parent=11 // pred_check_branch
          %392 = sbr.rel (%p390) target = $region16
        $region15: #{tpu_custom_call.1} parent=11 // pred_region
          %s394 = ssub.s32 65536, 65536
          %395 = vsyncadd [#allocation9], %s394
          %s396 = sshll.u32 [#allocation10], 4
          %s397 = int_to_ptr.vmem [resolvable:$true] %s396
          %402 = dma.hbm_to_vmem [thread:$0]  %s4, 65536, %s397, [#allocation9], 64, 64, 4
        $region16: #{tpu_custom_call.1} parent=11 // pred_fallthru
          _
        // Predicated region
        $region17: #{tpu_custom_call.1} parent=11 // pred_check
          %p403 = pneg %p181
        $region18: #{tpu_custom_call.1} parent=11 // pred_check_branch
          %405 = sbr.rel (%p403) target = $region20
        $region19: #{tpu_custom_call.1} parent=11 // pred_region
          %s407 = ssub.s32 16, 16
          %408 = vsyncadd [#allocation12], %s407
          %s410 = sshll.u32 [#allocation11], 4
          %s411 = int_to_ptr.vmem [resolvable:$true] %s410
          %413 = dma.hbm_to_vmem [thread:$0]  %s5, 16, %s411, [#allocation12]
        $region20: #{tpu_custom_call.1} parent=11 // pred_fallthru
          _
        // Predicated region
        $region21: #{tpu_custom_call.1} parent=11 // pred_check
          %p414 = pneg %p202
        $region22: #{tpu_custom_call.1} parent=11 // pred_check_branch
          %416 = sbr.rel (%p414) target = $region24
        $region23: #{tpu_custom_call.1} parent=11 // pred_region
          %s418 = ssub.s32 32768, 32768
          %419 = vsyncadd [#allocation12], %s418
          %s420 = sshll.u32 [#allocation13], 4
          %s421 = int_to_ptr.vmem [resolvable:$true] %s420
          %426 = dma.hbm_to_vmem [thread:$0]  %s6, 32768, %s421, [#allocation12], 64, 64, 4
        $region24: #{tpu_custom_call.1} parent=11 // pred_fallthru
          _
        // Predicated region
        $region25: #{tpu_custom_call.1} parent=11 // pred_check
          %p427 = pneg %p223
        $region26: #{tpu_custom_call.1} parent=11 // pred_check_branch
          %429 = sbr.rel (%p427) target = $region28
        $region27: #{tpu_custom_call.1} parent=11 // pred_region
          %s431 = ssub.s32 16, 16
          %432 = vsyncadd [#allocation15], %s431
          %s434 = sshll.u32 [#allocation14], 4
          %s435 = int_to_ptr.vmem [resolvable:$true] %s434
          %437 = dma.hbm_to_vmem [thread:$0]  %s7, 16, %s435, [#allocation15]
        $region28: #{tpu_custom_call.1} parent=11 // pred_fallthru
          _
        // Predicated region
        $region29: #{tpu_custom_call.1} parent=11 // pred_check
          %p438 = pneg %p244
        $region30: #{tpu_custom_call.1} parent=11 // pred_check_branch
          %440 = sbr.rel (%p438) target = $region32
        $region31: #{tpu_custom_call.1} parent=11 // pred_region
          %s442 = ssub.s32 16384, 16384
          %443 = vsyncadd [#allocation15], %s442
          %s444 = sshll.u32 [#allocation16], 4
          %s445 = int_to_ptr.vmem [resolvable:$true] %s444
          %450 = dma.hbm_to_vmem [thread:$0]  %s8, 16384, %s445, [#allocation15], 64, 64, 4
        $region32: #{tpu_custom_call.1} parent=11 // pred_fallthru
          _
        // Predicated region
        $region33: #{tpu_custom_call.1} parent=11 // pred_check
          %p451 = pneg %p265
        $region34: #{tpu_custom_call.1} parent=11 // pred_check_branch
          %453 = sbr.rel (%p451) target = $region36
        $region35: #{tpu_custom_call.1} parent=11 // pred_region
          %s455 = ssub.s32 16, 16
          %456 = vsyncadd [#allocation18], %s455
          %s458 = sshll.u32 [#allocation17], 4
          %s459 = int_to_ptr.vmem [resolvable:$true] %s458
          %461 = dma.hbm_to_vmem [thread:$0]  %s9, 16, %s459, [#allocation18]
        $region36: #{tpu_custom_call.1} parent=11 // pred_fallthru
          _
        // Predicated region
        $region37: #{tpu_custom_call.1} parent=11 // pred_check
          %p462 = pneg %p286
        $region38: #{tpu_custom_call.1} parent=11 // pred_check_branch
          %464 = sbr.rel (%p462) target = $region40
        $region39: #{tpu_custom_call.1} parent=11 // pred_region
          %s466 = ssub.s32 8192, 8192
          %467 = vsyncadd [#allocation18], %s466
          %s468 = sshll.u32 [#allocation19], 4
          %s469 = int_to_ptr.vmem [resolvable:$true] %s468
          %474 = dma.hbm_to_vmem [thread:$0]  %s10, 8192, %s469, [#allocation18], 64, 64, 4
        $region40: #{tpu_custom_call.1} parent=11 // pred_fallthru
          _
        // Predicated region
        $region41: #{tpu_custom_call.1} parent=11 // pred_check
          %p475 = pneg %p307
        $region42: #{tpu_custom_call.1} parent=11 // pred_check_branch
          %477 = sbr.rel (%p475) target = $region44
        $region43: #{tpu_custom_call.1} parent=11 // pred_region
          %s479 = ssub.s32 16, 16
          %480 = vsyncadd [#allocation21], %s479
          %s482 = sshll.u32 [#allocation20], 4
          %s483 = int_to_ptr.vmem [resolvable:$true] %s482
          %485 = dma.hbm_to_vmem [thread:$0]  %s11, 16, %s483, [#allocation21]
        $region44: #{tpu_custom_call.1} parent=11 // pred_fallthru
          _
        // Predicated region
        $region45: #{tpu_custom_call.1} parent=11 // pred_check
          %p486 = pneg %p328
        $region46: #{tpu_custom_call.1} parent=11 // pred_check_branch
          %488 = sbr.rel (%p486) target = $region48
        $region47: #{tpu_custom_call.1} parent=11 // pred_region
          _
        $region48: #{tpu_custom_call.1} parent=11 // pred_fallthru
          _
        // Predicated region
        $region49: #{tpu_custom_call.1} parent=11 // pred_check
          %p489 = pneg %p349
        $region50: #{tpu_custom_call.1} parent=11 // pred_check_branch
          %491 = sbr.rel (%p489) target = $region52
        $region51: #{tpu_custom_call.1} parent=11 // pred_region
          _
        $region52: #{tpu_custom_call.1} parent=11 // pred_fallthru
          _
      $region12: #{tpu_custom_call.1} parent=5 // pred_fallthru
        _
      %p492 = scmp.lt.s32.totalorder %s35, 2
      // Predicated region
      $region53: #{tpu_custom_call.1} parent=5 // pred_check
        %p493 = pneg %p492
      $region54: #{tpu_custom_call.1} parent=5 // pred_check_branch
        %495 = sbr.rel (%p493) target = $region56
      $region55: #{tpu_custom_call.1} parent=5 // pred_region
        // Predicated region
        $region57: #{tpu_custom_call.1} parent=55 // pred_check
          %p496 = pneg %p55
        $region58: #{tpu_custom_call.1} parent=55 // pred_check_branch
          %498 = sbr.rel (%p496) target = $region60
        $region59: #{tpu_custom_call.1} parent=55 // pred_region
          %s499 = sand.u32 %s45, 1
          %s500 = scalar_lea.sflag [#allocation4], %s499
          %s501 = sand.u32 %s45, 1
          %s502 = smul.addr %s501, 512
          %s503 = scalar_lea.vmem [#allocation3], %s502
          %s505 = ssub.s32 8192, 8192
          %506 = vsyncadd %s500, %s505
          %s507 = smul.addr %s35, 64
          %s508 = smul.addr %s507, 128
          %s509 = scalar_lea.hbm %s0, %s508
          %s511 = sshll.u32 %s503, 4
          %s512 = int_to_ptr.vmem [resolvable:$true] %s511
          %514 = dma.hbm_to_vmem [thread:$0]  %s509, 8192, %s512, %s500
        $region60: #{tpu_custom_call.1} parent=55 // pred_fallthru
          _
        // Predicated region
        $region61: #{tpu_custom_call.1} parent=55 // pred_check
          %p515 = pneg %p81
        $region62: #{tpu_custom_call.1} parent=55 // pred_check_branch
          %517 = sbr.rel (%p515) target = $region64
        $region63: #{tpu_custom_call.1} parent=55 // pred_region
          %s518 = sand.u32 %s35, 1
          %s519 = scalar_lea.sflag [#allocation6], %s518
          %s520 = sand.u32 %s71, 1
          %s521 = smul.addr %s520, 256
          %s522 = scalar_lea.vmem [#allocation5], %s521
          %s524 = ssub.s32 4096, 4096
          %525 = vsyncadd %s519, %s524
          %s526 = smul.addr %s35, 32
          %s527 = smul.addr %s526, 128
          %s528 = scalar_lea.hbm %s1, %s527
          %s530 = sshll.u32 %s522, 4
          %s531 = int_to_ptr.vmem [resolvable:$true] %s530
          %533 = dma.hbm_to_vmem [thread:$0]  %s528, 4096, %s531, %s519
        $region64: #{tpu_custom_call.1} parent=55 // pred_fallthru
          _
        // Predicated region
        $region65: #{tpu_custom_call.1} parent=55 // pred_check
          %p534 = pneg %p107
        $region66: #{tpu_custom_call.1} parent=55 // pred_check_branch
          %536 = sbr.rel (%p534) target = $region68
        $region67: #{tpu_custom_call.1} parent=55 // pred_region
          %s537 = sand.u32 %s35, 1
          %s538 = scalar_lea.sflag [#allocation6], %s537
          %s539 = sand.u32 %s97, 1
          %s540 = smul.addr %s539, 128
          %s541 = scalar_lea.vmem [#allocation7], %s540
          %s543 = ssub.s32 2048, 2048
          %544 = vsyncadd %s538, %s543
          %s545 = smul.addr %s35, 16
          %s546 = smul.addr %s545, 128
          %s547 = scalar_lea.hbm %s2, %s546
          %s549 = sshll.u32 %s541, 4
          %s550 = int_to_ptr.vmem [resolvable:$true] %s549
          %552 = dma.hbm_to_vmem [thread:$0]  %s547, 2048, %s550, %s538
        $region68: #{tpu_custom_call.1} parent=55 // pred_fallthru
          _
        // Predicated region
        $region69: #{tpu_custom_call.1} parent=55 // pred_check
          %p553 = pneg %p133
        $region70: #{tpu_custom_call.1} parent=55 // pred_check_branch
          %555 = sbr.rel (%p553) target = $region72
        $region71: #{tpu_custom_call.1} parent=55 // pred_region
          %s556 = sand.u32 %s35, 1
          %s557 = scalar_lea.sflag [#allocation9], %s556
          %s558 = sand.u32 %s123, 1
          %s559 = smul.addr %s558, 64
          %s560 = scalar_lea.vmem [#allocation8], %s559
          %s562 = ssub.s32 1024, 1024
          %563 = vsyncadd %s557, %s562
          %s564 = smul.addr %s35, 8
          %s565 = smul.addr %s564, 128
          %s566 = scalar_lea.hbm %s3, %s565
          %s568 = sshll.u32 %s560, 4
          %s569 = int_to_ptr.vmem [resolvable:$true] %s568
          %571 = dma.hbm_to_vmem [thread:$0]  %s566, 1024, %s569, %s557
        $region72: #{tpu_custom_call.1} parent=55 // pred_fallthru
          _
      $region56: #{tpu_custom_call.1} parent=5 // pred_fallthru
        _
      %p572 = scmp.le.s32.totalorder 1, %s35
      %p573 = scmp.lt.s32.totalorder %s35, 3
      %p574 = pnand %p572, %p573
      %p575 = pneg %p574
      // Predicated region
      $region73: #{tpu_custom_call.1} parent=5 // pred_check
        _
      $region74: #{tpu_custom_call.1} parent=5 // pred_check_branch
        %577 = sbr.rel (%p574) target = $region76
      $region75: #{tpu_custom_call.1} parent=5 // pred_region
        %s578 = ssub.s32 %s35, 1
        %s579 = sand.u32 %s48, 1
        %s580 = scalar_lea.sflag [#allocation4], %s579
        %s581 = sand.u32 %s48, 1
        %s582 = smul.addr %s581, 512
        %s583 = scalar_lea.vmem [#allocation3], %s582
        // Predicated region
        $region77: #{tpu_custom_call.1} parent=75 // pred_check
          %p584 = pneg %p61
        $region78: #{tpu_custom_call.1} parent=75 // pred_check_branch
          %586 = sbr.rel (%p584) target = $region80
        $region79: #{tpu_custom_call.1} parent=75 // pred_region
          %587 = dma.done %s580, 8192
        $region80: #{tpu_custom_call.1} parent=75 // pred_fallthru
          _
        %s588 = sand.u32 %s40, 1
        %s589 = scalar_lea.sflag [#allocation6], %s588
        %s590 = sand.u32 %s74, 1
        %s591 = smul.addr %s590, 256
        %s592 = scalar_lea.vmem [#allocation5], %s591
        // Predicated region
        $region81: #{tpu_custom_call.1} parent=75 // pred_check
          %p593 = pneg %p87
        $region82: #{tpu_custom_call.1} parent=75 // pred_check_branch
          %595 = sbr.rel (%p593) target = $region84
        $region83: #{tpu_custom_call.1} parent=75 // pred_region
          %596 = dma.done %s589, 4096
        $region84: #{tpu_custom_call.1} parent=75 // pred_fallthru
          _
        %s597 = sand.u32 %s40, 1
        %s598 = scalar_lea.sflag [#allocation6], %s597
        %s599 = sand.u32 %s100, 1
        %s600 = smul.addr %s599, 128
        %s601 = scalar_lea.vmem [#allocation7], %s600
        // Predicated region
        $region85: #{tpu_custom_call.1} parent=75 // pred_check
          %p602 = pneg %p113
        $region86: #{tpu_custom_call.1} parent=75 // pred_check_branch
          %604 = sbr.rel (%p602) target = $region88
        $region87: #{tpu_custom_call.1} parent=75 // pred_region
          %605 = dma.done %s598, 2048
        $region88: #{tpu_custom_call.1} parent=75 // pred_fallthru
          _
        %s606 = sand.u32 %s40, 1
        %s607 = scalar_lea.sflag [#allocation9], %s606
        %s608 = sand.u32 %s126, 1
        %s609 = smul.addr %s608, 64
        %s610 = scalar_lea.vmem [#allocation8], %s609
        // Predicated region
        $region89: #{tpu_custom_call.1} parent=75 // pred_check
          %p611 = pneg %p139
        $region90: #{tpu_custom_call.1} parent=75 // pred_check_branch
          %613 = sbr.rel (%p611) target = $region92
        $region91: #{tpu_custom_call.1} parent=75 // pred_region
          %614 = dma.done %s607, 1024
        $region92: #{tpu_custom_call.1} parent=75 // pred_fallthru
          _
        // Predicated region
        $region93: #{tpu_custom_call.1} parent=75 // pred_check
          %p615 = pneg %p160
        $region94: #{tpu_custom_call.1} parent=75 // pred_check_branch
          %617 = sbr.rel (%p615) target = $region96
        $region95: #{tpu_custom_call.1} parent=75 // pred_region
          %618 = dma.done [#allocation9], 65536
        $region96: #{tpu_custom_call.1} parent=75 // pred_fallthru
          _
        // Predicated region
        $region97: #{tpu_custom_call.1} parent=75 // pred_check
          %p619 = pneg %p181
        $region98: #{tpu_custom_call.1} parent=75 // pred_check_branch
          %621 = sbr.rel (%p619) target = $region100
        $region99: #{tpu_custom_call.1} parent=75 // pred_region
          %622 = dma.done [#allocation12], 16
        $region100: #{tpu_custom_call.1} parent=75 // pred_fallthru
          _
        // Predicated region
        $region101: #{tpu_custom_call.1} parent=75 // pred_check
          %p623 = pneg %p202
        $region102: #{tpu_custom_call.1} parent=75 // pred_check_branch
          %625 = sbr.rel (%p623) target = $region104
        $region103: #{tpu_custom_call.1} parent=75 // pred_region
          %626 = dma.done [#allocation12], 32768
        $region104: #{tpu_custom_call.1} parent=75 // pred_fallthru
          _
        // Predicated region
        $region105: #{tpu_custom_call.1} parent=75 // pred_check
          %p627 = pneg %p223
        $region106: #{tpu_custom_call.1} parent=75 // pred_check_branch
          %629 = sbr.rel (%p627) target = $region108
        $region107: #{tpu_custom_call.1} parent=75 // pred_region
          %630 = dma.done [#allocation15], 16
        $region108: #{tpu_custom_call.1} parent=75 // pred_fallthru
          _
        // Predicated region
        $region109: #{tpu_custom_call.1} parent=75 // pred_check
          %p631 = pneg %p244
        $region110: #{tpu_custom_call.1} parent=75 // pred_check_branch
          %633 = sbr.rel (%p631) target = $region112
        $region111: #{tpu_custom_call.1} parent=75 // pred_region
          %634 = dma.done [#allocation15], 16384
        $region112: #{tpu_custom_call.1} parent=75 // pred_fallthru
          _
        // Predicated region
        $region113: #{tpu_custom_call.1} parent=75 // pred_check
          %p635 = pneg %p265
        $region114: #{tpu_custom_call.1} parent=75 // pred_check_branch
          %637 = sbr.rel (%p635) target = $region116
        $region115: #{tpu_custom_call.1} parent=75 // pred_region
          %638 = dma.done [#allocation18], 16
        $region116: #{tpu_custom_call.1} parent=75 // pred_fallthru
          _
        // Predicated region
        $region117: #{tpu_custom_call.1} parent=75 // pred_check
          %p639 = pneg %p286
        $region118: #{tpu_custom_call.1} parent=75 // pred_check_branch
          %641 = sbr.rel (%p639) target = $region120
        $region119: #{tpu_custom_call.1} parent=75 // pred_region
          %642 = dma.done [#allocation18], 8192
        $region120: #{tpu_custom_call.1} parent=75 // pred_fallthru
          _
        // Predicated region
        $region121: #{tpu_custom_call.1} parent=75 // pred_check
          %p643 = pneg %p307
        $region122: #{tpu_custom_call.1} parent=75 // pred_check_branch
          %645 = sbr.rel (%p643) target = $region124
        $region123: #{tpu_custom_call.1} parent=75 // pred_region
          %646 = dma.done [#allocation21], 16
        $region124: #{tpu_custom_call.1} parent=75 // pred_fallthru
          _
        %s647 = sand.u32 %s48, 1
        %s648 = scalar_lea.sflag [#allocation4], %s647
        %s649 = sand.u32 %s48, 1
        %s650 = smul.addr %s649, 512
        %s651 = scalar_lea.vmem [#allocation3], %s650
        %p652 = pneg %p61
        %p653 = pneg %p58
        %s654 = sand.u32 %s40, 1
        %s655 = scalar_lea.sflag [#allocation6], %s654
        %s656 = sand.u32 %s74, 1
        %s657 = smul.addr %s656, 256
        %s658 = scalar_lea.vmem [#allocation5], %s657
        %p659 = pneg %p87
        %p660 = pneg %p84
        %s661 = sand.u32 %s40, 1
        %s662 = scalar_lea.sflag [#allocation6], %s661
        %s663 = sand.u32 %s100, 1
        %s664 = smul.addr %s663, 128
        %s665 = scalar_lea.vmem [#allocation7], %s664
        %p666 = pneg %p113
        %p667 = pneg %p110
        %s668 = sand.u32 %s40, 1
        %s669 = scalar_lea.sflag [#allocation9], %s668
        %s670 = sand.u32 %s126, 1
        %s671 = smul.addr %s670, 64
        %s672 = scalar_lea.vmem [#allocation8], %s671
        %p673 = pneg %p139
        %p674 = pneg %p136
        %p675 = pneg %p160
        %p676 = pneg %p157
        %p677 = pneg %p181
        %p678 = pneg %p178
        %p679 = pneg %p202
        %p680 = pneg %p199
        %p681 = pneg %p223
        %p682 = pneg %p220
        %p683 = pneg %p244
        %p684 = pneg %p241
        %p685 = pneg %p265
        %p686 = pneg %p262
        %p687 = pneg %p286
        %p688 = pneg %p283
        %p689 = pneg %p307
        %p690 = pneg %p304
        %p691 = pneg %p328
        %p692 = pneg %p325
        %p693 = pneg %p349
        %p694 = pneg %p346
        %p695 = pneg %p375
        %p696 = pneg %p372
        %p697 = scmp.lt.s32.totalorder %s40, 1
        %s698 = scalar_select %p697, %s40, 1
        %s699 = smul.addr %s698, 8
        %s700 = scalar_lea.vmem %s14, %s699
        %p701 = scmp.lt.s32.totalorder %s40, 1
        %s702 = scalar_select %p701, %s40, 1
        %s703 = smul.addr %s702, 8
        %s704 = scalar_lea.vmem %s14, %s703
        %v706 = vld [vmem:[#allocation2] sm:$0x1]
        %v707 = vld [vmem:[%s583] sm:$0xff]
        %v708 = vld [vmem:[%s583 + $0x8] sm:$0xff]
        %v709 = vld [vmem:[%s583 + $0x10] sm:$0xff]
        %v710 = vld [vmem:[%s583 + $0x18] sm:$0xff]
        %v711 = vld [vmem:[%s583 + $0x20] sm:$0xff]
        %v712 = vld [vmem:[%s583 + $0x28] sm:$0xff]
        %v713 = vld [vmem:[%s583 + $0x30] sm:$0xff]
        %v714 = vld [vmem:[%s583 + $0x38] sm:$0xff]
        %v715 = vld [vmem:[%s583 + $0x40] sm:$0xff]
        %v716 = vld [vmem:[%s583 + $0x48] sm:$0xff]
        %v717 = vld [vmem:[%s583 + $0x50] sm:$0xff]
        %v718 = vld [vmem:[%s583 + $0x58] sm:$0xff]
        %v719 = vld [vmem:[%s583 + $0x60] sm:$0xff]
        %v720 = vld [vmem:[%s583 + $0x68] sm:$0xff]
        %v721 = vld [vmem:[%s583 + $0x70] sm:$0xff]
        %v722 = vld [vmem:[%s583 + $0x78] sm:$0xff]
        %v723 = vld [vmem:[%s583 + $0x80] sm:$0xff]
        %v724 = vld [vmem:[%s583 + $0x88] sm:$0xff]
        %v725 = vld [vmem:[%s583 + $0x90] sm:$0xff]
        %v726 = vld [vmem:[%s583 + $0x98] sm:$0xff]
        %v727 = vld [vmem:[%s583 + $0xa0] sm:$0xff]
        %v728 = vld [vmem:[%s583 + $0xa8] sm:$0xff]
        %v729 = vld [vmem:[%s583 + $0xb0] sm:$0xff]
        %v730 = vld [vmem:[%s583 + $0xb8] sm:$0xff]
        %v731 = vld [vmem:[%s583 + $0xc0] sm:$0xff]
        %v732 = vld [vmem:[%s583 + $0xc8] sm:$0xff]
        %v733 = vld [vmem:[%s583 + $0xd0] sm:$0xff]
        %v734 = vld [vmem:[%s583 + $0xd8] sm:$0xff]
        %v735 = vld [vmem:[%s583 + $0xe0] sm:$0xff]
        %v736 = vld [vmem:[%s583 + $0xe8] sm:$0xff]
        %v737 = vld [vmem:[%s583 + $0xf0] sm:$0xff]
        %v738 = vld [vmem:[%s583 + $0xf8] sm:$0xff]
        %v739 = vld [vmem:[%s583 + $0x100] sm:$0xff]
        %v740 = vld [vmem:[%s583 + $0x108] sm:$0xff]
        %v741 = vld [vmem:[%s583 + $0x110] sm:$0xff]
        %v742 = vld [vmem:[%s583 + $0x118] sm:$0xff]
        %v743 = vld [vmem:[%s583 + $0x120] sm:$0xff]
        %v744 = vld [vmem:[%s583 + $0x128] sm:$0xff]
        %v745 = vld [vmem:[%s583 + $0x130] sm:$0xff]
        %v746 = vld [vmem:[%s583 + $0x138] sm:$0xff]
        %v747 = vld [vmem:[%s583 + $0x140] sm:$0xff]
        %v748 = vld [vmem:[%s583 + $0x148] sm:$0xff]
        %v749 = vld [vmem:[%s583 + $0x150] sm:$0xff]
        %v750 = vld [vmem:[%s583 + $0x158] sm:$0xff]
        %v751 = vld [vmem:[%s583 + $0x160] sm:$0xff]
        %v752 = vld [vmem:[%s583 + $0x168] sm:$0xff]
        %v753 = vld [vmem:[%s583 + $0x170] sm:$0xff]
        %v754 = vld [vmem:[%s583 + $0x178] sm:$0xff]
        %v755 = vld [vmem:[%s583 + $0x180] sm:$0xff]
        %v756 = vld [vmem:[%s583 + $0x188] sm:$0xff]
        %v757 = vld [vmem:[%s583 + $0x190] sm:$0xff]
        %v758 = vld [vmem:[%s583 + $0x198] sm:$0xff]
        %v759 = vld [vmem:[%s583 + $0x1a0] sm:$0xff]
        %v760 = vld [vmem:[%s583 + $0x1a8] sm:$0xff]
        %v761 = vld [vmem:[%s583 + $0x1b0] sm:$0xff]
        %v762 = vld [vmem:[%s583 + $0x1b8] sm:$0xff]
        %v763 = vld [vmem:[%s583 + $0x1c0] sm:$0xff]
        %v764 = vld [vmem:[%s583 + $0x1c8] sm:$0xff]
        %v765 = vld [vmem:[%s583 + $0x1d0] sm:$0xff]
        %v766 = vld [vmem:[%s583 + $0x1d8] sm:$0xff]
        %v767 = vld [vmem:[%s583 + $0x1e0] sm:$0xff]
        %v768 = vld [vmem:[%s583 + $0x1e8] sm:$0xff]
        %v769 = vld [vmem:[%s583 + $0x1f0] sm:$0xff]
        %v770 = vld [vmem:[%s583 + $0x1f8] sm:$0xff]
        %v771 = vpack.c.bf16 %v707, %v707
        %v772 = vpack.c.bf16 %v708, %v708
        %v773 = vpack.c.bf16 %v709, %v709
        %v774 = vpack.c.bf16 %v710, %v710
        %v775 = vpack.c.bf16 %v711, %v711
        %v776 = vpack.c.bf16 %v712, %v712
        %v777 = vpack.c.bf16 %v713, %v713
        %v778 = vpack.c.bf16 %v714, %v714
        %v779 = vpack.c.bf16 %v715, %v715
        %v780 = vpack.c.bf16 %v716, %v716
        %v781 = vpack.c.bf16 %v717, %v717
        %v782 = vpack.c.bf16 %v718, %v718
        %v783 = vpack.c.bf16 %v719, %v719
        %v784 = vpack.c.bf16 %v720, %v720
        %v785 = vpack.c.bf16 %v721, %v721
        %v786 = vpack.c.bf16 %v722, %v722
        %v787 = vpack.c.bf16 %v723, %v723
        %v788 = vpack.c.bf16 %v724, %v724
        %v789 = vpack.c.bf16 %v725, %v725
        %v790 = vpack.c.bf16 %v726, %v726
        %v791 = vpack.c.bf16 %v727, %v727
        %v792 = vpack.c.bf16 %v728, %v728
        %v793 = vpack.c.bf16 %v729, %v729
        %v794 = vpack.c.bf16 %v730, %v730
        %v795 = vpack.c.bf16 %v731, %v731
        %v796 = vpack.c.bf16 %v732, %v732
        %v797 = vpack.c.bf16 %v733, %v733
        %v798 = vpack.c.bf16 %v734, %v734
        %v799 = vpack.c.bf16 %v735, %v735
        %v800 = vpack.c.bf16 %v736, %v736
        %v801 = vpack.c.bf16 %v737, %v737
        %v802 = vpack.c.bf16 %v738, %v738
        %v803 = vpack.c.bf16 %v739, %v739
        %v804 = vpack.c.bf16 %v740, %v740
        %v805 = vpack.c.bf16 %v741, %v741
        %v806 = vpack.c.bf16 %v742, %v742
        %v807 = vpack.c.bf16 %v743, %v743
        %v808 = vpack.c.bf16 %v744, %v744
        %v809 = vpack.c.bf16 %v745, %v745
        %v810 = vpack.c.bf16 %v746, %v746
        %v811 = vpack.c.bf16 %v747, %v747
        %v812 = vpack.c.bf16 %v748, %v748
        %v813 = vpack.c.bf16 %v749, %v749
        %v814 = vpack.c.bf16 %v750, %v750
        %v815 = vpack.c.bf16 %v751, %v751
        %v816 = vpack.c.bf16 %v752, %v752
        %v817 = vpack.c.bf16 %v753, %v753
        %v818 = vpack.c.bf16 %v754, %v754
        %v819 = vpack.c.bf16 %v755, %v755
        %v820 = vpack.c.bf16 %v756, %v756
        %v821 = vpack.c.bf16 %v757, %v757
        %v822 = vpack.c.bf16 %v758, %v758
        %v823 = vpack.c.bf16 %v759, %v759
        %v824 = vpack.c.bf16 %v760, %v760
        %v825 = vpack.c.bf16 %v761, %v761
        %v826 = vpack.c.bf16 %v762, %v762
        %v827 = vpack.c.bf16 %v763, %v763
        %v828 = vpack.c.bf16 %v764, %v764
        %v829 = vpack.c.bf16 %v765, %v765
        %v830 = vpack.c.bf16 %v766, %v766
        %v831 = vpack.c.bf16 %v767, %v767
        %v832 = vpack.c.bf16 %v768, %v768
        %v833 = vpack.c.bf16 %v769, %v769
        %v834 = vpack.c.bf16 %v770, %v770
        %v835 = vld [vmem:[#allocation10] sm:$0xf]
        %v836 = vld [vmem:[#allocation10 + $0x4] sm:$0xf]
        %v837 = vld [vmem:[#allocation10 + $0x8] sm:$0xf]
        %v838 = vld [vmem:[#allocation10 + $0xc] sm:$0xf]
        %v839 = vld [vmem:[#allocation10 + $0x10] sm:$0xf]
        %v840 = vld [vmem:[#allocation10 + $0x14] sm:$0xf]
        %v841 = vld [vmem:[#allocation10 + $0x18] sm:$0xf]
        %v842 = vld [vmem:[#allocation10 + $0x1c] sm:$0xf]
        %v843 = vld [vmem:[#allocation10 + $0x20] sm:$0xf]
        %v844 = vld [vmem:[#allocation10 + $0x24] sm:$0xf]
        %v845 = vld [vmem:[#allocation10 + $0x28] sm:$0xf]
        %v846 = vld [vmem:[#allocation10 + $0x2c] sm:$0xf]
        %v847 = vld [vmem:[#allocation10 + $0x30] sm:$0xf]
        %v848 = vld [vmem:[#allocation10 + $0x34] sm:$0xf]
        %v849 = vld [vmem:[#allocation10 + $0x38] sm:$0xf]
        %v850 = vld [vmem:[#allocation10 + $0x3c] sm:$0xf]
        %v851 = vld [vmem:[#allocation10 + $0x40] sm:$0xf]
        %v852 = vld [vmem:[#allocation10 + $0x44] sm:$0xf]
        %v853 = vld [vmem:[#allocation10 + $0x48] sm:$0xf]
        %v854 = vld [vmem:[#allocation10 + $0x4c] sm:$0xf]
        %v855 = vld [vmem:[#allocation10 + $0x50] sm:$0xf]
        %v856 = vld [vmem:[#allocation10 + $0x54] sm:$0xf]
        %v857 = vld [vmem:[#allocation10 + $0x58] sm:$0xf]
        %v858 = vld [vmem:[#allocation10 + $0x5c] sm:$0xf]
        %v859 = vld [vmem:[#allocation10 + $0x60] sm:$0xf]
        %v860 = vld [vmem:[#allocation10 + $0x64] sm:$0xf]
        %v861 = vld [vmem:[#allocation10 + $0x68] sm:$0xf]
        %v862 = vld [vmem:[#allocation10 + $0x6c] sm:$0xf]
        %v863 = vld [vmem:[#allocation10 + $0x70] sm:$0xf]
        %v864 = vld [vmem:[#allocation10 + $0x74] sm:$0xf]
        %v865 = vld [vmem:[#allocation10 + $0x78] sm:$0xf]
        %v866 = vld [vmem:[#allocation10 + $0x7c] sm:$0xf]
        %v867 = vld [vmem:[#allocation10 + $0x80] sm:$0xf]
        %v868 = vld [vmem:[#allocation10 + $0x84] sm:$0xf]
        %v869 = vld [vmem:[#allocation10 + $0x88] sm:$0xf]
        %v870 = vld [vmem:[#allocation10 + $0x8c] sm:$0xf]
        %v871 = vld [vmem:[#allocation10 + $0x90] sm:$0xf]
        %v872 = vld [vmem:[#allocation10 + $0x94] sm:$0xf]
        %v873 = vld [vmem:[#allocation10 + $0x98] sm:$0xf]
        %v874 = vld [vmem:[#allocation10 + $0x9c] sm:$0xf]
        %v875 = vld [vmem:[#allocation10 + $0xa0] sm:$0xf]
        %v876 = vld [vmem:[#allocation10 + $0xa4] sm:$0xf]
        %v877 = vld [vmem:[#allocation10 + $0xa8] sm:$0xf]
        %v878 = vld [vmem:[#allocation10 + $0xac] sm:$0xf]
        %v879 = vld [vmem:[#allocation10 + $0xb0] sm:$0xf]
        %v880 = vld [vmem:[#allocation10 + $0xb4] sm:$0xf]
        %v881 = vld [vmem:[#allocation10 + $0xb8] sm:$0xf]
        %v882 = vld [vmem:[#allocation10 + $0xbc] sm:$0xf]
        %v883 = vld [vmem:[#allocation10 + $0xc0] sm:$0xf]
        %v884 = vld [vmem:[#allocation10 + $0xc4] sm:$0xf]
        %v885 = vld [vmem:[#allocation10 + $0xc8] sm:$0xf]
        %v886 = vld [vmem:[#allocation10 + $0xcc] sm:$0xf]
        %v887 = vld [vmem:[#allocation10 + $0xd0] sm:$0xf]
        %v888 = vld [vmem:[#allocation10 + $0xd4] sm:$0xf]
        %v889 = vld [vmem:[#allocation10 + $0xd8] sm:$0xf]
        %v890 = vld [vmem:[#allocation10 + $0xdc] sm:$0xf]
        %v891 = vld [vmem:[#allocation10 + $0xe0] sm:$0xf]
        %v892 = vld [vmem:[#allocation10 + $0xe4] sm:$0xf]
        %v893 = vld [vmem:[#allocation10 + $0xe8] sm:$0xf]
        %v894 = vld [vmem:[#allocation10 + $0xec] sm:$0xf]
        %v895 = vld [vmem:[#allocation10 + $0xf0] sm:$0xf]
        %v896 = vld [vmem:[#allocation10 + $0xf4] sm:$0xf]
        %v897 = vld [vmem:[#allocation10 + $0xf8] sm:$0xf]
        %v898 = vld [vmem:[#allocation10 + $0xfc] sm:$0xf]
        %v899 = vld [vmem:[#allocation10 + $0x100] sm:$0xf]
        %v900 = vld [vmem:[#allocation10 + $0x104] sm:$0xf]
        %v901 = vld [vmem:[#allocation10 + $0x108] sm:$0xf]
        %v902 = vld [vmem:[#allocation10 + $0x10c] sm:$0xf]
        %v903 = vld [vmem:[#allocation10 + $0x110] sm:$0xf]
        %v904 = vld [vmem:[#allocation10 + $0x114] sm:$0xf]
        %v905 = vld [vmem:[#allocation10 + $0x118] sm:$0xf]
        %v906 = vld [vmem:[#allocation10 + $0x11c] sm:$0xf]
        %v907 = vld [vmem:[#allocation10 + $0x120] sm:$0xf]
        %v908 = vld [vmem:[#allocation10 + $0x124] sm:$0xf]
        %v909 = vld [vmem:[#allocation10 + $0x128] sm:$0xf]
        %v910 = vld [vmem:[#allocation10 + $0x12c] sm:$0xf]
        %v911 = vld [vmem:[#allocation10 + $0x130] sm:$0xf]
        %v912 = vld [vmem:[#allocation10 + $0x134] sm:$0xf]
        %v913 = vld [vmem:[#allocation10 + $0x138] sm:$0xf]
        %v914 = vld [vmem:[#allocation10 + $0x13c] sm:$0xf]
        %v915 = vld [vmem:[#allocation10 + $0x140] sm:$0xf]
        %v916 = vld [vmem:[#allocation10 + $0x144] sm:$0xf]
        %v917 = vld [vmem:[#allocation10 + $0x148] sm:$0xf]
        %v918 = vld [vmem:[#allocation10 + $0x14c] sm:$0xf]
        %v919 = vld [vmem:[#allocation10 + $0x150] sm:$0xf]
        %v920 = vld [vmem:[#allocation10 + $0x154] sm:$0xf]
        %v921 = vld [vmem:[#allocation10 + $0x158] sm:$0xf]
        %v922 = vld [vmem:[#allocation10 + $0x15c] sm:$0xf]
        %v923 = vld [vmem:[#allocation10 + $0x160] sm:$0xf]
        %v924 = vld [vmem:[#allocation10 + $0x164] sm:$0xf]
        %v925 = vld [vmem:[#allocation10 + $0x168] sm:$0xf]
        %v926 = vld [vmem:[#allocation10 + $0x16c] sm:$0xf]
        %v927 = vld [vmem:[#allocation10 + $0x170] sm:$0xf]
        %v928 = vld [vmem:[#allocation10 + $0x174] sm:$0xf]
        %v929 = vld [vmem:[#allocation10 + $0x178] sm:$0xf]
        %v930 = vld [vmem:[#allocation10 + $0x17c] sm:$0xf]
        %v931 = vld [vmem:[#allocation10 + $0x180] sm:$0xf]
        %v932 = vld [vmem:[#allocation10 + $0x184] sm:$0xf]
        %v933 = vld [vmem:[#allocation10 + $0x188] sm:$0xf]
        %v934 = vld [vmem:[#allocation10 + $0x18c] sm:$0xf]
        %v935 = vld [vmem:[#allocation10 + $0x190] sm:$0xf]
        %v936 = vld [vmem:[#allocation10 + $0x194] sm:$0xf]
        %v937 = vld [vmem:[#allocation10 + $0x198] sm:$0xf]
        %v938 = vld [vmem:[#allocation10 + $0x19c] sm:$0xf]
        %v939 = vld [vmem:[#allocation10 + $0x1a0] sm:$0xf]
        %v940 = vld [vmem:[#allocation10 + $0x1a4] sm:$0xf]
        %v941 = vld [vmem:[#allocation10 + $0x1a8] sm:$0xf]
        %v942 = vld [vmem:[#allocation10 + $0x1ac] sm:$0xf]
        %v943 = vld [vmem:[#allocation10 + $0x1b0] sm:$0xf]
        %v944 = vld [vmem:[#allocation10 + $0x1b4] sm:$0xf]
        %v945 = vld [vmem:[#allocation10 + $0x1b8] sm:$0xf]
        %v946 = vld [vmem:[#allocation10 + $0x1bc] sm:$0xf]
        %v947 = vld [vmem:[#allocation10 + $0x1c0] sm:$0xf]
        %v948 = vld [vmem:[#allocation10 + $0x1c4] sm:$0xf]
        %v949 = vld [vmem:[#allocation10 + $0x1c8] sm:$0xf]
        %v950 = vld [vmem:[#allocation10 + $0x1cc] sm:$0xf]
        %v951 = vld [vmem:[#allocation10 + $0x1d0] sm:$0xf]
        %v952 = vld [vmem:[#allocation10 + $0x1d4] sm:$0xf]
        %v953 = vld [vmem:[#allocation10 + $0x1d8] sm:$0xf]
        %v954 = vld [vmem:[#allocation10 + $0x1dc] sm:$0xf]
        %v955 = vld [vmem:[#allocation10 + $0x1e0] sm:$0xf]
        %v956 = vld [vmem:[#allocation10 + $0x1e4] sm:$0xf]
        %v957 = vld [vmem:[#allocation10 + $0x1e8] sm:$0xf]
        %v958 = vld [vmem:[#allocation10 + $0x1ec] sm:$0xf]
        %v959 = vld [vmem:[#allocation10 + $0x1f0] sm:$0xf]
        %v960 = vld [vmem:[#allocation10 + $0x1f4] sm:$0xf]
        %v961 = vld [vmem:[#allocation10 + $0x1f8] sm:$0xf]
        %v962 = vld [vmem:[#allocation10 + $0x1fc] sm:$0xf]
        %v963 = vld [vmem:[#allocation10 + $0x200] sm:$0xf]
        %v964 = vld [vmem:[#allocation10 + $0x204] sm:$0xf]
        %v965 = vld [vmem:[#allocation10 + $0x208] sm:$0xf]
        %v966 = vld [vmem:[#allocation10 + $0x20c] sm:$0xf]
        %v967 = vld [vmem:[#allocation10 + $0x210] sm:$0xf]
        %v968 = vld [vmem:[#allocation10 + $0x214] sm:$0xf]
        %v969 = vld [vmem:[#allocation10 + $0x218] sm:$0xf]
        %v970 = vld [vmem:[#allocation10 + $0x21c] sm:$0xf]
        %v971 = vld [vmem:[#allocation10 + $0x220] sm:$0xf]
        %v972 = vld [vmem:[#allocation10 + $0x224] sm:$0xf]
        %v973 = vld [vmem:[#allocation10 + $0x228] sm:$0xf]
        %v974 = vld [vmem:[#allocation10 + $0x22c] sm:$0xf]
        %v975 = vld [vmem:[#allocation10 + $0x230] sm:$0xf]
        %v976 = vld [vmem:[#allocation10 + $0x234] sm:$0xf]
        %v977 = vld [vmem:[#allocation10 + $0x238] sm:$0xf]
        %v978 = vld [vmem:[#allocation10 + $0x23c] sm:$0xf]
        %v979 = vld [vmem:[#allocation10 + $0x240] sm:$0xf]
        %v980 = vld [vmem:[#allocation10 + $0x244] sm:$0xf]
        %v981 = vld [vmem:[#allocation10 + $0x248] sm:$0xf]
        %v982 = vld [vmem:[#allocation10 + $0x24c] sm:$0xf]
        %v983 = vld [vmem:[#allocation10 + $0x250] sm:$0xf]
        %v984 = vld [vmem:[#allocation10 + $0x254] sm:$0xf]
        %v985 = vld [vmem:[#allocation10 + $0x258] sm:$0xf]
        %v986 = vld [vmem:[#allocation10 + $0x25c] sm:$0xf]
        %v987 = vld [vmem:[#allocation10 + $0x260] sm:$0xf]
        %v988 = vld [vmem:[#allocation10 + $0x264] sm:$0xf]
        %v989 = vld [vmem:[#allocation10 + $0x268] sm:$0xf]
        %v990 = vld [vmem:[#allocation10 + $0x26c] sm:$0xf]
        %v991 = vld [vmem:[#allocation10 + $0x270] sm:$0xf]
        %v992 = vld [vmem:[#allocation10 + $0x274] sm:$0xf]
        %v993 = vld [vmem:[#allocation10 + $0x278] sm:$0xf]
        %v994 = vld [vmem:[#allocation10 + $0x27c] sm:$0xf]
        %v995 = vld [vmem:[#allocation10 + $0x280] sm:$0xf]
        %v996 = vld [vmem:[#allocation10 + $0x284] sm:$0xf]
        %v997 = vld [vmem:[#allocation10 + $0x288] sm:$0xf]
        %v998 = vld [vmem:[#allocation10 + $0x28c] sm:$0xf]
        %v999 = vld [vmem:[#allocation10 + $0x290] sm:$0xf]
        %v1000 = vld [vmem:[#allocation10 + $0x294] sm:$0xf]
        %v1001 = vld [vmem:[#allocation10 + $0x298] sm:$0xf]
        %v1002 = vld [vmem:[#allocation10 + $0x29c] sm:$0xf]
        %v1003 = vld [vmem:[#allocation10 + $0x2a0] sm:$0xf]
        %v1004 = vld [vmem:[#allocation10 + $0x2a4] sm:$0xf]
        %v1005 = vld [vmem:[#allocation10 + $0x2a8] sm:$0xf]
        %v1006 = vld [vmem:[#allocation10 + $0x2ac] sm:$0xf]
        %v1007 = vld [vmem:[#allocation10 + $0x2b0] sm:$0xf]
        %v1008 = vld [vmem:[#allocation10 + $0x2b4] sm:$0xf]
        %v1009 = vld [vmem:[#allocation10 + $0x2b8] sm:$0xf]
        %v1010 = vld [vmem:[#allocation10 + $0x2bc] sm:$0xf]
        %v1011 = vld [vmem:[#allocation10 + $0x2c0] sm:$0xf]
        %v1012 = vld [vmem:[#allocation10 + $0x2c4] sm:$0xf]
        %v1013 = vld [vmem:[#allocation10 + $0x2c8] sm:$0xf]
        %v1014 = vld [vmem:[#allocation10 + $0x2cc] sm:$0xf]
        %v1015 = vld [vmem:[#allocation10 + $0x2d0] sm:$0xf]
        %v1016 = vld [vmem:[#allocation10 + $0x2d4] sm:$0xf]
        %v1017 = vld [vmem:[#allocation10 + $0x2d8] sm:$0xf]
        %v1018 = vld [vmem:[#allocation10 + $0x2dc] sm:$0xf]
        %v1019 = vld [vmem:[#allocation10 + $0x2e0] sm:$0xf]
        %v1020 = vld [vmem:[#allocation10 + $0x2e4] sm:$0xf]
        %v1021 = vld [vmem:[#allocation10 + $0x2e8] sm:$0xf]
        %v1022 = vld [vmem:[#allocation10 + $0x2ec] sm:$0xf]
        %v1023 = vld [vmem:[#allocation10 + $0x2f0] sm:$0xf]
        %v1024 = vld [vmem:[#allocation10 + $0x2f4] sm:$0xf]
        %v1025 = vld [vmem:[#allocation10 + $0x2f8] sm:$0xf]
        %v1026 = vld [vmem:[#allocation10 + $0x2fc] sm:$0xf]
        %v1027 = vld [vmem:[#allocation10 + $0x300] sm:$0xf]
        %v1028 = vld [vmem:[#allocation10 + $0x304] sm:$0xf]
        %v1029 = vld [vmem:[#allocation10 + $0x308] sm:$0xf]
        %v1030 = vld [vmem:[#allocation10 + $0x30c] sm:$0xf]
        %v1031 = vld [vmem:[#allocation10 + $0x310] sm:$0xf]
        %v1032 = vld [vmem:[#allocation10 + $0x314] sm:$0xf]
        %v1033 = vld [vmem:[#allocation10 + $0x318] sm:$0xf]
        %v1034 = vld [vmem:[#allocation10 + $0x31c] sm:$0xf]
        %v1035 = vld [vmem:[#allocation10 + $0x320] sm:$0xf]
        %v1036 = vld [vmem:[#allocation10 + $0x324] sm:$0xf]
        %v1037 = vld [vmem:[#allocation10 + $0x328] sm:$0xf]
        %v1038 = vld [vmem:[#allocation10 + $0x32c] sm:$0xf]
        %v1039 = vld [vmem:[#allocation10 + $0x330] sm:$0xf]
        %v1040 = vld [vmem:[#allocation10 + $0x334] sm:$0xf]
        %v1041 = vld [vmem:[#allocation10 + $0x338] sm:$0xf]
        %v1042 = vld [vmem:[#allocation10 + $0x33c] sm:$0xf]
        %v1043 = vld [vmem:[#allocation10 + $0x340] sm:$0xf]
        %v1044 = vld [vmem:[#allocation10 + $0x344] sm:$0xf]
        %v1045 = vld [vmem:[#allocation10 + $0x348] sm:$0xf]
        %v1046 = vld [vmem:[#allocation10 + $0x34c] sm:$0xf]
        %v1047 = vld [vmem:[#allocation10 + $0x350] sm:$0xf]
        %v1048 = vld [vmem:[#allocation10 + $0x354] sm:$0xf]
        %v1049 = vld [vmem:[#allocation10 + $0x358] sm:$0xf]
        %v1050 = vld [vmem:[#allocation10 + $0x35c] sm:$0xf]
        %v1051 = vld [vmem:[#allocation10 + $0x360] sm:$0xf]
        %v1052 = vld [vmem:[#allocation10 + $0x364] sm:$0xf]
        %v1053 = vld [vmem:[#allocation10 + $0x368] sm:$0xf]
        %v1054 = vld [vmem:[#allocation10 + $0x36c] sm:$0xf]
        %v1055 = vld [vmem:[#allocation10 + $0x370] sm:$0xf]
        %v1056 = vld [vmem:[#allocation10 + $0x374] sm:$0xf]
        %v1057 = vld [vmem:[#allocation10 + $0x378] sm:$0xf]
        %v1058 = vld [vmem:[#allocation10 + $0x37c] sm:$0xf]
        %v1059 = vld [vmem:[#allocation10 + $0x380] sm:$0xf]
        %v1060 = vld [vmem:[#allocation10 + $0x384] sm:$0xf]
        %v1061 = vld [vmem:[#allocation10 + $0x388] sm:$0xf]
        %v1062 = vld [vmem:[#allocation10 + $0x38c] sm:$0xf]
        %v1063 = vld [vmem:[#allocation10 + $0x390] sm:$0xf]
        %v1064 = vld [vmem:[#allocation10 + $0x394] sm:$0xf]
        %v1065 = vld [vmem:[#allocation10 + $0x398] sm:$0xf]
        %v1066 = vld [vmem:[#allocation10 + $0x39c] sm:$0xf]
        %v1067 = vld [vmem:[#allocation10 + $0x3a0] sm:$0xf]
        %v1068 = vld [vmem:[#allocation10 + $0x3a4] sm:$0xf]
        %v1069 = vld [vmem:[#allocation10 + $0x3a8] sm:$0xf]
        %v1070 = vld [vmem:[#allocation10 + $0x3ac] sm:$0xf]
        %v1071 = vld [vmem:[#allocation10 + $0x3b0] sm:$0xf]
        %v1072 = vld [vmem:[#allocation10 + $0x3b4] sm:$0xf]
        %v1073 = vld [vmem:[#allocation10 + $0x3b8] sm:$0xf]
        %v1074 = vld [vmem:[#allocation10 + $0x3bc] sm:$0xf]
        %v1075 = vld [vmem:[#allocation10 + $0x3c0] sm:$0xf]
        %v1076 = vld [vmem:[#allocation10 + $0x3c4] sm:$0xf]
        %v1077 = vld [vmem:[#allocation10 + $0x3c8] sm:$0xf]
        %v1078 = vld [vmem:[#allocation10 + $0x3cc] sm:$0xf]
        %v1079 = vld [vmem:[#allocation10 + $0x3d0] sm:$0xf]
        %v1080 = vld [vmem:[#allocation10 + $0x3d4] sm:$0xf]
        %v1081 = vld [vmem:[#allocation10 + $0x3d8] sm:$0xf]
        %v1082 = vld [vmem:[#allocation10 + $0x3dc] sm:$0xf]
        %v1083 = vld [vmem:[#allocation10 + $0x3e0] sm:$0xf]
        %v1084 = vld [vmem:[#allocation10 + $0x3e4] sm:$0xf]
        %v1085 = vld [vmem:[#allocation10 + $0x3e8] sm:$0xf]
        %v1086 = vld [vmem:[#allocation10 + $0x3ec] sm:$0xf]
        %v1087 = vld [vmem:[#allocation10 + $0x3f0] sm:$0xf]
        %v1088 = vld [vmem:[#allocation10 + $0x3f4] sm:$0xf]
        %v1089 = vld [vmem:[#allocation10 + $0x3f8] sm:$0xf]
        %v1090 = vld [vmem:[#allocation10 + $0x3fc] sm:$0xf]
        %v1091 = vld [vmem:[#allocation10 + $0x400] sm:$0xf]
        %v1092 = vld [vmem:[#allocation10 + $0x404] sm:$0xf]
        %v1093 = vld [vmem:[#allocation10 + $0x408] sm:$0xf]
        %v1094 = vld [vmem:[#allocation10 + $0x40c] sm:$0xf]
        %v1095 = vld [vmem:[#allocation10 + $0x410] sm:$0xf]
        %v1096 = vld [vmem:[#allocation10 + $0x414] sm:$0xf]
        %v1097 = vld [vmem:[#allocation10 + $0x418] sm:$0xf]
        %v1098 = vld [vmem:[#allocation10 + $0x41c] sm:$0xf]
        %v1099 = vld [vmem:[#allocation10 + $0x420] sm:$0xf]
        %v1100 = vld [vmem:[#allocation10 + $0x424] sm:$0xf]
        %v1101 = vld [vmem:[#allocation10 + $0x428] sm:$0xf]
        %v1102 = vld [vmem:[#allocation10 + $0x42c] sm:$0xf]
        %v1103 = vld [vmem:[#allocation10 + $0x430] sm:$0xf]
        %v1104 = vld [vmem:[#allocation10 + $0x434] sm:$0xf]
        %v1105 = vld [vmem:[#allocation10 + $0x438] sm:$0xf]
        %v1106 = vld [vmem:[#allocation10 + $0x43c] sm:$0xf]
        %v1107 = vld [vmem:[#allocation10 + $0x440] sm:$0xf]
        %v1108 = vld [vmem:[#allocation10 + $0x444] sm:$0xf]
        %v1109 = vld [vmem:[#allocation10 + $0x448] sm:$0xf]
        %v1110 = vld [vmem:[#allocation10 + $0x44c] sm:$0xf]
        %v1111 = vld [vmem:[#allocation10 + $0x450] sm:$0xf]
        %v1112 = vld [vmem:[#allocation10 + $0x454] sm:$0xf]
        %v1113 = vld [vmem:[#allocation10 + $0x458] sm:$0xf]
        %v1114 = vld [vmem:[#allocation10 + $0x45c] sm:$0xf]
        %v1115 = vld [vmem:[#allocation10 + $0x460] sm:$0xf]
        %v1116 = vld [vmem:[#allocation10 + $0x464] sm:$0xf]
        %v1117 = vld [vmem:[#allocation10 + $0x468] sm:$0xf]
        %v1118 = vld [vmem:[#allocation10 + $0x46c] sm:$0xf]
        %v1119 = vld [vmem:[#allocation10 + $0x470] sm:$0xf]
        %v1120 = vld [vmem:[#allocation10 + $0x474] sm:$0xf]
        %v1121 = vld [vmem:[#allocation10 + $0x478] sm:$0xf]
        %v1122 = vld [vmem:[#allocation10 + $0x47c] sm:$0xf]
        %v1123 = vld [vmem:[#allocation10 + $0x480] sm:$0xf]
        %v1124 = vld [vmem:[#allocation10 + $0x484] sm:$0xf]
        %v1125 = vld [vmem:[#allocation10 + $0x488] sm:$0xf]
        %v1126 = vld [vmem:[#allocation10 + $0x48c] sm:$0xf]
        %v1127 = vld [vmem:[#allocation10 + $0x490] sm:$0xf]
        %v1128 = vld [vmem:[#allocation10 + $0x494] sm:$0xf]
        %v1129 = vld [vmem:[#allocation10 + $0x498] sm:$0xf]
        %v1130 = vld [vmem:[#allocation10 + $0x49c] sm:$0xf]
        %v1131 = vld [vmem:[#allocation10 + $0x4a0] sm:$0xf]
        %v1132 = vld [vmem:[#allocation10 + $0x4a4] sm:$0xf]
        %v1133 = vld [vmem:[#allocation10 + $0x4a8] sm:$0xf]
        %v1134 = vld [vmem:[#allocation10 + $0x4ac] sm:$0xf]
        %v1135 = vld [vmem:[#allocation10 + $0x4b0] sm:$0xf]
        %v1136 = vld [vmem:[#allocation10 + $0x4b4] sm:$0xf]
        %v1137 = vld [vmem:[#allocation10 + $0x4b8] sm:$0xf]
        %v1138 = vld [vmem:[#allocation10 + $0x4bc] sm:$0xf]
        %v1139 = vld [vmem:[#allocation10 + $0x4c0] sm:$0xf]
        %v1140 = vld [vmem:[#allocation10 + $0x4c4] sm:$0xf]
        %v1141 = vld [vmem:[#allocation10 + $0x4c8] sm:$0xf]
        %v1142 = vld [vmem:[#allocation10 + $0x4cc] sm:$0xf]
        %v1143 = vld [vmem:[#allocation10 + $0x4d0] sm:$0xf]
        %v1144 = vld [vmem:[#allocation10 + $0x4d4] sm:$0xf]
        %v1145 = vld [vmem:[#allocation10 + $0x4d8] sm:$0xf]
        %v1146 = vld [vmem:[#allocation10 + $0x4dc] sm:$0xf]
        %v1147 = vld [vmem:[#allocation10 + $0x4e0] sm:$0xf]
        %v1148 = vld [vmem:[#allocation10 + $0x4e4] sm:$0xf]
        %v1149 = vld [vmem:[#allocation10 + $0x4e8] sm:$0xf]
        %v1150 = vld [vmem:[#allocation10 + $0x4ec] sm:$0xf]
        %v1151 = vld [vmem:[#allocation10 + $0x4f0] sm:$0xf]
        %v1152 = vld [vmem:[#allocation10 + $0x4f4] sm:$0xf]
        %v1153 = vld [vmem:[#allocation10 + $0x4f8] sm:$0xf]
        %v1154 = vld [vmem:[#allocation10 + $0x4fc] sm:$0xf]
        %v1155 = vld [vmem:[#allocation10 + $0x500] sm:$0xf]
        %v1156 = vld [vmem:[#allocation10 + $0x504] sm:$0xf]
        %v1157 = vld [vmem:[#allocation10 + $0x508] sm:$0xf]
        %v1158 = vld [vmem:[#allocation10 + $0x50c] sm:$0xf]
        %v1159 = vld [vmem:[#allocation10 + $0x510] sm:$0xf]
        %v1160 = vld [vmem:[#allocation10 + $0x514] sm:$0xf]
        %v1161 = vld [vmem:[#allocation10 + $0x518] sm:$0xf]
        %v1162 = vld [vmem:[#allocation10 + $0x51c] sm:$0xf]
        %v1163 = vld [vmem:[#allocation10 + $0x520] sm:$0xf]
        %v1164 = vld [vmem:[#allocation10 + $0x524] sm:$0xf]
        %v1165 = vld [vmem:[#allocation10 + $0x528] sm:$0xf]
        %v1166 = vld [vmem:[#allocation10 + $0x52c] sm:$0xf]
        %v1167 = vld [vmem:[#allocation10 + $0x530] sm:$0xf]
        %v1168 = vld [vmem:[#allocation10 + $0x534] sm:$0xf]
        %v1169 = vld [vmem:[#allocation10 + $0x538] sm:$0xf]
        %v1170 = vld [vmem:[#allocation10 + $0x53c] sm:$0xf]
        %v1171 = vld [vmem:[#allocation10 + $0x540] sm:$0xf]
        %v1172 = vld [vmem:[#allocation10 + $0x544] sm:$0xf]
        %v1173 = vld [vmem:[#allocation10 + $0x548] sm:$0xf]
        %v1174 = vld [vmem:[#allocation10 + $0x54c] sm:$0xf]
        %v1175 = vld [vmem:[#allocation10 + $0x550] sm:$0xf]
        %v1176 = vld [vmem:[#allocation10 + $0x554] sm:$0xf]
        %v1177 = vld [vmem:[#allocation10 + $0x558] sm:$0xf]
        %v1178 = vld [vmem:[#allocation10 + $0x55c] sm:$0xf]
        %v1179 = vld [vmem:[#allocation10 + $0x560] sm:$0xf]
        %v1180 = vld [vmem:[#allocation10 + $0x564] sm:$0xf]
        %v1181 = vld [vmem:[#allocation10 + $0x568] sm:$0xf]
        %v1182 = vld [vmem:[#allocation10 + $0x56c] sm:$0xf]
        %v1183 = vld [vmem:[#allocation10 + $0x570] sm:$0xf]
        %v1184 = vld [vmem:[#allocation10 + $0x574] sm:$0xf]
        %v1185 = vld [vmem:[#allocation10 + $0x578] sm:$0xf]
        %v1186 = vld [vmem:[#allocation10 + $0x57c] sm:$0xf]
        %v1187 = vld [vmem:[#allocation10 + $0x580] sm:$0xf]
        %v1188 = vld [vmem:[#allocation10 + $0x584] sm:$0xf]
        %v1189 = vld [vmem:[#allocation10 + $0x588] sm:$0xf]
        %v1190 = vld [vmem:[#allocation10 + $0x58c] sm:$0xf]
        %v1191 = vld [vmem:[#allocation10 + $0x590] sm:$0xf]
        %v1192 = vld [vmem:[#allocation10 + $0x594] sm:$0xf]
        %v1193 = vld [vmem:[#allocation10 + $0x598] sm:$0xf]
        %v1194 = vld [vmem:[#allocation10 + $0x59c] sm:$0xf]
        %v1195 = vld [vmem:[#allocation10 + $0x5a0] sm:$0xf]
        %v1196 = vld [vmem:[#allocation10 + $0x5a4] sm:$0xf]
        %v1197 = vld [vmem:[#allocation10 + $0x5a8] sm:$0xf]
        %v1198 = vld [vmem:[#allocation10 + $0x5ac] sm:$0xf]
        %v1199 = vld [vmem:[#allocation10 + $0x5b0] sm:$0xf]
        %v1200 = vld [vmem:[#allocation10 + $0x5b4] sm:$0xf]
        %v1201 = vld [vmem:[#allocation10 + $0x5b8] sm:$0xf]
        %v1202 = vld [vmem:[#allocation10 + $0x5bc] sm:$0xf]
        %v1203 = vld [vmem:[#allocation10 + $0x5c0] sm:$0xf]
        %v1204 = vld [vmem:[#allocation10 + $0x5c4] sm:$0xf]
        %v1205 = vld [vmem:[#allocation10 + $0x5c8] sm:$0xf]
        %v1206 = vld [vmem:[#allocation10 + $0x5cc] sm:$0xf]
        %v1207 = vld [vmem:[#allocation10 + $0x5d0] sm:$0xf]
        %v1208 = vld [vmem:[#allocation10 + $0x5d4] sm:$0xf]
        %v1209 = vld [vmem:[#allocation10 + $0x5d8] sm:$0xf]
        %v1210 = vld [vmem:[#allocation10 + $0x5dc] sm:$0xf]
        %v1211 = vld [vmem:[#allocation10 + $0x5e0] sm:$0xf]
        %v1212 = vld [vmem:[#allocation10 + $0x5e4] sm:$0xf]
        %v1213 = vld [vmem:[#allocation10 + $0x5e8] sm:$0xf]
        %v1214 = vld [vmem:[#allocation10 + $0x5ec] sm:$0xf]
        %v1215 = vld [vmem:[#allocation10 + $0x5f0] sm:$0xf]
        %v1216 = vld [vmem:[#allocation10 + $0x5f4] sm:$0xf]
        %v1217 = vld [vmem:[#allocation10 + $0x5f8] sm:$0xf]
        %v1218 = vld [vmem:[#allocation10 + $0x5fc] sm:$0xf]
        %v1219 = vld [vmem:[#allocation10 + $0x600] sm:$0xf]
        %v1220 = vld [vmem:[#allocation10 + $0x604] sm:$0xf]
        %v1221 = vld [vmem:[#allocation10 + $0x608] sm:$0xf]
        %v1222 = vld [vmem:[#allocation10 + $0x60c] sm:$0xf]
        %v1223 = vld [vmem:[#allocation10 + $0x610] sm:$0xf]
        %v1224 = vld [vmem:[#allocation10 + $0x614] sm:$0xf]
        %v1225 = vld [vmem:[#allocation10 + $0x618] sm:$0xf]
        %v1226 = vld [vmem:[#allocation10 + $0x61c] sm:$0xf]
        %v1227 = vld [vmem:[#allocation10 + $0x620] sm:$0xf]
        %v1228 = vld [vmem:[#allocation10 + $0x624] sm:$0xf]
        %v1229 = vld [vmem:[#allocation10 + $0x628] sm:$0xf]
        %v1230 = vld [vmem:[#allocation10 + $0x62c] sm:$0xf]
        %v1231 = vld [vmem:[#allocation10 + $0x630] sm:$0xf]
        %v1232 = vld [vmem:[#allocation10 + $0x634] sm:$0xf]
        %v1233 = vld [vmem:[#allocation10 + $0x638] sm:$0xf]
        %v1234 = vld [vmem:[#allocation10 + $0x63c] sm:$0xf]
        %v1235 = vld [vmem:[#allocation10 + $0x640] sm:$0xf]
        %v1236 = vld [vmem:[#allocation10 + $0x644] sm:$0xf]
        %v1237 = vld [vmem:[#allocation10 + $0x648] sm:$0xf]
        %v1238 = vld [vmem:[#allocation10 + $0x64c] sm:$0xf]
        %v1239 = vld [vmem:[#allocation10 + $0x650] sm:$0xf]
        %v1240 = vld [vmem:[#allocation10 + $0x654] sm:$0xf]
        %v1241 = vld [vmem:[#allocation10 + $0x658] sm:$0xf]
        %v1242 = vld [vmem:[#allocation10 + $0x65c] sm:$0xf]
        %v1243 = vld [vmem:[#allocation10 + $0x660] sm:$0xf]
        %v1244 = vld [vmem:[#allocation10 + $0x664] sm:$0xf]
        %v1245 = vld [vmem:[#allocation10 + $0x668] sm:$0xf]
        %v1246 = vld [vmem:[#allocation10 + $0x66c] sm:$0xf]
        %v1247 = vld [vmem:[#allocation10 + $0x670] sm:$0xf]
        %v1248 = vld [vmem:[#allocation10 + $0x674] sm:$0xf]
        %v1249 = vld [vmem:[#allocation10 + $0x678] sm:$0xf]
        %v1250 = vld [vmem:[#allocation10 + $0x67c] sm:$0xf]
        %v1251 = vld [vmem:[#allocation10 + $0x680] sm:$0xf]
        %v1252 = vld [vmem:[#allocation10 + $0x684] sm:$0xf]
        %v1253 = vld [vmem:[#allocation10 + $0x688] sm:$0xf]
        %v1254 = vld [vmem:[#allocation10 + $0x68c] sm:$0xf]
        %v1255 = vld [vmem:[#allocation10 + $0x690] sm:$0xf]
        %v1256 = vld [vmem:[#allocation10 + $0x694] sm:$0xf]
        %v1257 = vld [vmem:[#allocation10 + $0x698] sm:$0xf]
        %v1258 = vld [vmem:[#allocation10 + $0x69c] sm:$0xf]
        %v1259 = vld [vmem:[#allocation10 + $0x6a0] sm:$0xf]
        %v1260 = vld [vmem:[#allocation10 + $0x6a4] sm:$0xf]
        %v1261 = vld [vmem:[#allocation10 + $0x6a8] sm:$0xf]
        %v1262 = vld [vmem:[#allocation10 + $0x6ac] sm:$0xf]
        %v1263 = vld [vmem:[#allocation10 + $0x6b0] sm:$0xf]
        %v1264 = vld [vmem:[#allocation10 + $0x6b4] sm:$0xf]
        %v1265 = vld [vmem:[#allocation10 + $0x6b8] sm:$0xf]
        %v1266 = vld [vmem:[#allocation10 + $0x6bc] sm:$0xf]
        %v1267 = vld [vmem:[#allocation10 + $0x6c0] sm:$0xf]
        %v1268 = vld [vmem:[#allocation10 + $0x6c4] sm:$0xf]
        %v1269 = vld [vmem:[#allocation10 + $0x6c8] sm:$0xf]
        %v1270 = vld [vmem:[#allocation10 + $0x6cc] sm:$0xf]
        %v1271 = vld [vmem:[#allocation10 + $0x6d0] sm:$0xf]
        %v1272 = vld [vmem:[#allocation10 + $0x6d4] sm:$0xf]
        %v1273 = vld [vmem:[#allocation10 + $0x6d8] sm:$0xf]
        %v1274 = vld [vmem:[#allocation10 + $0x6dc] sm:$0xf]
        %v1275 = vld [vmem:[#allocation10 + $0x6e0] sm:$0xf]
        %v1276 = vld [vmem:[#allocation10 + $0x6e4] sm:$0xf]
        %v1277 = vld [vmem:[#allocation10 + $0x6e8] sm:$0xf]
        %v1278 = vld [vmem:[#allocation10 + $0x6ec] sm:$0xf]
        %v1279 = vld [vmem:[#allocation10 + $0x6f0] sm:$0xf]
        %v1280 = vld [vmem:[#allocation10 + $0x6f4] sm:$0xf]
        %v1281 = vld [vmem:[#allocation10 + $0x6f8] sm:$0xf]
        %v1282 = vld [vmem:[#allocation10 + $0x6fc] sm:$0xf]
        %v1283 = vld [vmem:[#allocation10 + $0x700] sm:$0xf]
        %v1284 = vld [vmem:[#allocation10 + $0x704] sm:$0xf]
        %v1285 = vld [vmem:[#allocation10 + $0x708] sm:$0xf]
        %v1286 = vld [vmem:[#allocation10 + $0x70c] sm:$0xf]
        %v1287 = vld [vmem:[#allocation10 + $0x710] sm:$0xf]
        %v1288 = vld [vmem:[#allocation10 + $0x714] sm:$0xf]
        %v1289 = vld [vmem:[#allocation10 + $0x718] sm:$0xf]
        %v1290 = vld [vmem:[#allocation10 + $0x71c] sm:$0xf]
        %v1291 = vld [vmem:[#allocation10 + $0x720] sm:$0xf]
        %v1292 = vld [vmem:[#allocation10 + $0x724] sm:$0xf]
        %v1293 = vld [vmem:[#allocation10 + $0x728] sm:$0xf]
        %v1294 = vld [vmem:[#allocation10 + $0x72c] sm:$0xf]
        %v1295 = vld [vmem:[#allocation10 + $0x730] sm:$0xf]
        %v1296 = vld [vmem:[#allocation10 + $0x734] sm:$0xf]
        %v1297 = vld [vmem:[#allocation10 + $0x738] sm:$0xf]
        %v1298 = vld [vmem:[#allocation10 + $0x73c] sm:$0xf]
        %v1299 = vld [vmem:[#allocation10 + $0x740] sm:$0xf]
        %v1300 = vld [vmem:[#allocation10 + $0x744] sm:$0xf]
        %v1301 = vld [vmem:[#allocation10 + $0x748] sm:$0xf]
        %v1302 = vld [vmem:[#allocation10 + $0x74c] sm:$0xf]
        %v1303 = vld [vmem:[#allocation10 + $0x750] sm:$0xf]
        %v1304 = vld [vmem:[#allocation10 + $0x754] sm:$0xf]
        %v1305 = vld [vmem:[#allocation10 + $0x758] sm:$0xf]
        %v1306 = vld [vmem:[#allocation10 + $0x75c] sm:$0xf]
        %v1307 = vld [vmem:[#allocation10 + $0x760] sm:$0xf]
        %v1308 = vld [vmem:[#allocation10 + $0x764] sm:$0xf]
        %v1309 = vld [vmem:[#allocation10 + $0x768] sm:$0xf]
        %v1310 = vld [vmem:[#allocation10 + $0x76c] sm:$0xf]
        %v1311 = vld [vmem:[#allocation10 + $0x770] sm:$0xf]
        %v1312 = vld [vmem:[#allocation10 + $0x774] sm:$0xf]
        %v1313 = vld [vmem:[#allocation10 + $0x778] sm:$0xf]
        %v1314 = vld [vmem:[#allocation10 + $0x77c] sm:$0xf]
        %v1315 = vld [vmem:[#allocation10 + $0x780] sm:$0xf]
        %v1316 = vld [vmem:[#allocation10 + $0x784] sm:$0xf]
        %v1317 = vld [vmem:[#allocation10 + $0x788] sm:$0xf]
        %v1318 = vld [vmem:[#allocation10 + $0x78c] sm:$0xf]
        %v1319 = vld [vmem:[#allocation10 + $0x790] sm:$0xf]
        %v1320 = vld [vmem:[#allocation10 + $0x794] sm:$0xf]
        %v1321 = vld [vmem:[#allocation10 + $0x798] sm:$0xf]
        %v1322 = vld [vmem:[#allocation10 + $0x79c] sm:$0xf]
        %v1323 = vld [vmem:[#allocation10 + $0x7a0] sm:$0xf]
        %v1324 = vld [vmem:[#allocation10 + $0x7a4] sm:$0xf]
        %v1325 = vld [vmem:[#allocation10 + $0x7a8] sm:$0xf]
        %v1326 = vld [vmem:[#allocation10 + $0x7ac] sm:$0xf]
        %v1327 = vld [vmem:[#allocation10 + $0x7b0] sm:$0xf]
        %v1328 = vld [vmem:[#allocation10 + $0x7b4] sm:$0xf]
        %v1329 = vld [vmem:[#allocation10 + $0x7b8] sm:$0xf]
        %v1330 = vld [vmem:[#allocation10 + $0x7bc] sm:$0xf]
        %v1331 = vld [vmem:[#allocation10 + $0x7c0] sm:$0xf]
        %v1332 = vld [vmem:[#allocation10 + $0x7c4] sm:$0xf]
        %v1333 = vld [vmem:[#allocation10 + $0x7c8] sm:$0xf]
        %v1334 = vld [vmem:[#allocation10 + $0x7cc] sm:$0xf]
        %v1335 = vld [vmem:[#allocation10 + $0x7d0] sm:$0xf]
        %v1336 = vld [vmem:[#allocation10 + $0x7d4] sm:$0xf]
        %v1337 = vld [vmem:[#allocation10 + $0x7d8] sm:$0xf]
        %v1338 = vld [vmem:[#allocation10 + $0x7dc] sm:$0xf]
        %v1339 = vld [vmem:[#allocation10 + $0x7e0] sm:$0xf]
        %v1340 = vld [vmem:[#allocation10 + $0x7e4] sm:$0xf]
        %v1341 = vld [vmem:[#allocation10 + $0x7e8] sm:$0xf]
        %v1342 = vld [vmem:[#allocation10 + $0x7ec] sm:$0xf]
        %v1343 = vld [vmem:[#allocation10 + $0x7f0] sm:$0xf]
        %v1344 = vld [vmem:[#allocation10 + $0x7f4] sm:$0xf]
        %v1345 = vld [vmem:[#allocation10 + $0x7f8] sm:$0xf]
        %v1346 = vld [vmem:[#allocation10 + $0x7fc] sm:$0xf]
        %v1347 = vld [vmem:[#allocation10 + $0x800] sm:$0xf]
        %v1348 = vld [vmem:[#allocation10 + $0x804] sm:$0xf]
        %v1349 = vld [vmem:[#allocation10 + $0x808] sm:$0xf]
        %v1350 = vld [vmem:[#allocation10 + $0x80c] sm:$0xf]
        %v1351 = vld [vmem:[#allocation10 + $0x810] sm:$0xf]
        %v1352 = vld [vmem:[#allocation10 + $0x814] sm:$0xf]
        %v1353 = vld [vmem:[#allocation10 + $0x818] sm:$0xf]
        %v1354 = vld [vmem:[#allocation10 + $0x81c] sm:$0xf]
        %v1355 = vld [vmem:[#allocation10 + $0x820] sm:$0xf]
        %v1356 = vld [vmem:[#allocation10 + $0x824] sm:$0xf]
        %v1357 = vld [vmem:[#allocation10 + $0x828] sm:$0xf]
        %v1358 = vld [vmem:[#allocation10 + $0x82c] sm:$0xf]
        %v1359 = vld [vmem:[#allocation10 + $0x830] sm:$0xf]
        %v1360 = vld [vmem:[#allocation10 + $0x834] sm:$0xf]
        %v1361 = vld [vmem:[#allocation10 + $0x838] sm:$0xf]
        %v1362 = vld [vmem:[#allocation10 + $0x83c] sm:$0xf]
        %v1363 = vld [vmem:[#allocation10 + $0x840] sm:$0xf]
        %v1364 = vld [vmem:[#allocation10 + $0x844] sm:$0xf]
        %v1365 = vld [vmem:[#allocation10 + $0x848] sm:$0xf]
        %v1366 = vld [vmem:[#allocation10 + $0x84c] sm:$0xf]
        %v1367 = vld [vmem:[#allocation10 + $0x850] sm:$0xf]
        %v1368 = vld [vmem:[#allocation10 + $0x854] sm:$0xf]
        %v1369 = vld [vmem:[#allocation10 + $0x858] sm:$0xf]
        %v1370 = vld [vmem:[#allocation10 + $0x85c] sm:$0xf]
        %v1371 = vld [vmem:[#allocation10 + $0x860] sm:$0xf]
        %v1372 = vld [vmem:[#allocation10 + $0x864] sm:$0xf]
        %v1373 = vld [vmem:[#allocation10 + $0x868] sm:$0xf]
        %v1374 = vld [vmem:[#allocation10 + $0x86c] sm:$0xf]
        %v1375 = vld [vmem:[#allocation10 + $0x870] sm:$0xf]
        %v1376 = vld [vmem:[#allocation10 + $0x874] sm:$0xf]
        %v1377 = vld [vmem:[#allocation10 + $0x878] sm:$0xf]
        %v1378 = vld [vmem:[#allocation10 + $0x87c] sm:$0xf]
        %v1379 = vld [vmem:[#allocation10 + $0x880] sm:$0xf]
        %v1380 = vld [vmem:[#allocation10 + $0x884] sm:$0xf]
        %v1381 = vld [vmem:[#allocation10 + $0x888] sm:$0xf]
        %v1382 = vld [vmem:[#allocation10 + $0x88c] sm:$0xf]
        %v1383 = vld [vmem:[#allocation10 + $0x890] sm:$0xf]
        %v1384 = vld [vmem:[#allocation10 + $0x894] sm:$0xf]
        %v1385 = vld [vmem:[#allocation10 + $0x898] sm:$0xf]
        %v1386 = vld [vmem:[#allocation10 + $0x89c] sm:$0xf]
        %v1387 = vld [vmem:[#allocation10 + $0x8a0] sm:$0xf]
        %v1388 = vld [vmem:[#allocation10 + $0x8a4] sm:$0xf]
        %v1389 = vld [vmem:[#allocation10 + $0x8a8] sm:$0xf]
        %v1390 = vld [vmem:[#allocation10 + $0x8ac] sm:$0xf]
        %v1391 = vld [vmem:[#allocation10 + $0x8b0] sm:$0xf]
        %v1392 = vld [vmem:[#allocation10 + $0x8b4] sm:$0xf]
        %v1393 = vld [vmem:[#allocation10 + $0x8b8] sm:$0xf]
        %v1394 = vld [vmem:[#allocation10 + $0x8bc] sm:$0xf]
        %v1395 = vld [vmem:[#allocation10 + $0x8c0] sm:$0xf]
        %v1396 = vld [vmem:[#allocation10 + $0x8c4] sm:$0xf]
        %v1397 = vld [vmem:[#allocation10 + $0x8c8] sm:$0xf]
        %v1398 = vld [vmem:[#allocation10 + $0x8cc] sm:$0xf]
        %v1399 = vld [vmem:[#allocation10 + $0x8d0] sm:$0xf]
        %v1400 = vld [vmem:[#allocation10 + $0x8d4] sm:$0xf]
        %v1401 = vld [vmem:[#allocation10 + $0x8d8] sm:$0xf]
        %v1402 = vld [vmem:[#allocation10 + $0x8dc] sm:$0xf]
        %v1403 = vld [vmem:[#allocation10 + $0x8e0] sm:$0xf]
        %v1404 = vld [vmem:[#allocation10 + $0x8e4] sm:$0xf]
        %v1405 = vld [vmem:[#allocation10 + $0x8e8] sm:$0xf]
        %v1406 = vld [vmem:[#allocation10 + $0x8ec] sm:$0xf]
        %v1407 = vld [vmem:[#allocation10 + $0x8f0] sm:$0xf]
        %v1408 = vld [vmem:[#allocation10 + $0x8f4] sm:$0xf]
        %v1409 = vld [vmem:[#allocation10 + $0x8f8] sm:$0xf]
        %v1410 = vld [vmem:[#allocation10 + $0x8fc] sm:$0xf]
        %v1411 = vld [vmem:[#allocation10 + $0x900] sm:$0xf]
        %v1412 = vld [vmem:[#allocation10 + $0x904] sm:$0xf]
        %v1413 = vld [vmem:[#allocation10 + $0x908] sm:$0xf]
        %v1414 = vld [vmem:[#allocation10 + $0x90c] sm:$0xf]
        %v1415 = vld [vmem:[#allocation10 + $0x910] sm:$0xf]
        %v1416 = vld [vmem:[#allocation10 + $0x914] sm:$0xf]
        %v1417 = vld [vmem:[#allocation10 + $0x918] sm:$0xf]
        %v1418 = vld [vmem:[#allocation10 + $0x91c] sm:$0xf]
        %v1419 = vld [vmem:[#allocation10 + $0x920] sm:$0xf]
        %v1420 = vld [vmem:[#allocation10 + $0x924] sm:$0xf]
        %v1421 = vld [vmem:[#allocation10 + $0x928] sm:$0xf]
        %v1422 = vld [vmem:[#allocation10 + $0x92c] sm:$0xf]
        %v1423 = vld [vmem:[#allocation10 + $0x930] sm:$0xf]
        %v1424 = vld [vmem:[#allocation10 + $0x934] sm:$0xf]
        %v1425 = vld [vmem:[#allocation10 + $0x938] sm:$0xf]
        %v1426 = vld [vmem:[#allocation10 + $0x93c] sm:$0xf]
        %v1427 = vld [vmem:[#allocation10 + $0x940] sm:$0xf]
        %v1428 = vld [vmem:[#allocation10 + $0x944] sm:$0xf]
        %v1429 = vld [vmem:[#allocation10 + $0x948] sm:$0xf]
        %v1430 = vld [vmem:[#allocation10 + $0x94c] sm:$0xf]
        %v1431 = vld [vmem:[#allocation10 + $0x950] sm:$0xf]
        %v1432 = vld [vmem:[#allocation10 + $0x954] sm:$0xf]
        %v1433 = vld [vmem:[#allocation10 + $0x958] sm:$0xf]
        %v1434 = vld [vmem:[#allocation10 + $0x95c] sm:$0xf]
        %v1435 = vld [vmem:[#allocation10 + $0x960] sm:$0xf]
        %v1436 = vld [vmem:[#allocation10 + $0x964] sm:$0xf]
        %v1437 = vld [vmem:[#allocation10 + $0x968] sm:$0xf]
        %v1438 = vld [vmem:[#allocation10 + $0x96c] sm:$0xf]
        %v1439 = vld [vmem:[#allocation10 + $0x970] sm:$0xf]
        %v1440 = vld [vmem:[#allocation10 + $0x974] sm:$0xf]
        %v1441 = vld [vmem:[#allocation10 + $0x978] sm:$0xf]
        %v1442 = vld [vmem:[#allocation10 + $0x97c] sm:$0xf]
        %v1443 = vld [vmem:[#allocation10 + $0x980] sm:$0xf]
        %v1444 = vld [vmem:[#allocation10 + $0x984] sm:$0xf]
        %v1445 = vld [vmem:[#allocation10 + $0x988] sm:$0xf]
        %v1446 = vld [vmem:[#allocation10 + $0x98c] sm:$0xf]
        %v1447 = vld [vmem:[#allocation10 + $0x990] sm:$0xf]
        %v1448 = vld [vmem:[#allocation10 + $0x994] sm:$0xf]
        %v1449 = vld [vmem:[#allocation10 + $0x998] sm:$0xf]
        %v1450 = vld [vmem:[#allocation10 + $0x99c] sm:$0xf]
        %v1451 = vld [vmem:[#allocation10 + $0x9a0] sm:$0xf]
        %v1452 = vld [vmem:[#allocation10 + $0x9a4] sm:$0xf]
        %v1453 = vld [vmem:[#allocation10 + $0x9a8] sm:$0xf]
        %v1454 = vld [vmem:[#allocation10 + $0x9ac] sm:$0xf]
        %v1455 = vld [vmem:[#allocation10 + $0x9b0] sm:$0xf]
        %v1456 = vld [vmem:[#allocation10 + $0x9b4] sm:$0xf]
        %v1457 = vld [vmem:[#allocation10 + $0x9b8] sm:$0xf]
        %v1458 = vld [vmem:[#allocation10 + $0x9bc] sm:$0xf]
        %v1459 = vld [vmem:[#allocation10 + $0x9c0] sm:$0xf]
        %v1460 = vld [vmem:[#allocation10 + $0x9c4] sm:$0xf]
        %v1461 = vld [vmem:[#allocation10 + $0x9c8] sm:$0xf]
        %v1462 = vld [vmem:[#allocation10 + $0x9cc] sm:$0xf]
        %v1463 = vld [vmem:[#allocation10 + $0x9d0] sm:$0xf]
        %v1464 = vld [vmem:[#allocation10 + $0x9d4] sm:$0xf]
        %v1465 = vld [vmem:[#allocation10 + $0x9d8] sm:$0xf]
        %v1466 = vld [vmem:[#allocation10 + $0x9dc] sm:$0xf]
        %v1467 = vld [vmem:[#allocation10 + $0x9e0] sm:$0xf]
        %v1468 = vld [vmem:[#allocation10 + $0x9e4] sm:$0xf]
        %v1469 = vld [vmem:[#allocation10 + $0x9e8] sm:$0xf]
        %v1470 = vld [vmem:[#allocation10 + $0x9ec] sm:$0xf]
        %v1471 = vld [vmem:[#allocation10 + $0x9f0] sm:$0xf]
        %v1472 = vld [vmem:[#allocation10 + $0x9f4] sm:$0xf]
        %v1473 = vld [vmem:[#allocation10 + $0x9f8] sm:$0xf]
        %v1474 = vld [vmem:[#allocation10 + $0x9fc] sm:$0xf]
        %v1475 = vld [vmem:[#allocation10 + $0xa00] sm:$0xf]
        %v1476 = vld [vmem:[#allocation10 + $0xa04] sm:$0xf]
        %v1477 = vld [vmem:[#allocation10 + $0xa08] sm:$0xf]
        %v1478 = vld [vmem:[#allocation10 + $0xa0c] sm:$0xf]
        %v1479 = vld [vmem:[#allocation10 + $0xa10] sm:$0xf]
        %v1480 = vld [vmem:[#allocation10 + $0xa14] sm:$0xf]
        %v1481 = vld [vmem:[#allocation10 + $0xa18] sm:$0xf]
        %v1482 = vld [vmem:[#allocation10 + $0xa1c] sm:$0xf]
        %v1483 = vld [vmem:[#allocation10 + $0xa20] sm:$0xf]
        %v1484 = vld [vmem:[#allocation10 + $0xa24] sm:$0xf]
        %v1485 = vld [vmem:[#allocation10 + $0xa28] sm:$0xf]
        %v1486 = vld [vmem:[#allocation10 + $0xa2c] sm:$0xf]
        %v1487 = vld [vmem:[#allocation10 + $0xa30] sm:$0xf]
        %v1488 = vld [vmem:[#allocation10 + $0xa34] sm:$0xf]
        %v1489 = vld [vmem:[#allocation10 + $0xa38] sm:$0xf]
        %v1490 = vld [vmem:[#allocation10 + $0xa3c] sm:$0xf]
        %v1491 = vld [vmem:[#allocation10 + $0xa40] sm:$0xf]
        %v1492 = vld [vmem:[#allocation10 + $0xa44] sm:$0xf]
        %v1493 = vld [vmem:[#allocation10 + $0xa48] sm:$0xf]
        %v1494 = vld [vmem:[#allocation10 + $0xa4c] sm:$0xf]
        %v1495 = vld [vmem:[#allocation10 + $0xa50] sm:$0xf]
        %v1496 = vld [vmem:[#allocation10 + $0xa54] sm:$0xf]
        %v1497 = vld [vmem:[#allocation10 + $0xa58] sm:$0xf]
        %v1498 = vld [vmem:[#allocation10 + $0xa5c] sm:$0xf]
        %v1499 = vld [vmem:[#allocation10 + $0xa60] sm:$0xf]
        %v1500 = vld [vmem:[#allocation10 + $0xa64] sm:$0xf]
        %v1501 = vld [vmem:[#allocation10 + $0xa68] sm:$0xf]
        %v1502 = vld [vmem:[#allocation10 + $0xa6c] sm:$0xf]
        %v1503 = vld [vmem:[#allocation10 + $0xa70] sm:$0xf]
        %v1504 = vld [vmem:[#allocation10 + $0xa74] sm:$0xf]
        %v1505 = vld [vmem:[#allocation10 + $0xa78] sm:$0xf]
        %v1506 = vld [vmem:[#allocation10 + $0xa7c] sm:$0xf]
        %v1507 = vld [vmem:[#allocation10 + $0xa80] sm:$0xf]
        %v1508 = vld [vmem:[#allocation10 + $0xa84] sm:$0xf]
        %v1509 = vld [vmem:[#allocation10 + $0xa88] sm:$0xf]
        %v1510 = vld [vmem:[#allocation10 + $0xa8c] sm:$0xf]
        %v1511 = vld [vmem:[#allocation10 + $0xa90] sm:$0xf]
        %v1512 = vld [vmem:[#allocation10 + $0xa94] sm:$0xf]
        %v1513 = vld [vmem:[#allocation10 + $0xa98] sm:$0xf]
        %v1514 = vld [vmem:[#allocation10 + $0xa9c] sm:$0xf]
        %v1515 = vld [vmem:[#allocation10 + $0xaa0] sm:$0xf]
        %v1516 = vld [vmem:[#allocation10 + $0xaa4] sm:$0xf]
        %v1517 = vld [vmem:[#allocation10 + $0xaa8] sm:$0xf]
        %v1518 = vld [vmem:[#allocation10 + $0xaac] sm:$0xf]
        %v1519 = vld [vmem:[#allocation10 + $0xab0] sm:$0xf]
        %v1520 = vld [vmem:[#allocation10 + $0xab4] sm:$0xf]
        %v1521 = vld [vmem:[#allocation10 + $0xab8] sm:$0xf]
        %v1522 = vld [vmem:[#allocation10 + $0xabc] sm:$0xf]
        %v1523 = vld [vmem:[#allocation10 + $0xac0] sm:$0xf]
        %v1524 = vld [vmem:[#allocation10 + $0xac4] sm:$0xf]
        %v1525 = vld [vmem:[#allocation10 + $0xac8] sm:$0xf]
        %v1526 = vld [vmem:[#allocation10 + $0xacc] sm:$0xf]
        %v1527 = vld [vmem:[#allocation10 + $0xad0] sm:$0xf]
        %v1528 = vld [vmem:[#allocation10 + $0xad4] sm:$0xf]
        %v1529 = vld [vmem:[#allocation10 + $0xad8] sm:$0xf]
        %v1530 = vld [vmem:[#allocation10 + $0xadc] sm:$0xf]
        %v1531 = vld [vmem:[#allocation10 + $0xae0] sm:$0xf]
        %v1532 = vld [vmem:[#allocation10 + $0xae4] sm:$0xf]
        %v1533 = vld [vmem:[#allocation10 + $0xae8] sm:$0xf]
        %v1534 = vld [vmem:[#allocation10 + $0xaec] sm:$0xf]
        %v1535 = vld [vmem:[#allocation10 + $0xaf0] sm:$0xf]
        %v1536 = vld [vmem:[#allocation10 + $0xaf4] sm:$0xf]
        %v1537 = vld [vmem:[#allocation10 + $0xaf8] sm:$0xf]
        %v1538 = vld [vmem:[#allocation10 + $0xafc] sm:$0xf]
        %v1539 = vld [vmem:[#allocation10 + $0xb00] sm:$0xf]
        %v1540 = vld [vmem:[#allocation10 + $0xb04] sm:$0xf]
        %v1541 = vld [vmem:[#allocation10 + $0xb08] sm:$0xf]
        %v1542 = vld [vmem:[#allocation10 + $0xb0c] sm:$0xf]
        %v1543 = vld [vmem:[#allocation10 + $0xb10] sm:$0xf]
        %v1544 = vld [vmem:[#allocation10 + $0xb14] sm:$0xf]
        %v1545 = vld [vmem:[#allocation10 + $0xb18] sm:$0xf]
        %v1546 = vld [vmem:[#allocation10 + $0xb1c] sm:$0xf]
        %v1547 = vld [vmem:[#allocation10 + $0xb20] sm:$0xf]
        %v1548 = vld [vmem:[#allocation10 + $0xb24] sm:$0xf]
        %v1549 = vld [vmem:[#allocation10 + $0xb28] sm:$0xf]
        %v1550 = vld [vmem:[#allocation10 + $0xb2c] sm:$0xf]
        %v1551 = vld [vmem:[#allocation10 + $0xb30] sm:$0xf]
        %v1552 = vld [vmem:[#allocation10 + $0xb34] sm:$0xf]
        %v1553 = vld [vmem:[#allocation10 + $0xb38] sm:$0xf]
        %v1554 = vld [vmem:[#allocation10 + $0xb3c] sm:$0xf]
        %v1555 = vld [vmem:[#allocation10 + $0xb40] sm:$0xf]
        %v1556 = vld [vmem:[#allocation10 + $0xb44] sm:$0xf]
        %v1557 = vld [vmem:[#allocation10 + $0xb48] sm:$0xf]
        %v1558 = vld [vmem:[#allocation10 + $0xb4c] sm:$0xf]
        %v1559 = vld [vmem:[#allocation10 + $0xb50] sm:$0xf]
        %v1560 = vld [vmem:[#allocation10 + $0xb54] sm:$0xf]
        %v1561 = vld [vmem:[#allocation10 + $0xb58] sm:$0xf]
        %v1562 = vld [vmem:[#allocation10 + $0xb5c] sm:$0xf]
        %v1563 = vld [vmem:[#allocation10 + $0xb60] sm:$0xf]
        %v1564 = vld [vmem:[#allocation10 + $0xb64] sm:$0xf]
        %v1565 = vld [vmem:[#allocation10 + $0xb68] sm:$0xf]
        %v1566 = vld [vmem:[#allocation10 + $0xb6c] sm:$0xf]
        %v1567 = vld [vmem:[#allocation10 + $0xb70] sm:$0xf]
        %v1568 = vld [vmem:[#allocation10 + $0xb74] sm:$0xf]
        %v1569 = vld [vmem:[#allocation10 + $0xb78] sm:$0xf]
        %v1570 = vld [vmem:[#allocation10 + $0xb7c] sm:$0xf]
        %v1571 = vld [vmem:[#allocation10 + $0xb80] sm:$0xf]
        %v1572 = vld [vmem:[#allocation10 + $0xb84] sm:$0xf]
        %v1573 = vld [vmem:[#allocation10 + $0xb88] sm:$0xf]
        %v1574 = vld [vmem:[#allocation10 + $0xb8c] sm:$0xf]
        %v1575 = vld [vmem:[#allocation10 + $0xb90] sm:$0xf]
        %v1576 = vld [vmem:[#allocation10 + $0xb94] sm:$0xf]
        %v1577 = vld [vmem:[#allocation10 + $0xb98] sm:$0xf]
        %v1578 = vld [vmem:[#allocation10 + $0xb9c] sm:$0xf]
        %v1579 = vld [vmem:[#allocation10 + $0xba0] sm:$0xf]
        %v1580 = vld [vmem:[#allocation10 + $0xba4] sm:$0xf]
        %v1581 = vld [vmem:[#allocation10 + $0xba8] sm:$0xf]
        %v1582 = vld [vmem:[#allocation10 + $0xbac] sm:$0xf]
        %v1583 = vld [vmem:[#allocation10 + $0xbb0] sm:$0xf]
        %v1584 = vld [vmem:[#allocation10 + $0xbb4] sm:$0xf]
        %v1585 = vld [vmem:[#allocation10 + $0xbb8] sm:$0xf]
        %v1586 = vld [vmem:[#allocation10 + $0xbbc] sm:$0xf]
        %v1587 = vld [vmem:[#allocation10 + $0xbc0] sm:$0xf]
        %v1588 = vld [vmem:[#allocation10 + $0xbc4] sm:$0xf]
        %v1589 = vld [vmem:[#allocation10 + $0xbc8] sm:$0xf]
        %v1590 = vld [vmem:[#allocation10 + $0xbcc] sm:$0xf]
        %v1591 = vld [vmem:[#allocation10 + $0xbd0] sm:$0xf]
        %v1592 = vld [vmem:[#allocation10 + $0xbd4] sm:$0xf]
        %v1593 = vld [vmem:[#allocation10 + $0xbd8] sm:$0xf]
        %v1594 = vld [vmem:[#allocation10 + $0xbdc] sm:$0xf]
        %v1595 = vld [vmem:[#allocation10 + $0xbe0] sm:$0xf]
        %v1596 = vld [vmem:[#allocation10 + $0xbe4] sm:$0xf]
        %v1597 = vld [vmem:[#allocation10 + $0xbe8] sm:$0xf]
        %v1598 = vld [vmem:[#allocation10 + $0xbec] sm:$0xf]
        %v1599 = vld [vmem:[#allocation10 + $0xbf0] sm:$0xf]
        %v1600 = vld [vmem:[#allocation10 + $0xbf4] sm:$0xf]
        %v1601 = vld [vmem:[#allocation10 + $0xbf8] sm:$0xf]
        %v1602 = vld [vmem:[#allocation10 + $0xbfc] sm:$0xf]
        %v1603 = vld [vmem:[#allocation10 + $0xc00] sm:$0xf]
        %v1604 = vld [vmem:[#allocation10 + $0xc04] sm:$0xf]
        %v1605 = vld [vmem:[#allocation10 + $0xc08] sm:$0xf]
        %v1606 = vld [vmem:[#allocation10 + $0xc0c] sm:$0xf]
        %v1607 = vld [vmem:[#allocation10 + $0xc10] sm:$0xf]
        %v1608 = vld [vmem:[#allocation10 + $0xc14] sm:$0xf]
        %v1609 = vld [vmem:[#allocation10 + $0xc18] sm:$0xf]
        %v1610 = vld [vmem:[#allocation10 + $0xc1c] sm:$0xf]
        %v1611 = vld [vmem:[#allocation10 + $0xc20] sm:$0xf]
        %v1612 = vld [vmem:[#allocation10 + $0xc24] sm:$0xf]
        %v1613 = vld [vmem:[#allocation10 + $0xc28] sm:$0xf]
        %v1614 = vld [vmem:[#allocation10 + $0xc2c] sm:$0xf]
        %v1615 = vld [vmem:[#allocation10 + $0xc30] sm:$0xf]
        %v1616 = vld [vmem:[#allocation10 + $0xc34] sm:$0xf]
        %v1617 = vld [vmem:[#allocation10 + $0xc38] sm:$0xf]
        %v1618 = vld [vmem:[#allocation10 + $0xc3c] sm:$0xf]
        %v1619 = vld [vmem:[#allocation10 + $0xc40] sm:$0xf]
        %v1620 = vld [vmem:[#allocation10 + $0xc44] sm:$0xf]
        %v1621 = vld [vmem:[#allocation10 + $0xc48] sm:$0xf]
        %v1622 = vld [vmem:[#allocation10 + $0xc4c] sm:$0xf]
        %v1623 = vld [vmem:[#allocation10 + $0xc50] sm:$0xf]
        %v1624 = vld [vmem:[#allocation10 + $0xc54] sm:$0xf]
        %v1625 = vld [vmem:[#allocation10 + $0xc58] sm:$0xf]
        %v1626 = vld [vmem:[#allocation10 + $0xc5c] sm:$0xf]
        %v1627 = vld [vmem:[#allocation10 + $0xc60] sm:$0xf]
        %v1628 = vld [vmem:[#allocation10 + $0xc64] sm:$0xf]
        %v1629 = vld [vmem:[#allocation10 + $0xc68] sm:$0xf]
        %v1630 = vld [vmem:[#allocation10 + $0xc6c] sm:$0xf]
        %v1631 = vld [vmem:[#allocation10 + $0xc70] sm:$0xf]
        %v1632 = vld [vmem:[#allocation10 + $0xc74] sm:$0xf]
        %v1633 = vld [vmem:[#allocation10 + $0xc78] sm:$0xf]
        %v1634 = vld [vmem:[#allocation10 + $0xc7c] sm:$0xf]
        %v1635 = vld [vmem:[#allocation10 + $0xc80] sm:$0xf]
        %v1636 = vld [vmem:[#allocation10 + $0xc84] sm:$0xf]
        %v1637 = vld [vmem:[#allocation10 + $0xc88] sm:$0xf]
        %v1638 = vld [vmem:[#allocation10 + $0xc8c] sm:$0xf]
        %v1639 = vld [vmem:[#allocation10 + $0xc90] sm:$0xf]
        %v1640 = vld [vmem:[#allocation10 + $0xc94] sm:$0xf]
        %v1641 = vld [vmem:[#allocation10 + $0xc98] sm:$0xf]
        %v1642 = vld [vmem:[#allocation10 + $0xc9c] sm:$0xf]
        %v1643 = vld [vmem:[#allocation10 + $0xca0] sm:$0xf]
        %v1644 = vld [vmem:[#allocation10 + $0xca4] sm:$0xf]
        %v1645 = vld [vmem:[#allocation10 + $0xca8] sm:$0xf]
        %v1646 = vld [vmem:[#allocation10 + $0xcac] sm:$0xf]
        %v1647 = vld [vmem:[#allocation10 + $0xcb0] sm:$0xf]
        %v1648 = vld [vmem:[#allocation10 + $0xcb4] sm:$0xf]
        %v1649 = vld [vmem:[#allocation10 + $0xcb8] sm:$0xf]
        %v1650 = vld [vmem:[#allocation10 + $0xcbc] sm:$0xf]
        %v1651 = vld [vmem:[#allocation10 + $0xcc0] sm:$0xf]
        %v1652 = vld [vmem:[#allocation10 + $0xcc4] sm:$0xf]
        %v1653 = vld [vmem:[#allocation10 + $0xcc8] sm:$0xf]
        %v1654 = vld [vmem:[#allocation10 + $0xccc] sm:$0xf]
        %v1655 = vld [vmem:[#allocation10 + $0xcd0] sm:$0xf]
        %v1656 = vld [vmem:[#allocation10 + $0xcd4] sm:$0xf]
        %v1657 = vld [vmem:[#allocation10 + $0xcd8] sm:$0xf]
        %v1658 = vld [vmem:[#allocation10 + $0xcdc] sm:$0xf]
        %v1659 = vld [vmem:[#allocation10 + $0xce0] sm:$0xf]
        %v1660 = vld [vmem:[#allocation10 + $0xce4] sm:$0xf]
        %v1661 = vld [vmem:[#allocation10 + $0xce8] sm:$0xf]
        %v1662 = vld [vmem:[#allocation10 + $0xcec] sm:$0xf]
        %v1663 = vld [vmem:[#allocation10 + $0xcf0] sm:$0xf]
        %v1664 = vld [vmem:[#allocation10 + $0xcf4] sm:$0xf]
        %v1665 = vld [vmem:[#allocation10 + $0xcf8] sm:$0xf]
        %v1666 = vld [vmem:[#allocation10 + $0xcfc] sm:$0xf]
        %v1667 = vld [vmem:[#allocation10 + $0xd00] sm:$0xf]
        %v1668 = vld [vmem:[#allocation10 + $0xd04] sm:$0xf]
        %v1669 = vld [vmem:[#allocation10 + $0xd08] sm:$0xf]
        %v1670 = vld [vmem:[#allocation10 + $0xd0c] sm:$0xf]
        %v1671 = vld [vmem:[#allocation10 + $0xd10] sm:$0xf]
        %v1672 = vld [vmem:[#allocation10 + $0xd14] sm:$0xf]
        %v1673 = vld [vmem:[#allocation10 + $0xd18] sm:$0xf]
        %v1674 = vld [vmem:[#allocation10 + $0xd1c] sm:$0xf]
        %v1675 = vld [vmem:[#allocation10 + $0xd20] sm:$0xf]
        %v1676 = vld [vmem:[#allocation10 + $0xd24] sm:$0xf]
        %v1677 = vld [vmem:[#allocation10 + $0xd28] sm:$0xf]
        %v1678 = vld [vmem:[#allocation10 + $0xd2c] sm:$0xf]
        %v1679 = vld [vmem:[#allocation10 + $0xd30] sm:$0xf]
        %v1680 = vld [vmem:[#allocation10 + $0xd34] sm:$0xf]
        %v1681 = vld [vmem:[#allocation10 + $0xd38] sm:$0xf]
        %v1682 = vld [vmem:[#allocation10 + $0xd3c] sm:$0xf]
        %v1683 = vld [vmem:[#allocation10 + $0xd40] sm:$0xf]
        %v1684 = vld [vmem:[#allocation10 + $0xd44] sm:$0xf]
        %v1685 = vld [vmem:[#allocation10 + $0xd48] sm:$0xf]
        %v1686 = vld [vmem:[#allocation10 + $0xd4c] sm:$0xf]
        %v1687 = vld [vmem:[#allocation10 + $0xd50] sm:$0xf]
        %v1688 = vld [vmem:[#allocation10 + $0xd54] sm:$0xf]
        %v1689 = vld [vmem:[#allocation10 + $0xd58] sm:$0xf]
        %v1690 = vld [vmem:[#allocation10 + $0xd5c] sm:$0xf]
        %v1691 = vld [vmem:[#allocation10 + $0xd60] sm:$0xf]
        %v1692 = vld [vmem:[#allocation10 + $0xd64] sm:$0xf]
        %v1693 = vld [vmem:[#allocation10 + $0xd68] sm:$0xf]
        %v1694 = vld [vmem:[#allocation10 + $0xd6c] sm:$0xf]
        %v1695 = vld [vmem:[#allocation10 + $0xd70] sm:$0xf]
        %v1696 = vld [vmem:[#allocation10 + $0xd74] sm:$0xf]
        %v1697 = vld [vmem:[#allocation10 + $0xd78] sm:$0xf]
        %v1698 = vld [vmem:[#allocation10 + $0xd7c] sm:$0xf]
        %v1699 = vld [vmem:[#allocation10 + $0xd80] sm:$0xf]
        %v1700 = vld [vmem:[#allocation10 + $0xd84] sm:$0xf]
        %v1701 = vld [vmem:[#allocation10 + $0xd88] sm:$0xf]
        %v1702 = vld [vmem:[#allocation10 + $0xd8c] sm:$0xf]
        %v1703 = vld [vmem:[#allocation10 + $0xd90] sm:$0xf]
        %v1704 = vld [vmem:[#allocation10 + $0xd94] sm:$0xf]
        %v1705 = vld [vmem:[#allocation10 + $0xd98] sm:$0xf]
        %v1706 = vld [vmem:[#allocation10 + $0xd9c] sm:$0xf]
        %v1707 = vld [vmem:[#allocation10 + $0xda0] sm:$0xf]
        %v1708 = vld [vmem:[#allocation10 + $0xda4] sm:$0xf]
        %v1709 = vld [vmem:[#allocation10 + $0xda8] sm:$0xf]
        %v1710 = vld [vmem:[#allocation10 + $0xdac] sm:$0xf]
        %v1711 = vld [vmem:[#allocation10 + $0xdb0] sm:$0xf]
        %v1712 = vld [vmem:[#allocation10 + $0xdb4] sm:$0xf]
        %v1713 = vld [vmem:[#allocation10 + $0xdb8] sm:$0xf]
        %v1714 = vld [vmem:[#allocation10 + $0xdbc] sm:$0xf]
        %v1715 = vld [vmem:[#allocation10 + $0xdc0] sm:$0xf]
        %v1716 = vld [vmem:[#allocation10 + $0xdc4] sm:$0xf]
        %v1717 = vld [vmem:[#allocation10 + $0xdc8] sm:$0xf]
        %v1718 = vld [vmem:[#allocation10 + $0xdcc] sm:$0xf]
        %v1719 = vld [vmem:[#allocation10 + $0xdd0] sm:$0xf]
        %v1720 = vld [vmem:[#allocation10 + $0xdd4] sm:$0xf]
        %v1721 = vld [vmem:[#allocation10 + $0xdd8] sm:$0xf]
        %v1722 = vld [vmem:[#allocation10 + $0xddc] sm:$0xf]
        %v1723 = vld [vmem:[#allocation10 + $0xde0] sm:$0xf]
        %v1724 = vld [vmem:[#allocation10 + $0xde4] sm:$0xf]
        %v1725 = vld [vmem:[#allocation10 + $0xde8] sm:$0xf]
        %v1726 = vld [vmem:[#allocation10 + $0xdec] sm:$0xf]
        %v1727 = vld [vmem:[#allocation10 + $0xdf0] sm:$0xf]
        %v1728 = vld [vmem:[#allocation10 + $0xdf4] sm:$0xf]
        %v1729 = vld [vmem:[#allocation10 + $0xdf8] sm:$0xf]
        %v1730 = vld [vmem:[#allocation10 + $0xdfc] sm:$0xf]
        %v1731 = vld [vmem:[#allocation10 + $0xe00] sm:$0xf]
        %v1732 = vld [vmem:[#allocation10 + $0xe04] sm:$0xf]
        %v1733 = vld [vmem:[#allocation10 + $0xe08] sm:$0xf]
        %v1734 = vld [vmem:[#allocation10 + $0xe0c] sm:$0xf]
        %v1735 = vld [vmem:[#allocation10 + $0xe10] sm:$0xf]
        %v1736 = vld [vmem:[#allocation10 + $0xe14] sm:$0xf]
        %v1737 = vld [vmem:[#allocation10 + $0xe18] sm:$0xf]
        %v1738 = vld [vmem:[#allocation10 + $0xe1c] sm:$0xf]
        %v1739 = vld [vmem:[#allocation10 + $0xe20] sm:$0xf]
        %v1740 = vld [vmem:[#allocation10 + $0xe24] sm:$0xf]
        %v1741 = vld [vmem:[#allocation10 + $0xe28] sm:$0xf]
        %v1742 = vld [vmem:[#allocation10 + $0xe2c] sm:$0xf]
        %v1743 = vld [vmem:[#allocation10 + $0xe30] sm:$0xf]
        %v1744 = vld [vmem:[#allocation10 + $0xe34] sm:$0xf]
        %v1745 = vld [vmem:[#allocation10 + $0xe38] sm:$0xf]
        %v1746 = vld [vmem:[#allocation10 + $0xe3c] sm:$0xf]
        %v1747 = vld [vmem:[#allocation10 + $0xe40] sm:$0xf]
        %v1748 = vld [vmem:[#allocation10 + $0xe44] sm:$0xf]
        %v1749 = vld [vmem:[#allocation10 + $0xe48] sm:$0xf]
        %v1750 = vld [vmem:[#allocation10 + $0xe4c] sm:$0xf]
        %v1751 = vld [vmem:[#allocation10 + $0xe50] sm:$0xf]
        %v1752 = vld [vmem:[#allocation10 + $0xe54] sm:$0xf]
        %v1753 = vld [vmem:[#allocation10 + $0xe58] sm:$0xf]
        %v1754 = vld [vmem:[#allocation10 + $0xe5c] sm:$0xf]
        %v1755 = vld [vmem:[#allocation10 + $0xe60] sm:$0xf]
        %v1756 = vld [vmem:[#allocation10 + $0xe64] sm:$0xf]
        %v1757 = vld [vmem:[#allocation10 + $0xe68] sm:$0xf]
        %v1758 = vld [vmem:[#allocation10 + $0xe6c] sm:$0xf]
        %v1759 = vld [vmem:[#allocation10 + $0xe70] sm:$0xf]
        %v1760 = vld [vmem:[#allocation10 + $0xe74] sm:$0xf]
        %v1761 = vld [vmem:[#allocation10 + $0xe78] sm:$0xf]
        %v1762 = vld [vmem:[#allocation10 + $0xe7c] sm:$0xf]
        %v1763 = vld [vmem:[#allocation10 + $0xe80] sm:$0xf]
        %v1764 = vld [vmem:[#allocation10 + $0xe84] sm:$0xf]
        %v1765 = vld [vmem:[#allocation10 + $0xe88] sm:$0xf]
        %v1766 = vld [vmem:[#allocation10 + $0xe8c] sm:$0xf]
        %v1767 = vld [vmem:[#allocation10 + $0xe90] sm:$0xf]
        %v1768 = vld [vmem:[#allocation10 + $0xe94] sm:$0xf]
        %v1769 = vld [vmem:[#allocation10 + $0xe98] sm:$0xf]
        %v1770 = vld [vmem:[#allocation10 + $0xe9c] sm:$0xf]
        %v1771 = vld [vmem:[#allocation10 + $0xea0] sm:$0xf]
        %v1772 = vld [vmem:[#allocation10 + $0xea4] sm:$0xf]
        %v1773 = vld [vmem:[#allocation10 + $0xea8] sm:$0xf]
        %v1774 = vld [vmem:[#allocation10 + $0xeac] sm:$0xf]
        %v1775 = vld [vmem:[#allocation10 + $0xeb0] sm:$0xf]
        %v1776 = vld [vmem:[#allocation10 + $0xeb4] sm:$0xf]
        %v1777 = vld [vmem:[#allocation10 + $0xeb8] sm:$0xf]
        %v1778 = vld [vmem:[#allocation10 + $0xebc] sm:$0xf]
        %v1779 = vld [vmem:[#allocation10 + $0xec0] sm:$0xf]
        %v1780 = vld [vmem:[#allocation10 + $0xec4] sm:$0xf]
        %v1781 = vld [vmem:[#allocation10 + $0xec8] sm:$0xf]
        %v1782 = vld [vmem:[#allocation10 + $0xecc] sm:$0xf]
        %v1783 = vld [vmem:[#allocation10 + $0xed0] sm:$0xf]
        %v1784 = vld [vmem:[#allocation10 + $0xed4] sm:$0xf]
        %v1785 = vld [vmem:[#allocation10 + $0xed8] sm:$0xf]
        %v1786 = vld [vmem:[#allocation10 + $0xedc] sm:$0xf]
        %v1787 = vld [vmem:[#allocation10 + $0xee0] sm:$0xf]
        %v1788 = vld [vmem:[#allocation10 + $0xee4] sm:$0xf]
        %v1789 = vld [vmem:[#allocation10 + $0xee8] sm:$0xf]
        %v1790 = vld [vmem:[#allocation10 + $0xeec] sm:$0xf]
        %v1791 = vld [vmem:[#allocation10 + $0xef0] sm:$0xf]
        %v1792 = vld [vmem:[#allocation10 + $0xef4] sm:$0xf]
        %v1793 = vld [vmem:[#allocation10 + $0xef8] sm:$0xf]
        %v1794 = vld [vmem:[#allocation10 + $0xefc] sm:$0xf]
        %v1795 = vld [vmem:[#allocation10 + $0xf00] sm:$0xf]
        %v1796 = vld [vmem:[#allocation10 + $0xf04] sm:$0xf]
        %v1797 = vld [vmem:[#allocation10 + $0xf08] sm:$0xf]
        %v1798 = vld [vmem:[#allocation10 + $0xf0c] sm:$0xf]
        %v1799 = vld [vmem:[#allocation10 + $0xf10] sm:$0xf]
        %v1800 = vld [vmem:[#allocation10 + $0xf14] sm:$0xf]
        %v1801 = vld [vmem:[#allocation10 + $0xf18] sm:$0xf]
        %v1802 = vld [vmem:[#allocation10 + $0xf1c] sm:$0xf]
        %v1803 = vld [vmem:[#allocation10 + $0xf20] sm:$0xf]
        %v1804 = vld [vmem:[#allocation10 + $0xf24] sm:$0xf]
        %v1805 = vld [vmem:[#allocation10 + $0xf28] sm:$0xf]
        %v1806 = vld [vmem:[#allocation10 + $0xf2c] sm:$0xf]
        %v1807 = vld [vmem:[#allocation10 + $0xf30] sm:$0xf]
        %v1808 = vld [vmem:[#allocation10 + $0xf34] sm:$0xf]
        %v1809 = vld [vmem:[#allocation10 + $0xf38] sm:$0xf]
        %v1810 = vld [vmem:[#allocation10 + $0xf3c] sm:$0xf]
        %v1811 = vld [vmem:[#allocation10 + $0xf40] sm:$0xf]
        %v1812 = vld [vmem:[#allocation10 + $0xf44] sm:$0xf]
        %v1813 = vld [vmem:[#allocation10 + $0xf48] sm:$0xf]
        %v1814 = vld [vmem:[#allocation10 + $0xf4c] sm:$0xf]
        %v1815 = vld [vmem:[#allocation10 + $0xf50] sm:$0xf]
        %v1816 = vld [vmem:[#allocation10 + $0xf54] sm:$0xf]
        %v1817 = vld [vmem:[#allocation10 + $0xf58] sm:$0xf]
        %v1818 = vld [vmem:[#allocation10 + $0xf5c] sm:$0xf]
        %v1819 = vld [vmem:[#allocation10 + $0xf60] sm:$0xf]
        %v1820 = vld [vmem:[#allocation10 + $0xf64] sm:$0xf]
        %v1821 = vld [vmem:[#allocation10 + $0xf68] sm:$0xf]
        %v1822 = vld [vmem:[#allocation10 + $0xf6c] sm:$0xf]
        %v1823 = vld [vmem:[#allocation10 + $0xf70] sm:$0xf]
        %v1824 = vld [vmem:[#allocation10 + $0xf74] sm:$0xf]
        %v1825 = vld [vmem:[#allocation10 + $0xf78] sm:$0xf]
        %v1826 = vld [vmem:[#allocation10 + $0xf7c] sm:$0xf]
        %v1827 = vld [vmem:[#allocation10 + $0xf80] sm:$0xf]
        %v1828 = vld [vmem:[#allocation10 + $0xf84] sm:$0xf]
        %v1829 = vld [vmem:[#allocation10 + $0xf88] sm:$0xf]
        %v1830 = vld [vmem:[#allocation10 + $0xf8c] sm:$0xf]
        %v1831 = vld [vmem:[#allocation10 + $0xf90] sm:$0xf]
        %v1832 = vld [vmem:[#allocation10 + $0xf94] sm:$0xf]
        %v1833 = vld [vmem:[#allocation10 + $0xf98] sm:$0xf]
        %v1834 = vld [vmem:[#allocation10 + $0xf9c] sm:$0xf]
        %v1835 = vld [vmem:[#allocation10 + $0xfa0] sm:$0xf]
        %v1836 = vld [vmem:[#allocation10 + $0xfa4] sm:$0xf]
        %v1837 = vld [vmem:[#allocation10 + $0xfa8] sm:$0xf]
        %v1838 = vld [vmem:[#allocation10 + $0xfac] sm:$0xf]
        %v1839 = vld [vmem:[#allocation10 + $0xfb0] sm:$0xf]
        %v1840 = vld [vmem:[#allocation10 + $0xfb4] sm:$0xf]
        %v1841 = vld [vmem:[#allocation10 + $0xfb8] sm:$0xf]
        %v1842 = vld [vmem:[#allocation10 + $0xfbc] sm:$0xf]
        %v1843 = vld [vmem:[#allocation10 + $0xfc0] sm:$0xf]
        %v1844 = vld [vmem:[#allocation10 + $0xfc4] sm:$0xf]
        %v1845 = vld [vmem:[#allocation10 + $0xfc8] sm:$0xf]
        %v1846 = vld [vmem:[#allocation10 + $0xfcc] sm:$0xf]
        %v1847 = vld [vmem:[#allocation10 + $0xfd0] sm:$0xf]
        %v1848 = vld [vmem:[#allocation10 + $0xfd4] sm:$0xf]
        %v1849 = vld [vmem:[#allocation10 + $0xfd8] sm:$0xf]
        %v1850 = vld [vmem:[#allocation10 + $0xfdc] sm:$0xf]
        %v1851 = vld [vmem:[#allocation10 + $0xfe0] sm:$0xf]
        %v1852 = vld [vmem:[#allocation10 + $0xfe4] sm:$0xf]
        %v1853 = vld [vmem:[#allocation10 + $0xfe8] sm:$0xf]
        %v1854 = vld [vmem:[#allocation10 + $0xfec] sm:$0xf]
        %v1855 = vld [vmem:[#allocation10 + $0xff0] sm:$0xf]
        %v1856 = vld [vmem:[#allocation10 + $0xff4] sm:$0xf]
        %v1857 = vld [vmem:[#allocation10 + $0xff8] sm:$0xf]
        %v1858 = vld [vmem:[#allocation10 + $0xffc] sm:$0xf]
        %v2883 = vunpack.c.l.b16 %v835
        %v2884 = vunpack.c.l.b16 %v836
        %v2885 = vunpack.c.l.b16 %v837
        %v2886 = vunpack.c.l.b16 %v838
        %v2887 = vunpack.c.l.b16 %v839
        %v2888 = vunpack.c.l.b16 %v840
        %v2889 = vunpack.c.l.b16 %v841
        %v2890 = vunpack.c.l.b16 %v842
        %v2891 = vunpack.c.l.b16 %v843
        %v2892 = vunpack.c.l.b16 %v844
        %v2893 = vunpack.c.l.b16 %v845
        %v2894 = vunpack.c.l.b16 %v846
        %v2895 = vunpack.c.l.b16 %v847
        %v2896 = vunpack.c.l.b16 %v848
        %v2897 = vunpack.c.l.b16 %v849
        %v2898 = vunpack.c.l.b16 %v850
        %v2899 = vunpack.c.l.b16 %v851
        %v2900 = vunpack.c.l.b16 %v852
        %v2901 = vunpack.c.l.b16 %v853
        %v2902 = vunpack.c.l.b16 %v854
        %v2903 = vunpack.c.l.b16 %v855
        %v2904 = vunpack.c.l.b16 %v856
        %v2905 = vunpack.c.l.b16 %v857
        %v2906 = vunpack.c.l.b16 %v858
        %v2907 = vunpack.c.l.b16 %v859
        %v2908 = vunpack.c.l.b16 %v860
        %v2909 = vunpack.c.l.b16 %v861
        %v2910 = vunpack.c.l.b16 %v862
        %v2911 = vunpack.c.l.b16 %v863
        %v2912 = vunpack.c.l.b16 %v864
        %v2913 = vunpack.c.l.b16 %v865
        %v2914 = vunpack.c.l.b16 %v866
        %v2915 = vunpack.c.l.b16 %v867
        %v2916 = vunpack.c.l.b16 %v868
        %v2917 = vunpack.c.l.b16 %v869
        %v2918 = vunpack.c.l.b16 %v870
        %v2919 = vunpack.c.l.b16 %v871
        %v2920 = vunpack.c.l.b16 %v872
        %v2921 = vunpack.c.l.b16 %v873
        %v2922 = vunpack.c.l.b16 %v874
        %v2923 = vunpack.c.l.b16 %v875
        %v2924 = vunpack.c.l.b16 %v876
        %v2925 = vunpack.c.l.b16 %v877
        %v2926 = vunpack.c.l.b16 %v878
        %v2927 = vunpack.c.l.b16 %v879
        %v2928 = vunpack.c.l.b16 %v880
        %v2929 = vunpack.c.l.b16 %v881
        %v2930 = vunpack.c.l.b16 %v882
        %v2931 = vunpack.c.l.b16 %v883
        %v2932 = vunpack.c.l.b16 %v884
        %v2933 = vunpack.c.l.b16 %v885
        %v2934 = vunpack.c.l.b16 %v886
        %v2935 = vunpack.c.l.b16 %v887
        %v2936 = vunpack.c.l.b16 %v888
        %v2937 = vunpack.c.l.b16 %v889
        %v2938 = vunpack.c.l.b16 %v890
        %v2939 = vunpack.c.l.b16 %v891
        %v2940 = vunpack.c.l.b16 %v892
        %v2941 = vunpack.c.l.b16 %v893
        %v2942 = vunpack.c.l.b16 %v894
        %v2943 = vunpack.c.l.b16 %v895
        %v2944 = vunpack.c.l.b16 %v896
        %v2945 = vunpack.c.l.b16 %v897
        %v2946 = vunpack.c.l.b16 %v898
        %v2947 = vunpack.c.l.b16 %v899
        %v2948 = vunpack.c.l.b16 %v900
        %v2949 = vunpack.c.l.b16 %v901
        %v2950 = vunpack.c.l.b16 %v902
        %v2951 = vunpack.c.l.b16 %v903
        %v2952 = vunpack.c.l.b16 %v904
        %v2953 = vunpack.c.l.b16 %v905
        %v2954 = vunpack.c.l.b16 %v906
        %v2955 = vunpack.c.l.b16 %v907
        %v2956 = vunpack.c.l.b16 %v908
        %v2957 = vunpack.c.l.b16 %v909
        %v2958 = vunpack.c.l.b16 %v910
        %v2959 = vunpack.c.l.b16 %v911
        %v2960 = vunpack.c.l.b16 %v912
        %v2961 = vunpack.c.l.b16 %v913
        %v2962 = vunpack.c.l.b16 %v914
        %v2963 = vunpack.c.l.b16 %v915
        %v2964 = vunpack.c.l.b16 %v916
        %v2965 = vunpack.c.l.b16 %v917
        %v2966 = vunpack.c.l.b16 %v918
        %v2967 = vunpack.c.l.b16 %v919
        %v2968 = vunpack.c.l.b16 %v920
        %v2969 = vunpack.c.l.b16 %v921
        %v2970 = vunpack.c.l.b16 %v922
        %v2971 = vunpack.c.l.b16 %v923
        %v2972 = vunpack.c.l.b16 %v924
        %v2973 = vunpack.c.l.b16 %v925
        %v2974 = vunpack.c.l.b16 %v926
        %v2975 = vunpack.c.l.b16 %v927
        %v2976 = vunpack.c.l.b16 %v928
        %v2977 = vunpack.c.l.b16 %v929
        %v2978 = vunpack.c.l.b16 %v930
        %v2979 = vunpack.c.l.b16 %v931
        %v2980 = vunpack.c.l.b16 %v932
        %v2981 = vunpack.c.l.b16 %v933
        %v2982 = vunpack.c.l.b16 %v934
        %v2983 = vunpack.c.l.b16 %v935
        %v2984 = vunpack.c.l.b16 %v936
        %v2985 = vunpack.c.l.b16 %v937
        %v2986 = vunpack.c.l.b16 %v938
        %v2987 = vunpack.c.l.b16 %v939
        %v2988 = vunpack.c.l.b16 %v940
        %v2989 = vunpack.c.l.b16 %v941
        %v2990 = vunpack.c.l.b16 %v942
        %v2991 = vunpack.c.l.b16 %v943
        %v2992 = vunpack.c.l.b16 %v944
        %v2993 = vunpack.c.l.b16 %v945
        %v2994 = vunpack.c.l.b16 %v946
        %v2995 = vunpack.c.l.b16 %v947
        %v2996 = vunpack.c.l.b16 %v948
        %v2997 = vunpack.c.l.b16 %v949
        %v2998 = vunpack.c.l.b16 %v950
        %v2999 = vunpack.c.l.b16 %v951
        %v3000 = vunpack.c.l.b16 %v952
        %v3001 = vunpack.c.l.b16 %v953
        %v3002 = vunpack.c.l.b16 %v954
        %v3003 = vunpack.c.l.b16 %v955
        %v3004 = vunpack.c.l.b16 %v956
        %v3005 = vunpack.c.l.b16 %v957
        %v3006 = vunpack.c.l.b16 %v958
        %v3007 = vunpack.c.l.b16 %v959
        %v3008 = vunpack.c.l.b16 %v960
        %v3009 = vunpack.c.l.b16 %v961
        %v3010 = vunpack.c.l.b16 %v962
        %v3011 = vunpack.c.l.b16 %v963
        %v3012 = vunpack.c.l.b16 %v964
        %v3013 = vunpack.c.l.b16 %v965
        %v3014 = vunpack.c.l.b16 %v966
        %v3015 = vunpack.c.l.b16 %v967
        %v3016 = vunpack.c.l.b16 %v968
        %v3017 = vunpack.c.l.b16 %v969
        %v3018 = vunpack.c.l.b16 %v970
        %v3019 = vunpack.c.l.b16 %v971
        %v3020 = vunpack.c.l.b16 %v972
        %v3021 = vunpack.c.l.b16 %v973
        %v3022 = vunpack.c.l.b16 %v974
        %v3023 = vunpack.c.l.b16 %v975
        %v3024 = vunpack.c.l.b16 %v976
        %v3025 = vunpack.c.l.b16 %v977
        %v3026 = vunpack.c.l.b16 %v978
        %v3027 = vunpack.c.l.b16 %v979
        %v3028 = vunpack.c.l.b16 %v980
        %v3029 = vunpack.c.l.b16 %v981
        %v3030 = vunpack.c.l.b16 %v982
        %v3031 = vunpack.c.l.b16 %v983
        %v3032 = vunpack.c.l.b16 %v984
        %v3033 = vunpack.c.l.b16 %v985
        %v3034 = vunpack.c.l.b16 %v986
        %v3035 = vunpack.c.l.b16 %v987
        %v3036 = vunpack.c.l.b16 %v988
        %v3037 = vunpack.c.l.b16 %v989
        %v3038 = vunpack.c.l.b16 %v990
        %v3039 = vunpack.c.l.b16 %v991
        %v3040 = vunpack.c.l.b16 %v992
        %v3041 = vunpack.c.l.b16 %v993
        %v3042 = vunpack.c.l.b16 %v994
        %v3043 = vunpack.c.l.b16 %v995
        %v3044 = vunpack.c.l.b16 %v996
        %v3045 = vunpack.c.l.b16 %v997
        %v3046 = vunpack.c.l.b16 %v998
        %v3047 = vunpack.c.l.b16 %v999
        %v3048 = vunpack.c.l.b16 %v1000
        %v3049 = vunpack.c.l.b16 %v1001
        %v3050 = vunpack.c.l.b16 %v1002
        %v3051 = vunpack.c.l.b16 %v1003
        %v3052 = vunpack.c.l.b16 %v1004
        %v3053 = vunpack.c.l.b16 %v1005
        %v3054 = vunpack.c.l.b16 %v1006
        %v3055 = vunpack.c.l.b16 %v1007
        %v3056 = vunpack.c.l.b16 %v1008
        %v3057 = vunpack.c.l.b16 %v1009
        %v3058 = vunpack.c.l.b16 %v1010
        %v3059 = vunpack.c.l.b16 %v1011
        %v3060 = vunpack.c.l.b16 %v1012
        %v3061 = vunpack.c.l.b16 %v1013
        %v3062 = vunpack.c.l.b16 %v1014
        %v3063 = vunpack.c.l.b16 %v1015
        %v3064 = vunpack.c.l.b16 %v1016
        %v3065 = vunpack.c.l.b16 %v1017
        %v3066 = vunpack.c.l.b16 %v1018
        %v3067 = vunpack.c.l.b16 %v1019
        %v3068 = vunpack.c.l.b16 %v1020
        %v3069 = vunpack.c.l.b16 %v1021
        %v3070 = vunpack.c.l.b16 %v1022
        %v3071 = vunpack.c.l.b16 %v1023
        %v3072 = vunpack.c.l.b16 %v1024
        %v3073 = vunpack.c.l.b16 %v1025
        %v3074 = vunpack.c.l.b16 %v1026
        %v3075 = vunpack.c.l.b16 %v1027
        %v3076 = vunpack.c.l.b16 %v1028
        %v3077 = vunpack.c.l.b16 %v1029
        %v3078 = vunpack.c.l.b16 %v1030
        %v3079 = vunpack.c.l.b16 %v1031
        %v3080 = vunpack.c.l.b16 %v1032
        %v3081 = vunpack.c.l.b16 %v1033
        %v3082 = vunpack.c.l.b16 %v1034
        %v3083 = vunpack.c.l.b16 %v1035
        %v3084 = vunpack.c.l.b16 %v1036
        %v3085 = vunpack.c.l.b16 %v1037
        %v3086 = vunpack.c.l.b16 %v1038
        %v3087 = vunpack.c.l.b16 %v1039
        %v3088 = vunpack.c.l.b16 %v1040
        %v3089 = vunpack.c.l.b16 %v1041
        %v3090 = vunpack.c.l.b16 %v1042
        %v3091 = vunpack.c.l.b16 %v1043
        %v3092 = vunpack.c.l.b16 %v1044
        %v3093 = vunpack.c.l.b16 %v1045
        %v3094 = vunpack.c.l.b16 %v1046
        %v3095 = vunpack.c.l.b16 %v1047
        %v3096 = vunpack.c.l.b16 %v1048
        %v3097 = vunpack.c.l.b16 %v1049
        %v3098 = vunpack.c.l.b16 %v1050
        %v3099 = vunpack.c.l.b16 %v1051
        %v3100 = vunpack.c.l.b16 %v1052
        %v3101 = vunpack.c.l.b16 %v1053
        %v3102 = vunpack.c.l.b16 %v1054
        %v3103 = vunpack.c.l.b16 %v1055
        %v3104 = vunpack.c.l.b16 %v1056
        %v3105 = vunpack.c.l.b16 %v1057
        %v3106 = vunpack.c.l.b16 %v1058
        %v3107 = vunpack.c.l.b16 %v1059
        %v3108 = vunpack.c.l.b16 %v1060
        %v3109 = vunpack.c.l.b16 %v1061
        %v3110 = vunpack.c.l.b16 %v1062
        %v3111 = vunpack.c.l.b16 %v1063
        %v3112 = vunpack.c.l.b16 %v1064
        %v3113 = vunpack.c.l.b16 %v1065
        %v3114 = vunpack.c.l.b16 %v1066
        %v3115 = vunpack.c.l.b16 %v1067
        %v3116 = vunpack.c.l.b16 %v1068
        %v3117 = vunpack.c.l.b16 %v1069
        %v3118 = vunpack.c.l.b16 %v1070
        %v3119 = vunpack.c.l.b16 %v1071
        %v3120 = vunpack.c.l.b16 %v1072
        %v3121 = vunpack.c.l.b16 %v1073
        %v3122 = vunpack.c.l.b16 %v1074
        %v3123 = vunpack.c.l.b16 %v1075
        %v3124 = vunpack.c.l.b16 %v1076
        %v3125 = vunpack.c.l.b16 %v1077
        %v3126 = vunpack.c.l.b16 %v1078
        %v3127 = vunpack.c.l.b16 %v1079
        %v3128 = vunpack.c.l.b16 %v1080
        %v3129 = vunpack.c.l.b16 %v1081
        %v3130 = vunpack.c.l.b16 %v1082
        %v3131 = vunpack.c.l.b16 %v1083
        %v3132 = vunpack.c.l.b16 %v1084
        %v3133 = vunpack.c.l.b16 %v1085
        %v3134 = vunpack.c.l.b16 %v1086
        %v3135 = vunpack.c.l.b16 %v1087
        %v3136 = vunpack.c.l.b16 %v1088
        %v3137 = vunpack.c.l.b16 %v1089
        %v3138 = vunpack.c.l.b16 %v1090
        %v3139 = vunpack.c.l.b16 %v1091
        %v3140 = vunpack.c.l.b16 %v1092
        %v3141 = vunpack.c.l.b16 %v1093
        %v3142 = vunpack.c.l.b16 %v1094
        %v3143 = vunpack.c.l.b16 %v1095
        %v3144 = vunpack.c.l.b16 %v1096
        %v3145 = vunpack.c.l.b16 %v1097
        %v3146 = vunpack.c.l.b16 %v1098
        %v3147 = vunpack.c.l.b16 %v1099
        %v3148 = vunpack.c.l.b16 %v1100
        %v3149 = vunpack.c.l.b16 %v1101
        %v3150 = vunpack.c.l.b16 %v1102
        %v3151 = vunpack.c.l.b16 %v1103
        %v3152 = vunpack.c.l.b16 %v1104
        %v3153 = vunpack.c.l.b16 %v1105
        %v3154 = vunpack.c.l.b16 %v1106
        %v3155 = vunpack.c.l.b16 %v1107
        %v3156 = vunpack.c.l.b16 %v1108
        %v3157 = vunpack.c.l.b16 %v1109
        %v3158 = vunpack.c.l.b16 %v1110
        %v3159 = vunpack.c.l.b16 %v1111
        %v3160 = vunpack.c.l.b16 %v1112
        %v3161 = vunpack.c.l.b16 %v1113
        %v3162 = vunpack.c.l.b16 %v1114
        %v3163 = vunpack.c.l.b16 %v1115
        %v3164 = vunpack.c.l.b16 %v1116
        %v3165 = vunpack.c.l.b16 %v1117
        %v3166 = vunpack.c.l.b16 %v1118
        %v3167 = vunpack.c.l.b16 %v1119
        %v3168 = vunpack.c.l.b16 %v1120
        %v3169 = vunpack.c.l.b16 %v1121
        %v3170 = vunpack.c.l.b16 %v1122
        %v3171 = vunpack.c.l.b16 %v1123
        %v3172 = vunpack.c.l.b16 %v1124
        %v3173 = vunpack.c.l.b16 %v1125
        %v3174 = vunpack.c.l.b16 %v1126
        %v3175 = vunpack.c.l.b16 %v1127
        %v3176 = vunpack.c.l.b16 %v1128
        %v3177 = vunpack.c.l.b16 %v1129
        %v3178 = vunpack.c.l.b16 %v1130
        %v3179 = vunpack.c.l.b16 %v1131
        %v3180 = vunpack.c.l.b16 %v1132
        %v3181 = vunpack.c.l.b16 %v1133
        %v3182 = vunpack.c.l.b16 %v1134
        %v3183 = vunpack.c.l.b16 %v1135
        %v3184 = vunpack.c.l.b16 %v1136
        %v3185 = vunpack.c.l.b16 %v1137
        %v3186 = vunpack.c.l.b16 %v1138
        %v3187 = vunpack.c.l.b16 %v1139
        %v3188 = vunpack.c.l.b16 %v1140
        %v3189 = vunpack.c.l.b16 %v1141
        %v3190 = vunpack.c.l.b16 %v1142
        %v3191 = vunpack.c.l.b16 %v1143
        %v3192 = vunpack.c.l.b16 %v1144
        %v3193 = vunpack.c.l.b16 %v1145
        %v3194 = vunpack.c.l.b16 %v1146
        %v3195 = vunpack.c.l.b16 %v1147
        %v3196 = vunpack.c.l.b16 %v1148
        %v3197 = vunpack.c.l.b16 %v1149
        %v3198 = vunpack.c.l.b16 %v1150
        %v3199 = vunpack.c.l.b16 %v1151
        %v3200 = vunpack.c.l.b16 %v1152
        %v3201 = vunpack.c.l.b16 %v1153
        %v3202 = vunpack.c.l.b16 %v1154
        %v3203 = vunpack.c.l.b16 %v1155
        %v3204 = vunpack.c.l.b16 %v1156
        %v3205 = vunpack.c.l.b16 %v1157
        %v3206 = vunpack.c.l.b16 %v1158
        %v3207 = vunpack.c.l.b16 %v1159
        %v3208 = vunpack.c.l.b16 %v1160
        %v3209 = vunpack.c.l.b16 %v1161
        %v3210 = vunpack.c.l.b16 %v1162
        %v3211 = vunpack.c.l.b16 %v1163
        %v3212 = vunpack.c.l.b16 %v1164
        %v3213 = vunpack.c.l.b16 %v1165
        %v3214 = vunpack.c.l.b16 %v1166
        %v3215 = vunpack.c.l.b16 %v1167
        %v3216 = vunpack.c.l.b16 %v1168
        %v3217 = vunpack.c.l.b16 %v1169
        %v3218 = vunpack.c.l.b16 %v1170
        %v3219 = vunpack.c.l.b16 %v1171
        %v3220 = vunpack.c.l.b16 %v1172
        %v3221 = vunpack.c.l.b16 %v1173
        %v3222 = vunpack.c.l.b16 %v1174
        %v3223 = vunpack.c.l.b16 %v1175
        %v3224 = vunpack.c.l.b16 %v1176
        %v3225 = vunpack.c.l.b16 %v1177
        %v3226 = vunpack.c.l.b16 %v1178
        %v3227 = vunpack.c.l.b16 %v1179
        %v3228 = vunpack.c.l.b16 %v1180
        %v3229 = vunpack.c.l.b16 %v1181
        %v3230 = vunpack.c.l.b16 %v1182
        %v3231 = vunpack.c.l.b16 %v1183
        %v3232 = vunpack.c.l.b16 %v1184
        %v3233 = vunpack.c.l.b16 %v1185
        %v3234 = vunpack.c.l.b16 %v1186
        %v3235 = vunpack.c.l.b16 %v1187
        %v3236 = vunpack.c.l.b16 %v1188
        %v3237 = vunpack.c.l.b16 %v1189
        %v3238 = vunpack.c.l.b16 %v1190
        %v3239 = vunpack.c.l.b16 %v1191
        %v3240 = vunpack.c.l.b16 %v1192
        %v3241 = vunpack.c.l.b16 %v1193
        %v3242 = vunpack.c.l.b16 %v1194
        %v3243 = vunpack.c.l.b16 %v1195
        %v3244 = vunpack.c.l.b16 %v1196
        %v3245 = vunpack.c.l.b16 %v1197
        %v3246 = vunpack.c.l.b16 %v1198
        %v3247 = vunpack.c.l.b16 %v1199
        %v3248 = vunpack.c.l.b16 %v1200
        %v3249 = vunpack.c.l.b16 %v1201
        %v3250 = vunpack.c.l.b16 %v1202
        %v3251 = vunpack.c.l.b16 %v1203
        %v3252 = vunpack.c.l.b16 %v1204
        %v3253 = vunpack.c.l.b16 %v1205
        %v3254 = vunpack.c.l.b16 %v1206
        %v3255 = vunpack.c.l.b16 %v1207
        %v3256 = vunpack.c.l.b16 %v1208
        %v3257 = vunpack.c.l.b16 %v1209
        %v3258 = vunpack.c.l.b16 %v1210
        %v3259 = vunpack.c.l.b16 %v1211
        %v3260 = vunpack.c.l.b16 %v1212
        %v3261 = vunpack.c.l.b16 %v1213
        %v3262 = vunpack.c.l.b16 %v1214
        %v3263 = vunpack.c.l.b16 %v1215
        %v3264 = vunpack.c.l.b16 %v1216
        %v3265 = vunpack.c.l.b16 %v1217
        %v3266 = vunpack.c.l.b16 %v1218
        %v3267 = vunpack.c.l.b16 %v1219
        %v3268 = vunpack.c.l.b16 %v1220
        %v3269 = vunpack.c.l.b16 %v1221
        %v3270 = vunpack.c.l.b16 %v1222
        %v3271 = vunpack.c.l.b16 %v1223
        %v3272 = vunpack.c.l.b16 %v1224
        %v3273 = vunpack.c.l.b16 %v1225
        %v3274 = vunpack.c.l.b16 %v1226
        %v3275 = vunpack.c.l.b16 %v1227
        %v3276 = vunpack.c.l.b16 %v1228
        %v3277 = vunpack.c.l.b16 %v1229
        %v3278 = vunpack.c.l.b16 %v1230
        %v3279 = vunpack.c.l.b16 %v1231
        %v3280 = vunpack.c.l.b16 %v1232
        %v3281 = vunpack.c.l.b16 %v1233
        %v3282 = vunpack.c.l.b16 %v1234
        %v3283 = vunpack.c.l.b16 %v1235
        %v3284 = vunpack.c.l.b16 %v1236
        %v3285 = vunpack.c.l.b16 %v1237
        %v3286 = vunpack.c.l.b16 %v1238
        %v3287 = vunpack.c.l.b16 %v1239
        %v3288 = vunpack.c.l.b16 %v1240
        %v3289 = vunpack.c.l.b16 %v1241
        %v3290 = vunpack.c.l.b16 %v1242
        %v3291 = vunpack.c.l.b16 %v1243
        %v3292 = vunpack.c.l.b16 %v1244
        %v3293 = vunpack.c.l.b16 %v1245
        %v3294 = vunpack.c.l.b16 %v1246
        %v3295 = vunpack.c.l.b16 %v1247
        %v3296 = vunpack.c.l.b16 %v1248
        %v3297 = vunpack.c.l.b16 %v1249
        %v3298 = vunpack.c.l.b16 %v1250
        %v3299 = vunpack.c.l.b16 %v1251
        %v3300 = vunpack.c.l.b16 %v1252
        %v3301 = vunpack.c.l.b16 %v1253
        %v3302 = vunpack.c.l.b16 %v1254
        %v3303 = vunpack.c.l.b16 %v1255
        %v3304 = vunpack.c.l.b16 %v1256
        %v3305 = vunpack.c.l.b16 %v1257
        %v3306 = vunpack.c.l.b16 %v1258
        %v3307 = vunpack.c.l.b16 %v1259
        %v3308 = vunpack.c.l.b16 %v1260
        %v3309 = vunpack.c.l.b16 %v1261
        %v3310 = vunpack.c.l.b16 %v1262
        %v3311 = vunpack.c.l.b16 %v1263
        %v3312 = vunpack.c.l.b16 %v1264
        %v3313 = vunpack.c.l.b16 %v1265
        %v3314 = vunpack.c.l.b16 %v1266
        %v3315 = vunpack.c.l.b16 %v1267
        %v3316 = vunpack.c.l.b16 %v1268
        %v3317 = vunpack.c.l.b16 %v1269
        %v3318 = vunpack.c.l.b16 %v1270
        %v3319 = vunpack.c.l.b16 %v1271
        %v3320 = vunpack.c.l.b16 %v1272
        %v3321 = vunpack.c.l.b16 %v1273
        %v3322 = vunpack.c.l.b16 %v1274
        %v3323 = vunpack.c.l.b16 %v1275
        %v3324 = vunpack.c.l.b16 %v1276
        %v3325 = vunpack.c.l.b16 %v1277
        %v3326 = vunpack.c.l.b16 %v1278
        %v3327 = vunpack.c.l.b16 %v1279
        %v3328 = vunpack.c.l.b16 %v1280
        %v3329 = vunpack.c.l.b16 %v1281
        %v3330 = vunpack.c.l.b16 %v1282
        %v3331 = vunpack.c.l.b16 %v1283
        %v3332 = vunpack.c.l.b16 %v1284
        %v3333 = vunpack.c.l.b16 %v1285
        %v3334 = vunpack.c.l.b16 %v1286
        %v3335 = vunpack.c.l.b16 %v1287
        %v3336 = vunpack.c.l.b16 %v1288
        %v3337 = vunpack.c.l.b16 %v1289
        %v3338 = vunpack.c.l.b16 %v1290
        %v3339 = vunpack.c.l.b16 %v1291
        %v3340 = vunpack.c.l.b16 %v1292
        %v3341 = vunpack.c.l.b16 %v1293
        %v3342 = vunpack.c.l.b16 %v1294
        %v3343 = vunpack.c.l.b16 %v1295
        %v3344 = vunpack.c.l.b16 %v1296
        %v3345 = vunpack.c.l.b16 %v1297
        %v3346 = vunpack.c.l.b16 %v1298
        %v3347 = vunpack.c.l.b16 %v1299
        %v3348 = vunpack.c.l.b16 %v1300
        %v3349 = vunpack.c.l.b16 %v1301
        %v3350 = vunpack.c.l.b16 %v1302
        %v3351 = vunpack.c.l.b16 %v1303
        %v3352 = vunpack.c.l.b16 %v1304
        %v3353 = vunpack.c.l.b16 %v1305
        %v3354 = vunpack.c.l.b16 %v1306
        %v3355 = vunpack.c.l.b16 %v1307
        %v3356 = vunpack.c.l.b16 %v1308
        %v3357 = vunpack.c.l.b16 %v1309
        %v3358 = vunpack.c.l.b16 %v1310
        %v3359 = vunpack.c.l.b16 %v1311
        %v3360 = vunpack.c.l.b16 %v1312
        %v3361 = vunpack.c.l.b16 %v1313
        %v3362 = vunpack.c.l.b16 %v1314
        %v3363 = vunpack.c.l.b16 %v1315
        %v3364 = vunpack.c.l.b16 %v1316
        %v3365 = vunpack.c.l.b16 %v1317
        %v3366 = vunpack.c.l.b16 %v1318
        %v3367 = vunpack.c.l.b16 %v1319
        %v3368 = vunpack.c.l.b16 %v1320
        %v3369 = vunpack.c.l.b16 %v1321
        %v3370 = vunpack.c.l.b16 %v1322
        %v3371 = vunpack.c.l.b16 %v1323
        %v3372 = vunpack.c.l.b16 %v1324
        %v3373 = vunpack.c.l.b16 %v1325
        %v3374 = vunpack.c.l.b16 %v1326
        %v3375 = vunpack.c.l.b16 %v1327
        %v3376 = vunpack.c.l.b16 %v1328
        %v3377 = vunpack.c.l.b16 %v1329
        %v3378 = vunpack.c.l.b16 %v1330
        %v3379 = vunpack.c.l.b16 %v1331
        %v3380 = vunpack.c.l.b16 %v1332
        %v3381 = vunpack.c.l.b16 %v1333
        %v3382 = vunpack.c.l.b16 %v1334
        %v3383 = vunpack.c.l.b16 %v1335
        %v3384 = vunpack.c.l.b16 %v1336
        %v3385 = vunpack.c.l.b16 %v1337
        %v3386 = vunpack.c.l.b16 %v1338
        %v3387 = vunpack.c.l.b16 %v1339
        %v3388 = vunpack.c.l.b16 %v1340
        %v3389 = vunpack.c.l.b16 %v1341
        %v3390 = vunpack.c.l.b16 %v1342
        %v3391 = vunpack.c.l.b16 %v1343
        %v3392 = vunpack.c.l.b16 %v1344
        %v3393 = vunpack.c.l.b16 %v1345
        %v3394 = vunpack.c.l.b16 %v1346
        %v3395 = vunpack.c.l.b16 %v1347
        %v3396 = vunpack.c.l.b16 %v1348
        %v3397 = vunpack.c.l.b16 %v1349
        %v3398 = vunpack.c.l.b16 %v1350
        %v3399 = vunpack.c.l.b16 %v1351
        %v3400 = vunpack.c.l.b16 %v1352
        %v3401 = vunpack.c.l.b16 %v1353
        %v3402 = vunpack.c.l.b16 %v1354
        %v3403 = vunpack.c.l.b16 %v1355
        %v3404 = vunpack.c.l.b16 %v1356
        %v3405 = vunpack.c.l.b16 %v1357
        %v3406 = vunpack.c.l.b16 %v1358
        %v3407 = vunpack.c.l.b16 %v1359
        %v3408 = vunpack.c.l.b16 %v1360
        %v3409 = vunpack.c.l.b16 %v1361
        %v3410 = vunpack.c.l.b16 %v1362
        %v3411 = vunpack.c.l.b16 %v1363
        %v3412 = vunpack.c.l.b16 %v1364
        %v3413 = vunpack.c.l.b16 %v1365
        %v3414 = vunpack.c.l.b16 %v1366
        %v3415 = vunpack.c.l.b16 %v1367
        %v3416 = vunpack.c.l.b16 %v1368
        %v3417 = vunpack.c.l.b16 %v1369
        %v3418 = vunpack.c.l.b16 %v1370
        %v3419 = vunpack.c.l.b16 %v1371
        %v3420 = vunpack.c.l.b16 %v1372
        %v3421 = vunpack.c.l.b16 %v1373
        %v3422 = vunpack.c.l.b16 %v1374
        %v3423 = vunpack.c.l.b16 %v1375
        %v3424 = vunpack.c.l.b16 %v1376
        %v3425 = vunpack.c.l.b16 %v1377
        %v3426 = vunpack.c.l.b16 %v1378
        %v3427 = vunpack.c.l.b16 %v1379
        %v3428 = vunpack.c.l.b16 %v1380
        %v3429 = vunpack.c.l.b16 %v1381
        %v3430 = vunpack.c.l.b16 %v1382
        %v3431 = vunpack.c.l.b16 %v1383
        %v3432 = vunpack.c.l.b16 %v1384
        %v3433 = vunpack.c.l.b16 %v1385
        %v3434 = vunpack.c.l.b16 %v1386
        %v3435 = vunpack.c.l.b16 %v1387
        %v3436 = vunpack.c.l.b16 %v1388
        %v3437 = vunpack.c.l.b16 %v1389
        %v3438 = vunpack.c.l.b16 %v1390
        %v3439 = vunpack.c.l.b16 %v1391
        %v3440 = vunpack.c.l.b16 %v1392
        %v3441 = vunpack.c.l.b16 %v1393
        %v3442 = vunpack.c.l.b16 %v1394
        %v3443 = vunpack.c.l.b16 %v1395
        %v3444 = vunpack.c.l.b16 %v1396
        %v3445 = vunpack.c.l.b16 %v1397
        %v3446 = vunpack.c.l.b16 %v1398
        %v3447 = vunpack.c.l.b16 %v1399
        %v3448 = vunpack.c.l.b16 %v1400
        %v3449 = vunpack.c.l.b16 %v1401
        %v3450 = vunpack.c.l.b16 %v1402
        %v3451 = vunpack.c.l.b16 %v1403
        %v3452 = vunpack.c.l.b16 %v1404
        %v3453 = vunpack.c.l.b16 %v1405
        %v3454 = vunpack.c.l.b16 %v1406
        %v3455 = vunpack.c.l.b16 %v1407
        %v3456 = vunpack.c.l.b16 %v1408
        %v3457 = vunpack.c.l.b16 %v1409
        %v3458 = vunpack.c.l.b16 %v1410
        %v3459 = vunpack.c.l.b16 %v1411
        %v3460 = vunpack.c.l.b16 %v1412
        %v3461 = vunpack.c.l.b16 %v1413
        %v3462 = vunpack.c.l.b16 %v1414
        %v3463 = vunpack.c.l.b16 %v1415
        %v3464 = vunpack.c.l.b16 %v1416
        %v3465 = vunpack.c.l.b16 %v1417
        %v3466 = vunpack.c.l.b16 %v1418
        %v3467 = vunpack.c.l.b16 %v1419
        %v3468 = vunpack.c.l.b16 %v1420
        %v3469 = vunpack.c.l.b16 %v1421
        %v3470 = vunpack.c.l.b16 %v1422
        %v3471 = vunpack.c.l.b16 %v1423
        %v3472 = vunpack.c.l.b16 %v1424
        %v3473 = vunpack.c.l.b16 %v1425
        %v3474 = vunpack.c.l.b16 %v1426
        %v3475 = vunpack.c.l.b16 %v1427
        %v3476 = vunpack.c.l.b16 %v1428
        %v3477 = vunpack.c.l.b16 %v1429
        %v3478 = vunpack.c.l.b16 %v1430
        %v3479 = vunpack.c.l.b16 %v1431
        %v3480 = vunpack.c.l.b16 %v1432
        %v3481 = vunpack.c.l.b16 %v1433
        %v3482 = vunpack.c.l.b16 %v1434
        %v3483 = vunpack.c.l.b16 %v1435
        %v3484 = vunpack.c.l.b16 %v1436
        %v3485 = vunpack.c.l.b16 %v1437
        %v3486 = vunpack.c.l.b16 %v1438
        %v3487 = vunpack.c.l.b16 %v1439
        %v3488 = vunpack.c.l.b16 %v1440
        %v3489 = vunpack.c.l.b16 %v1441
        %v3490 = vunpack.c.l.b16 %v1442
        %v3491 = vunpack.c.l.b16 %v1443
        %v3492 = vunpack.c.l.b16 %v1444
        %v3493 = vunpack.c.l.b16 %v1445
        %v3494 = vunpack.c.l.b16 %v1446
        %v3495 = vunpack.c.l.b16 %v1447
        %v3496 = vunpack.c.l.b16 %v1448
        %v3497 = vunpack.c.l.b16 %v1449
        %v3498 = vunpack.c.l.b16 %v1450
        %v3499 = vunpack.c.l.b16 %v1451
        %v3500 = vunpack.c.l.b16 %v1452
        %v3501 = vunpack.c.l.b16 %v1453
        %v3502 = vunpack.c.l.b16 %v1454
        %v3503 = vunpack.c.l.b16 %v1455
        %v3504 = vunpack.c.l.b16 %v1456
        %v3505 = vunpack.c.l.b16 %v1457
        %v3506 = vunpack.c.l.b16 %v1458
        %v3507 = vunpack.c.l.b16 %v1459
        %v3508 = vunpack.c.l.b16 %v1460
        %v3509 = vunpack.c.l.b16 %v1461
        %v3510 = vunpack.c.l.b16 %v1462
        %v3511 = vunpack.c.l.b16 %v1463
        %v3512 = vunpack.c.l.b16 %v1464
        %v3513 = vunpack.c.l.b16 %v1465
        %v3514 = vunpack.c.l.b16 %v1466
        %v3515 = vunpack.c.l.b16 %v1467
        %v3516 = vunpack.c.l.b16 %v1468
        %v3517 = vunpack.c.l.b16 %v1469
        %v3518 = vunpack.c.l.b16 %v1470
        %v3519 = vunpack.c.l.b16 %v1471
        %v3520 = vunpack.c.l.b16 %v1472
        %v3521 = vunpack.c.l.b16 %v1473
        %v3522 = vunpack.c.l.b16 %v1474
        %v3523 = vunpack.c.l.b16 %v1475
        %v3524 = vunpack.c.l.b16 %v1476
        %v3525 = vunpack.c.l.b16 %v1477
        %v3526 = vunpack.c.l.b16 %v1478
        %v3527 = vunpack.c.l.b16 %v1479
        %v3528 = vunpack.c.l.b16 %v1480
        %v3529 = vunpack.c.l.b16 %v1481
        %v3530 = vunpack.c.l.b16 %v1482
        %v3531 = vunpack.c.l.b16 %v1483
        %v3532 = vunpack.c.l.b16 %v1484
        %v3533 = vunpack.c.l.b16 %v1485
        %v3534 = vunpack.c.l.b16 %v1486
        %v3535 = vunpack.c.l.b16 %v1487
        %v3536 = vunpack.c.l.b16 %v1488
        %v3537 = vunpack.c.l.b16 %v1489
        %v3538 = vunpack.c.l.b16 %v1490
        %v3539 = vunpack.c.l.b16 %v1491
        %v3540 = vunpack.c.l.b16 %v1492
        %v3541 = vunpack.c.l.b16 %v1493
        %v3542 = vunpack.c.l.b16 %v1494
        %v3543 = vunpack.c.l.b16 %v1495
        %v3544 = vunpack.c.l.b16 %v1496
        %v3545 = vunpack.c.l.b16 %v1497
        %v3546 = vunpack.c.l.b16 %v1498
        %v3547 = vunpack.c.l.b16 %v1499
        %v3548 = vunpack.c.l.b16 %v1500
        %v3549 = vunpack.c.l.b16 %v1501
        %v3550 = vunpack.c.l.b16 %v1502
        %v3551 = vunpack.c.l.b16 %v1503
        %v3552 = vunpack.c.l.b16 %v1504
        %v3553 = vunpack.c.l.b16 %v1505
        %v3554 = vunpack.c.l.b16 %v1506
        %v3555 = vunpack.c.l.b16 %v1507
        %v3556 = vunpack.c.l.b16 %v1508
        %v3557 = vunpack.c.l.b16 %v1509
        %v3558 = vunpack.c.l.b16 %v1510
        %v3559 = vunpack.c.l.b16 %v1511
        %v3560 = vunpack.c.l.b16 %v1512
        %v3561 = vunpack.c.l.b16 %v1513
        %v3562 = vunpack.c.l.b16 %v1514
        %v3563 = vunpack.c.l.b16 %v1515
        %v3564 = vunpack.c.l.b16 %v1516
        %v3565 = vunpack.c.l.b16 %v1517
        %v3566 = vunpack.c.l.b16 %v1518
        %v3567 = vunpack.c.l.b16 %v1519
        %v3568 = vunpack.c.l.b16 %v1520
        %v3569 = vunpack.c.l.b16 %v1521
        %v3570 = vunpack.c.l.b16 %v1522
        %v3571 = vunpack.c.l.b16 %v1523
        %v3572 = vunpack.c.l.b16 %v1524
        %v3573 = vunpack.c.l.b16 %v1525
        %v3574 = vunpack.c.l.b16 %v1526
        %v3575 = vunpack.c.l.b16 %v1527
        %v3576 = vunpack.c.l.b16 %v1528
        %v3577 = vunpack.c.l.b16 %v1529
        %v3578 = vunpack.c.l.b16 %v1530
        %v3579 = vunpack.c.l.b16 %v1531
        %v3580 = vunpack.c.l.b16 %v1532
        %v3581 = vunpack.c.l.b16 %v1533
        %v3582 = vunpack.c.l.b16 %v1534
        %v3583 = vunpack.c.l.b16 %v1535
        %v3584 = vunpack.c.l.b16 %v1536
        %v3585 = vunpack.c.l.b16 %v1537
        %v3586 = vunpack.c.l.b16 %v1538
        %v3587 = vunpack.c.l.b16 %v1539
        %v3588 = vunpack.c.l.b16 %v1540
        %v3589 = vunpack.c.l.b16 %v1541
        %v3590 = vunpack.c.l.b16 %v1542
        %v3591 = vunpack.c.l.b16 %v1543
        %v3592 = vunpack.c.l.b16 %v1544
        %v3593 = vunpack.c.l.b16 %v1545
        %v3594 = vunpack.c.l.b16 %v1546
        %v3595 = vunpack.c.l.b16 %v1547
        %v3596 = vunpack.c.l.b16 %v1548
        %v3597 = vunpack.c.l.b16 %v1549
        %v3598 = vunpack.c.l.b16 %v1550
        %v3599 = vunpack.c.l.b16 %v1551
        %v3600 = vunpack.c.l.b16 %v1552
        %v3601 = vunpack.c.l.b16 %v1553
        %v3602 = vunpack.c.l.b16 %v1554
        %v3603 = vunpack.c.l.b16 %v1555
        %v3604 = vunpack.c.l.b16 %v1556
        %v3605 = vunpack.c.l.b16 %v1557
        %v3606 = vunpack.c.l.b16 %v1558
        %v3607 = vunpack.c.l.b16 %v1559
        %v3608 = vunpack.c.l.b16 %v1560
        %v3609 = vunpack.c.l.b16 %v1561
        %v3610 = vunpack.c.l.b16 %v1562
        %v3611 = vunpack.c.l.b16 %v1563
        %v3612 = vunpack.c.l.b16 %v1564
        %v3613 = vunpack.c.l.b16 %v1565
        %v3614 = vunpack.c.l.b16 %v1566
        %v3615 = vunpack.c.l.b16 %v1567
        %v3616 = vunpack.c.l.b16 %v1568
        %v3617 = vunpack.c.l.b16 %v1569
        %v3618 = vunpack.c.l.b16 %v1570
        %v3619 = vunpack.c.l.b16 %v1571
        %v3620 = vunpack.c.l.b16 %v1572
        %v3621 = vunpack.c.l.b16 %v1573
        %v3622 = vunpack.c.l.b16 %v1574
        %v3623 = vunpack.c.l.b16 %v1575
        %v3624 = vunpack.c.l.b16 %v1576
        %v3625 = vunpack.c.l.b16 %v1577
        %v3626 = vunpack.c.l.b16 %v1578
        %v3627 = vunpack.c.l.b16 %v1579
        %v3628 = vunpack.c.l.b16 %v1580
        %v3629 = vunpack.c.l.b16 %v1581
        %v3630 = vunpack.c.l.b16 %v1582
        %v3631 = vunpack.c.l.b16 %v1583
        %v3632 = vunpack.c.l.b16 %v1584
        %v3633 = vunpack.c.l.b16 %v1585
        %v3634 = vunpack.c.l.b16 %v1586
        %v3635 = vunpack.c.l.b16 %v1587
        %v3636 = vunpack.c.l.b16 %v1588
        %v3637 = vunpack.c.l.b16 %v1589
        %v3638 = vunpack.c.l.b16 %v1590
        %v3639 = vunpack.c.l.b16 %v1591
        %v3640 = vunpack.c.l.b16 %v1592
        %v3641 = vunpack.c.l.b16 %v1593
        %v3642 = vunpack.c.l.b16 %v1594
        %v3643 = vunpack.c.l.b16 %v1595
        %v3644 = vunpack.c.l.b16 %v1596
        %v3645 = vunpack.c.l.b16 %v1597
        %v3646 = vunpack.c.l.b16 %v1598
        %v3647 = vunpack.c.l.b16 %v1599
        %v3648 = vunpack.c.l.b16 %v1600
        %v3649 = vunpack.c.l.b16 %v1601
        %v3650 = vunpack.c.l.b16 %v1602
        %v3651 = vunpack.c.l.b16 %v1603
        %v3652 = vunpack.c.l.b16 %v1604
        %v3653 = vunpack.c.l.b16 %v1605
        %v3654 = vunpack.c.l.b16 %v1606
        %v3655 = vunpack.c.l.b16 %v1607
        %v3656 = vunpack.c.l.b16 %v1608
        %v3657 = vunpack.c.l.b16 %v1609
        %v3658 = vunpack.c.l.b16 %v1610
        %v3659 = vunpack.c.l.b16 %v1611
        %v3660 = vunpack.c.l.b16 %v1612
        %v3661 = vunpack.c.l.b16 %v1613
        %v3662 = vunpack.c.l.b16 %v1614
        %v3663 = vunpack.c.l.b16 %v1615
        %v3664 = vunpack.c.l.b16 %v1616
        %v3665 = vunpack.c.l.b16 %v1617
        %v3666 = vunpack.c.l.b16 %v1618
        %v3667 = vunpack.c.l.b16 %v1619
        %v3668 = vunpack.c.l.b16 %v1620
        %v3669 = vunpack.c.l.b16 %v1621
        %v3670 = vunpack.c.l.b16 %v1622
        %v3671 = vunpack.c.l.b16 %v1623
        %v3672 = vunpack.c.l.b16 %v1624
        %v3673 = vunpack.c.l.b16 %v1625
        %v3674 = vunpack.c.l.b16 %v1626
        %v3675 = vunpack.c.l.b16 %v1627
        %v3676 = vunpack.c.l.b16 %v1628
        %v3677 = vunpack.c.l.b16 %v1629
        %v3678 = vunpack.c.l.b16 %v1630
        %v3679 = vunpack.c.l.b16 %v1631
        %v3680 = vunpack.c.l.b16 %v1632
        %v3681 = vunpack.c.l.b16 %v1633
        %v3682 = vunpack.c.l.b16 %v1634
        %v3683 = vunpack.c.l.b16 %v1635
        %v3684 = vunpack.c.l.b16 %v1636
        %v3685 = vunpack.c.l.b16 %v1637
        %v3686 = vunpack.c.l.b16 %v1638
        %v3687 = vunpack.c.l.b16 %v1639
        %v3688 = vunpack.c.l.b16 %v1640
        %v3689 = vunpack.c.l.b16 %v1641
        %v3690 = vunpack.c.l.b16 %v1642
        %v3691 = vunpack.c.l.b16 %v1643
        %v3692 = vunpack.c.l.b16 %v1644
        %v3693 = vunpack.c.l.b16 %v1645
        %v3694 = vunpack.c.l.b16 %v1646
        %v3695 = vunpack.c.l.b16 %v1647
        %v3696 = vunpack.c.l.b16 %v1648
        %v3697 = vunpack.c.l.b16 %v1649
        %v3698 = vunpack.c.l.b16 %v1650
        %v3699 = vunpack.c.l.b16 %v1651
        %v3700 = vunpack.c.l.b16 %v1652
        %v3701 = vunpack.c.l.b16 %v1653
        %v3702 = vunpack.c.l.b16 %v1654
        %v3703 = vunpack.c.l.b16 %v1655
        %v3704 = vunpack.c.l.b16 %v1656
        %v3705 = vunpack.c.l.b16 %v1657
        %v3706 = vunpack.c.l.b16 %v1658
        %v3707 = vunpack.c.l.b16 %v1659
        %v3708 = vunpack.c.l.b16 %v1660
        %v3709 = vunpack.c.l.b16 %v1661
        %v3710 = vunpack.c.l.b16 %v1662
        %v3711 = vunpack.c.l.b16 %v1663
        %v3712 = vunpack.c.l.b16 %v1664
        %v3713 = vunpack.c.l.b16 %v1665
        %v3714 = vunpack.c.l.b16 %v1666
        %v3715 = vunpack.c.l.b16 %v1667
        %v3716 = vunpack.c.l.b16 %v1668
        %v3717 = vunpack.c.l.b16 %v1669
        %v3718 = vunpack.c.l.b16 %v1670
        %v3719 = vunpack.c.l.b16 %v1671
        %v3720 = vunpack.c.l.b16 %v1672
        %v3721 = vunpack.c.l.b16 %v1673
        %v3722 = vunpack.c.l.b16 %v1674
        %v3723 = vunpack.c.l.b16 %v1675
        %v3724 = vunpack.c.l.b16 %v1676
        %v3725 = vunpack.c.l.b16 %v1677
        %v3726 = vunpack.c.l.b16 %v1678
        %v3727 = vunpack.c.l.b16 %v1679
        %v3728 = vunpack.c.l.b16 %v1680
        %v3729 = vunpack.c.l.b16 %v1681
        %v3730 = vunpack.c.l.b16 %v1682
        %v3731 = vunpack.c.l.b16 %v1683
        %v3732 = vunpack.c.l.b16 %v1684
        %v3733 = vunpack.c.l.b16 %v1685
        %v3734 = vunpack.c.l.b16 %v1686
        %v3735 = vunpack.c.l.b16 %v1687
        %v3736 = vunpack.c.l.b16 %v1688
        %v3737 = vunpack.c.l.b16 %v1689
        %v3738 = vunpack.c.l.b16 %v1690
        %v3739 = vunpack.c.l.b16 %v1691
        %v3740 = vunpack.c.l.b16 %v1692
        %v3741 = vunpack.c.l.b16 %v1693
        %v3742 = vunpack.c.l.b16 %v1694
        %v3743 = vunpack.c.l.b16 %v1695
        %v3744 = vunpack.c.l.b16 %v1696
        %v3745 = vunpack.c.l.b16 %v1697
        %v3746 = vunpack.c.l.b16 %v1698
        %v3747 = vunpack.c.l.b16 %v1699
        %v3748 = vunpack.c.l.b16 %v1700
        %v3749 = vunpack.c.l.b16 %v1701
        %v3750 = vunpack.c.l.b16 %v1702
        %v3751 = vunpack.c.l.b16 %v1703
        %v3752 = vunpack.c.l.b16 %v1704
        %v3753 = vunpack.c.l.b16 %v1705
        %v3754 = vunpack.c.l.b16 %v1706
        %v3755 = vunpack.c.l.b16 %v1707
        %v3756 = vunpack.c.l.b16 %v1708
        %v3757 = vunpack.c.l.b16 %v1709
        %v3758 = vunpack.c.l.b16 %v1710
        %v3759 = vunpack.c.l.b16 %v1711
        %v3760 = vunpack.c.l.b16 %v1712
        %v3761 = vunpack.c.l.b16 %v1713
        %v3762 = vunpack.c.l.b16 %v1714
        %v3763 = vunpack.c.l.b16 %v1715
        %v3764 = vunpack.c.l.b16 %v1716
        %v3765 = vunpack.c.l.b16 %v1717
        %v3766 = vunpack.c.l.b16 %v1718
        %v3767 = vunpack.c.l.b16 %v1719
        %v3768 = vunpack.c.l.b16 %v1720
        %v3769 = vunpack.c.l.b16 %v1721
        %v3770 = vunpack.c.l.b16 %v1722
        %v3771 = vunpack.c.l.b16 %v1723
        %v3772 = vunpack.c.l.b16 %v1724
        %v3773 = vunpack.c.l.b16 %v1725
        %v3774 = vunpack.c.l.b16 %v1726
        %v3775 = vunpack.c.l.b16 %v1727
        %v3776 = vunpack.c.l.b16 %v1728
        %v3777 = vunpack.c.l.b16 %v1729
        %v3778 = vunpack.c.l.b16 %v1730
        %v3779 = vunpack.c.l.b16 %v1731
        %v3780 = vunpack.c.l.b16 %v1732
        %v3781 = vunpack.c.l.b16 %v1733
        %v3782 = vunpack.c.l.b16 %v1734
        %v3783 = vunpack.c.l.b16 %v1735
        %v3784 = vunpack.c.l.b16 %v1736
        %v3785 = vunpack.c.l.b16 %v1737
        %v3786 = vunpack.c.l.b16 %v1738
        %v3787 = vunpack.c.l.b16 %v1739
        %v3788 = vunpack.c.l.b16 %v1740
        %v3789 = vunpack.c.l.b16 %v1741
        %v3790 = vunpack.c.l.b16 %v1742
        %v3791 = vunpack.c.l.b16 %v1743
        %v3792 = vunpack.c.l.b16 %v1744
        %v3793 = vunpack.c.l.b16 %v1745
        %v3794 = vunpack.c.l.b16 %v1746
        %v3795 = vunpack.c.l.b16 %v1747
        %v3796 = vunpack.c.l.b16 %v1748
        %v3797 = vunpack.c.l.b16 %v1749
        %v3798 = vunpack.c.l.b16 %v1750
        %v3799 = vunpack.c.l.b16 %v1751
        %v3800 = vunpack.c.l.b16 %v1752
        %v3801 = vunpack.c.l.b16 %v1753
        %v3802 = vunpack.c.l.b16 %v1754
        %v3803 = vunpack.c.l.b16 %v1755
        %v3804 = vunpack.c.l.b16 %v1756
        %v3805 = vunpack.c.l.b16 %v1757
        %v3806 = vunpack.c.l.b16 %v1758
        %v3807 = vunpack.c.l.b16 %v1759
        %v3808 = vunpack.c.l.b16 %v1760
        %v3809 = vunpack.c.l.b16 %v1761
        %v3810 = vunpack.c.l.b16 %v1762
        %v3811 = vunpack.c.l.b16 %v1763
        %v3812 = vunpack.c.l.b16 %v1764
        %v3813 = vunpack.c.l.b16 %v1765
        %v3814 = vunpack.c.l.b16 %v1766
        %v3815 = vunpack.c.l.b16 %v1767
        %v3816 = vunpack.c.l.b16 %v1768
        %v3817 = vunpack.c.l.b16 %v1769
        %v3818 = vunpack.c.l.b16 %v1770
        %v3819 = vunpack.c.l.b16 %v1771
        %v3820 = vunpack.c.l.b16 %v1772
        %v3821 = vunpack.c.l.b16 %v1773
        %v3822 = vunpack.c.l.b16 %v1774
        %v3823 = vunpack.c.l.b16 %v1775
        %v3824 = vunpack.c.l.b16 %v1776
        %v3825 = vunpack.c.l.b16 %v1777
        %v3826 = vunpack.c.l.b16 %v1778
        %v3827 = vunpack.c.l.b16 %v1779
        %v3828 = vunpack.c.l.b16 %v1780
        %v3829 = vunpack.c.l.b16 %v1781
        %v3830 = vunpack.c.l.b16 %v1782
        %v3831 = vunpack.c.l.b16 %v1783
        %v3832 = vunpack.c.l.b16 %v1784
        %v3833 = vunpack.c.l.b16 %v1785
        %v3834 = vunpack.c.l.b16 %v1786
        %v3835 = vunpack.c.l.b16 %v1787
        %v3836 = vunpack.c.l.b16 %v1788
        %v3837 = vunpack.c.l.b16 %v1789
        %v3838 = vunpack.c.l.b16 %v1790
        %v3839 = vunpack.c.l.b16 %v1791
        %v3840 = vunpack.c.l.b16 %v1792
        %v3841 = vunpack.c.l.b16 %v1793
        %v3842 = vunpack.c.l.b16 %v1794
        %v3843 = vunpack.c.l.b16 %v1795
        %v3844 = vunpack.c.l.b16 %v1796
        %v3845 = vunpack.c.l.b16 %v1797
        %v3846 = vunpack.c.l.b16 %v1798
        %v3847 = vunpack.c.l.b16 %v1799
        %v3848 = vunpack.c.l.b16 %v1800
        %v3849 = vunpack.c.l.b16 %v1801
        %v3850 = vunpack.c.l.b16 %v1802
        %v3851 = vunpack.c.l.b16 %v1803
        %v3852 = vunpack.c.l.b16 %v1804
        %v3853 = vunpack.c.l.b16 %v1805
        %v3854 = vunpack.c.l.b16 %v1806
        %v3855 = vunpack.c.l.b16 %v1807
        %v3856 = vunpack.c.l.b16 %v1808
        %v3857 = vunpack.c.l.b16 %v1809
        %v3858 = vunpack.c.l.b16 %v1810
        %v3859 = vunpack.c.l.b16 %v1811
        %v3860 = vunpack.c.l.b16 %v1812
        %v3861 = vunpack.c.l.b16 %v1813
        %v3862 = vunpack.c.l.b16 %v1814
        %v3863 = vunpack.c.l.b16 %v1815
        %v3864 = vunpack.c.l.b16 %v1816
        %v3865 = vunpack.c.l.b16 %v1817
        %v3866 = vunpack.c.l.b16 %v1818
        %v3867 = vunpack.c.l.b16 %v1819
        %v3868 = vunpack.c.l.b16 %v1820
        %v3869 = vunpack.c.l.b16 %v1821
        %v3870 = vunpack.c.l.b16 %v1822
        %v3871 = vunpack.c.l.b16 %v1823
        %v3872 = vunpack.c.l.b16 %v1824
        %v3873 = vunpack.c.l.b16 %v1825
        %v3874 = vunpack.c.l.b16 %v1826
        %v3875 = vunpack.c.l.b16 %v1827
        %v3876 = vunpack.c.l.b16 %v1828
        %v3877 = vunpack.c.l.b16 %v1829
        %v3878 = vunpack.c.l.b16 %v1830
        %v3879 = vunpack.c.l.b16 %v1831
        %v3880 = vunpack.c.l.b16 %v1832
        %v3881 = vunpack.c.l.b16 %v1833
        %v3882 = vunpack.c.l.b16 %v1834
        %v3883 = vunpack.c.l.b16 %v1835
        %v3884 = vunpack.c.l.b16 %v1836
        %v3885 = vunpack.c.l.b16 %v1837
        %v3886 = vunpack.c.l.b16 %v1838
        %v3887 = vunpack.c.l.b16 %v1839
        %v3888 = vunpack.c.l.b16 %v1840
        %v3889 = vunpack.c.l.b16 %v1841
        %v3890 = vunpack.c.l.b16 %v1842
        %v3891 = vunpack.c.l.b16 %v1843
        %v3892 = vunpack.c.l.b16 %v1844
        %v3893 = vunpack.c.l.b16 %v1845
        %v3894 = vunpack.c.l.b16 %v1846
        %v3895 = vunpack.c.l.b16 %v1847
        %v3896 = vunpack.c.l.b16 %v1848
        %v3897 = vunpack.c.l.b16 %v1849
        %v3898 = vunpack.c.l.b16 %v1850
        %v3899 = vunpack.c.l.b16 %v1851
        %v3900 = vunpack.c.l.b16 %v1852
        %v3901 = vunpack.c.l.b16 %v1853
        %v3902 = vunpack.c.l.b16 %v1854
        %v3903 = vunpack.c.l.b16 %v1855
        %v3904 = vunpack.c.l.b16 %v1856
        %v3905 = vunpack.c.l.b16 %v1857
        %v3906 = vunpack.c.l.b16 %v1858
        %v3907 = vpack.c.b16 %v2884, %v2883
        %v3908 = vpack.c.b16 %v2886, %v2885
        %v3909 = vpack.c.b16 %v2888, %v2887
        %v3910 = vpack.c.b16 %v2890, %v2889
        %v3911 = vpack.c.b16 %v2892, %v2891
        %v3912 = vpack.c.b16 %v2894, %v2893
        %v3913 = vpack.c.b16 %v2896, %v2895
        %v3914 = vpack.c.b16 %v2898, %v2897
        %v3915 = vpack.c.b16 %v2900, %v2899
        %v3916 = vpack.c.b16 %v2902, %v2901
        %v3917 = vpack.c.b16 %v2904, %v2903
        %v3918 = vpack.c.b16 %v2906, %v2905
        %v3919 = vpack.c.b16 %v2908, %v2907
        %v3920 = vpack.c.b16 %v2910, %v2909
        %v3921 = vpack.c.b16 %v2912, %v2911
        %v3922 = vpack.c.b16 %v2914, %v2913
        %v3923 = vpack.c.b16 %v2916, %v2915
        %v3924 = vpack.c.b16 %v2918, %v2917
        %v3925 = vpack.c.b16 %v2920, %v2919
        %v3926 = vpack.c.b16 %v2922, %v2921
        %v3927 = vpack.c.b16 %v2924, %v2923
        %v3928 = vpack.c.b16 %v2926, %v2925
        %v3929 = vpack.c.b16 %v2928, %v2927
        %v3930 = vpack.c.b16 %v2930, %v2929
        %v3931 = vpack.c.b16 %v2932, %v2931
        %v3932 = vpack.c.b16 %v2934, %v2933
        %v3933 = vpack.c.b16 %v2936, %v2935
        %v3934 = vpack.c.b16 %v2938, %v2937
        %v3935 = vpack.c.b16 %v2940, %v2939
        %v3936 = vpack.c.b16 %v2942, %v2941
        %v3937 = vpack.c.b16 %v2944, %v2943
        %v3938 = vpack.c.b16 %v2946, %v2945
        %v3939 = vpack.c.b16 %v2948, %v2947
        %v3940 = vpack.c.b16 %v2950, %v2949
        %v3941 = vpack.c.b16 %v2952, %v2951
        %v3942 = vpack.c.b16 %v2954, %v2953
        %v3943 = vpack.c.b16 %v2956, %v2955
        %v3944 = vpack.c.b16 %v2958, %v2957
        %v3945 = vpack.c.b16 %v2960, %v2959
        %v3946 = vpack.c.b16 %v2962, %v2961
        %v3947 = vpack.c.b16 %v2964, %v2963
        %v3948 = vpack.c.b16 %v2966, %v2965
        %v3949 = vpack.c.b16 %v2968, %v2967
        %v3950 = vpack.c.b16 %v2970, %v2969
        %v3951 = vpack.c.b16 %v2972, %v2971
        %v3952 = vpack.c.b16 %v2974, %v2973
        %v3953 = vpack.c.b16 %v2976, %v2975
        %v3954 = vpack.c.b16 %v2978, %v2977
        %v3955 = vpack.c.b16 %v2980, %v2979
        %v3956 = vpack.c.b16 %v2982, %v2981
        %v3957 = vpack.c.b16 %v2984, %v2983
        %v3958 = vpack.c.b16 %v2986, %v2985
        %v3959 = vpack.c.b16 %v2988, %v2987
        %v3960 = vpack.c.b16 %v2990, %v2989
        %v3961 = vpack.c.b16 %v2992, %v2991
        %v3962 = vpack.c.b16 %v2994, %v2993
        %v3963 = vpack.c.b16 %v2996, %v2995
        %v3964 = vpack.c.b16 %v2998, %v2997
        %v3965 = vpack.c.b16 %v3000, %v2999
        %v3966 = vpack.c.b16 %v3002, %v3001
        %v3967 = vpack.c.b16 %v3004, %v3003
        %v3968 = vpack.c.b16 %v3006, %v3005
        %v3969 = vpack.c.b16 %v3008, %v3007
        %v3970 = vpack.c.b16 %v3010, %v3009
        %v3971 = vpack.c.b16 %v3012, %v3011
        %v3972 = vpack.c.b16 %v3014, %v3013
        %v3973 = vpack.c.b16 %v3016, %v3015
        %v3974 = vpack.c.b16 %v3018, %v3017
        %v3975 = vpack.c.b16 %v3020, %v3019
        %v3976 = vpack.c.b16 %v3022, %v3021
        %v3977 = vpack.c.b16 %v3024, %v3023
        %v3978 = vpack.c.b16 %v3026, %v3025
        %v3979 = vpack.c.b16 %v3028, %v3027
        %v3980 = vpack.c.b16 %v3030, %v3029
        %v3981 = vpack.c.b16 %v3032, %v3031
        %v3982 = vpack.c.b16 %v3034, %v3033
        %v3983 = vpack.c.b16 %v3036, %v3035
        %v3984 = vpack.c.b16 %v3038, %v3037
        %v3985 = vpack.c.b16 %v3040, %v3039
        %v3986 = vpack.c.b16 %v3042, %v3041
        %v3987 = vpack.c.b16 %v3044, %v3043
        %v3988 = vpack.c.b16 %v3046, %v3045
        %v3989 = vpack.c.b16 %v3048, %v3047
        %v3990 = vpack.c.b16 %v3050, %v3049
        %v3991 = vpack.c.b16 %v3052, %v3051
        %v3992 = vpack.c.b16 %v3054, %v3053
        %v3993 = vpack.c.b16 %v3056, %v3055
        %v3994 = vpack.c.b16 %v3058, %v3057
        %v3995 = vpack.c.b16 %v3060, %v3059
        %v3996 = vpack.c.b16 %v3062, %v3061
        %v3997 = vpack.c.b16 %v3064, %v3063
        %v3998 = vpack.c.b16 %v3066, %v3065
        %v3999 = vpack.c.b16 %v3068, %v3067
        %v4000 = vpack.c.b16 %v3070, %v3069
        %v4001 = vpack.c.b16 %v3072, %v3071
        %v4002 = vpack.c.b16 %v3074, %v3073
        %v4003 = vpack.c.b16 %v3076, %v3075
        %v4004 = vpack.c.b16 %v3078, %v3077
        %v4005 = vpack.c.b16 %v3080, %v3079
        %v4006 = vpack.c.b16 %v3082, %v3081
        %v4007 = vpack.c.b16 %v3084, %v3083
        %v4008 = vpack.c.b16 %v3086, %v3085
        %v4009 = vpack.c.b16 %v3088, %v3087
        %v4010 = vpack.c.b16 %v3090, %v3089
        %v4011 = vpack.c.b16 %v3092, %v3091
        %v4012 = vpack.c.b16 %v3094, %v3093
        %v4013 = vpack.c.b16 %v3096, %v3095
        %v4014 = vpack.c.b16 %v3098, %v3097
        %v4015 = vpack.c.b16 %v3100, %v3099
        %v4016 = vpack.c.b16 %v3102, %v3101
        %v4017 = vpack.c.b16 %v3104, %v3103
        %v4018 = vpack.c.b16 %v3106, %v3105
        %v4019 = vpack.c.b16 %v3108, %v3107
        %v4020 = vpack.c.b16 %v3110, %v3109
        %v4021 = vpack.c.b16 %v3112, %v3111
        %v4022 = vpack.c.b16 %v3114, %v3113
        %v4023 = vpack.c.b16 %v3116, %v3115
        %v4024 = vpack.c.b16 %v3118, %v3117
        %v4025 = vpack.c.b16 %v3120, %v3119
        %v4026 = vpack.c.b16 %v3122, %v3121
        %v4027 = vpack.c.b16 %v3124, %v3123
        %v4028 = vpack.c.b16 %v3126, %v3125
        %v4029 = vpack.c.b16 %v3128, %v3127
        %v4030 = vpack.c.b16 %v3130, %v3129
        %v4031 = vpack.c.b16 %v3132, %v3131
        %v4032 = vpack.c.b16 %v3134, %v3133
        %v4033 = vpack.c.b16 %v3136, %v3135
        %v4034 = vpack.c.b16 %v3138, %v3137
        %v4035 = vpack.c.b16 %v3140, %v3139
        %v4036 = vpack.c.b16 %v3142, %v3141
        %v4037 = vpack.c.b16 %v3144, %v3143
        %v4038 = vpack.c.b16 %v3146, %v3145
        %v4039 = vpack.c.b16 %v3148, %v3147
        %v4040 = vpack.c.b16 %v3150, %v3149
        %v4041 = vpack.c.b16 %v3152, %v3151
        %v4042 = vpack.c.b16 %v3154, %v3153
        %v4043 = vpack.c.b16 %v3156, %v3155
        %v4044 = vpack.c.b16 %v3158, %v3157
        %v4045 = vpack.c.b16 %v3160, %v3159
        %v4046 = vpack.c.b16 %v3162, %v3161
        %v4047 = vpack.c.b16 %v3164, %v3163
        %v4048 = vpack.c.b16 %v3166, %v3165
        %v4049 = vpack.c.b16 %v3168, %v3167
        %v4050 = vpack.c.b16 %v3170, %v3169
        %v4051 = vpack.c.b16 %v3172, %v3171
        %v4052 = vpack.c.b16 %v3174, %v3173
        %v4053 = vpack.c.b16 %v3176, %v3175
        %v4054 = vpack.c.b16 %v3178, %v3177
        %v4055 = vpack.c.b16 %v3180, %v3179
        %v4056 = vpack.c.b16 %v3182, %v3181
        %v4057 = vpack.c.b16 %v3184, %v3183
        %v4058 = vpack.c.b16 %v3186, %v3185
        %v4059 = vpack.c.b16 %v3188, %v3187
        %v4060 = vpack.c.b16 %v3190, %v3189
        %v4061 = vpack.c.b16 %v3192, %v3191
        %v4062 = vpack.c.b16 %v3194, %v3193
        %v4063 = vpack.c.b16 %v3196, %v3195
        %v4064 = vpack.c.b16 %v3198, %v3197
        %v4065 = vpack.c.b16 %v3200, %v3199
        %v4066 = vpack.c.b16 %v3202, %v3201
        %v4067 = vpack.c.b16 %v3204, %v3203
        %v4068 = vpack.c.b16 %v3206, %v3205
        %v4069 = vpack.c.b16 %v3208, %v3207
        %v4070 = vpack.c.b16 %v3210, %v3209
        %v4071 = vpack.c.b16 %v3212, %v3211
        %v4072 = vpack.c.b16 %v3214, %v3213
        %v4073 = vpack.c.b16 %v3216, %v3215
        %v4074 = vpack.c.b16 %v3218, %v3217
        %v4075 = vpack.c.b16 %v3220, %v3219
        %v4076 = vpack.c.b16 %v3222, %v3221
        %v4077 = vpack.c.b16 %v3224, %v3223
        %v4078 = vpack.c.b16 %v3226, %v3225
        %v4079 = vpack.c.b16 %v3228, %v3227
        %v4080 = vpack.c.b16 %v3230, %v3229
        %v4081 = vpack.c.b16 %v3232, %v3231
        %v4082 = vpack.c.b16 %v3234, %v3233
        %v4083 = vpack.c.b16 %v3236, %v3235
        %v4084 = vpack.c.b16 %v3238, %v3237
        %v4085 = vpack.c.b16 %v3240, %v3239
        %v4086 = vpack.c.b16 %v3242, %v3241
        %v4087 = vpack.c.b16 %v3244, %v3243
        %v4088 = vpack.c.b16 %v3246, %v3245
        %v4089 = vpack.c.b16 %v3248, %v3247
        %v4090 = vpack.c.b16 %v3250, %v3249
        %v4091 = vpack.c.b16 %v3252, %v3251
        %v4092 = vpack.c.b16 %v3254, %v3253
        %v4093 = vpack.c.b16 %v3256, %v3255
        %v4094 = vpack.c.b16 %v3258, %v3257
        %v4095 = vpack.c.b16 %v3260, %v3259
        %v4096 = vpack.c.b16 %v3262, %v3261
        %v4097 = vpack.c.b16 %v3264, %v3263
        %v4098 = vpack.c.b16 %v3266, %v3265
        %v4099 = vpack.c.b16 %v3268, %v3267
        %v4100 = vpack.c.b16 %v3270, %v3269
        %v4101 = vpack.c.b16 %v3272, %v3271
        %v4102 = vpack.c.b16 %v3274, %v3273
        %v4103 = vpack.c.b16 %v3276, %v3275
        %v4104 = vpack.c.b16 %v3278, %v3277
        %v4105 = vpack.c.b16 %v3280, %v3279
        %v4106 = vpack.c.b16 %v3282, %v3281
        %v4107 = vpack.c.b16 %v3284, %v3283
        %v4108 = vpack.c.b16 %v3286, %v3285
        %v4109 = vpack.c.b16 %v3288, %v3287
        %v4110 = vpack.c.b16 %v3290, %v3289
        %v4111 = vpack.c.b16 %v3292, %v3291
        %v4112 = vpack.c.b16 %v3294, %v3293
        %v4113 = vpack.c.b16 %v3296, %v3295
        %v4114 = vpack.c.b16 %v3298, %v3297
        %v4115 = vpack.c.b16 %v3300, %v3299
        %v4116 = vpack.c.b16 %v3302, %v3301
        %v4117 = vpack.c.b16 %v3304, %v3303
        %v4118 = vpack.c.b16 %v3306, %v3305
        %v4119 = vpack.c.b16 %v3308, %v3307
        %v4120 = vpack.c.b16 %v3310, %v3309
        %v4121 = vpack.c.b16 %v3312, %v3311
        %v4122 = vpack.c.b16 %v3314, %v3313
        %v4123 = vpack.c.b16 %v3316, %v3315
        %v4124 = vpack.c.b16 %v3318, %v3317
        %v4125 = vpack.c.b16 %v3320, %v3319
        %v4126 = vpack.c.b16 %v3322, %v3321
        %v4127 = vpack.c.b16 %v3324, %v3323
        %v4128 = vpack.c.b16 %v3326, %v3325
        %v4129 = vpack.c.b16 %v3328, %v3327
        %v4130 = vpack.c.b16 %v3330, %v3329
        %v4131 = vpack.c.b16 %v3332, %v3331
        %v4132 = vpack.c.b16 %v3334, %v3333
        %v4133 = vpack.c.b16 %v3336, %v3335
        %v4134 = vpack.c.b16 %v3338, %v3337
        %v4135 = vpack.c.b16 %v3340, %v3339
        %v4136 = vpack.c.b16 %v3342, %v3341
        %v4137 = vpack.c.b16 %v3344, %v3343
        %v4138 = vpack.c.b16 %v3346, %v3345
        %v4139 = vpack.c.b16 %v3348, %v3347
        %v4140 = vpack.c.b16 %v3350, %v3349
        %v4141 = vpack.c.b16 %v3352, %v3351
        %v4142 = vpack.c.b16 %v3354, %v3353
        %v4143 = vpack.c.b16 %v3356, %v3355
        %v4144 = vpack.c.b16 %v3358, %v3357
        %v4145 = vpack.c.b16 %v3360, %v3359
        %v4146 = vpack.c.b16 %v3362, %v3361
        %v4147 = vpack.c.b16 %v3364, %v3363
        %v4148 = vpack.c.b16 %v3366, %v3365
        %v4149 = vpack.c.b16 %v3368, %v3367
        %v4150 = vpack.c.b16 %v3370, %v3369
        %v4151 = vpack.c.b16 %v3372, %v3371
        %v4152 = vpack.c.b16 %v3374, %v3373
        %v4153 = vpack.c.b16 %v3376, %v3375
        %v4154 = vpack.c.b16 %v3378, %v3377
        %v4155 = vpack.c.b16 %v3380, %v3379
        %v4156 = vpack.c.b16 %v3382, %v3381
        %v4157 = vpack.c.b16 %v3384, %v3383
        %v4158 = vpack.c.b16 %v3386, %v3385
        %v4159 = vpack.c.b16 %v3388, %v3387
        %v4160 = vpack.c.b16 %v3390, %v3389
        %v4161 = vpack.c.b16 %v3392, %v3391
        %v4162 = vpack.c.b16 %v3394, %v3393
        %v4163 = vpack.c.b16 %v3396, %v3395
        %v4164 = vpack.c.b16 %v3398, %v3397
        %v4165 = vpack.c.b16 %v3400, %v3399
        %v4166 = vpack.c.b16 %v3402, %v3401
        %v4167 = vpack.c.b16 %v3404, %v3403
        %v4168 = vpack.c.b16 %v3406, %v3405
        %v4169 = vpack.c.b16 %v3408, %v3407
        %v4170 = vpack.c.b16 %v3410, %v3409
        %v4171 = vpack.c.b16 %v3412, %v3411
        %v4172 = vpack.c.b16 %v3414, %v3413
        %v4173 = vpack.c.b16 %v3416, %v3415
        %v4174 = vpack.c.b16 %v3418, %v3417
        %v4175 = vpack.c.b16 %v3420, %v3419
        %v4176 = vpack.c.b16 %v3422, %v3421
        %v4177 = vpack.c.b16 %v3424, %v3423
        %v4178 = vpack.c.b16 %v3426, %v3425
        %v4179 = vpack.c.b16 %v3428, %v3427
        %v4180 = vpack.c.b16 %v3430, %v3429
        %v4181 = vpack.c.b16 %v3432, %v3431
        %v4182 = vpack.c.b16 %v3434, %v3433
        %v4183 = vpack.c.b16 %v3436, %v3435
        %v4184 = vpack.c.b16 %v3438, %v3437
        %v4185 = vpack.c.b16 %v3440, %v3439
        %v4186 = vpack.c.b16 %v3442, %v3441
        %v4187 = vpack.c.b16 %v3444, %v3443
        %v4188 = vpack.c.b16 %v3446, %v3445
        %v4189 = vpack.c.b16 %v3448, %v3447
        %v4190 = vpack.c.b16 %v3450, %v3449
        %v4191 = vpack.c.b16 %v3452, %v3451
        %v4192 = vpack.c.b16 %v3454, %v3453
        %v4193 = vpack.c.b16 %v3456, %v3455
        %v4194 = vpack.c.b16 %v3458, %v3457
        %v4195 = vpack.c.b16 %v3460, %v3459
        %v4196 = vpack.c.b16 %v3462, %v3461
        %v4197 = vpack.c.b16 %v3464, %v3463
        %v4198 = vpack.c.b16 %v3466, %v3465
        %v4199 = vpack.c.b16 %v3468, %v3467
        %v4200 = vpack.c.b16 %v3470, %v3469
        %v4201 = vpack.c.b16 %v3472, %v3471
        %v4202 = vpack.c.b16 %v3474, %v3473
        %v4203 = vpack.c.b16 %v3476, %v3475
        %v4204 = vpack.c.b16 %v3478, %v3477
        %v4205 = vpack.c.b16 %v3480, %v3479
        %v4206 = vpack.c.b16 %v3482, %v3481
        %v4207 = vpack.c.b16 %v3484, %v3483
        %v4208 = vpack.c.b16 %v3486, %v3485
        %v4209 = vpack.c.b16 %v3488, %v3487
        %v4210 = vpack.c.b16 %v3490, %v3489
        %v4211 = vpack.c.b16 %v3492, %v3491
        %v4212 = vpack.c.b16 %v3494, %v3493
        %v4213 = vpack.c.b16 %v3496, %v3495
        %v4214 = vpack.c.b16 %v3498, %v3497
        %v4215 = vpack.c.b16 %v3500, %v3499
        %v4216 = vpack.c.b16 %v3502, %v3501
        %v4217 = vpack.c.b16 %v3504, %v3503
        %v4218 = vpack.c.b16 %v3506, %v3505
        %v4219 = vpack.c.b16 %v3508, %v3507
        %v4220 = vpack.c.b16 %v3510, %v3509
        %v4221 = vpack.c.b16 %v3512, %v3511
        %v4222 = vpack.c.b16 %v3514, %v3513
        %v4223 = vpack.c.b16 %v3516, %v3515
        %v4224 = vpack.c.b16 %v3518, %v3517
        %v4225 = vpack.c.b16 %v3520, %v3519
        %v4226 = vpack.c.b16 %v3522, %v3521
        %v4227 = vpack.c.b16 %v3524, %v3523
        %v4228 = vpack.c.b16 %v3526, %v3525
        %v4229 = vpack.c.b16 %v3528, %v3527
        %v4230 = vpack.c.b16 %v3530, %v3529
        %v4231 = vpack.c.b16 %v3532, %v3531
        %v4232 = vpack.c.b16 %v3534, %v3533
        %v4233 = vpack.c.b16 %v3536, %v3535
        %v4234 = vpack.c.b16 %v3538, %v3537
        %v4235 = vpack.c.b16 %v3540, %v3539
        %v4236 = vpack.c.b16 %v3542, %v3541
        %v4237 = vpack.c.b16 %v3544, %v3543
        %v4238 = vpack.c.b16 %v3546, %v3545
        %v4239 = vpack.c.b16 %v3548, %v3547
        %v4240 = vpack.c.b16 %v3550, %v3549
        %v4241 = vpack.c.b16 %v3552, %v3551
        %v4242 = vpack.c.b16 %v3554, %v3553
        %v4243 = vpack.c.b16 %v3556, %v3555
        %v4244 = vpack.c.b16 %v3558, %v3557
        %v4245 = vpack.c.b16 %v3560, %v3559
        %v4246 = vpack.c.b16 %v3562, %v3561
        %v4247 = vpack.c.b16 %v3564, %v3563
        %v4248 = vpack.c.b16 %v3566, %v3565
        %v4249 = vpack.c.b16 %v3568, %v3567
        %v4250 = vpack.c.b16 %v3570, %v3569
        %v4251 = vpack.c.b16 %v3572, %v3571
        %v4252 = vpack.c.b16 %v3574, %v3573
        %v4253 = vpack.c.b16 %v3576, %v3575
        %v4254 = vpack.c.b16 %v3578, %v3577
        %v4255 = vpack.c.b16 %v3580, %v3579
        %v4256 = vpack.c.b16 %v3582, %v3581
        %v4257 = vpack.c.b16 %v3584, %v3583
        %v4258 = vpack.c.b16 %v3586, %v3585
        %v4259 = vpack.c.b16 %v3588, %v3587
        %v4260 = vpack.c.b16 %v3590, %v3589
        %v4261 = vpack.c.b16 %v3592, %v3591
        %v4262 = vpack.c.b16 %v3594, %v3593
        %v4263 = vpack.c.b16 %v3596, %v3595
        %v4264 = vpack.c.b16 %v3598, %v3597
        %v4265 = vpack.c.b16 %v3600, %v3599
        %v4266 = vpack.c.b16 %v3602, %v3601
        %v4267 = vpack.c.b16 %v3604, %v3603
        %v4268 = vpack.c.b16 %v3606, %v3605
        %v4269 = vpack.c.b16 %v3608, %v3607
        %v4270 = vpack.c.b16 %v3610, %v3609
        %v4271 = vpack.c.b16 %v3612, %v3611
        %v4272 = vpack.c.b16 %v3614, %v3613
        %v4273 = vpack.c.b16 %v3616, %v3615
        %v4274 = vpack.c.b16 %v3618, %v3617
        %v4275 = vpack.c.b16 %v3620, %v3619
        %v4276 = vpack.c.b16 %v3622, %v3621
        %v4277 = vpack.c.b16 %v3624, %v3623
        %v4278 = vpack.c.b16 %v3626, %v3625
        %v4279 = vpack.c.b16 %v3628, %v3627
        %v4280 = vpack.c.b16 %v3630, %v3629
        %v4281 = vpack.c.b16 %v3632, %v3631
        %v4282 = vpack.c.b16 %v3634, %v3633
        %v4283 = vpack.c.b16 %v3636, %v3635
        %v4284 = vpack.c.b16 %v3638, %v3637
        %v4285 = vpack.c.b16 %v3640, %v3639
        %v4286 = vpack.c.b16 %v3642, %v3641
        %v4287 = vpack.c.b16 %v3644, %v3643
        %v4288 = vpack.c.b16 %v3646, %v3645
        %v4289 = vpack.c.b16 %v3648, %v3647
        %v4290 = vpack.c.b16 %v3650, %v3649
        %v4291 = vpack.c.b16 %v3652, %v3651
        %v4292 = vpack.c.b16 %v3654, %v3653
        %v4293 = vpack.c.b16 %v3656, %v3655
        %v4294 = vpack.c.b16 %v3658, %v3657
        %v4295 = vpack.c.b16 %v3660, %v3659
        %v4296 = vpack.c.b16 %v3662, %v3661
        %v4297 = vpack.c.b16 %v3664, %v3663
        %v4298 = vpack.c.b16 %v3666, %v3665
        %v4299 = vpack.c.b16 %v3668, %v3667
        %v4300 = vpack.c.b16 %v3670, %v3669
        %v4301 = vpack.c.b16 %v3672, %v3671
        %v4302 = vpack.c.b16 %v3674, %v3673
        %v4303 = vpack.c.b16 %v3676, %v3675
        %v4304 = vpack.c.b16 %v3678, %v3677
        %v4305 = vpack.c.b16 %v3680, %v3679
        %v4306 = vpack.c.b16 %v3682, %v3681
        %v4307 = vpack.c.b16 %v3684, %v3683
        %v4308 = vpack.c.b16 %v3686, %v3685
        %v4309 = vpack.c.b16 %v3688, %v3687
        %v4310 = vpack.c.b16 %v3690, %v3689
        %v4311 = vpack.c.b16 %v3692, %v3691
        %v4312 = vpack.c.b16 %v3694, %v3693
        %v4313 = vpack.c.b16 %v3696, %v3695
        %v4314 = vpack.c.b16 %v3698, %v3697
        %v4315 = vpack.c.b16 %v3700, %v3699
        %v4316 = vpack.c.b16 %v3702, %v3701
        %v4317 = vpack.c.b16 %v3704, %v3703
        %v4318 = vpack.c.b16 %v3706, %v3705
        %v4319 = vpack.c.b16 %v3708, %v3707
        %v4320 = vpack.c.b16 %v3710, %v3709
        %v4321 = vpack.c.b16 %v3712, %v3711
        %v4322 = vpack.c.b16 %v3714, %v3713
        %v4323 = vpack.c.b16 %v3716, %v3715
        %v4324 = vpack.c.b16 %v3718, %v3717
        %v4325 = vpack.c.b16 %v3720, %v3719
        %v4326 = vpack.c.b16 %v3722, %v3721
        %v4327 = vpack.c.b16 %v3724, %v3723
        %v4328 = vpack.c.b16 %v3726, %v3725
        %v4329 = vpack.c.b16 %v3728, %v3727
        %v4330 = vpack.c.b16 %v3730, %v3729
        %v4331 = vpack.c.b16 %v3732, %v3731
        %v4332 = vpack.c.b16 %v3734, %v3733
        %v4333 = vpack.c.b16 %v3736, %v3735
        %v4334 = vpack.c.b16 %v3738, %v3737
        %v4335 = vpack.c.b16 %v3740, %v3739
        %v4336 = vpack.c.b16 %v3742, %v3741
        %v4337 = vpack.c.b16 %v3744, %v3743
        %v4338 = vpack.c.b16 %v3746, %v3745
        %v4339 = vpack.c.b16 %v3748, %v3747
        %v4340 = vpack.c.b16 %v3750, %v3749
        %v4341 = vpack.c.b16 %v3752, %v3751
        %v4342 = vpack.c.b16 %v3754, %v3753
        %v4343 = vpack.c.b16 %v3756, %v3755
        %v4344 = vpack.c.b16 %v3758, %v3757
        %v4345 = vpack.c.b16 %v3760, %v3759
        %v4346 = vpack.c.b16 %v3762, %v3761
        %v4347 = vpack.c.b16 %v3764, %v3763
        %v4348 = vpack.c.b16 %v3766, %v3765
        %v4349 = vpack.c.b16 %v3768, %v3767
        %v4350 = vpack.c.b16 %v3770, %v3769
        %v4351 = vpack.c.b16 %v3772, %v3771
        %v4352 = vpack.c.b16 %v3774, %v3773
        %v4353 = vpack.c.b16 %v3776, %v3775
        %v4354 = vpack.c.b16 %v3778, %v3777
        %v4355 = vpack.c.b16 %v3780, %v3779
        %v4356 = vpack.c.b16 %v3782, %v3781
        %v4357 = vpack.c.b16 %v3784, %v3783
        %v4358 = vpack.c.b16 %v3786, %v3785
        %v4359 = vpack.c.b16 %v3788, %v3787
        %v4360 = vpack.c.b16 %v3790, %v3789
        %v4361 = vpack.c.b16 %v3792, %v3791
        %v4362 = vpack.c.b16 %v3794, %v3793
        %v4363 = vpack.c.b16 %v3796, %v3795
        %v4364 = vpack.c.b16 %v3798, %v3797
        %v4365 = vpack.c.b16 %v3800, %v3799
        %v4366 = vpack.c.b16 %v3802, %v3801
        %v4367 = vpack.c.b16 %v3804, %v3803
        %v4368 = vpack.c.b16 %v3806, %v3805
        %v4369 = vpack.c.b16 %v3808, %v3807
        %v4370 = vpack.c.b16 %v3810, %v3809
        %v4371 = vpack.c.b16 %v3812, %v3811
        %v4372 = vpack.c.b16 %v3814, %v3813
        %v4373 = vpack.c.b16 %v3816, %v3815
        %v4374 = vpack.c.b16 %v3818, %v3817
        %v4375 = vpack.c.b16 %v3820, %v3819
        %v4376 = vpack.c.b16 %v3822, %v3821
        %v4377 = vpack.c.b16 %v3824, %v3823
        %v4378 = vpack.c.b16 %v3826, %v3825
        %v4379 = vpack.c.b16 %v3828, %v3827
        %v4380 = vpack.c.b16 %v3830, %v3829
        %v4381 = vpack.c.b16 %v3832, %v3831
        %v4382 = vpack.c.b16 %v3834, %v3833
        %v4383 = vpack.c.b16 %v3836, %v3835
        %v4384 = vpack.c.b16 %v3838, %v3837
        %v4385 = vpack.c.b16 %v3840, %v3839
        %v4386 = vpack.c.b16 %v3842, %v3841
        %v4387 = vpack.c.b16 %v3844, %v3843
        %v4388 = vpack.c.b16 %v3846, %v3845
        %v4389 = vpack.c.b16 %v3848, %v3847
        %v4390 = vpack.c.b16 %v3850, %v3849
        %v4391 = vpack.c.b16 %v3852, %v3851
        %v4392 = vpack.c.b16 %v3854, %v3853
        %v4393 = vpack.c.b16 %v3856, %v3855
        %v4394 = vpack.c.b16 %v3858, %v3857
        %v4395 = vpack.c.b16 %v3860, %v3859
        %v4396 = vpack.c.b16 %v3862, %v3861
        %v4397 = vpack.c.b16 %v3864, %v3863
        %v4398 = vpack.c.b16 %v3866, %v3865
        %v4399 = vpack.c.b16 %v3868, %v3867
        %v4400 = vpack.c.b16 %v3870, %v3869
        %v4401 = vpack.c.b16 %v3872, %v3871
        %v4402 = vpack.c.b16 %v3874, %v3873
        %v4403 = vpack.c.b16 %v3876, %v3875
        %v4404 = vpack.c.b16 %v3878, %v3877
        %v4405 = vpack.c.b16 %v3880, %v3879
        %v4406 = vpack.c.b16 %v3882, %v3881
        %v4407 = vpack.c.b16 %v3884, %v3883
        %v4408 = vpack.c.b16 %v3886, %v3885
        %v4409 = vpack.c.b16 %v3888, %v3887
        %v4410 = vpack.c.b16 %v3890, %v3889
        %v4411 = vpack.c.b16 %v3892, %v3891
        %v4412 = vpack.c.b16 %v3894, %v3893
        %v4413 = vpack.c.b16 %v3896, %v3895
        %v4414 = vpack.c.b16 %v3898, %v3897
        %v4415 = vpack.c.b16 %v3900, %v3899
        %v4416 = vpack.c.b16 %v3902, %v3901
        %v4417 = vpack.c.b16 %v3904, %v3903
        %v4418 = vpack.c.b16 %v3906, %v3905
        %4931 = vmatprep.subr.bf16.mxu0 0
        %4932 = vmatpush1.bf16.msra.mxu0 %v3907
        %4933 = vmatprep.subr.bf16.mxu0 0
        %4934 = vmatpush1.bf16.msra.mxu0 %v3908
        %4935 = vmatprep.subr.bf16.mxu0 0
        %4936 = vmatpush1.bf16.msra.mxu0 %v3909
        %4937 = vmatprep.subr.bf16.mxu0 0
        %4938 = vmatpush1.bf16.msra.mxu0 %v3910
        %4939 = vmatprep.subr.bf16.mxu0 0
        %4940 = vmatpush1.bf16.msra.mxu0 %v3911
        %4941 = vmatprep.subr.bf16.mxu0 0
        %4942 = vmatpush1.bf16.msra.mxu0 %v3912
        %4943 = vmatprep.subr.bf16.mxu0 0
        %4944 = vmatpush1.bf16.msra.mxu0 %v3913
        %4945 = vmatprep.subr.bf16.mxu0 0
        %4946 = vmatpush1.bf16.msra.mxu0 %v3914
        %4947 = vmatprep.subr.bf16.mxu0 0
        %4948 = vmatpush1.bf16.msra.mxu0 %v3915
        %4949 = vmatprep.subr.bf16.mxu0 0
        %4950 = vmatpush1.bf16.msra.mxu0 %v3916
        %4951 = vmatprep.subr.bf16.mxu0 0
        %4952 = vmatpush1.bf16.msra.mxu0 %v3917
        %4953 = vmatprep.subr.bf16.mxu0 0
        %4954 = vmatpush1.bf16.msra.mxu0 %v3918
        %4955 = vmatprep.subr.bf16.mxu0 0
        %4956 = vmatpush1.bf16.msra.mxu0 %v3919
        %4957 = vmatprep.subr.bf16.mxu0 0
        %4958 = vmatpush1.bf16.msra.mxu0 %v3920
        %4959 = vmatprep.subr.bf16.mxu0 0
        %4960 = vmatpush1.bf16.msra.mxu0 %v3921
        %4961 = vmatprep.subr.bf16.mxu0 0
        %4962 = vmatpush1.bf16.msra.mxu0 %v3922
        %4963 = vmatprep.mubr.bf16.mxu0 %v772
        %4964 = vmatmul.mubr.bf16.gmra.mrb[0].mxu0 %v771
        %v4965 = vpop.f32.mrb[0].mxu0
        %v4966 = vadd.f32 0.0, %v4965
        %v4967 = vpop.f32.mrb[0].mxu0
        %v4968 = vpop.f32.mrb[0].mxu0
        %v4969 = vpop.f32.mrb[0].mxu0
        %4970 = vdwg.mxu0
        %4971 = vmatprep.subr.bf16.mxu0 0
        %4972 = vmatpush1.bf16.msra.mxu0 %v3923
        %4973 = vmatprep.subr.bf16.mxu0 0
        %4974 = vmatpush1.bf16.msra.mxu0 %v3924
        %4975 = vmatprep.subr.bf16.mxu0 0
        %4976 = vmatpush1.bf16.msra.mxu0 %v3925
        %4977 = vmatprep.subr.bf16.mxu0 0
        %4978 = vmatpush1.bf16.msra.mxu0 %v3926
        %4979 = vmatprep.subr.bf16.mxu0 0
        %4980 = vmatpush1.bf16.msra.mxu0 %v3927
        %4981 = vmatprep.subr.bf16.mxu0 0
        %4982 = vmatpush1.bf16.msra.mxu0 %v3928
        %4983 = vmatprep.subr.bf16.mxu0 0
        %4984 = vmatpush1.bf16.msra.mxu0 %v3929
        %4985 = vmatprep.subr.bf16.mxu0 0
        %4986 = vmatpush1.bf16.msra.mxu0 %v3930
        %4987 = vmatprep.subr.bf16.mxu0 0
        %4988 = vmatpush1.bf16.msra.mxu0 %v3931
        %4989 = vmatprep.subr.bf16.mxu0 0
        %4990 = vmatpush1.bf16.msra.mxu0 %v3932
        %4991 = vmatprep.subr.bf16.mxu0 0
        %4992 = vmatpush1.bf16.msra.mxu0 %v3933
        %4993 = vmatprep.subr.bf16.mxu0 0
        %4994 = vmatpush1.bf16.msra.mxu0 %v3934
        %4995 = vmatprep.subr.bf16.mxu0 0
        %4996 = vmatpush1.bf16.msra.mxu0 %v3935
        %4997 = vmatprep.subr.bf16.mxu0 0
        %4998 = vmatpush1.bf16.msra.mxu0 %v3936
        %4999 = vmatprep.subr.bf16.mxu0 0
        %5000 = vmatpush1.bf16.msra.mxu0 %v3937
        %5001 = vmatprep.subr.bf16.mxu0 0
        %5002 = vmatpush1.bf16.msra.mxu0 %v3938
        %5003 = vmatprep.mubr.bf16.mxu0 %v774
        %5004 = vmatmul.mubr.bf16.gmra.mrb[0].mxu0 %v773
        %v5005 = vpop.f32.mrb[0].mxu0
        %v5006 = vadd.f32 %v4966, %v5005
        %v5007 = vpop.f32.mrb[0].mxu0
        %v5008 = vpop.f32.mrb[0].mxu0
        %v5009 = vpop.f32.mrb[0].mxu0
        %5010 = vdwg.mxu0
        %5011 = vmatprep.subr.bf16.mxu0 0
        %5012 = vmatpush1.bf16.msra.mxu0 %v3939
        %5013 = vmatprep.subr.bf16.mxu0 0
        %5014 = vmatpush1.bf16.msra.mxu0 %v3940
        %5015 = vmatprep.subr.bf16.mxu0 0
        %5016 = vmatpush1.bf16.msra.mxu0 %v3941
        %5017 = vmatprep.subr.bf16.mxu0 0
        %5018 = vmatpush1.bf16.msra.mxu0 %v3942
        %5019 = vmatprep.subr.bf16.mxu0 0
        %5020 = vmatpush1.bf16.msra.mxu0 %v3943
        %5021 = vmatprep.subr.bf16.mxu0 0
        %5022 = vmatpush1.bf16.msra.mxu0 %v3944
        %5023 = vmatprep.subr.bf16.mxu0 0
        %5024 = vmatpush1.bf16.msra.mxu0 %v3945
        %5025 = vmatprep.subr.bf16.mxu0 0
        %5026 = vmatpush1.bf16.msra.mxu0 %v3946
        %5027 = vmatprep.subr.bf16.mxu0 0
        %5028 = vmatpush1.bf16.msra.mxu0 %v3947
        %5029 = vmatprep.subr.bf16.mxu0 0
        %5030 = vmatpush1.bf16.msra.mxu0 %v3948
        %5031 = vmatprep.subr.bf16.mxu0 0
        %5032 = vmatpush1.bf16.msra.mxu0 %v3949
        %5033 = vmatprep.subr.bf16.mxu0 0
        %5034 = vmatpush1.bf16.msra.mxu0 %v3950
        %5035 = vmatprep.subr.bf16.mxu0 0
        %5036 = vmatpush1.bf16.msra.mxu0 %v3951
        %5037 = vmatprep.subr.bf16.mxu0 0
        %5038 = vmatpush1.bf16.msra.mxu0 %v3952
        %5039 = vmatprep.subr.bf16.mxu0 0
        %5040 = vmatpush1.bf16.msra.mxu0 %v3953
        %5041 = vmatprep.subr.bf16.mxu0 0
        %5042 = vmatpush1.bf16.msra.mxu0 %v3954
        %5043 = vmatprep.mubr.bf16.mxu0 %v776
        %5044 = vmatmul.mubr.bf16.gmra.mrb[0].mxu0 %v775
        %v5045 = vpop.f32.mrb[0].mxu0
        %v5046 = vadd.f32 %v5006, %v5045
        %v5047 = vpop.f32.mrb[0].mxu0
        %v5048 = vpop.f32.mrb[0].mxu0
        %v5049 = vpop.f32.mrb[0].mxu0
        %5050 = vdwg.mxu0
        %5051 = vmatprep.subr.bf16.mxu0 0
        %5052 = vmatpush1.bf16.msra.mxu0 %v3955
        %5053 = vmatprep.subr.bf16.mxu0 0
        %5054 = vmatpush1.bf16.msra.mxu0 %v3956
        %5055 = vmatprep.subr.bf16.mxu0 0
        %5056 = vmatpush1.bf16.msra.mxu0 %v3957
        %5057 = vmatprep.subr.bf16.mxu0 0
        %5058 = vmatpush1.bf16.msra.mxu0 %v3958
        %5059 = vmatprep.subr.bf16.mxu0 0
        %5060 = vmatpush1.bf16.msra.mxu0 %v3959
        %5061 = vmatprep.subr.bf16.mxu0 0
        %5062 = vmatpush1.bf16.msra.mxu0 %v3960
        %5063 = vmatprep.subr.bf16.mxu0 0
        %5064 = vmatpush1.bf16.msra.mxu0 %v3961
        %5065 = vmatprep.subr.bf16.mxu0 0
        %5066 = vmatpush1.bf16.msra.mxu0 %v3962
        %5067 = vmatprep.subr.bf16.mxu0 0
        %5068 = vmatpush1.bf16.msra.mxu0 %v3963
        %5069 = vmatprep.subr.bf16.mxu0 0
        %5070 = vmatpush1.bf16.msra.mxu0 %v3964
        %5071 = vmatprep.subr.bf16.mxu0 0
        %5072 = vmatpush1.bf16.msra.mxu0 %v3965
        %5073 = vmatprep.subr.bf16.mxu0 0
        %5074 = vmatpush1.bf16.msra.mxu0 %v3966
        %5075 = vmatprep.subr.bf16.mxu0 0
        %5076 = vmatpush1.bf16.msra.mxu0 %v3967
        %5077 = vmatprep.subr.bf16.mxu0 0
        %5078 = vmatpush1.bf16.msra.mxu0 %v3968
        %5079 = vmatprep.subr.bf16.mxu0 0
        %5080 = vmatpush1.bf16.msra.mxu0 %v3969
        %5081 = vmatprep.subr.bf16.mxu0 0
        %5082 = vmatpush1.bf16.msra.mxu0 %v3970
        %5083 = vmatprep.mubr.bf16.mxu0 %v778
        %5084 = vmatmul.mubr.bf16.gmra.mrb[0].mxu0 %v777
        %v5085 = vpop.f32.mrb[0].mxu0
        %v5086 = vadd.f32 %v5046, %v5085
        %v5087 = vpop.f32.mrb[0].mxu0
        %v5088 = vpop.f32.mrb[0].mxu0
        %v5089 = vpop.f32.mrb[0].mxu0
        %5090 = vdwg.mxu0
        %5091 = vmatprep.subr.bf16.mxu0 0
        %5092 = vmatpush1.bf16.msra.mxu0 %v3971
        %5093 = vmatprep.subr.bf16.mxu0 0
        %5094 = vmatpush1.bf16.msra.mxu0 %v3972
        %5095 = vmatprep.subr.bf16.mxu0 0
        %5096 = vmatpush1.bf16.msra.mxu0 %v3973
        %5097 = vmatprep.subr.bf16.mxu0 0
        %5098 = vmatpush1.bf16.msra.mxu0 %v3974
        %5099 = vmatprep.subr.bf16.mxu0 0
        %5100 = vmatpush1.bf16.msra.mxu0 %v3975
        %5101 = vmatprep.subr.bf16.mxu0 0
        %5102 = vmatpush1.bf16.msra.mxu0 %v3976
        %5103 = vmatprep.subr.bf16.mxu0 0
        %5104 = vmatpush1.bf16.msra.mxu0 %v3977
        %5105 = vmatprep.subr.bf16.mxu0 0
        %5106 = vmatpush1.bf16.msra.mxu0 %v3978
        %5107 = vmatprep.subr.bf16.mxu0 0
        %5108 = vmatpush1.bf16.msra.mxu0 %v3979
        %5109 = vmatprep.subr.bf16.mxu0 0
        %5110 = vmatpush1.bf16.msra.mxu0 %v3980
        %5111 = vmatprep.subr.bf16.mxu0 0
        %5112 = vmatpush1.bf16.msra.mxu0 %v3981
        %5113 = vmatprep.subr.bf16.mxu0 0
        %5114 = vmatpush1.bf16.msra.mxu0 %v3982
        %5115 = vmatprep.subr.bf16.mxu0 0
        %5116 = vmatpush1.bf16.msra.mxu0 %v3983
        %5117 = vmatprep.subr.bf16.mxu0 0
        %5118 = vmatpush1.bf16.msra.mxu0 %v3984
        %5119 = vmatprep.subr.bf16.mxu0 0
        %5120 = vmatpush1.bf16.msra.mxu0 %v3985
        %5121 = vmatprep.subr.bf16.mxu0 0
        %5122 = vmatpush1.bf16.msra.mxu0 %v3986
        %5123 = vmatprep.mubr.bf16.mxu0 %v780
        %5124 = vmatmul.mubr.bf16.gmra.mrb[0].mxu0 %v779
        %v5125 = vpop.f32.mrb[0].mxu0
        %v5126 = vadd.f32 %v5086, %v5125
        %v5127 = vpop.f32.mrb[0].mxu0
        %v5128 = vpop.f32.mrb[0].mxu0
        %v5129 = vpop.f32.mrb[0].mxu0
        %5130 = vdwg.mxu0
        %5131 = vmatprep.subr.bf16.mxu0 0
        %5132 = vmatpush1.bf16.msra.mxu0 %v3987
        %5133 = vmatprep.subr.bf16.mxu0 0
        %5134 = vmatpush1.bf16.msra.mxu0 %v3988
        %5135 = vmatprep.subr.bf16.mxu0 0
        %5136 = vmatpush1.bf16.msra.mxu0 %v3989
        %5137 = vmatprep.subr.bf16.mxu0 0
        %5138 = vmatpush1.bf16.msra.mxu0 %v3990
        %5139 = vmatprep.subr.bf16.mxu0 0
        %5140 = vmatpush1.bf16.msra.mxu0 %v3991
        %5141 = vmatprep.subr.bf16.mxu0 0
        %5142 = vmatpush1.bf16.msra.mxu0 %v3992
        %5143 = vmatprep.subr.bf16.mxu0 0
        %5144 = vmatpush1.bf16.msra.mxu0 %v3993
        %5145 = vmatprep.subr.bf16.mxu0 0
        %5146 = vmatpush1.bf16.msra.mxu0 %v3994
        %5147 = vmatprep.subr.bf16.mxu0 0
        %5148 = vmatpush1.bf16.msra.mxu0 %v3995
        %5149 = vmatprep.subr.bf16.mxu0 0
        %5150 = vmatpush1.bf16.msra.mxu0 %v3996
        %5151 = vmatprep.subr.bf16.mxu0 0
        %5152 = vmatpush1.bf16.msra.mxu0 %v3997
        %5153 = vmatprep.subr.bf16.mxu0 0
        %5154 = vmatpush1.bf16.msra.mxu0 %v3998
        %5155 = vmatprep.subr.bf16.mxu0 0
        %5156 = vmatpush1.bf16.msra.mxu0 %v3999
        %5157 = vmatprep.subr.bf16.mxu0 0
        %5158 = vmatpush1.bf16.msra.mxu0 %v4000
        %5159 = vmatprep.subr.bf16.mxu0 0
        %5160 = vmatpush1.bf16.msra.mxu0 %v4001
        %5161 = vmatprep.subr.bf16.mxu0 0
        %5162 = vmatpush1.bf16.msra.mxu0 %v4002
        %5163 = vmatprep.mubr.bf16.mxu0 %v782
        %5164 = vmatmul.mubr.bf16.gmra.mrb[0].mxu0 %v781
        %v5165 = vpop.f32.mrb[0].mxu0
        %v5166 = vadd.f32 %v5126, %v5165
        %v5167 = vpop.f32.mrb[0].mxu0
        %v5168 = vpop.f32.mrb[0].mxu0
        %v5169 = vpop.f32.mrb[0].mxu0
        %5170 = vdwg.mxu0
        %5171 = vmatprep.subr.bf16.mxu0 0
        %5172 = vmatpush1.bf16.msra.mxu0 %v4003
        %5173 = vmatprep.subr.bf16.mxu0 0
        %5174 = vmatpush1.bf16.msra.mxu0 %v4004
        %5175 = vmatprep.subr.bf16.mxu0 0
        %5176 = vmatpush1.bf16.msra.mxu0 %v4005
        %5177 = vmatprep.subr.bf16.mxu0 0
        %5178 = vmatpush1.bf16.msra.mxu0 %v4006
        %5179 = vmatprep.subr.bf16.mxu0 0
        %5180 = vmatpush1.bf16.msra.mxu0 %v4007
        %5181 = vmatprep.subr.bf16.mxu0 0
        %5182 = vmatpush1.bf16.msra.mxu0 %v4008
        %5183 = vmatprep.subr.bf16.mxu0 0
        %5184 = vmatpush1.bf16.msra.mxu0 %v4009
        %5185 = vmatprep.subr.bf16.mxu0 0
        %5186 = vmatpush1.bf16.msra.mxu0 %v4010
        %5187 = vmatprep.subr.bf16.mxu0 0
        %5188 = vmatpush1.bf16.msra.mxu0 %v4011
        %5189 = vmatprep.subr.bf16.mxu0 0
        %5190 = vmatpush1.bf16.msra.mxu0 %v4012
        %5191 = vmatprep.subr.bf16.mxu0 0
        %5192 = vmatpush1.bf16.msra.mxu0 %v4013
        %5193 = vmatprep.subr.bf16.mxu0 0
        %5194 = vmatpush1.bf16.msra.mxu0 %v4014
        %5195 = vmatprep.subr.bf16.mxu0 0
        %5196 = vmatpush1.bf16.msra.mxu0 %v4015
        %5197 = vmatprep.subr.bf16.mxu0 0
        %5198 = vmatpush1.bf16.msra.mxu0 %v4016
        %5199 = vmatprep.subr.bf16.mxu0 0
        %5200 = vmatpush1.bf16.msra.mxu0 %v4017
        %5201 = vmatprep.subr.bf16.mxu0 0
        %5202 = vmatpush1.bf16.msra.mxu0 %v4018
        %5203 = vmatprep.mubr.bf16.mxu0 %v784
        %5204 = vmatmul.mubr.bf16.gmra.mrb[0].mxu0 %v783
        %v5205 = vpop.f32.mrb[0].mxu0
        %v5206 = vadd.f32 %v5166, %v5205
        %v5207 = vpop.f32.mrb[0].mxu0
        %v5208 = vpop.f32.mrb[0].mxu0
        %v5209 = vpop.f32.mrb[0].mxu0
        %5210 = vdwg.mxu0
        %5211 = vmatprep.subr.bf16.mxu0 0
        %5212 = vmatpush1.bf16.msra.mxu0 %v4019
        %5213 = vmatprep.subr.bf16.mxu0 0
        %5214 = vmatpush1.bf16.msra.mxu0 %v4020
        %5215 = vmatprep.subr.bf16.mxu0 0
        %5216 = vmatpush1.bf16.msra.mxu0 %v4021
        %5217 = vmatprep.subr.bf16.mxu0 0
        %5218 = vmatpush1.bf16.msra.mxu0 %v4022
        %5219 = vmatprep.subr.bf16.mxu0 0
        %5220 = vmatpush1.bf16.msra.mxu0 %v4023
        %5221 = vmatprep.subr.bf16.mxu0 0
        %5222 = vmatpush1.bf16.msra.mxu0 %v4024
        %5223 = vmatprep.subr.bf16.mxu0 0
        %5224 = vmatpush1.bf16.msra.mxu0 %v4025
        %5225 = vmatprep.subr.bf16.mxu0 0
        %5226 = vmatpush1.bf16.msra.mxu0 %v4026
        %5227 = vmatprep.subr.bf16.mxu0 0
        %5228 = vmatpush1.bf16.msra.mxu0 %v4027
        %5229 = vmatprep.subr.bf16.mxu0 0
        %5230 = vmatpush1.bf16.msra.mxu0 %v4028
        %5231 = vmatprep.subr.bf16.mxu0 0
        %5232 = vmatpush1.bf16.msra.mxu0 %v4029
        %5233 = vmatprep.subr.bf16.mxu0 0
        %5234 = vmatpush1.bf16.msra.mxu0 %v4030
        %5235 = vmatprep.subr.bf16.mxu0 0
        %5236 = vmatpush1.bf16.msra.mxu0 %v4031
        %5237 = vmatprep.subr.bf16.mxu0 0
        %5238 = vmatpush1.bf16.msra.mxu0 %v4032
        %5239 = vmatprep.subr.bf16.mxu0 0
        %5240 = vmatpush1.bf16.msra.mxu0 %v4033
        %5241 = vmatprep.subr.bf16.mxu0 0
        %5242 = vmatpush1.bf16.msra.mxu0 %v4034
        %5243 = vmatprep.mubr.bf16.mxu0 %v786
        %5244 = vmatmul.mubr.bf16.gmra.mrb[0].mxu0 %v785
        %v5245 = vpop.f32.mrb[0].mxu0
        %v5246 = vadd.f32 %v5206, %v5245
        %v5247 = vpop.f32.mrb[0].mxu0
        %v5248 = vpop.f32.mrb[0].mxu0
        %v5249 = vpop.f32.mrb[0].mxu0
        %5250 = vdwg.mxu0
        %5251 = vmatprep.subr.bf16.mxu0 0
        %5252 = vmatpush1.bf16.msra.mxu0 %v4035
        %5253 = vmatprep.subr.bf16.mxu0 0
        %5254 = vmatpush1.bf16.msra.mxu0 %v4036
        %5255 = vmatprep.subr.bf16.mxu0 0
        %5256 = vmatpush1.bf16.msra.mxu0 %v4037
        %5257 = vmatprep.subr.bf16.mxu0 0
        %5258 = vmatpush1.bf16.msra.mxu0 %v4038
        %5259 = vmatprep.subr.bf16.mxu0 0
        %5260 = vmatpush1.bf16.msra.mxu0 %v4039
        %5261 = vmatprep.subr.bf16.mxu0 0
        %5262 = vmatpush1.bf16.msra.mxu0 %v4040
        %5263 = vmatprep.subr.bf16.mxu0 0
        %5264 = vmatpush1.bf16.msra.mxu0 %v4041
        %5265 = vmatprep.subr.bf16.mxu0 0
        %5266 = vmatpush1.bf16.msra.mxu0 %v4042
        %5267 = vmatprep.subr.bf16.mxu0 0
        %5268 = vmatpush1.bf16.msra.mxu0 %v4043
        %5269 = vmatprep.subr.bf16.mxu0 0
        %5270 = vmatpush1.bf16.msra.mxu0 %v4044
        %5271 = vmatprep.subr.bf16.mxu0 0
        %5272 = vmatpush1.bf16.msra.mxu0 %v4045
        %5273 = vmatprep.subr.bf16.mxu0 0
        %5274 = vmatpush1.bf16.msra.mxu0 %v4046
        %5275 = vmatprep.subr.bf16.mxu0 0
        %5276 = vmatpush1.bf16.msra.mxu0 %v4047
        %5277 = vmatprep.subr.bf16.mxu0 0
        %5278 = vmatpush1.bf16.msra.mxu0 %v4048
        %5279 = vmatprep.subr.bf16.mxu0 0
        %5280 = vmatpush1.bf16.msra.mxu0 %v4049
        %5281 = vmatprep.subr.bf16.mxu0 0
        %5282 = vmatpush1.bf16.msra.mxu0 %v4050
        %5283 = vmatprep.mubr.bf16.mxu0 %v788
        %5284 = vmatmul.mubr.bf16.gmra.mrb[0].mxu0 %v787
        %v5285 = vpop.f32.mrb[0].mxu0
        %v5286 = vadd.f32 %v5246, %v5285
        %v5287 = vpop.f32.mrb[0].mxu0
        %v5288 = vpop.f32.mrb[0].mxu0
        %v5289 = vpop.f32.mrb[0].mxu0
        %5290 = vdwg.mxu0
        %5291 = vmatprep.subr.bf16.mxu0 0
        %5292 = vmatpush1.bf16.msra.mxu0 %v4051
        %5293 = vmatprep.subr.bf16.mxu0 0
        %5294 = vmatpush1.bf16.msra.mxu0 %v4052
        %5295 = vmatprep.subr.bf16.mxu0 0
        %5296 = vmatpush1.bf16.msra.mxu0 %v4053
        %5297 = vmatprep.subr.bf16.mxu0 0
        %5298 = vmatpush1.bf16.msra.mxu0 %v4054
        %5299 = vmatprep.subr.bf16.mxu0 0
        %5300 = vmatpush1.bf16.msra.mxu0 %v4055
        %5301 = vmatprep.subr.bf16.mxu0 0
        %5302 = vmatpush1.bf16.msra.mxu0 %v4056
        %5303 = vmatprep.subr.bf16.mxu0 0
        %5304 = vmatpush1.bf16.msra.mxu0 %v4057
        %5305 = vmatprep.subr.bf16.mxu0 0
        %5306 = vmatpush1.bf16.msra.mxu0 %v4058
        %5307 = vmatprep.subr.bf16.mxu0 0
        %5308 = vmatpush1.bf16.msra.mxu0 %v4059
        %5309 = vmatprep.subr.bf16.mxu0 0
        %5310 = vmatpush1.bf16.msra.mxu0 %v4060
        %5311 = vmatprep.subr.bf16.mxu0 0
        %5312 = vmatpush1.bf16.msra.mxu0 %v4061
        %5313 = vmatprep.subr.bf16.mxu0 0
        %5314 = vmatpush1.bf16.msra.mxu0 %v4062
        %5315 = vmatprep.subr.bf16.mxu0 0
        %5316 = vmatpush1.bf16.msra.mxu0 %v4063
        %5317 = vmatprep.subr.bf16.mxu0 0
        %5318 = vmatpush1.bf16.msra.mxu0 %v4064
        %5319 = vmatprep.subr.bf16.mxu0 0
        %5320 = vmatpush1.bf16.msra.mxu0 %v4065
        %5321 = vmatprep.subr.bf16.mxu0 0
        %5322 = vmatpush1.bf16.msra.mxu0 %v4066
        %5323 = vmatprep.mubr.bf16.mxu0 %v790
        %5324 = vmatmul.mubr.bf16.gmra.mrb[0].mxu0 %v789
        %v5325 = vpop.f32.mrb[0].mxu0
        %v5326 = vadd.f32 %v5286, %v5325
        %v5327 = vpop.f32.mrb[0].mxu0
        %v5328 = vpop.f32.mrb[0].mxu0
        %v5329 = vpop.f32.mrb[0].mxu0
        %5330 = vdwg.mxu0
        %5331 = vmatprep.subr.bf16.mxu0 0
        %5332 = vmatpush1.bf16.msra.mxu0 %v4067
        %5333 = vmatprep.subr.bf16.mxu0 0
        %5334 = vmatpush1.bf16.msra.mxu0 %v4068
        %5335 = vmatprep.subr.bf16.mxu0 0
        %5336 = vmatpush1.bf16.msra.mxu0 %v4069
        %5337 = vmatprep.subr.bf16.mxu0 0
        %5338 = vmatpush1.bf16.msra.mxu0 %v4070
        %5339 = vmatprep.subr.bf16.mxu0 0
        %5340 = vmatpush1.bf16.msra.mxu0 %v4071
        %5341 = vmatprep.subr.bf16.mxu0 0
        %5342 = vmatpush1.bf16.msra.mxu0 %v4072
        %5343 = vmatprep.subr.bf16.mxu0 0
        %5344 = vmatpush1.bf16.msra.mxu0 %v4073
        %5345 = vmatprep.subr.bf16.mxu0 0
        %5346 = vmatpush1.bf16.msra.mxu0 %v4074
        %5347 = vmatprep.subr.bf16.mxu0 0
        %5348 = vmatpush1.bf16.msra.mxu0 %v4075
        %5349 = vmatprep.subr.bf16.mxu0 0
        %5350 = vmatpush1.bf16.msra.mxu0 %v4076
        %5351 = vmatprep.subr.bf16.mxu0 0
        %5352 = vmatpush1.bf16.msra.mxu0 %v4077
        %5353 = vmatprep.subr.bf16.mxu0 0
        %5354 = vmatpush1.bf16.msra.mxu0 %v4078
        %5355 = vmatprep.subr.bf16.mxu0 0
        %5356 = vmatpush1.bf16.msra.mxu0 %v4079
        %5357 = vmatprep.subr.bf16.mxu0 0
        %5358 = vmatpush1.bf16.msra.mxu0 %v4080
        %5359 = vmatprep.subr.bf16.mxu0 0
        %5360 = vmatpush1.bf16.msra.mxu0 %v4081
        %5361 = vmatprep.subr.bf16.mxu0 0
        %5362 = vmatpush1.bf16.msra.mxu0 %v4082
        %5363 = vmatprep.mubr.bf16.mxu0 %v792
        %5364 = vmatmul.mubr.bf16.gmra.mrb[0].mxu0 %v791
        %v5365 = vpop.f32.mrb[0].mxu0
        %v5366 = vadd.f32 %v5326, %v5365
        %v5367 = vpop.f32.mrb[0].mxu0
        %v5368 = vpop.f32.mrb[0].mxu0
        %v5369 = vpop.f32.mrb[0].mxu0
        %5370 = vdwg.mxu0
        %5371 = vmatprep.subr.bf16.mxu0 0
        %5372 = vmatpush1.bf16.msra.mxu0 %v4083
        %5373 = vmatprep.subr.bf16.mxu0 0
        %5374 = vmatpush1.bf16.msra.mxu0 %v4084
        %5375 = vmatprep.subr.bf16.mxu0 0
        %5376 = vmatpush1.bf16.msra.mxu0 %v4085
        %5377 = vmatprep.subr.bf16.mxu0 0
        %5378 = vmatpush1.bf16.msra.mxu0 %v4086
        %5379 = vmatprep.subr.bf16.mxu0 0
        %5380 = vmatpush1.bf16.msra.mxu0 %v4087
        %5381 = vmatprep.subr.bf16.mxu0 0
        %5382 = vmatpush1.bf16.msra.mxu0 %v4088
        %5383 = vmatprep.subr.bf16.mxu0 0
        %5384 = vmatpush1.bf16.msra.mxu0 %v4089
        %5385 = vmatprep.subr.bf16.mxu0 0
        %5386 = vmatpush1.bf16.msra.mxu0 %v4090
        %5387 = vmatprep.subr.bf16.mxu0 0
        %5388 = vmatpush1.bf16.msra.mxu0 %v4091
        %5389 = vmatprep.subr.bf16.mxu0 0
        %5390 = vmatpush1.bf16.msra.mxu0 %v4092
        %5391 = vmatprep.subr.bf16.mxu0 0
        %5392 = vmatpush1.bf16.msra.mxu0 %v4093
        %5393 = vmatprep.subr.bf16.mxu0 0
        %5394 = vmatpush1.bf16.msra.mxu0 %v4094
        %5395 = vmatprep.subr.bf16.mxu0 0
        %5396 = vmatpush1.bf16.msra.mxu0 %v4095
        %5397 = vmatprep.subr.bf16.mxu0 0
        %5398 = vmatpush1.bf16.msra.mxu0 %v4096
        %5399 = vmatprep.subr.bf16.mxu0 0
        %5400 = vmatpush1.bf16.msra.mxu0 %v4097
        %5401 = vmatprep.subr.bf16.mxu0 0
        %5402 = vmatpush1.bf16.msra.mxu0 %v4098
        %5403 = vmatprep.mubr.bf16.mxu0 %v794
        %5404 = vmatmul.mubr.bf16.gmra.mrb[0].mxu0 %v793
        %v5405 = vpop.f32.mrb[0].mxu0
        %v5406 = vadd.f32 %v5366, %v5405
        %v5407 = vpop.f32.mrb[0].mxu0
        %v5408 = vpop.f32.mrb[0].mxu0
        %v5409 = vpop.f32.mrb[0].mxu0
        %5410 = vdwg.mxu0
        %5411 = vmatprep.subr.bf16.mxu0 0
        %5412 = vmatpush1.bf16.msra.mxu0 %v4099
        %5413 = vmatprep.subr.bf16.mxu0 0
        %5414 = vmatpush1.bf16.msra.mxu0 %v4100
        %5415 = vmatprep.subr.bf16.mxu0 0
        %5416 = vmatpush1.bf16.msra.mxu0 %v4101
        %5417 = vmatprep.subr.bf16.mxu0 0
        %5418 = vmatpush1.bf16.msra.mxu0 %v4102
        %5419 = vmatprep.subr.bf16.mxu0 0
        %5420 = vmatpush1.bf16.msra.mxu0 %v4103
        %5421 = vmatprep.subr.bf16.mxu0 0
        %5422 = vmatpush1.bf16.msra.mxu0 %v4104
        %5423 = vmatprep.subr.bf16.mxu0 0
        %5424 = vmatpush1.bf16.msra.mxu0 %v4105
        %5425 = vmatprep.subr.bf16.mxu0 0
        %5426 = vmatpush1.bf16.msra.mxu0 %v4106
        %5427 = vmatprep.subr.bf16.mxu0 0
        %5428 = vmatpush1.bf16.msra.mxu0 %v4107
        %5429 = vmatprep.subr.bf16.mxu0 0
        %5430 = vmatpush1.bf16.msra.mxu0 %v4108
        %5431 = vmatprep.subr.bf16.mxu0 0
        %5432 = vmatpush1.bf16.msra.mxu0 %v4109
        %5433 = vmatprep.subr.bf16.mxu0 0
        %5434 = vmatpush1.bf16.msra.mxu0 %v4110
        %5435 = vmatprep.subr.bf16.mxu0 0
        %5436 = vmatpush1.bf16.msra.mxu0 %v4111
        %5437 = vmatprep.subr.bf16.mxu0 0
        %5438 = vmatpush1.bf16.msra.mxu0 %v4112
        %5439 = vmatprep.subr.bf16.mxu0 0
        %5440 = vmatpush1.bf16.msra.mxu0 %v4113
        %5441 = vmatprep.subr.bf16.mxu0 0
        %5442 = vmatpush1.bf16.msra.mxu0 %v4114
        %5443 = vmatprep.mubr.bf16.mxu0 %v796
        %5444 = vmatmul.mubr.bf16.gmra.mrb[0].mxu0 %v795
        %v5445 = vpop.f32.mrb[0].mxu0
        %v5446 = vadd.f32 %v5406, %v5445
        %v5447 = vpop.f32.mrb[0].mxu0
        %v5448 = vpop.f32.mrb[0].mxu0
        %v5449 = vpop.f32.mrb[0].mxu0
        %5450 = vdwg.mxu0
        %5451 = vmatprep.subr.bf16.mxu0 0
        %5452 = vmatpush1.bf16.msra.mxu0 %v4115
        %5453 = vmatprep.subr.bf16.mxu0 0
        %5454 = vmatpush1.bf16.msra.mxu0 %v4116
        %5455 = vmatprep.subr.bf16.mxu0 0
        %5456 = vmatpush1.bf16.msra.mxu0 %v4117
        %5457 = vmatprep.subr.bf16.mxu0 0
        %5458 = vmatpush1.bf16.msra.mxu0 %v4118
        %5459 = vmatprep.subr.bf16.mxu0 0
        %5460 = vmatpush1.bf16.msra.mxu0 %v4119
        %5461 = vmatprep.subr.bf16.mxu0 0
        %5462 = vmatpush1.bf16.msra.mxu0 %v4120
        %5463 = vmatprep.subr.bf16.mxu0 0
        %5464 = vmatpush1.bf16.msra.mxu0 %v4121
        %5465 = vmatprep.subr.bf16.mxu0 0
        %5466 = vmatpush1.bf16.msra.mxu0 %v4122
        %5467 = vmatprep.subr.bf16.mxu0 0
        %5468 = vmatpush1.bf16.msra.mxu0 %v4123
        %5469 = vmatprep.subr.bf16.mxu0 0
        %5470 = vmatpush1.bf16.msra.mxu0 %v4124
        %5471 = vmatprep.subr.bf16.mxu0 0
        %5472 = vmatpush1.bf16.msra.mxu0 %v4125
        %5473 = vmatprep.subr.bf16.mxu0 0
        %5474 = vmatpush1.bf16.msra.mxu0 %v4126
        %5475 = vmatprep.subr.bf16.mxu0 0
        %5476 = vmatpush1.bf16.msra.mxu0 %v4127
        %5477 = vmatprep.subr.bf16.mxu0 0
        %5478 = vmatpush1.bf16.msra.mxu0 %v4128
        %5479 = vmatprep.subr.bf16.mxu0 0
        %5480 = vmatpush1.bf16.msra.mxu0 %v4129
        %5481 = vmatprep.subr.bf16.mxu0 0
        %5482 = vmatpush1.bf16.msra.mxu0 %v4130
        %5483 = vmatprep.mubr.bf16.mxu0 %v798
        %5484 = vmatmul.mubr.bf16.gmra.mrb[0].mxu0 %v797
        %v5485 = vpop.f32.mrb[0].mxu0
        %v5486 = vadd.f32 %v5446, %v5485
        %v5487 = vpop.f32.mrb[0].mxu0
        %v5488 = vpop.f32.mrb[0].mxu0
        %v5489 = vpop.f32.mrb[0].mxu0
        %5490 = vdwg.mxu0
        %5491 = vmatprep.subr.bf16.mxu0 0
        %5492 = vmatpush1.bf16.msra.mxu0 %v4131
        %5493 = vmatprep.subr.bf16.mxu0 0
        %5494 = vmatpush1.bf16.msra.mxu0 %v4132
        %5495 = vmatprep.subr.bf16.mxu0 0
        %5496 = vmatpush1.bf16.msra.mxu0 %v4133
        %5497 = vmatprep.subr.bf16.mxu0 0
        %5498 = vmatpush1.bf16.msra.mxu0 %v4134
        %5499 = vmatprep.subr.bf16.mxu0 0
        %5500 = vmatpush1.bf16.msra.mxu0 %v4135
        %5501 = vmatprep.subr.bf16.mxu0 0
        %5502 = vmatpush1.bf16.msra.mxu0 %v4136
        %5503 = vmatprep.subr.bf16.mxu0 0
        %5504 = vmatpush1.bf16.msra.mxu0 %v4137
        %5505 = vmatprep.subr.bf16.mxu0 0
        %5506 = vmatpush1.bf16.msra.mxu0 %v4138
        %5507 = vmatprep.subr.bf16.mxu0 0
        %5508 = vmatpush1.bf16.msra.mxu0 %v4139
        %5509 = vmatprep.subr.bf16.mxu0 0
        %5510 = vmatpush1.bf16.msra.mxu0 %v4140
        %5511 = vmatprep.subr.bf16.mxu0 0
        %5512 = vmatpush1.bf16.msra.mxu0 %v4141
        %5513 = vmatprep.subr.bf16.mxu0 0
        %5514 = vmatpush1.bf16.msra.mxu0 %v4142
        %5515 = vmatprep.subr.bf16.mxu0 0
        %5516 = vmatpush1.bf16.msra.mxu0 %v4143
        %5517 = vmatprep.subr.bf16.mxu0 0
        %5518 = vmatpush1.bf16.msra.mxu0 %v4144
        %5519 = vmatprep.subr.bf16.mxu0 0
        %5520 = vmatpush1.bf16.msra.mxu0 %v4145
        %5521 = vmatprep.subr.bf16.mxu0 0
        %5522 = vmatpush1.bf16.msra.mxu0 %v4146
        %5523 = vmatprep.mubr.bf16.mxu0 %v800
        %5524 = vmatmul.mubr.bf16.gmra.mrb[0].mxu0 %v799
        %v5525 = vpop.f32.mrb[0].mxu0
        %v5526 = vadd.f32 %v5486, %v5525
        %v5527 = vpop.f32.mrb[0].mxu0
        %v5528 = vpop.f32.mrb[0].mxu0
        %v5529 = vpop.f32.mrb[0].mxu0
        %5530 = vdwg.mxu0
        %5531 = vmatprep.subr.bf16.mxu0 0
        %5532 = vmatpush1.bf16.msra.mxu0 %v4147
        %5533 = vmatprep.subr.bf16.mxu0 0
        %5534 = vmatpush1.bf16.msra.mxu0 %v4148
        %5535 = vmatprep.subr.bf16.mxu0 0
        %5536 = vmatpush1.bf16.msra.mxu0 %v4149
        %5537 = vmatprep.subr.bf16.mxu0 0
        %5538 = vmatpush1.bf16.msra.mxu0 %v4150
        %5539 = vmatprep.subr.bf16.mxu0 0
        %5540 = vmatpush1.bf16.msra.mxu0 %v4151
        %5541 = vmatprep.subr.bf16.mxu0 0
        %5542 = vmatpush1.bf16.msra.mxu0 %v4152
        %5543 = vmatprep.subr.bf16.mxu0 0
        %5544 = vmatpush1.bf16.msra.mxu0 %v4153
        %5545 = vmatprep.subr.bf16.mxu0 0
        %5546 = vmatpush1.bf16.msra.mxu0 %v4154
        %5547 = vmatprep.subr.bf16.mxu0 0
        %5548 = vmatpush1.bf16.msra.mxu0 %v4155
        %5549 = vmatprep.subr.bf16.mxu0 0
        %5550 = vmatpush1.bf16.msra.mxu0 %v4156
        %5551 = vmatprep.subr.bf16.mxu0 0
        %5552 = vmatpush1.bf16.msra.mxu0 %v4157
        %5553 = vmatprep.subr.bf16.mxu0 0
        %5554 = vmatpush1.bf16.msra.mxu0 %v4158
        %5555 = vmatprep.subr.bf16.mxu0 0
        %5556 = vmatpush1.bf16.msra.mxu0 %v4159
        %5557 = vmatprep.subr.bf16.mxu0 0
        %5558 = vmatpush1.bf16.msra.mxu0 %v4160
        %5559 = vmatprep.subr.bf16.mxu0 0
        %5560 = vmatpush1.bf16.msra.mxu0 %v4161
        %5561 = vmatprep.subr.bf16.mxu0 0
        %5562 = vmatpush1.bf16.msra.mxu0 %v4162
        %5563 = vmatprep.mubr.bf16.mxu0 %v802
        %5564 = vmatmul.mubr.bf16.gmra.mrb[0].mxu0 %v801
        %v5565 = vpop.f32.mrb[0].mxu0
        %v5566 = vadd.f32 %v5526, %v5565
        %v5567 = vpop.f32.mrb[0].mxu0
        %v5568 = vpop.f32.mrb[0].mxu0
        %v5569 = vpop.f32.mrb[0].mxu0
        %5570 = vdwg.mxu0
        %5571 = vmatprep.subr.bf16.mxu0 0
        %5572 = vmatpush1.bf16.msra.mxu0 %v4163
        %5573 = vmatprep.subr.bf16.mxu0 0
        %5574 = vmatpush1.bf16.msra.mxu0 %v4164
        %5575 = vmatprep.subr.bf16.mxu0 0
        %5576 = vmatpush1.bf16.msra.mxu0 %v4165
        %5577 = vmatprep.subr.bf16.mxu0 0
        %5578 = vmatpush1.bf16.msra.mxu0 %v4166
        %5579 = vmatprep.subr.bf16.mxu0 0
        %5580 = vmatpush1.bf16.msra.mxu0 %v4167
        %5581 = vmatprep.subr.bf16.mxu0 0
        %5582 = vmatpush1.bf16.msra.mxu0 %v4168
        %5583 = vmatprep.subr.bf16.mxu0 0
        %5584 = vmatpush1.bf16.msra.mxu0 %v4169
        %5585 = vmatprep.subr.bf16.mxu0 0
        %5586 = vmatpush1.bf16.msra.mxu0 %v4170
        %5587 = vmatprep.subr.bf16.mxu0 0
        %5588 = vmatpush1.bf16.msra.mxu0 %v4171
        %5589 = vmatprep.subr.bf16.mxu0 0
        %5590 = vmatpush1.bf16.msra.mxu0 %v4172
        %5591 = vmatprep.subr.bf16.mxu0 0
        %5592 = vmatpush1.bf16.msra.mxu0 %v4173
        %5593 = vmatprep.subr.bf16.mxu0 0
        %5594 = vmatpush1.bf16.msra.mxu0 %v4174
        %5595 = vmatprep.subr.bf16.mxu0 0
        %5596 = vmatpush1.bf16.msra.mxu0 %v4175
        %5597 = vmatprep.subr.bf16.mxu0 0
        %5598 = vmatpush1.bf16.msra.mxu0 %v4176
        %5599 = vmatprep.subr.bf16.mxu0 0
        %5600 = vmatpush1.bf16.msra.mxu0 %v4177
        %5601 = vmatprep.subr.bf16.mxu0 0
        %5602 = vmatpush1.bf16.msra.mxu0 %v4178
        %5603 = vmatprep.mubr.bf16.mxu0 %v804
        %5604 = vmatmul.mubr.bf16.gmra.mrb[0].mxu0 %v803
        %v5605 = vpop.f32.mrb[0].mxu0
        %v5606 = vadd.f32 %v5566, %v5605
        %v5607 = vpop.f32.mrb[0].mxu0
        %v5608 = vpop.f32.mrb[0].mxu0
        %v5609 = vpop.f32.mrb[0].mxu0
        %5610 = vdwg.mxu0
        %5611 = vmatprep.subr.bf16.mxu0 0
        %5612 = vmatpush1.bf16.msra.mxu0 %v4179
        %5613 = vmatprep.subr.bf16.mxu0 0
        %5614 = vmatpush1.bf16.msra.mxu0 %v4180
        %5615 = vmatprep.subr.bf16.mxu0 0
        %5616 = vmatpush1.bf16.msra.mxu0 %v4181
        %5617 = vmatprep.subr.bf16.mxu0 0
        %5618 = vmatpush1.bf16.msra.mxu0 %v4182
        %5619 = vmatprep.subr.bf16.mxu0 0
        %5620 = vmatpush1.bf16.msra.mxu0 %v4183
        %5621 = vmatprep.subr.bf16.mxu0 0
        %5622 = vmatpush1.bf16.msra.mxu0 %v4184
        %5623 = vmatprep.subr.bf16.mxu0 0
        %5624 = vmatpush1.bf16.msra.mxu0 %v4185
        %5625 = vmatprep.subr.bf16.mxu0 0
        %5626 = vmatpush1.bf16.msra.mxu0 %v4186
        %5627 = vmatprep.subr.bf16.mxu0 0
        %5628 = vmatpush1.bf16.msra.mxu0 %v4187
        %5629 = vmatprep.subr.bf16.mxu0 0
        %5630 = vmatpush1.bf16.msra.mxu0 %v4188
        %5631 = vmatprep.subr.bf16.mxu0 0
        %5632 = vmatpush1.bf16.msra.mxu0 %v4189
        %5633 = vmatprep.subr.bf16.mxu0 0
        %5634 = vmatpush1.bf16.msra.mxu0 %v4190
        %5635 = vmatprep.subr.bf16.mxu0 0
        %5636 = vmatpush1.bf16.msra.mxu0 %v4191
        %5637 = vmatprep.subr.bf16.mxu0 0
        %5638 = vmatpush1.bf16.msra.mxu0 %v4192
        %5639 = vmatprep.subr.bf16.mxu0 0
        %5640 = vmatpush1.bf16.msra.mxu0 %v4193
        %5641 = vmatprep.subr.bf16.mxu0 0
        %5642 = vmatpush1.bf16.msra.mxu0 %v4194
        %5643 = vmatprep.mubr.bf16.mxu0 %v806
        %5644 = vmatmul.mubr.bf16.gmra.mrb[0].mxu0 %v805
        %v5645 = vpop.f32.mrb[0].mxu0
        %v5646 = vadd.f32 %v5606, %v5645
        %v5647 = vpop.f32.mrb[0].mxu0
        %v5648 = vpop.f32.mrb[0].mxu0
        %v5649 = vpop.f32.mrb[0].mxu0
        %5650 = vdwg.mxu0
        %5651 = vmatprep.subr.bf16.mxu0 0
        %5652 = vmatpush1.bf16.msra.mxu0 %v4195
        %5653 = vmatprep.subr.bf16.mxu0 0
        %5654 = vmatpush1.bf16.msra.mxu0 %v4196
        %5655 = vmatprep.subr.bf16.mxu0 0
        %5656 = vmatpush1.bf16.msra.mxu0 %v4197
        %5657 = vmatprep.subr.bf16.mxu0 0
        %5658 = vmatpush1.bf16.msra.mxu0 %v4198
        %5659 = vmatprep.subr.bf16.mxu0 0
        %5660 = vmatpush1.bf16.msra.mxu0 %v4199
        %5661 = vmatprep.subr.bf16.mxu0 0
        %5662 = vmatpush1.bf16.msra.mxu0 %v4200
        %5663 = vmatprep.subr.bf16.mxu0 0
        %5664 = vmatpush1.bf16.msra.mxu0 %v4201
        %5665 = vmatprep.subr.bf16.mxu0 0
        %5666 = vmatpush1.bf16.msra.mxu0 %v4202
        %5667 = vmatprep.subr.bf16.mxu0 0
        %5668 = vmatpush1.bf16.msra.mxu0 %v4203
        %5669 = vmatprep.subr.bf16.mxu0 0
        %5670 = vmatpush1.bf16.msra.mxu0 %v4204
        %5671 = vmatprep.subr.bf16.mxu0 0
        %5672 = vmatpush1.bf16.msra.mxu0 %v4205
        %5673 = vmatprep.subr.bf16.mxu0 0
        %5674 = vmatpush1.bf16.msra.mxu0 %v4206
        %5675 = vmatprep.subr.bf16.mxu0 0
        %5676 = vmatpush1.bf16.msra.mxu0 %v4207
        %5677 = vmatprep.subr.bf16.mxu0 0
        %5678 = vmatpush1.bf16.msra.mxu0 %v4208
        %5679 = vmatprep.subr.bf16.mxu0 0
        %5680 = vmatpush1.bf16.msra.mxu0 %v4209
        %5681 = vmatprep.subr.bf16.mxu0 0
        %5682 = vmatpush1.bf16.msra.mxu0 %v4210
        %5683 = vmatprep.mubr.bf16.mxu0 %v808
        %5684 = vmatmul.mubr.bf16.gmra.mrb[0].mxu0 %v807
        %v5685 = vpop.f32.mrb[0].mxu0
        %v5686 = vadd.f32 %v5646, %v5685
        %v5687 = vpop.f32.mrb[0].mxu0
        %v5688 = vpop.f32.mrb[0].mxu0
        %v5689 = vpop.f32.mrb[0].mxu0
        %5690 = vdwg.mxu0
        %5691 = vmatprep.subr.bf16.mxu0 0
        %5692 = vmatpush1.bf16.msra.mxu0 %v4211
        %5693 = vmatprep.subr.bf16.mxu0 0
        %5694 = vmatpush1.bf16.msra.mxu0 %v4212
        %5695 = vmatprep.subr.bf16.mxu0 0
        %5696 = vmatpush1.bf16.msra.mxu0 %v4213
        %5697 = vmatprep.subr.bf16.mxu0 0
        %5698 = vmatpush1.bf16.msra.mxu0 %v4214
        %5699 = vmatprep.subr.bf16.mxu0 0
        %5700 = vmatpush1.bf16.msra.mxu0 %v4215
        %5701 = vmatprep.subr.bf16.mxu0 0
        %5702 = vmatpush1.bf16.msra.mxu0 %v4216
        %5703 = vmatprep.subr.bf16.mxu0 0
        %5704 = vmatpush1.bf16.msra.mxu0 %v4217
        %5705 = vmatprep.subr.bf16.mxu0 0
        %5706 = vmatpush1.bf16.msra.mxu0 %v4218
        %5707 = vmatprep.subr.bf16.mxu0 0
        %5708 = vmatpush1.bf16.msra.mxu0 %v4219
        %5709 = vmatprep.subr.bf16.mxu0 0
        %5710 = vmatpush1.bf16.msra.mxu0 %v4220
        %5711 = vmatprep.subr.bf16.mxu0 0
        %5712 = vmatpush1.bf16.msra.mxu0 %v4221
        %5713 = vmatprep.subr.bf16.mxu0 0
        %5714 = vmatpush1.bf16.msra.mxu0 %v4222
        %5715 = vmatprep.subr.bf16.mxu0 0
        %5716 = vmatpush1.bf16.msra.mxu0 %v4223
        %5717 = vmatprep.subr.bf16.mxu0 0
        %5718 = vmatpush1.bf16.msra.mxu0 %v4224
        %5719 = vmatprep.subr.bf16.mxu0 0
        %5720 = vmatpush1.bf16.msra.mxu0 %v4225
        %5721 = vmatprep.subr.bf16.mxu0 0
        %5722 = vmatpush1.bf16.msra.mxu0 %v4226
        %5723 = vmatprep.mubr.bf16.mxu0 %v810
        %5724 = vmatmul.mubr.bf16.gmra.mrb[0].mxu0 %v809
        %v5725 = vpop.f32.mrb[0].mxu0
        %v5726 = vadd.f32 %v5686, %v5725
        %v5727 = vpop.f32.mrb[0].mxu0
        %v5728 = vpop.f32.mrb[0].mxu0
        %v5729 = vpop.f32.mrb[0].mxu0
        %5730 = vdwg.mxu0
        %5731 = vmatprep.subr.bf16.mxu0 0
        %5732 = vmatpush1.bf16.msra.mxu0 %v4227
        %5733 = vmatprep.subr.bf16.mxu0 0
        %5734 = vmatpush1.bf16.msra.mxu0 %v4228
        %5735 = vmatprep.subr.bf16.mxu0 0
        %5736 = vmatpush1.bf16.msra.mxu0 %v4229
        %5737 = vmatprep.subr.bf16.mxu0 0
        %5738 = vmatpush1.bf16.msra.mxu0 %v4230
        %5739 = vmatprep.subr.bf16.mxu0 0
        %5740 = vmatpush1.bf16.msra.mxu0 %v4231
        %5741 = vmatprep.subr.bf16.mxu0 0
        %5742 = vmatpush1.bf16.msra.mxu0 %v4232
        %5743 = vmatprep.subr.bf16.mxu0 0
        %5744 = vmatpush1.bf16.msra.mxu0 %v4233
        %5745 = vmatprep.subr.bf16.mxu0 0
        %5746 = vmatpush1.bf16.msra.mxu0 %v4234
        %5747 = vmatprep.subr.bf16.mxu0 0
        %5748 = vmatpush1.bf16.msra.mxu0 %v4235
        %5749 = vmatprep.subr.bf16.mxu0 0
        %5750 = vmatpush1.bf16.msra.mxu0 %v4236
        %5751 = vmatprep.subr.bf16.mxu0 0
        %5752 = vmatpush1.bf16.msra.mxu0 %v4237
        %5753 = vmatprep.subr.bf16.mxu0 0
        %5754 = vmatpush1.bf16.msra.mxu0 %v4238
        %5755 = vmatprep.subr.bf16.mxu0 0
        %5756 = vmatpush1.bf16.msra.mxu0 %v4239
        %5757 = vmatprep.subr.bf16.mxu0 0
        %5758 = vmatpush1.bf16.msra.mxu0 %v4240
        %5759 = vmatprep.subr.bf16.mxu0 0
        %5760 = vmatpush1.bf16.msra.mxu0 %v4241
        %5761 = vmatprep.subr.bf16.mxu0 0
        %5762 = vmatpush1.bf16.msra.mxu0 %v4242
        %5763 = vmatprep.mubr.bf16.mxu0 %v812
        %5764 = vmatmul.mubr.bf16.gmra.mrb[0].mxu0 %v811
        %v5765 = vpop.f32.mrb[0].mxu0
        %v5766 = vadd.f32 %v5726, %v5765
        %v5767 = vpop.f32.mrb[0].mxu0
        %v5768 = vpop.f32.mrb[0].mxu0
        %v5769 = vpop.f32.mrb[0].mxu0
        %5770 = vdwg.mxu0
        %5771 = vmatprep.subr.bf16.mxu0 0
        %5772 = vmatpush1.bf16.msra.mxu0 %v4243
        %5773 = vmatprep.subr.bf16.mxu0 0
        %5774 = vmatpush1.bf16.msra.mxu0 %v4244
        %5775 = vmatprep.subr.bf16.mxu0 0
        %5776 = vmatpush1.bf16.msra.mxu0 %v4245
        %5777 = vmatprep.subr.bf16.mxu0 0
        %5778 = vmatpush1.bf16.msra.mxu0 %v4246
        %5779 = vmatprep.subr.bf16.mxu0 0
        %5780 = vmatpush1.bf16.msra.mxu0 %v4247
        %5781 = vmatprep.subr.bf16.mxu0 0
        %5782 = vmatpush1.bf16.msra.mxu0 %v4248
        %5783 = vmatprep.subr.bf16.mxu0 0
        %5784 = vmatpush1.bf16.msra.mxu0 %v4249
        %5785 = vmatprep.subr.bf16.mxu0 0
        %5786 = vmatpush1.bf16.msra.mxu0 %v4250
        %5787 = vmatprep.subr.bf16.mxu0 0
        %5788 = vmatpush1.bf16.msra.mxu0 %v4251
        %5789 = vmatprep.subr.bf16.mxu0 0
        %5790 = vmatpush1.bf16.msra.mxu0 %v4252
        %5791 = vmatprep.subr.bf16.mxu0 0
        %5792 = vmatpush1.bf16.msra.mxu0 %v4253
        %5793 = vmatprep.subr.bf16.mxu0 0
        %5794 = vmatpush1.bf16.msra.mxu0 %v4254
        %5795 = vmatprep.subr.bf16.mxu0 0
        %5796 = vmatpush1.bf16.msra.mxu0 %v4255
        %5797 = vmatprep.subr.bf16.mxu0 0
        %5798 = vmatpush1.bf16.msra.mxu0 %v4256
        %5799 = vmatprep.subr.bf16.mxu0 0
        %5800 = vmatpush1.bf16.msra.mxu0 %v4257
        %5801 = vmatprep.subr.bf16.mxu0 0
        %5802 = vmatpush1.bf16.msra.mxu0 %v4258
        %5803 = vmatprep.mubr.bf16.mxu0 %v814
        %5804 = vmatmul.mubr.bf16.gmra.mrb[0].mxu0 %v813
        %v5805 = vpop.f32.mrb[0].mxu0
        %v5806 = vadd.f32 %v5766, %v5805
        %v5807 = vpop.f32.mrb[0].mxu0
        %v5808 = vpop.f32.mrb[0].mxu0
        %v5809 = vpop.f32.mrb[0].mxu0
        %5810 = vdwg.mxu0
        %5811 = vmatprep.subr.bf16.mxu0 0
        %5812 = vmatpush1.bf16.msra.mxu0 %v4259
        %5813 = vmatprep.subr.bf16.mxu0 0
        %5814 = vmatpush1.bf16.msra.mxu0 %v4260
        %5815 = vmatprep.subr.bf16.mxu0 0
        %5816 = vmatpush1.bf16.msra.mxu0 %v4261
        %5817 = vmatprep.subr.bf16.mxu0 0
        %5818 = vmatpush1.bf16.msra.mxu0 %v4262
        %5819 = vmatprep.subr.bf16.mxu0 0
        %5820 = vmatpush1.bf16.msra.mxu0 %v4263
        %5821 = vmatprep.subr.bf16.mxu0 0
        %5822 = vmatpush1.bf16.msra.mxu0 %v4264
        %5823 = vmatprep.subr.bf16.mxu0 0
        %5824 = vmatpush1.bf16.msra.mxu0 %v4265
        %5825 = vmatprep.subr.bf16.mxu0 0
        %5826 = vmatpush1.bf16.msra.mxu0 %v4266
        %5827 = vmatprep.subr.bf16.mxu0 0
        %5828 = vmatpush1.bf16.msra.mxu0 %v4267
        %5829 = vmatprep.subr.bf16.mxu0 0
        %5830 = vmatpush1.bf16.msra.mxu0 %v4268
        %5831 = vmatprep.subr.bf16.mxu0 0
        %5832 = vmatpush1.bf16.msra.mxu0 %v4269
        %5833 = vmatprep.subr.bf16.mxu0 0
        %5834 = vmatpush1.bf16.msra.mxu0 %v4270
        %5835 = vmatprep.subr.bf16.mxu0 0
        %5836 = vmatpush1.bf16.msra.mxu0 %v4271
        %5837 = vmatprep.subr.bf16.mxu0 0
        %5838 = vmatpush1.bf16.msra.mxu0 %v4272
        %5839 = vmatprep.subr.bf16.mxu0 0
        %5840 = vmatpush1.bf16.msra.mxu0 %v4273
        %5841 = vmatprep.subr.bf16.mxu0 0
        %5842 = vmatpush1.bf16.msra.mxu0 %v4274
        %5843 = vmatprep.mubr.bf16.mxu0 %v816
        %5844 = vmatmul.mubr.bf16.gmra.mrb[0].mxu0 %v815
        %v5845 = vpop.f32.mrb[0].mxu0
        %v5846 = vadd.f32 %v5806, %v5845
        %v5847 = vpop.f32.mrb[0].mxu0
        %v5848 = vpop.f32.mrb[0].mxu0
        %v5849 = vpop.f32.mrb[0].mxu0
        %5850 = vdwg.mxu0
        %5851 = vmatprep.subr.bf16.mxu0 0
        %5852 = vmatpush1.bf16.msra.mxu0 %v4275
        %5853 = vmatprep.subr.bf16.mxu0 0
        %5854 = vmatpush1.bf16.msra.mxu0 %v4276
        %5855 = vmatprep.subr.bf16.mxu0 0
        %5856 = vmatpush1.bf16.msra.mxu0 %v4277
        %5857 = vmatprep.subr.bf16.mxu0 0
        %5858 = vmatpush1.bf16.msra.mxu0 %v4278
        %5859 = vmatprep.subr.bf16.mxu0 0
        %5860 = vmatpush1.bf16.msra.mxu0 %v4279
        %5861 = vmatprep.subr.bf16.mxu0 0
        %5862 = vmatpush1.bf16.msra.mxu0 %v4280
        %5863 = vmatprep.subr.bf16.mxu0 0
        %5864 = vmatpush1.bf16.msra.mxu0 %v4281
        %5865 = vmatprep.subr.bf16.mxu0 0
        %5866 = vmatpush1.bf16.msra.mxu0 %v4282
        %5867 = vmatprep.subr.bf16.mxu0 0
        %5868 = vmatpush1.bf16.msra.mxu0 %v4283
        %5869 = vmatprep.subr.bf16.mxu0 0
        %5870 = vmatpush1.bf16.msra.mxu0 %v4284
        %5871 = vmatprep.subr.bf16.mxu0 0
        %5872 = vmatpush1.bf16.msra.mxu0 %v4285
        %5873 = vmatprep.subr.bf16.mxu0 0
        %5874 = vmatpush1.bf16.msra.mxu0 %v4286
        %5875 = vmatprep.subr.bf16.mxu0 0
        %5876 = vmatpush1.bf16.msra.mxu0 %v4287
        %5877 = vmatprep.subr.bf16.mxu0 0
        %5878 = vmatpush1.bf16.msra.mxu0 %v4288
        %5879 = vmatprep.subr.bf16.mxu0 0
        %5880 = vmatpush1.bf16.msra.mxu0 %v4289
        %5881 = vmatprep.subr.bf16.mxu0 0
        %5882 = vmatpush1.bf16.msra.mxu0 %v4290
        %5883 = vmatprep.mubr.bf16.mxu0 %v818
        %5884 = vmatmul.mubr.bf16.gmra.mrb[0].mxu0 %v817
        %v5885 = vpop.f32.mrb[0].mxu0
        %v5886 = vadd.f32 %v5846, %v5885
        %v5887 = vpop.f32.mrb[0].mxu0
        %v5888 = vpop.f32.mrb[0].mxu0
        %v5889 = vpop.f32.mrb[0].mxu0
        %5890 = vdwg.mxu0
        %5891 = vmatprep.subr.bf16.mxu0 0
        %5892 = vmatpush1.bf16.msra.mxu0 %v4291
        %5893 = vmatprep.subr.bf16.mxu0 0
        %5894 = vmatpush1.bf16.msra.mxu0 %v4292
        %5895 = vmatprep.subr.bf16.mxu0 0
        %5896 = vmatpush1.bf16.msra.mxu0 %v4293
        %5897 = vmatprep.subr.bf16.mxu0 0
        %5898 = vmatpush1.bf16.msra.mxu0 %v4294
        %5899 = vmatprep.subr.bf16.mxu0 0
        %5900 = vmatpush1.bf16.msra.mxu0 %v4295
        %5901 = vmatprep.subr.bf16.mxu0 0
        %5902 = vmatpush1.bf16.msra.mxu0 %v4296
        %5903 = vmatprep.subr.bf16.mxu0 0
        %5904 = vmatpush1.bf16.msra.mxu0 %v4297
        %5905 = vmatprep.subr.bf16.mxu0 0
        %5906 = vmatpush1.bf16.msra.mxu0 %v4298
        %5907 = vmatprep.subr.bf16.mxu0 0
        %5908 = vmatpush1.bf16.msra.mxu0 %v4299
        %5909 = vmatprep.subr.bf16.mxu0 0
        %5910 = vmatpush1.bf16.msra.mxu0 %v4300
        %5911 = vmatprep.subr.bf16.mxu0 0
        %5912 = vmatpush1.bf16.msra.mxu0 %v4301
        %5913 = vmatprep.subr.bf16.mxu0 0
        %5914 = vmatpush1.bf16.msra.mxu0 %v4302
        %5915 = vmatprep.subr.bf16.mxu0 0
        %5916 = vmatpush1.bf16.msra.mxu0 %v4303
        %5917 = vmatprep.subr.bf16.mxu0 0
        %5918 = vmatpush1.bf16.msra.mxu0 %v4304
        %5919 = vmatprep.subr.bf16.mxu0 0
        %5920 = vmatpush1.bf16.msra.mxu0 %v4305
        %5921 = vmatprep.subr.bf16.mxu0 0
        %5922 = vmatpush1.bf16.msra.mxu0 %v4306
        %5923 = vmatprep.mubr.bf16.mxu0 %v820
        %5924 = vmatmul.mubr.bf16.gmra.mrb[0].mxu0 %v819
        %v5925 = vpop.f32.mrb[0].mxu0
        %v5926 = vadd.f32 %v5886, %v5925
        %v5927 = vpop.f32.mrb[0].mxu0
        %v5928 = vpop.f32.mrb[0].mxu0
        %v5929 = vpop.f32.mrb[0].mxu0
        %5930 = vdwg.mxu0
        %5931 = vmatprep.subr.bf16.mxu0 0
        %5932 = vmatpush1.bf16.msra.mxu0 %v4307
        %5933 = vmatprep.subr.bf16.mxu0 0
        %5934 = vmatpush1.bf16.msra.mxu0 %v4308
        %5935 = vmatprep.subr.bf16.mxu0 0
        %5936 = vmatpush1.bf16.msra.mxu0 %v4309
        %5937 = vmatprep.subr.bf16.mxu0 0
        %5938 = vmatpush1.bf16.msra.mxu0 %v4310
        %5939 = vmatprep.subr.bf16.mxu0 0
        %5940 = vmatpush1.bf16.msra.mxu0 %v4311
        %5941 = vmatprep.subr.bf16.mxu0 0
        %5942 = vmatpush1.bf16.msra.mxu0 %v4312
        %5943 = vmatprep.subr.bf16.mxu0 0
        %5944 = vmatpush1.bf16.msra.mxu0 %v4313
        %5945 = vmatprep.subr.bf16.mxu0 0
        %5946 = vmatpush1.bf16.msra.mxu0 %v4314
        %5947 = vmatprep.subr.bf16.mxu0 0
        %5948 = vmatpush1.bf16.msra.mxu0 %v4315
        %5949 = vmatprep.subr.bf16.mxu0 0
        %5950 = vmatpush1.bf16.msra.mxu0 %v4316
        %5951 = vmatprep.subr.bf16.mxu0 0
        %5952 = vmatpush1.bf16.msra.mxu0 %v4317
        %5953 = vmatprep.subr.bf16.mxu0 0
        %5954 = vmatpush1.bf16.msra.mxu0 %v4318
        %5955 = vmatprep.subr.bf16.mxu0 0
        %5956 = vmatpush1.bf16.msra.mxu0 %v4319
        %5957 = vmatprep.subr.bf16.mxu0 0
        %5958 = vmatpush1.bf16.msra.mxu0 %v4320
        %5959 = vmatprep.subr.bf16.mxu0 0
        %5960 = vmatpush1.bf16.msra.mxu0 %v4321
        %5961 = vmatprep.subr.bf16.mxu0 0
        %5962 = vmatpush1.bf16.msra.mxu0 %v4322
        %5963 = vmatprep.mubr.bf16.mxu0 %v822
        %5964 = vmatmul.mubr.bf16.gmra.mrb[0].mxu0 %v821
        %v5965 = vpop.f32.mrb[0].mxu0
        %v5966 = vadd.f32 %v5926, %v5965
        %v5967 = vpop.f32.mrb[0].mxu0
        %v5968 = vpop.f32.mrb[0].mxu0
        %v5969 = vpop.f32.mrb[0].mxu0
        %5970 = vdwg.mxu0
        %5971 = vmatprep.subr.bf16.mxu0 0
        %5972 = vmatpush1.bf16.msra.mxu0 %v4323
        %5973 = vmatprep.subr.bf16.mxu0 0
        %5974 = vmatpush1.bf16.msra.mxu0 %v4324
        %5975 = vmatprep.subr.bf16.mxu0 0
        %5976 = vmatpush1.bf16.msra.mxu0 %v4325
        %5977 = vmatprep.subr.bf16.mxu0 0
        %5978 = vmatpush1.bf16.msra.mxu0 %v4326
        %5979 = vmatprep.subr.bf16.mxu0 0
        %5980 = vmatpush1.bf16.msra.mxu0 %v4327
        %5981 = vmatprep.subr.bf16.mxu0 0
        %5982 = vmatpush1.bf16.msra.mxu0 %v4328
        %5983 = vmatprep.subr.bf16.mxu0 0
        %5984 = vmatpush1.bf16.msra.mxu0 %v4329
        %5985 = vmatprep.subr.bf16.mxu0 0
        %5986 = vmatpush1.bf16.msra.mxu0 %v4330
        %5987 = vmatprep.subr.bf16.mxu0 0
        %5988 = vmatpush1.bf16.msra.mxu0 %v4331
        %5989 = vmatprep.subr.bf16.mxu0 0
        %5990 = vmatpush1.bf16.msra.mxu0 %v4332
        %5991 = vmatprep.subr.bf16.mxu0 0
        %5992 = vmatpush1.bf16.msra.mxu0 %v4333
        %5993 = vmatprep.subr.bf16.mxu0 0
        %5994 = vmatpush1.bf16.msra.mxu0 %v4334
        %5995 = vmatprep.subr.bf16.mxu0 0
        %5996 = vmatpush1.bf16.msra.mxu0 %v4335
        %5997 = vmatprep.subr.bf16.mxu0 0
        %5998 = vmatpush1.bf16.msra.mxu0 %v4336
        %5999 = vmatprep.subr.bf16.mxu0 0
        %6000 = vmatpush1.bf16.msra.mxu0 %v4337
        %6001 = vmatprep.subr.bf16.mxu0 0
        %6002 = vmatpush1.bf16.msra.mxu0 %v4338
        %6003 = vmatprep.mubr.bf16.mxu0 %v824
        %6004 = vmatmul.mubr.bf16.gmra.mrb[0].mxu0 %v823
        %v6005 = vpop.f32.mrb[0].mxu0
        %v6006 = vadd.f32 %v5966, %v6005
        %v6007 = vpop.f32.mrb[0].mxu0
        %v6008 = vpop.f32.mrb[0].mxu0
        %v6009 = vpop.f32.mrb[0].mxu0
        %6010 = vdwg.mxu0
        %6011 = vmatprep.subr.bf16.mxu0 0
        %6012 = vmatpush1.bf16.msra.mxu0 %v4339
        %6013 = vmatprep.subr.bf16.mxu0 0
        %6014 = vmatpush1.bf16.msra.mxu0 %v4340
        %6015 = vmatprep.subr.bf16.mxu0 0
        %6016 = vmatpush1.bf16.msra.mxu0 %v4341
        %6017 = vmatprep.subr.bf16.mxu0 0
        %6018 = vmatpush1.bf16.msra.mxu0 %v4342
        %6019 = vmatprep.subr.bf16.mxu0 0
        %6020 = vmatpush1.bf16.msra.mxu0 %v4343
        %6021 = vmatprep.subr.bf16.mxu0 0
        %6022 = vmatpush1.bf16.msra.mxu0 %v4344
        %6023 = vmatprep.subr.bf16.mxu0 0
        %6024 = vmatpush1.bf16.msra.mxu0 %v4345
        %6025 = vmatprep.subr.bf16.mxu0 0
        %6026 = vmatpush1.bf16.msra.mxu0 %v4346
        %6027 = vmatprep.subr.bf16.mxu0 0
        %6028 = vmatpush1.bf16.msra.mxu0 %v4347
        %6029 = vmatprep.subr.bf16.mxu0 0
        %6030 = vmatpush1.bf16.msra.mxu0 %v4348
        %6031 = vmatprep.subr.bf16.mxu0 0
        %6032 = vmatpush1.bf16.msra.mxu0 %v4349
        %6033 = vmatprep.subr.bf16.mxu0 0
        %6034 = vmatpush1.bf16.msra.mxu0 %v4350
        %6035 = vmatprep.subr.bf16.mxu0 0
        %6036 = vmatpush1.bf16.msra.mxu0 %v4351
        %6037 = vmatprep.subr.bf16.mxu0 0
        %6038 = vmatpush1.bf16.msra.mxu0 %v4352
        %6039 = vmatprep.subr.bf16.mxu0 0
        %6040 = vmatpush1.bf16.msra.mxu0 %v4353
        %6041 = vmatprep.subr.bf16.mxu0 0
        %6042 = vmatpush1.bf16.msra.mxu0 %v4354
        %6043 = vmatprep.mubr.bf16.mxu0 %v826
        %6044 = vmatmul.mubr.bf16.gmra.mrb[0].mxu0 %v825
        %v6045 = vpop.f32.mrb[0].mxu0
        %v6046 = vadd.f32 %v6006, %v6045
        %v6047 = vpop.f32.mrb[0].mxu0
        %v6048 = vpop.f32.mrb[0].mxu0
        %v6049 = vpop.f32.mrb[0].mxu0
        %6050 = vdwg.mxu0
        %6051 = vmatprep.subr.bf16.mxu0 0
        %6052 = vmatpush1.bf16.msra.mxu0 %v4355
        %6053 = vmatprep.subr.bf16.mxu0 0
        %6054 = vmatpush1.bf16.msra.mxu0 %v4356
        %6055 = vmatprep.subr.bf16.mxu0 0
        %6056 = vmatpush1.bf16.msra.mxu0 %v4357
        %6057 = vmatprep.subr.bf16.mxu0 0
        %6058 = vmatpush1.bf16.msra.mxu0 %v4358
        %6059 = vmatprep.subr.bf16.mxu0 0
        %6060 = vmatpush1.bf16.msra.mxu0 %v4359
        %6061 = vmatprep.subr.bf16.mxu0 0
        %6062 = vmatpush1.bf16.msra.mxu0 %v4360
        %6063 = vmatprep.subr.bf16.mxu0 0
        %6064 = vmatpush1.bf16.msra.mxu0 %v4361
        %6065 = vmatprep.subr.bf16.mxu0 0
        %6066 = vmatpush1.bf16.msra.mxu0 %v4362
        %6067 = vmatprep.subr.bf16.mxu0 0
        %6068 = vmatpush1.bf16.msra.mxu0 %v4363
        %6069 = vmatprep.subr.bf16.mxu0 0
        %6070 = vmatpush1.bf16.msra.mxu0 %v4364
        %6071 = vmatprep.subr.bf16.mxu0 0
        %6072 = vmatpush1.bf16.msra.mxu0 %v4365
        %6073 = vmatprep.subr.bf16.mxu0 0
        %6074 = vmatpush1.bf16.msra.mxu0 %v4366
        %6075 = vmatprep.subr.bf16.mxu0 0
        %6076 = vmatpush1.bf16.msra.mxu0 %v4367
        %6077 = vmatprep.subr.bf16.mxu0 0
        %6078 = vmatpush1.bf16.msra.mxu0 %v4368
        %6079 = vmatprep.subr.bf16.mxu0 0
        %6080 = vmatpush1.bf16.msra.mxu0 %v4369
        %6081 = vmatprep.subr.bf16.mxu0 0
        %6082 = vmatpush1.bf16.msra.mxu0 %v4370
        %6083 = vmatprep.mubr.bf16.mxu0 %v828
        %6084 = vmatmul.mubr.bf16.gmra.mrb[0].mxu0 %v827
        %v6085 = vpop.f32.mrb[0].mxu0
        %v6086 = vadd.f32 %v6046, %v6085
        %v6087 = vpop.f32.mrb[0].mxu0
        %v6088 = vpop.f32.mrb[0].mxu0
        %v6089 = vpop.f32.mrb[0].mxu0
        %6090 = vdwg.mxu0
        %6091 = vmatprep.subr.bf16.mxu0 0
        %6092 = vmatpush1.bf16.msra.mxu0 %v4371
        %6093 = vmatprep.subr.bf16.mxu0 0
        %6094 = vmatpush1.bf16.msra.mxu0 %v4372
        %6095 = vmatprep.subr.bf16.mxu0 0
        %6096 = vmatpush1.bf16.msra.mxu0 %v4373
        %6097 = vmatprep.subr.bf16.mxu0 0
        %6098 = vmatpush1.bf16.msra.mxu0 %v4374
        %6099 = vmatprep.subr.bf16.mxu0 0
        %6100 = vmatpush1.bf16.msra.mxu0 %v4375
        %6101 = vmatprep.subr.bf16.mxu0 0
        %6102 = vmatpush1.bf16.msra.mxu0 %v4376
        %6103 = vmatprep.subr.bf16.mxu0 0
        %6104 = vmatpush1.bf16.msra.mxu0 %v4377
        %6105 = vmatprep.subr.bf16.mxu0 0
        %6106 = vmatpush1.bf16.msra.mxu0 %v4378
        %6107 = vmatprep.subr.bf16.mxu0 0
        %6108 = vmatpush1.bf16.msra.mxu0 %v4379
        %6109 = vmatprep.subr.bf16.mxu0 0
        %6110 = vmatpush1.bf16.msra.mxu0 %v4380
        %6111 = vmatprep.subr.bf16.mxu0 0
        %6112 = vmatpush1.bf16.msra.mxu0 %v4381
        %6113 = vmatprep.subr.bf16.mxu0 0
        %6114 = vmatpush1.bf16.msra.mxu0 %v4382
        %6115 = vmatprep.subr.bf16.mxu0 0
        %6116 = vmatpush1.bf16.msra.mxu0 %v4383
        %6117 = vmatprep.subr.bf16.mxu0 0
        %6118 = vmatpush1.bf16.msra.mxu0 %v4384
        %6119 = vmatprep.subr.bf16.mxu0 0
        %6120 = vmatpush1.bf16.msra.mxu0 %v4385
        %6121 = vmatprep.subr.bf16.mxu0 0
        %6122 = vmatpush1.bf16.msra.mxu0 %v4386
        %6123 = vmatprep.mubr.bf16.mxu0 %v830
        %6124 = vmatmul.mubr.bf16.gmra.mrb[0].mxu0 %v829
        %v6125 = vpop.f32.mrb[0].mxu0
        %v6126 = vadd.f32 %v6086, %v6125
        %v6127 = vpop.f32.mrb[0].mxu0
        %v6128 = vpop.f32.mrb[0].mxu0
        %v6129 = vpop.f32.mrb[0].mxu0
        %6130 = vdwg.mxu0
        %6131 = vmatprep.subr.bf16.mxu0 0
        %6132 = vmatpush1.bf16.msra.mxu0 %v4387
        %6133 = vmatprep.subr.bf16.mxu0 0
        %6134 = vmatpush1.bf16.msra.mxu0 %v4388
        %6135 = vmatprep.subr.bf16.mxu0 0
        %6136 = vmatpush1.bf16.msra.mxu0 %v4389
        %6137 = vmatprep.subr.bf16.mxu0 0
        %6138 = vmatpush1.bf16.msra.mxu0 %v4390
        %6139 = vmatprep.subr.bf16.mxu0 0
        %6140 = vmatpush1.bf16.msra.mxu0 %v4391
        %6141 = vmatprep.subr.bf16.mxu0 0
        %6142 = vmatpush1.bf16.msra.mxu0 %v4392
        %6143 = vmatprep.subr.bf16.mxu0 0
        %6144 = vmatpush1.bf16.msra.mxu0 %v4393
        %6145 = vmatprep.subr.bf16.mxu0 0
        %6146 = vmatpush1.bf16.msra.mxu0 %v4394
        %6147 = vmatprep.subr.bf16.mxu0 0
        %6148 = vmatpush1.bf16.msra.mxu0 %v4395
        %6149 = vmatprep.subr.bf16.mxu0 0
        %6150 = vmatpush1.bf16.msra.mxu0 %v4396
        %6151 = vmatprep.subr.bf16.mxu0 0
        %6152 = vmatpush1.bf16.msra.mxu0 %v4397
        %6153 = vmatprep.subr.bf16.mxu0 0
        %6154 = vmatpush1.bf16.msra.mxu0 %v4398
        %6155 = vmatprep.subr.bf16.mxu0 0
        %6156 = vmatpush1.bf16.msra.mxu0 %v4399
        %6157 = vmatprep.subr.bf16.mxu0 0
        %6158 = vmatpush1.bf16.msra.mxu0 %v4400
        %6159 = vmatprep.subr.bf16.mxu0 0
        %6160 = vmatpush1.bf16.msra.mxu0 %v4401
        %6161 = vmatprep.subr.bf16.mxu0 0
        %6162 = vmatpush1.bf16.msra.mxu0 %v4402
        %6163 = vmatprep.mubr.bf16.mxu0 %v832
        %6164 = vmatmul.mubr.bf16.gmra.mrb[0].mxu0 %v831
        %v6165 = vpop.f32.mrb[0].mxu0
        %v6166 = vadd.f32 %v6126, %v6165
        %v6167 = vpop.f32.mrb[0].mxu0
        %v6168 = vpop.f32.mrb[0].mxu0
        %v6169 = vpop.f32.mrb[0].mxu0
        %6170 = vdwg.mxu0
        %6171 = vmatprep.subr.bf16.mxu0 0
        %6172 = vmatpush1.bf16.msra.mxu0 %v4403
        %6173 = vmatprep.subr.bf16.mxu0 0
        %6174 = vmatpush1.bf16.msra.mxu0 %v4404
        %6175 = vmatprep.subr.bf16.mxu0 0
        %6176 = vmatpush1.bf16.msra.mxu0 %v4405
        %6177 = vmatprep.subr.bf16.mxu0 0
        %6178 = vmatpush1.bf16.msra.mxu0 %v4406
        %6179 = vmatprep.subr.bf16.mxu0 0
        %6180 = vmatpush1.bf16.msra.mxu0 %v4407
        %6181 = vmatprep.subr.bf16.mxu0 0
        %6182 = vmatpush1.bf16.msra.mxu0 %v4408
        %6183 = vmatprep.subr.bf16.mxu0 0
        %6184 = vmatpush1.bf16.msra.mxu0 %v4409
        %6185 = vmatprep.subr.bf16.mxu0 0
        %6186 = vmatpush1.bf16.msra.mxu0 %v4410
        %6187 = vmatprep.subr.bf16.mxu0 0
        %6188 = vmatpush1.bf16.msra.mxu0 %v4411
        %6189 = vmatprep.subr.bf16.mxu0 0
        %6190 = vmatpush1.bf16.msra.mxu0 %v4412
        %6191 = vmatprep.subr.bf16.mxu0 0
        %6192 = vmatpush1.bf16.msra.mxu0 %v4413
        %6193 = vmatprep.subr.bf16.mxu0 0
        %6194 = vmatpush1.bf16.msra.mxu0 %v4414
        %6195 = vmatprep.subr.bf16.mxu0 0
        %6196 = vmatpush1.bf16.msra.mxu0 %v4415
        %6197 = vmatprep.subr.bf16.mxu0 0
        %6198 = vmatpush1.bf16.msra.mxu0 %v4416
        %6199 = vmatprep.subr.bf16.mxu0 0
        %6200 = vmatpush1.bf16.msra.mxu0 %v4417
        %6201 = vmatprep.subr.bf16.mxu0 0
        %6202 = vmatpush1.bf16.msra.mxu0 %v4418
        %6203 = vmatprep.mubr.bf16.mxu0 %v834
        %6204 = vmatmul.mubr.bf16.gmra.mrb[0].mxu0 %v833
        %v6205 = vpop.f32.mrb[0].mxu0
        %v6206 = vadd.f32 %v6166, %v6205
        %v6207 = vpop.f32.mrb[0].mxu0
        %v6208 = vpop.f32.mrb[0].mxu0
        %v6209 = vpop.f32.mrb[0].mxu0
        %6210 = vdwg.mxu0
        %v6211 = vmul.f32 %v6206, 0.0009765625
        %v6212 = vld [vmem:[#allocation11] sm:$0x1]
        %v6214 = vlaneseq
        %v6215 = vshrl.u32 %v6214, 7
        %v6216 = vsub.s32 0, %v6215
        %v6217 = vrot.slane %v6212, %v6216
        %v6219 = vadd.f32 %v6211, %v6217
        %v6220 = vmax.f32 %v6219, 0.0
        %v6221 = vld [vmem:[%s12] sm:$0xff]
        %v6222 = vld [vmem:[%s12 + $0x8] sm:$0xff]
        %v6223 = vld [vmem:[%s12 + $0x10] sm:$0xff]
        %v6224 = vld [vmem:[%s12 + $0x18] sm:$0xff]
        %v6225 = vld [vmem:[%s12 + $0x20] sm:$0xff]
        %v6226 = vld [vmem:[%s12 + $0x28] sm:$0xff]
        %v6227 = vld [vmem:[%s12 + $0x30] sm:$0xff]
        %v6228 = vld [vmem:[%s12 + $0x38] sm:$0xff]
        %v6229 = vld [vmem:[%s12 + $0x40] sm:$0xff]
        %v6230 = vld [vmem:[%s12 + $0x48] sm:$0xff]
        %v6231 = vld [vmem:[%s12 + $0x50] sm:$0xff]
        %v6232 = vld [vmem:[%s12 + $0x58] sm:$0xff]
        %v6233 = vld [vmem:[%s12 + $0x60] sm:$0xff]
        %v6234 = vld [vmem:[%s12 + $0x68] sm:$0xff]
        %v6235 = vld [vmem:[%s12 + $0x70] sm:$0xff]
        %v6236 = vld [vmem:[%s12 + $0x78] sm:$0xff]
        %6237 = vmatprep.subr.mxu0 0.0
        %6238 = vmatpush1.msra.mxu0 %v6221
        %6239 = vmatprep.subr.mxu0 0.0
        %6240 = vmatpush1.msra.mxu0 %v6222
        %6241 = vmatprep.subr.mxu0 0.0
        %6242 = vmatpush1.msra.mxu0 %v6223
        %6243 = vmatprep.subr.mxu0 0.0
        %6244 = vmatpush1.msra.mxu0 %v6224
        %6245 = vmatprep.subr.mxu0 0.0
        %6246 = vmatpush1.msra.mxu0 %v6225
        %6247 = vmatprep.subr.mxu0 0.0
        %6248 = vmatpush1.msra.mxu0 %v6226
        %6249 = vmatprep.subr.mxu0 0.0
        %6250 = vmatpush1.msra.mxu0 %v6227
        %6251 = vmatprep.subr.mxu0 0.0
        %6252 = vmatpush1.msra.mxu0 %v6228
        %6253 = vmatprep.subr.mxu0 0.0
        %6254 = vmatpush1.msra.mxu0 %v6229
        %6255 = vmatprep.subr.mxu0 0.0
        %6256 = vmatpush1.msra.mxu0 %v6230
        %6257 = vmatprep.subr.mxu0 0.0
        %6258 = vmatpush1.msra.mxu0 %v6231
        %6259 = vmatprep.subr.mxu0 0.0
        %6260 = vmatpush1.msra.mxu0 %v6232
        %6261 = vmatprep.subr.mxu0 0.0
        %6262 = vmatpush1.msra.mxu0 %v6233
        %6263 = vmatprep.subr.mxu0 0.0
        %6264 = vmatpush1.msra.mxu0 %v6234
        %6265 = vmatprep.subr.mxu0 0.0
        %6266 = vmatpush1.msra.mxu0 %v6235
        %6267 = vmatprep.subr.mxu0 0.0
        %6268 = vmatpush1.msra.mxu0 %v6236
        %6269 = vmatprep.subr.mxu0 0.0
        %6270 = vmatpush1.msra.mxu0 0.0
        %6271 = vmatprep.subr.mxu0 0.0
        %6272 = vmatpush1.msra.mxu0 0.0
        %6273 = vmatprep.subr.mxu0 0.0
        %6274 = vmatpush1.msra.mxu0 0.0
        %6275 = vmatprep.subr.mxu0 0.0
        %6276 = vmatpush1.msra.mxu0 0.0
        %6277 = vmatprep.subr.mxu0 0.0
        %6278 = vmatpush1.msra.mxu0 0.0
        %6279 = vmatprep.subr.mxu0 0.0
        %6280 = vmatpush1.msra.mxu0 0.0
        %6281 = vmatprep.subr.mxu0 0.0
        %6282 = vmatpush1.msra.mxu0 0.0
        %6283 = vmatprep.subr.mxu0 0.0
        %6284 = vmatpush1.msra.mxu0 0.0
        %6285 = vmatprep.subr.mxu0 0.0
        %6286 = vmatpush1.msra.mxu0 0.0
        %6287 = vmatprep.subr.mxu0 0.0
        %6288 = vmatpush1.msra.mxu0 0.0
        %6289 = vmatprep.subr.mxu0 0.0
        %6290 = vmatpush1.msra.mxu0 0.0
        %6291 = vmatprep.subr.mxu0 0.0
        %6292 = vmatpush1.msra.mxu0 0.0
        %6293 = vmatprep.subr.mxu0 0.0
        %6294 = vmatpush1.msra.mxu0 0.0
        %6295 = vmatprep.subr.mxu0 0.0
        %6296 = vmatpush1.msra.mxu0 0.0
        %6297 = vmatprep.subr.mxu0 0.0
        %6298 = vmatpush1.msra.mxu0 0.0
        %6299 = vmatprep.subr.mxu0 0.0
        %6300 = vmatpush1.msra.mxu0 0.0
        %6301 = vmatprep.mubr.f32.mxu0 0.0
        %6302 = vmatmul.mubr.f32.gmra.mrb[0].mxu0 %v6220
        %v6303 = vpop.f32.mrb[0].mxu0
        %v6304 = vadd.f32 0.0, %v6303
        %v6305 = vpop.f32.mrb[0].mxu0
        %6306 = vdwg.mxu0
        %v6308 = vlaneseq
        %v6309 = vshrl.u32 %v6308, 7
        %v6310 = vsub.s32 0, %v6309
        %v6311 = vrot.slane %v706, %v6310
        %v6313 = vadd.f32 %v6311, %v6304
        %v6314 = vld [vmem:[%s592] sm:$0xff]
        %v6315 = vld [vmem:[%s592 + $0x8] sm:$0xff]
        %v6316 = vld [vmem:[%s592 + $0x10] sm:$0xff]
        %v6317 = vld [vmem:[%s592 + $0x18] sm:$0xff]
        %v6318 = vld [vmem:[%s592 + $0x20] sm:$0xff]
        %v6319 = vld [vmem:[%s592 + $0x28] sm:$0xff]
        %v6320 = vld [vmem:[%s592 + $0x30] sm:$0xff]
        %v6321 = vld [vmem:[%s592 + $0x38] sm:$0xff]
        %v6322 = vld [vmem:[%s592 + $0x40] sm:$0xff]
        %v6323 = vld [vmem:[%s592 + $0x48] sm:$0xff]
        %v6324 = vld [vmem:[%s592 + $0x50] sm:$0xff]
        %v6325 = vld [vmem:[%s592 + $0x58] sm:$0xff]
        %v6326 = vld [vmem:[%s592 + $0x60] sm:$0xff]
        %v6327 = vld [vmem:[%s592 + $0x68] sm:$0xff]
        %v6328 = vld [vmem:[%s592 + $0x70] sm:$0xff]
        %v6329 = vld [vmem:[%s592 + $0x78] sm:$0xff]
        %v6330 = vld [vmem:[%s592 + $0x80] sm:$0xff]
        %v6331 = vld [vmem:[%s592 + $0x88] sm:$0xff]
        %v6332 = vld [vmem:[%s592 + $0x90] sm:$0xff]
        %v6333 = vld [vmem:[%s592 + $0x98] sm:$0xff]
        %v6334 = vld [vmem:[%s592 + $0xa0] sm:$0xff]
        %v6335 = vld [vmem:[%s592 + $0xa8] sm:$0xff]
        %v6336 = vld [vmem:[%s592 + $0xb0] sm:$0xff]
        %v6337 = vld [vmem:[%s592 + $0xb8] sm:$0xff]
        %v6338 = vld [vmem:[%s592 + $0xc0] sm:$0xff]
        %v6339 = vld [vmem:[%s592 + $0xc8] sm:$0xff]
        %v6340 = vld [vmem:[%s592 + $0xd0] sm:$0xff]
        %v6341 = vld [vmem:[%s592 + $0xd8] sm:$0xff]
        %v6342 = vld [vmem:[%s592 + $0xe0] sm:$0xff]
        %v6343 = vld [vmem:[%s592 + $0xe8] sm:$0xff]
        %v6344 = vld [vmem:[%s592 + $0xf0] sm:$0xff]
        %v6345 = vld [vmem:[%s592 + $0xf8] sm:$0xff]
        %v6346 = vpack.c.bf16 %v6314, %v6314
        %v6347 = vpack.c.bf16 %v6315, %v6315
        %v6348 = vpack.c.bf16 %v6316, %v6316
        %v6349 = vpack.c.bf16 %v6317, %v6317
        %v6350 = vpack.c.bf16 %v6318, %v6318
        %v6351 = vpack.c.bf16 %v6319, %v6319
        %v6352 = vpack.c.bf16 %v6320, %v6320
        %v6353 = vpack.c.bf16 %v6321, %v6321
        %v6354 = vpack.c.bf16 %v6322, %v6322
        %v6355 = vpack.c.bf16 %v6323, %v6323
        %v6356 = vpack.c.bf16 %v6324, %v6324
        %v6357 = vpack.c.bf16 %v6325, %v6325
        %v6358 = vpack.c.bf16 %v6326, %v6326
        %v6359 = vpack.c.bf16 %v6327, %v6327
        %v6360 = vpack.c.bf16 %v6328, %v6328
        %v6361 = vpack.c.bf16 %v6329, %v6329
        %v6362 = vpack.c.bf16 %v6330, %v6330
        %v6363 = vpack.c.bf16 %v6331, %v6331
        %v6364 = vpack.c.bf16 %v6332, %v6332
        %v6365 = vpack.c.bf16 %v6333, %v6333
        %v6366 = vpack.c.bf16 %v6334, %v6334
        %v6367 = vpack.c.bf16 %v6335, %v6335
        %v6368 = vpack.c.bf16 %v6336, %v6336
        %v6369 = vpack.c.bf16 %v6337, %v6337
        %v6370 = vpack.c.bf16 %v6338, %v6338
        %v6371 = vpack.c.bf16 %v6339, %v6339
        %v6372 = vpack.c.bf16 %v6340, %v6340
        %v6373 = vpack.c.bf16 %v6341, %v6341
        %v6374 = vpack.c.bf16 %v6342, %v6342
        %v6375 = vpack.c.bf16 %v6343, %v6343
        %v6376 = vpack.c.bf16 %v6344, %v6344
        %v6377 = vpack.c.bf16 %v6345, %v6345
        %v6378 = vld [vmem:[#allocation13] sm:$0xf]
        %v6379 = vld [vmem:[#allocation13 + $0x4] sm:$0xf]
        %v6380 = vld [vmem:[#allocation13 + $0x8] sm:$0xf]
        %v6381 = vld [vmem:[#allocation13 + $0xc] sm:$0xf]
        %v6382 = vld [vmem:[#allocation13 + $0x10] sm:$0xf]
        %v6383 = vld [vmem:[#allocation13 + $0x14] sm:$0xf]
        %v6384 = vld [vmem:[#allocation13 + $0x18] sm:$0xf]
        %v6385 = vld [vmem:[#allocation13 + $0x1c] sm:$0xf]
        %v6386 = vld [vmem:[#allocation13 + $0x20] sm:$0xf]
        %v6387 = vld [vmem:[#allocation13 + $0x24] sm:$0xf]
        %v6388 = vld [vmem:[#allocation13 + $0x28] sm:$0xf]
        %v6389 = vld [vmem:[#allocation13 + $0x2c] sm:$0xf]
        %v6390 = vld [vmem:[#allocation13 + $0x30] sm:$0xf]
        %v6391 = vld [vmem:[#allocation13 + $0x34] sm:$0xf]
        %v6392 = vld [vmem:[#allocation13 + $0x38] sm:$0xf]
        %v6393 = vld [vmem:[#allocation13 + $0x3c] sm:$0xf]
        %v6394 = vld [vmem:[#allocation13 + $0x40] sm:$0xf]
        %v6395 = vld [vmem:[#allocation13 + $0x44] sm:$0xf]
        %v6396 = vld [vmem:[#allocation13 + $0x48] sm:$0xf]
        %v6397 = vld [vmem:[#allocation13 + $0x4c] sm:$0xf]
        %v6398 = vld [vmem:[#allocation13 + $0x50] sm:$0xf]
        %v6399 = vld [vmem:[#allocation13 + $0x54] sm:$0xf]
        %v6400 = vld [vmem:[#allocation13 + $0x58] sm:$0xf]
        %v6401 = vld [vmem:[#allocation13 + $0x5c] sm:$0xf]
        %v6402 = vld [vmem:[#allocation13 + $0x60] sm:$0xf]
        %v6403 = vld [vmem:[#allocation13 + $0x64] sm:$0xf]
        %v6404 = vld [vmem:[#allocation13 + $0x68] sm:$0xf]
        %v6405 = vld [vmem:[#allocation13 + $0x6c] sm:$0xf]
        %v6406 = vld [vmem:[#allocation13 + $0x70] sm:$0xf]
        %v6407 = vld [vmem:[#allocation13 + $0x74] sm:$0xf]
        %v6408 = vld [vmem:[#allocation13 + $0x78] sm:$0xf]
        %v6409 = vld [vmem:[#allocation13 + $0x7c] sm:$0xf]
        %v6410 = vld [vmem:[#allocation13 + $0x80] sm:$0xf]
        %v6411 = vld [vmem:[#allocation13 + $0x84] sm:$0xf]
        %v6412 = vld [vmem:[#allocation13 + $0x88] sm:$0xf]
        %v6413 = vld [vmem:[#allocation13 + $0x8c] sm:$0xf]
        %v6414 = vld [vmem:[#allocation13 + $0x90] sm:$0xf]
        %v6415 = vld [vmem:[#allocation13 + $0x94] sm:$0xf]
        %v6416 = vld [vmem:[#allocation13 + $0x98] sm:$0xf]
        %v6417 = vld [vmem:[#allocation13 + $0x9c] sm:$0xf]
        %v6418 = vld [vmem:[#allocation13 + $0xa0] sm:$0xf]
        %v6419 = vld [vmem:[#allocation13 + $0xa4] sm:$0xf]
        %v6420 = vld [vmem:[#allocation13 + $0xa8] sm:$0xf]
        %v6421 = vld [vmem:[#allocation13 + $0xac] sm:$0xf]
        %v6422 = vld [vmem:[#allocation13 + $0xb0] sm:$0xf]
        %v6423 = vld [vmem:[#allocation13 + $0xb4] sm:$0xf]
        %v6424 = vld [vmem:[#allocation13 + $0xb8] sm:$0xf]
        %v6425 = vld [vmem:[#allocation13 + $0xbc] sm:$0xf]
        %v6426 = vld [vmem:[#allocation13 + $0xc0] sm:$0xf]
        %v6427 = vld [vmem:[#allocation13 + $0xc4] sm:$0xf]
        %v6428 = vld [vmem:[#allocation13 + $0xc8] sm:$0xf]
        %v6429 = vld [vmem:[#allocation13 + $0xcc] sm:$0xf]
        %v6430 = vld [vmem:[#allocation13 + $0xd0] sm:$0xf]
        %v6431 = vld [vmem:[#allocation13 + $0xd4] sm:$0xf]
        %v6432 = vld [vmem:[#allocation13 + $0xd8] sm:$0xf]
        %v6433 = vld [vmem:[#allocation13 + $0xdc] sm:$0xf]
        %v6434 = vld [vmem:[#allocation13 + $0xe0] sm:$0xf]
        %v6435 = vld [vmem:[#allocation13 + $0xe4] sm:$0xf]
        %v6436 = vld [vmem:[#allocation13 + $0xe8] sm:$0xf]
        %v6437 = vld [vmem:[#allocation13 + $0xec] sm:$0xf]
        %v6438 = vld [vmem:[#allocation13 + $0xf0] sm:$0xf]
        %v6439 = vld [vmem:[#allocation13 + $0xf4] sm:$0xf]
        %v6440 = vld [vmem:[#allocation13 + $0xf8] sm:$0xf]
        %v6441 = vld [vmem:[#allocation13 + $0xfc] sm:$0xf]
        %v6442 = vld [vmem:[#allocation13 + $0x100] sm:$0xf]
        %v6443 = vld [vmem:[#allocation13 + $0x104] sm:$0xf]
        %v6444 = vld [vmem:[#allocation13 + $0x108] sm:$0xf]
        %v6445 = vld [vmem:[#allocation13 + $0x10c] sm:$0xf]
        %v6446 = vld [vmem:[#allocation13 + $0x110] sm:$0xf]
        %v6447 = vld [vmem:[#allocation13 + $0x114] sm:$0xf]
        %v6448 = vld [vmem:[#allocation13 + $0x118] sm:$0xf]
        %v6449 = vld [vmem:[#allocation13 + $0x11c] sm:$0xf]
        %v6450 = vld [vmem:[#allocation13 + $0x120] sm:$0xf]
        %v6451 = vld [vmem:[#allocation13 + $0x124] sm:$0xf]
        %v6452 = vld [vmem:[#allocation13 + $0x128] sm:$0xf]
        %v6453 = vld [vmem:[#allocation13 + $0x12c] sm:$0xf]
        %v6454 = vld [vmem:[#allocation13 + $0x130] sm:$0xf]
        %v6455 = vld [vmem:[#allocation13 + $0x134] sm:$0xf]
        %v6456 = vld [vmem:[#allocation13 + $0x138] sm:$0xf]
        %v6457 = vld [vmem:[#allocation13 + $0x13c] sm:$0xf]
        %v6458 = vld [vmem:[#allocation13 + $0x140] sm:$0xf]
        %v6459 = vld [vmem:[#allocation13 + $0x144] sm:$0xf]
        %v6460 = vld [vmem:[#allocation13 + $0x148] sm:$0xf]
        %v6461 = vld [vmem:[#allocation13 + $0x14c] sm:$0xf]
        %v6462 = vld [vmem:[#allocation13 + $0x150] sm:$0xf]
        %v6463 = vld [vmem:[#allocation13 + $0x154] sm:$0xf]
        %v6464 = vld [vmem:[#allocation13 + $0x158] sm:$0xf]
        %v6465 = vld [vmem:[#allocation13 + $0x15c] sm:$0xf]
        %v6466 = vld [vmem:[#allocation13 + $0x160] sm:$0xf]
        %v6467 = vld [vmem:[#allocation13 + $0x164] sm:$0xf]
        %v6468 = vld [vmem:[#allocation13 + $0x168] sm:$0xf]
        %v6469 = vld [vmem:[#allocation13 + $0x16c] sm:$0xf]
        %v6470 = vld [vmem:[#allocation13 + $0x170] sm:$0xf]
        %v6471 = vld [vmem:[#allocation13 + $0x174] sm:$0xf]
        %v6472 = vld [vmem:[#allocation13 + $0x178] sm:$0xf]
        %v6473 = vld [vmem:[#allocation13 + $0x17c] sm:$0xf]
        %v6474 = vld [vmem:[#allocation13 + $0x180] sm:$0xf]
        %v6475 = vld [vmem:[#allocation13 + $0x184] sm:$0xf]
        %v6476 = vld [vmem:[#allocation13 + $0x188] sm:$0xf]
        %v6477 = vld [vmem:[#allocation13 + $0x18c] sm:$0xf]
        %v6478 = vld [vmem:[#allocation13 + $0x190] sm:$0xf]
        %v6479 = vld [vmem:[#allocation13 + $0x194] sm:$0xf]
        %v6480 = vld [vmem:[#allocation13 + $0x198] sm:$0xf]
        %v6481 = vld [vmem:[#allocation13 + $0x19c] sm:$0xf]
        %v6482 = vld [vmem:[#allocation13 + $0x1a0] sm:$0xf]
        %v6483 = vld [vmem:[#allocation13 + $0x1a4] sm:$0xf]
        %v6484 = vld [vmem:[#allocation13 + $0x1a8] sm:$0xf]
        %v6485 = vld [vmem:[#allocation13 + $0x1ac] sm:$0xf]
        %v6486 = vld [vmem:[#allocation13 + $0x1b0] sm:$0xf]
        %v6487 = vld [vmem:[#allocation13 + $0x1b4] sm:$0xf]
        %v6488 = vld [vmem:[#allocation13 + $0x1b8] sm:$0xf]
        %v6489 = vld [vmem:[#allocation13 + $0x1bc] sm:$0xf]
        %v6490 = vld [vmem:[#allocation13 + $0x1c0] sm:$0xf]
        %v6491 = vld [vmem:[#allocation13 + $0x1c4] sm:$0xf]
        %v6492 = vld [vmem:[#allocation13 + $0x1c8] sm:$0xf]
        %v6493 = vld [vmem:[#allocation13 + $0x1cc] sm:$0xf]
        %v6494 = vld [vmem:[#allocation13 + $0x1d0] sm:$0xf]
        %v6495 = vld [vmem:[#allocation13 + $0x1d4] sm:$0xf]
        %v6496 = vld [vmem:[#allocation13 + $0x1d8] sm:$0xf]
        %v6497 = vld [vmem:[#allocation13 + $0x1dc] sm:$0xf]
        %v6498 = vld [vmem:[#allocation13 + $0x1e0] sm:$0xf]
        %v6499 = vld [vmem:[#allocation13 + $0x1e4] sm:$0xf]
        %v6500 = vld [vmem:[#allocation13 + $0x1e8] sm:$0xf]
        %v6501 = vld [vmem:[#allocation13 + $0x1ec] sm:$0xf]
        %v6502 = vld [vmem:[#allocation13 + $0x1f0] sm:$0xf]
        %v6503 = vld [vmem:[#allocation13 + $0x1f4] sm:$0xf]
        %v6504 = vld [vmem:[#allocation13 + $0x1f8] sm:$0xf]
        %v6505 = vld [vmem:[#allocation13 + $0x1fc] sm:$0xf]
        %v6506 = vld [vmem:[#allocation13 + $0x200] sm:$0xf]
        %v6507 = vld [vmem:[#allocation13 + $0x204] sm:$0xf]
        %v6508 = vld [vmem:[#allocation13 + $0x208] sm:$0xf]
        %v6509 = vld [vmem:[#allocation13 + $0x20c] sm:$0xf]
        %v6510 = vld [vmem:[#allocation13 + $0x210] sm:$0xf]
        %v6511 = vld [vmem:[#allocation13 + $0x214] sm:$0xf]
        %v6512 = vld [vmem:[#allocation13 + $0x218] sm:$0xf]
        %v6513 = vld [vmem:[#allocation13 + $0x21c] sm:$0xf]
        %v6514 = vld [vmem:[#allocation13 + $0x220] sm:$0xf]
        %v6515 = vld [vmem:[#allocation13 + $0x224] sm:$0xf]
        %v6516 = vld [vmem:[#allocation13 + $0x228] sm:$0xf]
        %v6517 = vld [vmem:[#allocation13 + $0x22c] sm:$0xf]
        %v6518 = vld [vmem:[#allocation13 + $0x230] sm:$0xf]
        %v6519 = vld [vmem:[#allocation13 + $0x234] sm:$0xf]
        %v6520 = vld [vmem:[#allocation13 + $0x238] sm:$0xf]
        %v6521 = vld [vmem:[#allocation13 + $0x23c] sm:$0xf]
        %v6522 = vld [vmem:[#allocation13 + $0x240] sm:$0xf]
        %v6523 = vld [vmem:[#allocation13 + $0x244] sm:$0xf]
        %v6524 = vld [vmem:[#allocation13 + $0x248] sm:$0xf]
        %v6525 = vld [vmem:[#allocation13 + $0x24c] sm:$0xf]
        %v6526 = vld [vmem:[#allocation13 + $0x250] sm:$0xf]
        %v6527 = vld [vmem:[#allocation13 + $0x254] sm:$0xf]
        %v6528 = vld [vmem:[#allocation13 + $0x258] sm:$0xf]
        %v6529 = vld [vmem:[#allocation13 + $0x25c] sm:$0xf]
        %v6530 = vld [vmem:[#allocation13 + $0x260] sm:$0xf]
        %v6531 = vld [vmem:[#allocation13 + $0x264] sm:$0xf]
        %v6532 = vld [vmem:[#allocation13 + $0x268] sm:$0xf]
        %v6533 = vld [vmem:[#allocation13 + $0x26c] sm:$0xf]
        %v6534 = vld [vmem:[#allocation13 + $0x270] sm:$0xf]
        %v6535 = vld [vmem:[#allocation13 + $0x274] sm:$0xf]
        %v6536 = vld [vmem:[#allocation13 + $0x278] sm:$0xf]
        %v6537 = vld [vmem:[#allocation13 + $0x27c] sm:$0xf]
        %v6538 = vld [vmem:[#allocation13 + $0x280] sm:$0xf]
        %v6539 = vld [vmem:[#allocation13 + $0x284] sm:$0xf]
        %v6540 = vld [vmem:[#allocation13 + $0x288] sm:$0xf]
        %v6541 = vld [vmem:[#allocation13 + $0x28c] sm:$0xf]
        %v6542 = vld [vmem:[#allocation13 + $0x290] sm:$0xf]
        %v6543 = vld [vmem:[#allocation13 + $0x294] sm:$0xf]
        %v6544 = vld [vmem:[#allocation13 + $0x298] sm:$0xf]
        %v6545 = vld [vmem:[#allocation13 + $0x29c] sm:$0xf]
        %v6546 = vld [vmem:[#allocation13 + $0x2a0] sm:$0xf]
        %v6547 = vld [vmem:[#allocation13 + $0x2a4] sm:$0xf]
        %v6548 = vld [vmem:[#allocation13 + $0x2a8] sm:$0xf]
        %v6549 = vld [vmem:[#allocation13 + $0x2ac] sm:$0xf]
        %v6550 = vld [vmem:[#allocation13 + $0x2b0] sm:$0xf]
        %v6551 = vld [vmem:[#allocation13 + $0x2b4] sm:$0xf]
        %v6552 = vld [vmem:[#allocation13 + $0x2b8] sm:$0xf]
        %v6553 = vld [vmem:[#allocation13 + $0x2bc] sm:$0xf]
        %v6554 = vld [vmem:[#allocation13 + $0x2c0] sm:$0xf]
        %v6555 = vld [vmem:[#allocation13 + $0x2c4] sm:$0xf]
        %v6556 = vld [vmem:[#allocation13 + $0x2c8] sm:$0xf]
        %v6557 = vld [vmem:[#allocation13 + $0x2cc] sm:$0xf]
        %v6558 = vld [vmem:[#allocation13 + $0x2d0] sm:$0xf]
        %v6559 = vld [vmem:[#allocation13 + $0x2d4] sm:$0xf]
        %v6560 = vld [vmem:[#allocation13 + $0x2d8] sm:$0xf]
        %v6561 = vld [vmem:[#allocation13 + $0x2dc] sm:$0xf]
        %v6562 = vld [vmem:[#allocation13 + $0x2e0] sm:$0xf]
        %v6563 = vld [vmem:[#allocation13 + $0x2e4] sm:$0xf]
        %v6564 = vld [vmem:[#allocation13 + $0x2e8] sm:$0xf]
        %v6565 = vld [vmem:[#allocation13 + $0x2ec] sm:$0xf]
        %v6566 = vld [vmem:[#allocation13 + $0x2f0] sm:$0xf]
        %v6567 = vld [vmem:[#allocation13 + $0x2f4] sm:$0xf]
        %v6568 = vld [vmem:[#allocation13 + $0x2f8] sm:$0xf]
        %v6569 = vld [vmem:[#allocation13 + $0x2fc] sm:$0xf]
        %v6570 = vld [vmem:[#allocation13 + $0x300] sm:$0xf]
        %v6571 = vld [vmem:[#allocation13 + $0x304] sm:$0xf]
        %v6572 = vld [vmem:[#allocation13 + $0x308] sm:$0xf]
        %v6573 = vld [vmem:[#allocation13 + $0x30c] sm:$0xf]
        %v6574 = vld [vmem:[#allocation13 + $0x310] sm:$0xf]
        %v6575 = vld [vmem:[#allocation13 + $0x314] sm:$0xf]
        %v6576 = vld [vmem:[#allocation13 + $0x318] sm:$0xf]
        %v6577 = vld [vmem:[#allocation13 + $0x31c] sm:$0xf]
        %v6578 = vld [vmem:[#allocation13 + $0x320] sm:$0xf]
        %v6579 = vld [vmem:[#allocation13 + $0x324] sm:$0xf]
        %v6580 = vld [vmem:[#allocation13 + $0x328] sm:$0xf]
        %v6581 = vld [vmem:[#allocation13 + $0x32c] sm:$0xf]
        %v6582 = vld [vmem:[#allocation13 + $0x330] sm:$0xf]
        %v6583 = vld [vmem:[#allocation13 + $0x334] sm:$0xf]
        %v6584 = vld [vmem:[#allocation13 + $0x338] sm:$0xf]
        %v6585 = vld [vmem:[#allocation13 + $0x33c] sm:$0xf]
        %v6586 = vld [vmem:[#allocation13 + $0x340] sm:$0xf]
        %v6587 = vld [vmem:[#allocation13 + $0x344] sm:$0xf]
        %v6588 = vld [vmem:[#allocation13 + $0x348] sm:$0xf]
        %v6589 = vld [vmem:[#allocation13 + $0x34c] sm:$0xf]
        %v6590 = vld [vmem:[#allocation13 + $0x350] sm:$0xf]
        %v6591 = vld [vmem:[#allocation13 + $0x354] sm:$0xf]
        %v6592 = vld [vmem:[#allocation13 + $0x358] sm:$0xf]
        %v6593 = vld [vmem:[#allocation13 + $0x35c] sm:$0xf]
        %v6594 = vld [vmem:[#allocation13 + $0x360] sm:$0xf]
        %v6595 = vld [vmem:[#allocation13 + $0x364] sm:$0xf]
        %v6596 = vld [vmem:[#allocation13 + $0x368] sm:$0xf]
        %v6597 = vld [vmem:[#allocation13 + $0x36c] sm:$0xf]
        %v6598 = vld [vmem:[#allocation13 + $0x370] sm:$0xf]
        %v6599 = vld [vmem:[#allocation13 + $0x374] sm:$0xf]
        %v6600 = vld [vmem:[#allocation13 + $0x378] sm:$0xf]
        %v6601 = vld [vmem:[#allocation13 + $0x37c] sm:$0xf]
        %v6602 = vld [vmem:[#allocation13 + $0x380] sm:$0xf]
        %v6603 = vld [vmem:[#allocation13 + $0x384] sm:$0xf]
        %v6604 = vld [vmem:[#allocation13 + $0x388] sm:$0xf]
        %v6605 = vld [vmem:[#allocation13 + $0x38c] sm:$0xf]
        %v6606 = vld [vmem:[#allocation13 + $0x390] sm:$0xf]
        %v6607 = vld [vmem:[#allocation13 + $0x394] sm:$0xf]
        %v6608 = vld [vmem:[#allocation13 + $0x398] sm:$0xf]
        %v6609 = vld [vmem:[#allocation13 + $0x39c] sm:$0xf]
        %v6610 = vld [vmem:[#allocation13 + $0x3a0] sm:$0xf]
        %v6611 = vld [vmem:[#allocation13 + $0x3a4] sm:$0xf]
        %v6612 = vld [vmem:[#allocation13 + $0x3a8] sm:$0xf]
        %v6613 = vld [vmem:[#allocation13 + $0x3ac] sm:$0xf]
        %v6614 = vld [vmem:[#allocation13 + $0x3b0] sm:$0xf]
        %v6615 = vld [vmem:[#allocation13 + $0x3b4] sm:$0xf]
        %v6616 = vld [vmem:[#allocation13 + $0x3b8] sm:$0xf]
        %v6617 = vld [vmem:[#allocation13 + $0x3bc] sm:$0xf]
        %v6618 = vld [vmem:[#allocation13 + $0x3c0] sm:$0xf]
        %v6619 = vld [vmem:[#allocation13 + $0x3c4] sm:$0xf]
        %v6620 = vld [vmem:[#allocation13 + $0x3c8] sm:$0xf]
        %v6621 = vld [vmem:[#allocation13 + $0x3cc] sm:$0xf]
        %v6622 = vld [vmem:[#allocation13 + $0x3d0] sm:$0xf]
        %v6623 = vld [vmem:[#allocation13 + $0x3d4] sm:$0xf]
        %v6624 = vld [vmem:[#allocation13 + $0x3d8] sm:$0xf]
        %v6625 = vld [vmem:[#allocation13 + $0x3dc] sm:$0xf]
        %v6626 = vld [vmem:[#allocation13 + $0x3e0] sm:$0xf]
        %v6627 = vld [vmem:[#allocation13 + $0x3e4] sm:$0xf]
        %v6628 = vld [vmem:[#allocation13 + $0x3e8] sm:$0xf]
        %v6629 = vld [vmem:[#allocation13 + $0x3ec] sm:$0xf]
        %v6630 = vld [vmem:[#allocation13 + $0x3f0] sm:$0xf]
        %v6631 = vld [vmem:[#allocation13 + $0x3f4] sm:$0xf]
        %v6632 = vld [vmem:[#allocation13 + $0x3f8] sm:$0xf]
        %v6633 = vld [vmem:[#allocation13 + $0x3fc] sm:$0xf]
        %v6634 = vld [vmem:[#allocation13 + $0x400] sm:$0xf]
        %v6635 = vld [vmem:[#allocation13 + $0x404] sm:$0xf]
        %v6636 = vld [vmem:[#allocation13 + $0x408] sm:$0xf]
        %v6637 = vld [vmem:[#allocation13 + $0x40c] sm:$0xf]
        %v6638 = vld [vmem:[#allocation13 + $0x410] sm:$0xf]
        %v6639 = vld [vmem:[#allocation13 + $0x414] sm:$0xf]
        %v6640 = vld [vmem:[#allocation13 + $0x418] sm:$0xf]
        %v6641 = vld [vmem:[#allocation13 + $0x41c] sm:$0xf]
        %v6642 = vld [vmem:[#allocation13 + $0x420] sm:$0xf]
        %v6643 = vld [vmem:[#allocation13 + $0x424] sm:$0xf]
        %v6644 = vld [vmem:[#allocation13 + $0x428] sm:$0xf]
        %v6645 = vld [vmem:[#allocation13 + $0x42c] sm:$0xf]
        %v6646 = vld [vmem:[#allocation13 + $0x430] sm:$0xf]
        %v6647 = vld [vmem:[#allocation13 + $0x434] sm:$0xf]
        %v6648 = vld [vmem:[#allocation13 + $0x438] sm:$0xf]
        %v6649 = vld [vmem:[#allocation13 + $0x43c] sm:$0xf]
        %v6650 = vld [vmem:[#allocation13 + $0x440] sm:$0xf]
        %v6651 = vld [vmem:[#allocation13 + $0x444] sm:$0xf]
        %v6652 = vld [vmem:[#allocation13 + $0x448] sm:$0xf]
        %v6653 = vld [vmem:[#allocation13 + $0x44c] sm:$0xf]
        %v6654 = vld [vmem:[#allocation13 + $0x450] sm:$0xf]
        %v6655 = vld [vmem:[#allocation13 + $0x454] sm:$0xf]
        %v6656 = vld [vmem:[#allocation13 + $0x458] sm:$0xf]
        %v6657 = vld [vmem:[#allocation13 + $0x45c] sm:$0xf]
        %v6658 = vld [vmem:[#allocation13 + $0x460] sm:$0xf]
        %v6659 = vld [vmem:[#allocation13 + $0x464] sm:$0xf]
        %v6660 = vld [vmem:[#allocation13 + $0x468] sm:$0xf]
        %v6661 = vld [vmem:[#allocation13 + $0x46c] sm:$0xf]
        %v6662 = vld [vmem:[#allocation13 + $0x470] sm:$0xf]
        %v6663 = vld [vmem:[#allocation13 + $0x474] sm:$0xf]
        %v6664 = vld [vmem:[#allocation13 + $0x478] sm:$0xf]
        %v6665 = vld [vmem:[#allocation13 + $0x47c] sm:$0xf]
        %v6666 = vld [vmem:[#allocation13 + $0x480] sm:$0xf]
        %v6667 = vld [vmem:[#allocation13 + $0x484] sm:$0xf]
        %v6668 = vld [vmem:[#allocation13 + $0x488] sm:$0xf]
        %v6669 = vld [vmem:[#allocation13 + $0x48c] sm:$0xf]
        %v6670 = vld [vmem:[#allocation13 + $0x490] sm:$0xf]
        %v6671 = vld [vmem:[#allocation13 + $0x494] sm:$0xf]
        %v6672 = vld [vmem:[#allocation13 + $0x498] sm:$0xf]
        %v6673 = vld [vmem:[#allocation13 + $0x49c] sm:$0xf]
        %v6674 = vld [vmem:[#allocation13 + $0x4a0] sm:$0xf]
        %v6675 = vld [vmem:[#allocation13 + $0x4a4] sm:$0xf]
        %v6676 = vld [vmem:[#allocation13 + $0x4a8] sm:$0xf]
        %v6677 = vld [vmem:[#allocation13 + $0x4ac] sm:$0xf]
        %v6678 = vld [vmem:[#allocation13 + $0x4b0] sm:$0xf]
        %v6679 = vld [vmem:[#allocation13 + $0x4b4] sm:$0xf]
        %v6680 = vld [vmem:[#allocation13 + $0x4b8] sm:$0xf]
        %v6681 = vld [vmem:[#allocation13 + $0x4bc] sm:$0xf]
        %v6682 = vld [vmem:[#allocation13 + $0x4c0] sm:$0xf]
        %v6683 = vld [vmem:[#allocation13 + $0x4c4] sm:$0xf]
        %v6684 = vld [vmem:[#allocation13 + $0x4c8] sm:$0xf]
        %v6685 = vld [vmem:[#allocation13 + $0x4cc] sm:$0xf]
        %v6686 = vld [vmem:[#allocation13 + $0x4d0] sm:$0xf]
        %v6687 = vld [vmem:[#allocation13 + $0x4d4] sm:$0xf]
        %v6688 = vld [vmem:[#allocation13 + $0x4d8] sm:$0xf]
        %v6689 = vld [vmem:[#allocation13 + $0x4dc] sm:$0xf]
        %v6690 = vld [vmem:[#allocation13 + $0x4e0] sm:$0xf]
        %v6691 = vld [vmem:[#allocation13 + $0x4e4] sm:$0xf]
        %v6692 = vld [vmem:[#allocation13 + $0x4e8] sm:$0xf]
        %v6693 = vld [vmem:[#allocation13 + $0x4ec] sm:$0xf]
        %v6694 = vld [vmem:[#allocation13 + $0x4f0] sm:$0xf]
        %v6695 = vld [vmem:[#allocation13 + $0x4f4] sm:$0xf]
        %v6696 = vld [vmem:[#allocation13 + $0x4f8] sm:$0xf]
        %v6697 = vld [vmem:[#allocation13 + $0x4fc] sm:$0xf]
        %v6698 = vld [vmem:[#allocation13 + $0x500] sm:$0xf]
        %v6699 = vld [vmem:[#allocation13 + $0x504] sm:$0xf]
        %v6700 = vld [vmem:[#allocation13 + $0x508] sm:$0xf]
        %v6701 = vld [vmem:[#allocation13 + $0x50c] sm:$0xf]
        %v6702 = vld [vmem:[#allocation13 + $0x510] sm:$0xf]
        %v6703 = vld [vmem:[#allocation13 + $0x514] sm:$0xf]
        %v6704 = vld [vmem:[#allocation13 + $0x518] sm:$0xf]
        %v6705 = vld [vmem:[#allocation13 + $0x51c] sm:$0xf]
        %v6706 = vld [vmem:[#allocation13 + $0x520] sm:$0xf]
        %v6707 = vld [vmem:[#allocation13 + $0x524] sm:$0xf]
        %v6708 = vld [vmem:[#allocation13 + $0x528] sm:$0xf]
        %v6709 = vld [vmem:[#allocation13 + $0x52c] sm:$0xf]
        %v6710 = vld [vmem:[#allocation13 + $0x530] sm:$0xf]
        %v6711 = vld [vmem:[#allocation13 + $0x534] sm:$0xf]
        %v6712 = vld [vmem:[#allocation13 + $0x538] sm:$0xf]
        %v6713 = vld [vmem:[#allocation13 + $0x53c] sm:$0xf]
        %v6714 = vld [vmem:[#allocation13 + $0x540] sm:$0xf]
        %v6715 = vld [vmem:[#allocation13 + $0x544] sm:$0xf]
        %v6716 = vld [vmem:[#allocation13 + $0x548] sm:$0xf]
        %v6717 = vld [vmem:[#allocation13 + $0x54c] sm:$0xf]
        %v6718 = vld [vmem:[#allocation13 + $0x550] sm:$0xf]
        %v6719 = vld [vmem:[#allocation13 + $0x554] sm:$0xf]
        %v6720 = vld [vmem:[#allocation13 + $0x558] sm:$0xf]
        %v6721 = vld [vmem:[#allocation13 + $0x55c] sm:$0xf]
        %v6722 = vld [vmem:[#allocation13 + $0x560] sm:$0xf]
        %v6723 = vld [vmem:[#allocation13 + $0x564] sm:$0xf]
        %v6724 = vld [vmem:[#allocation13 + $0x568] sm:$0xf]
        %v6725 = vld [vmem:[#allocation13 + $0x56c] sm:$0xf]
        %v6726 = vld [vmem:[#allocation13 + $0x570] sm:$0xf]
        %v6727 = vld [vmem:[#allocation13 + $0x574] sm:$0xf]
        %v6728 = vld [vmem:[#allocation13 + $0x578] sm:$0xf]
        %v6729 = vld [vmem:[#allocation13 + $0x57c] sm:$0xf]
        %v6730 = vld [vmem:[#allocation13 + $0x580] sm:$0xf]
        %v6731 = vld [vmem:[#allocation13 + $0x584] sm:$0xf]
        %v6732 = vld [vmem:[#allocation13 + $0x588] sm:$0xf]
        %v6733 = vld [vmem:[#allocation13 + $0x58c] sm:$0xf]
        %v6734 = vld [vmem:[#allocation13 + $0x590] sm:$0xf]
        %v6735 = vld [vmem:[#allocation13 + $0x594] sm:$0xf]
        %v6736 = vld [vmem:[#allocation13 + $0x598] sm:$0xf]
        %v6737 = vld [vmem:[#allocation13 + $0x59c] sm:$0xf]
        %v6738 = vld [vmem:[#allocation13 + $0x5a0] sm:$0xf]
        %v6739 = vld [vmem:[#allocation13 + $0x5a4] sm:$0xf]
        %v6740 = vld [vmem:[#allocation13 + $0x5a8] sm:$0xf]
        %v6741 = vld [vmem:[#allocation13 + $0x5ac] sm:$0xf]
        %v6742 = vld [vmem:[#allocation13 + $0x5b0] sm:$0xf]
        %v6743 = vld [vmem:[#allocation13 + $0x5b4] sm:$0xf]
        %v6744 = vld [vmem:[#allocation13 + $0x5b8] sm:$0xf]
        %v6745 = vld [vmem:[#allocation13 + $0x5bc] sm:$0xf]
        %v6746 = vld [vmem:[#allocation13 + $0x5c0] sm:$0xf]
        %v6747 = vld [vmem:[#allocation13 + $0x5c4] sm:$0xf]
        %v6748 = vld [vmem:[#allocation13 + $0x5c8] sm:$0xf]
        %v6749 = vld [vmem:[#allocation13 + $0x5cc] sm:$0xf]
        %v6750 = vld [vmem:[#allocation13 + $0x5d0] sm:$0xf]
        %v6751 = vld [vmem:[#allocation13 + $0x5d4] sm:$0xf]
        %v6752 = vld [vmem:[#allocation13 + $0x5d8] sm:$0xf]
        %v6753 = vld [vmem:[#allocation13 + $0x5dc] sm:$0xf]
        %v6754 = vld [vmem:[#allocation13 + $0x5e0] sm:$0xf]
        %v6755 = vld [vmem:[#allocation13 + $0x5e4] sm:$0xf]
        %v6756 = vld [vmem:[#allocation13 + $0x5e8] sm:$0xf]
        %v6757 = vld [vmem:[#allocation13 + $0x5ec] sm:$0xf]
        %v6758 = vld [vmem:[#allocation13 + $0x5f0] sm:$0xf]
        %v6759 = vld [vmem:[#allocation13 + $0x5f4] sm:$0xf]
        %v6760 = vld [vmem:[#allocation13 + $0x5f8] sm:$0xf]
        %v6761 = vld [vmem:[#allocation13 + $0x5fc] sm:$0xf]
        %v6762 = vld [vmem:[#allocation13 + $0x600] sm:$0xf]
        %v6763 = vld [vmem:[#allocation13 + $0x604] sm:$0xf]
        %v6764 = vld [vmem:[#allocation13 + $0x608] sm:$0xf]
        %v6765 = vld [vmem:[#allocation13 + $0x60c] sm:$0xf]
        %v6766 = vld [vmem:[#allocation13 + $0x610] sm:$0xf]
        %v6767 = vld [vmem:[#allocation13 + $0x614] sm:$0xf]
        %v6768 = vld [vmem:[#allocation13 + $0x618] sm:$0xf]
        %v6769 = vld [vmem:[#allocation13 + $0x61c] sm:$0xf]
        %v6770 = vld [vmem:[#allocation13 + $0x620] sm:$0xf]
        %v6771 = vld [vmem:[#allocation13 + $0x624] sm:$0xf]
        %v6772 = vld [vmem:[#allocation13 + $0x628] sm:$0xf]
        %v6773 = vld [vmem:[#allocation13 + $0x62c] sm:$0xf]
        %v6774 = vld [vmem:[#allocation13 + $0x630] sm:$0xf]
        %v6775 = vld [vmem:[#allocation13 + $0x634] sm:$0xf]
        %v6776 = vld [vmem:[#allocation13 + $0x638] sm:$0xf]
        %v6777 = vld [vmem:[#allocation13 + $0x63c] sm:$0xf]
        %v6778 = vld [vmem:[#allocation13 + $0x640] sm:$0xf]
        %v6779 = vld [vmem:[#allocation13 + $0x644] sm:$0xf]
        %v6780 = vld [vmem:[#allocation13 + $0x648] sm:$0xf]
        %v6781 = vld [vmem:[#allocation13 + $0x64c] sm:$0xf]
        %v6782 = vld [vmem:[#allocation13 + $0x650] sm:$0xf]
        %v6783 = vld [vmem:[#allocation13 + $0x654] sm:$0xf]
        %v6784 = vld [vmem:[#allocation13 + $0x658] sm:$0xf]
        %v6785 = vld [vmem:[#allocation13 + $0x65c] sm:$0xf]
        %v6786 = vld [vmem:[#allocation13 + $0x660] sm:$0xf]
        %v6787 = vld [vmem:[#allocation13 + $0x664] sm:$0xf]
        %v6788 = vld [vmem:[#allocation13 + $0x668] sm:$0xf]
        %v6789 = vld [vmem:[#allocation13 + $0x66c] sm:$0xf]
        %v6790 = vld [vmem:[#allocation13 + $0x670] sm:$0xf]
        %v6791 = vld [vmem:[#allocation13 + $0x674] sm:$0xf]
        %v6792 = vld [vmem:[#allocation13 + $0x678] sm:$0xf]
        %v6793 = vld [vmem:[#allocation13 + $0x67c] sm:$0xf]
        %v6794 = vld [vmem:[#allocation13 + $0x680] sm:$0xf]
        %v6795 = vld [vmem:[#allocation13 + $0x684] sm:$0xf]
        %v6796 = vld [vmem:[#allocation13 + $0x688] sm:$0xf]
        %v6797 = vld [vmem:[#allocation13 + $0x68c] sm:$0xf]
        %v6798 = vld [vmem:[#allocation13 + $0x690] sm:$0xf]
        %v6799 = vld [vmem:[#allocation13 + $0x694] sm:$0xf]
        %v6800 = vld [vmem:[#allocation13 + $0x698] sm:$0xf]
        %v6801 = vld [vmem:[#allocation13 + $0x69c] sm:$0xf]
        %v6802 = vld [vmem:[#allocation13 + $0x6a0] sm:$0xf]
        %v6803 = vld [vmem:[#allocation13 + $0x6a4] sm:$0xf]
        %v6804 = vld [vmem:[#allocation13 + $0x6a8] sm:$0xf]
        %v6805 = vld [vmem:[#allocation13 + $0x6ac] sm:$0xf]
        %v6806 = vld [vmem:[#allocation13 + $0x6b0] sm:$0xf]
        %v6807 = vld [vmem:[#allocation13 + $0x6b4] sm:$0xf]
        %v6808 = vld [vmem:[#allocation13 + $0x6b8] sm:$0xf]
        %v6809 = vld [vmem:[#allocation13 + $0x6bc] sm:$0xf]
        %v6810 = vld [vmem:[#allocation13 + $0x6c0] sm:$0xf]
        %v6811 = vld [vmem:[#allocation13 + $0x6c4] sm:$0xf]
        %v6812 = vld [vmem:[#allocation13 + $0x6c8] sm:$0xf]
        %v6813 = vld [vmem:[#allocation13 + $0x6cc] sm:$0xf]
        %v6814 = vld [vmem:[#allocation13 + $0x6d0] sm:$0xf]
        %v6815 = vld [vmem:[#allocation13 + $0x6d4] sm:$0xf]
        %v6816 = vld [vmem:[#allocation13 + $0x6d8] sm:$0xf]
        %v6817 = vld [vmem:[#allocation13 + $0x6dc] sm:$0xf]
        %v6818 = vld [vmem:[#allocation13 + $0x6e0] sm:$0xf]
        %v6819 = vld [vmem:[#allocation13 + $0x6e4] sm:$0xf]
        %v6820 = vld [vmem:[#allocation13 + $0x6e8] sm:$0xf]
        %v6821 = vld [vmem:[#allocation13 + $0x6ec] sm:$0xf]
        %v6822 = vld [vmem:[#allocation13 + $0x6f0] sm:$0xf]
        %v6823 = vld [vmem:[#allocation13 + $0x6f4] sm:$0xf]
        %v6824 = vld [vmem:[#allocation13 + $0x6f8] sm:$0xf]
        %v6825 = vld [vmem:[#allocation13 + $0x6fc] sm:$0xf]
        %v6826 = vld [vmem:[#allocation13 + $0x700] sm:$0xf]
        %v6827 = vld [vmem:[#allocation13 + $0x704] sm:$0xf]
        %v6828 = vld [vmem:[#allocation13 + $0x708] sm:$0xf]
        %v6829 = vld [vmem:[#allocation13 + $0x70c] sm:$0xf]
        %v6830 = vld [vmem:[#allocation13 + $0x710] sm:$0xf]
        %v6831 = vld [vmem:[#allocation13 + $0x714] sm:$0xf]
        %v6832 = vld [vmem:[#allocation13 + $0x718] sm:$0xf]
        %v6833 = vld [vmem:[#allocation13 + $0x71c] sm:$0xf]
        %v6834 = vld [vmem:[#allocation13 + $0x720] sm:$0xf]
        %v6835 = vld [vmem:[#allocation13 + $0x724] sm:$0xf]
        %v6836 = vld [vmem:[#allocation13 + $0x728] sm:$0xf]
        %v6837 = vld [vmem:[#allocation13 + $0x72c] sm:$0xf]
        %v6838 = vld [vmem:[#allocation13 + $0x730] sm:$0xf]
        %v6839 = vld [vmem:[#allocation13 + $0x734] sm:$0xf]
        %v6840 = vld [vmem:[#allocation13 + $0x738] sm:$0xf]
        %v6841 = vld [vmem:[#allocation13 + $0x73c] sm:$0xf]
        %v6842 = vld [vmem:[#allocation13 + $0x740] sm:$0xf]
        %v6843 = vld [vmem:[#allocation13 + $0x744] sm:$0xf]
        %v6844 = vld [vmem:[#allocation13 + $0x748] sm:$0xf]
        %v6845 = vld [vmem:[#allocation13 + $0x74c] sm:$0xf]
        %v6846 = vld [vmem:[#allocation13 + $0x750] sm:$0xf]
        %v6847 = vld [vmem:[#allocation13 + $0x754] sm:$0xf]
        %v6848 = vld [vmem:[#allocation13 + $0x758] sm:$0xf]
        %v6849 = vld [vmem:[#allocation13 + $0x75c] sm:$0xf]
        %v6850 = vld [vmem:[#allocation13 + $0x760] sm:$0xf]
        %v6851 = vld [vmem:[#allocation13 + $0x764] sm:$0xf]
        %v6852 = vld [vmem:[#allocation13 + $0x768] sm:$0xf]
        %v6853 = vld [vmem:[#allocation13 + $0x76c] sm:$0xf]
        %v6854 = vld [vmem:[#allocation13 + $0x770] sm:$0xf]
        %v6855 = vld [vmem:[#allocation13 + $0x774] sm:$0xf]
        %v6856 = vld [vmem:[#allocation13 + $0x778] sm:$0xf]
        %v6857 = vld [vmem:[#allocation13 + $0x77c] sm:$0xf]
        %v6858 = vld [vmem:[#allocation13 + $0x780] sm:$0xf]
        %v6859 = vld [vmem:[#allocation13 + $0x784] sm:$0xf]
        %v6860 = vld [vmem:[#allocation13 + $0x788] sm:$0xf]
        %v6861 = vld [vmem:[#allocation13 + $0x78c] sm:$0xf]
        %v6862 = vld [vmem:[#allocation13 + $0x790] sm:$0xf]
        %v6863 = vld [vmem:[#allocation13 + $0x794] sm:$0xf]
        %v6864 = vld [vmem:[#allocation13 + $0x798] sm:$0xf]
        %v6865 = vld [vmem:[#allocation13 + $0x79c] sm:$0xf]
        %v6866 = vld [vmem:[#allocation13 + $0x7a0] sm:$0xf]
        %v6867 = vld [vmem:[#allocation13 + $0x7a4] sm:$0xf]
        %v6868 = vld [vmem:[#allocation13 + $0x7a8] sm:$0xf]
        %v6869 = vld [vmem:[#allocation13 + $0x7ac] sm:$0xf]
        %v6870 = vld [vmem:[#allocation13 + $0x7b0] sm:$0xf]
        %v6871 = vld [vmem:[#allocation13 + $0x7b4] sm:$0xf]
        %v6872 = vld [vmem:[#allocation13 + $0x7b8] sm:$0xf]
        %v6873 = vld [vmem:[#allocation13 + $0x7bc] sm:$0xf]
        %v6874 = vld [vmem:[#allocation13 + $0x7c0] sm:$0xf]
        %v6875 = vld [vmem:[#allocation13 + $0x7c4] sm:$0xf]
        %v6876 = vld [vmem:[#allocation13 + $0x7c8] sm:$0xf]
        %v6877 = vld [vmem:[#allocation13 + $0x7cc] sm:$0xf]
        %v6878 = vld [vmem:[#allocation13 + $0x7d0] sm:$0xf]
        %v6879 = vld [vmem:[#allocation13 + $0x7d4] sm:$0xf]
        %v6880 = vld [vmem:[#allocation13 + $0x7d8] sm:$0xf]
        %v6881 = vld [vmem:[#allocation13 + $0x7dc] sm:$0xf]
        %v6882 = vld [vmem:[#allocation13 + $0x7e0] sm:$0xf]
        %v6883 = vld [vmem:[#allocation13 + $0x7e4] sm:$0xf]
        %v6884 = vld [vmem:[#allocation13 + $0x7e8] sm:$0xf]
        %v6885 = vld [vmem:[#allocation13 + $0x7ec] sm:$0xf]
        %v6886 = vld [vmem:[#allocation13 + $0x7f0] sm:$0xf]
        %v6887 = vld [vmem:[#allocation13 + $0x7f4] sm:$0xf]
        %v6888 = vld [vmem:[#allocation13 + $0x7f8] sm:$0xf]
        %v6889 = vld [vmem:[#allocation13 + $0x7fc] sm:$0xf]
        %v7402 = vunpack.c.l.b16 %v6378
        %v7403 = vunpack.c.l.b16 %v6379
        %v7404 = vunpack.c.l.b16 %v6380
        %v7405 = vunpack.c.l.b16 %v6381
        %v7406 = vunpack.c.l.b16 %v6382
        %v7407 = vunpack.c.l.b16 %v6383
        %v7408 = vunpack.c.l.b16 %v6384
        %v7409 = vunpack.c.l.b16 %v6385
        %v7410 = vunpack.c.l.b16 %v6386
        %v7411 = vunpack.c.l.b16 %v6387
        %v7412 = vunpack.c.l.b16 %v6388
        %v7413 = vunpack.c.l.b16 %v6389
        %v7414 = vunpack.c.l.b16 %v6390
        %v7415 = vunpack.c.l.b16 %v6391
        %v7416 = vunpack.c.l.b16 %v6392
        %v7417 = vunpack.c.l.b16 %v6393
        %v7418 = vunpack.c.l.b16 %v6394
        %v7419 = vunpack.c.l.b16 %v6395
        %v7420 = vunpack.c.l.b16 %v6396
        %v7421 = vunpack.c.l.b16 %v6397
        %v7422 = vunpack.c.l.b16 %v6398
        %v7423 = vunpack.c.l.b16 %v6399
        %v7424 = vunpack.c.l.b16 %v6400
        %v7425 = vunpack.c.l.b16 %v6401
        %v7426 = vunpack.c.l.b16 %v6402
        %v7427 = vunpack.c.l.b16 %v6403
        %v7428 = vunpack.c.l.b16 %v6404
        %v7429 = vunpack.c.l.b16 %v6405
        %v7430 = vunpack.c.l.b16 %v6406
        %v7431 = vunpack.c.l.b16 %v6407
        %v7432 = vunpack.c.l.b16 %v6408
        %v7433 = vunpack.c.l.b16 %v6409
        %v7434 = vunpack.c.l.b16 %v6410
        %v7435 = vunpack.c.l.b16 %v6411
        %v7436 = vunpack.c.l.b16 %v6412
        %v7437 = vunpack.c.l.b16 %v6413
        %v7438 = vunpack.c.l.b16 %v6414
        %v7439 = vunpack.c.l.b16 %v6415
        %v7440 = vunpack.c.l.b16 %v6416
        %v7441 = vunpack.c.l.b16 %v6417
        %v7442 = vunpack.c.l.b16 %v6418
        %v7443 = vunpack.c.l.b16 %v6419
        %v7444 = vunpack.c.l.b16 %v6420
        %v7445 = vunpack.c.l.b16 %v6421
        %v7446 = vunpack.c.l.b16 %v6422
        %v7447 = vunpack.c.l.b16 %v6423
        %v7448 = vunpack.c.l.b16 %v6424
        %v7449 = vunpack.c.l.b16 %v6425
        %v7450 = vunpack.c.l.b16 %v6426
        %v7451 = vunpack.c.l.b16 %v6427
        %v7452 = vunpack.c.l.b16 %v6428
        %v7453 = vunpack.c.l.b16 %v6429
        %v7454 = vunpack.c.l.b16 %v6430
        %v7455 = vunpack.c.l.b16 %v6431
        %v7456 = vunpack.c.l.b16 %v6432
        %v7457 = vunpack.c.l.b16 %v6433
        %v7458 = vunpack.c.l.b16 %v6434
        %v7459 = vunpack.c.l.b16 %v6435
        %v7460 = vunpack.c.l.b16 %v6436
        %v7461 = vunpack.c.l.b16 %v6437
        %v7462 = vunpack.c.l.b16 %v6438
        %v7463 = vunpack.c.l.b16 %v6439
        %v7464 = vunpack.c.l.b16 %v6440
        %v7465 = vunpack.c.l.b16 %v6441
        %v7466 = vunpack.c.l.b16 %v6442
        %v7467 = vunpack.c.l.b16 %v6443
        %v7468 = vunpack.c.l.b16 %v6444
        %v7469 = vunpack.c.l.b16 %v6445
        %v7470 = vunpack.c.l.b16 %v6446
        %v7471 = vunpack.c.l.b16 %v6447
        %v7472 = vunpack.c.l.b16 %v6448
        %v7473 = vunpack.c.l.b16 %v6449
        %v7474 = vunpack.c.l.b16 %v6450
        %v7475 = vunpack.c.l.b16 %v6451
        %v7476 = vunpack.c.l.b16 %v6452
        %v7477 = vunpack.c.l.b16 %v6453
        %v7478 = vunpack.c.l.b16 %v6454
        %v7479 = vunpack.c.l.b16 %v6455
        %v7480 = vunpack.c.l.b16 %v6456
        %v7481 = vunpack.c.l.b16 %v6457
        %v7482 = vunpack.c.l.b16 %v6458
        %v7483 = vunpack.c.l.b16 %v6459
        %v7484 = vunpack.c.l.b16 %v6460
        %v7485 = vunpack.c.l.b16 %v6461
        %v7486 = vunpack.c.l.b16 %v6462
        %v7487 = vunpack.c.l.b16 %v6463
        %v7488 = vunpack.c.l.b16 %v6464
        %v7489 = vunpack.c.l.b16 %v6465
        %v7490 = vunpack.c.l.b16 %v6466
        %v7491 = vunpack.c.l.b16 %v6467
        %v7492 = vunpack.c.l.b16 %v6468
        %v7493 = vunpack.c.l.b16 %v6469
        %v7494 = vunpack.c.l.b16 %v6470
        %v7495 = vunpack.c.l.b16 %v6471
        %v7496 = vunpack.c.l.b16 %v6472
        %v7497 = vunpack.c.l.b16 %v6473
        %v7498 = vunpack.c.l.b16 %v6474
        %v7499 = vunpack.c.l.b16 %v6475
        %v7500 = vunpack.c.l.b16 %v6476
        %v7501 = vunpack.c.l.b16 %v6477
        %v7502 = vunpack.c.l.b16 %v6478
        %v7503 = vunpack.c.l.b16 %v6479
        %v7504 = vunpack.c.l.b16 %v6480
        %v7505 = vunpack.c.l.b16 %v6481
        %v7506 = vunpack.c.l.b16 %v6482
        %v7507 = vunpack.c.l.b16 %v6483
        %v7508 = vunpack.c.l.b16 %v6484
        %v7509 = vunpack.c.l.b16 %v6485
        %v7510 = vunpack.c.l.b16 %v6486
        %v7511 = vunpack.c.l.b16 %v6487
        %v7512 = vunpack.c.l.b16 %v6488
        %v7513 = vunpack.c.l.b16 %v6489
        %v7514 = vunpack.c.l.b16 %v6490
        %v7515 = vunpack.c.l.b16 %v6491
        %v7516 = vunpack.c.l.b16 %v6492
        %v7517 = vunpack.c.l.b16 %v6493
        %v7518 = vunpack.c.l.b16 %v6494
        %v7519 = vunpack.c.l.b16 %v6495
        %v7520 = vunpack.c.l.b16 %v6496
        %v7521 = vunpack.c.l.b16 %v6497
        %v7522 = vunpack.c.l.b16 %v6498
        %v7523 = vunpack.c.l.b16 %v6499
        %v7524 = vunpack.c.l.b16 %v6500
        %v7525 = vunpack.c.l.b16 %v6501
        %v7526 = vunpack.c.l.b16 %v6502
        %v7527 = vunpack.c.l.b16 %v6503
        %v7528 = vunpack.c.l.b16 %v6504
        %v7529 = vunpack.c.l.b16 %v6505
        %v7530 = vunpack.c.l.b16 %v6506
        %v7531 = vunpack.c.l.b16 %v6507
        %v7532 = vunpack.c.l.b16 %v6508
        %v7533 = vunpack.c.l.b16 %v6509
        %v7534 = vunpack.c.l.b16 %v6510
        %v7535 = vunpack.c.l.b16 %v6511
        %v7536 = vunpack.c.l.b16 %v6512
        %v7537 = vunpack.c.l.b16 %v6513
        %v7538 = vunpack.c.l.b16 %v6514
        %v7539 = vunpack.c.l.b16 %v6515
        %v7540 = vunpack.c.l.b16 %v6516
        %v7541 = vunpack.c.l.b16 %v6517
        %v7542 = vunpack.c.l.b16 %v6518
        %v7543 = vunpack.c.l.b16 %v6519
        %v7544 = vunpack.c.l.b16 %v6520
        %v7545 = vunpack.c.l.b16 %v6521
        %v7546 = vunpack.c.l.b16 %v6522
        %v7547 = vunpack.c.l.b16 %v6523
        %v7548 = vunpack.c.l.b16 %v6524
        %v7549 = vunpack.c.l.b16 %v6525
        %v7550 = vunpack.c.l.b16 %v6526
        %v7551 = vunpack.c.l.b16 %v6527
        %v7552 = vunpack.c.l.b16 %v6528
        %v7553 = vunpack.c.l.b16 %v6529
        %v7554 = vunpack.c.l.b16 %v6530
        %v7555 = vunpack.c.l.b16 %v6531
        %v7556 = vunpack.c.l.b16 %v6532
        %v7557 = vunpack.c.l.b16 %v6533
        %v7558 = vunpack.c.l.b16 %v6534
        %v7559 = vunpack.c.l.b16 %v6535
        %v7560 = vunpack.c.l.b16 %v6536
        %v7561 = vunpack.c.l.b16 %v6537
        %v7562 = vunpack.c.l.b16 %v6538
        %v7563 = vunpack.c.l.b16 %v6539
        %v7564 = vunpack.c.l.b16 %v6540
        %v7565 = vunpack.c.l.b16 %v6541
        %v7566 = vunpack.c.l.b16 %v6542
        %v7567 = vunpack.c.l.b16 %v6543
        %v7568 = vunpack.c.l.b16 %v6544
        %v7569 = vunpack.c.l.b16 %v6545
        %v7570 = vunpack.c.l.b16 %v6546
        %v7571 = vunpack.c.l.b16 %v6547
        %v7572 = vunpack.c.l.b16 %v6548
        %v7573 = vunpack.c.l.b16 %v6549
        %v7574 = vunpack.c.l.b16 %v6550
        %v7575 = vunpack.c.l.b16 %v6551
        %v7576 = vunpack.c.l.b16 %v6552
        %v7577 = vunpack.c.l.b16 %v6553
        %v7578 = vunpack.c.l.b16 %v6554
        %v7579 = vunpack.c.l.b16 %v6555
        %v7580 = vunpack.c.l.b16 %v6556
        %v7581 = vunpack.c.l.b16 %v6557
        %v7582 = vunpack.c.l.b16 %v6558
        %v7583 = vunpack.c.l.b16 %v6559
        %v7584 = vunpack.c.l.b16 %v6560
        %v7585 = vunpack.c.l.b16 %v6561
        %v7586 = vunpack.c.l.b16 %v6562
        %v7587 = vunpack.c.l.b16 %v6563
        %v7588 = vunpack.c.l.b16 %v6564
        %v7589 = vunpack.c.l.b16 %v6565
        %v7590 = vunpack.c.l.b16 %v6566
        %v7591 = vunpack.c.l.b16 %v6567
        %v7592 = vunpack.c.l.b16 %v6568
        %v7593 = vunpack.c.l.b16 %v6569
        %v7594 = vunpack.c.l.b16 %v6570
        %v7595 = vunpack.c.l.b16 %v6571
        %v7596 = vunpack.c.l.b16 %v6572
        %v7597 = vunpack.c.l.b16 %v6573
        %v7598 = vunpack.c.l.b16 %v6574
        %v7599 = vunpack.c.l.b16 %v6575
        %v7600 = vunpack.c.l.b16 %v6576
        %v7601 = vunpack.c.l.b16 %v6577
        %v7602 = vunpack.c.l.b16 %v6578
        %v7603 = vunpack.c.l.b16 %v6579
        %v7604 = vunpack.c.l.b16 %v6580
        %v7605 = vunpack.c.l.b16 %v6581
        %v7606 = vunpack.c.l.b16 %v6582
        %v7607 = vunpack.c.l.b16 %v6583
        %v7608 = vunpack.c.l.b16 %v6584
        %v7609 = vunpack.c.l.b16 %v6585
        %v7610 = vunpack.c.l.b16 %v6586
        %v7611 = vunpack.c.l.b16 %v6587
        %v7612 = vunpack.c.l.b16 %v6588
        %v7613 = vunpack.c.l.b16 %v6589
        %v7614 = vunpack.c.l.b16 %v6590
        %v7615 = vunpack.c.l.b16 %v6591
        %v7616 = vunpack.c.l.b16 %v6592
        %v7617 = vunpack.c.l.b16 %v6593
        %v7618 = vunpack.c.l.b16 %v6594
        %v7619 = vunpack.c.l.b16 %v6595
        %v7620 = vunpack.c.l.b16 %v6596
        %v7621 = vunpack.c.l.b16 %v6597
        %v7622 = vunpack.c.l.b16 %v6598
        %v7623 = vunpack.c.l.b16 %v6599
        %v7624 = vunpack.c.l.b16 %v6600
        %v7625 = vunpack.c.l.b16 %v6601
        %v7626 = vunpack.c.l.b16 %v6602
        %v7627 = vunpack.c.l.b16 %v6603
        %v7628 = vunpack.c.l.b16 %v6604
        %v7629 = vunpack.c.l.b16 %v6605
        %v7630 = vunpack.c.l.b16 %v6606
        %v7631 = vunpack.c.l.b16 %v6607
        %v7632 = vunpack.c.l.b16 %v6608
        %v7633 = vunpack.c.l.b16 %v6609
        %v7634 = vunpack.c.l.b16 %v6610
        %v7635 = vunpack.c.l.b16 %v6611
        %v7636 = vunpack.c.l.b16 %v6612
        %v7637 = vunpack.c.l.b16 %v6613
        %v7638 = vunpack.c.l.b16 %v6614
        %v7639 = vunpack.c.l.b16 %v6615
        %v7640 = vunpack.c.l.b16 %v6616
        %v7641 = vunpack.c.l.b16 %v6617
        %v7642 = vunpack.c.l.b16 %v6618
        %v7643 = vunpack.c.l.b16 %v6619
        %v7644 = vunpack.c.l.b16 %v6620
        %v7645 = vunpack.c.l.b16 %v6621
        %v7646 = vunpack.c.l.b16 %v6622
        %v7647 = vunpack.c.l.b16 %v6623
        %v7648 = vunpack.c.l.b16 %v6624
        %v7649 = vunpack.c.l.b16 %v6625
        %v7650 = vunpack.c.l.b16 %v6626
        %v7651 = vunpack.c.l.b16 %v6627
        %v7652 = vunpack.c.l.b16 %v6628
        %v7653 = vunpack.c.l.b16 %v6629
        %v7654 = vunpack.c.l.b16 %v6630
        %v7655 = vunpack.c.l.b16 %v6631
        %v7656 = vunpack.c.l.b16 %v6632
        %v7657 = vunpack.c.l.b16 %v6633
        %v7658 = vunpack.c.l.b16 %v6634
        %v7659 = vunpack.c.l.b16 %v6635
        %v7660 = vunpack.c.l.b16 %v6636
        %v7661 = vunpack.c.l.b16 %v6637
        %v7662 = vunpack.c.l.b16 %v6638
        %v7663 = vunpack.c.l.b16 %v6639
        %v7664 = vunpack.c.l.b16 %v6640
        %v7665 = vunpack.c.l.b16 %v6641
        %v7666 = vunpack.c.l.b16 %v6642
        %v7667 = vunpack.c.l.b16 %v6643
        %v7668 = vunpack.c.l.b16 %v6644
        %v7669 = vunpack.c.l.b16 %v6645
        %v7670 = vunpack.c.l.b16 %v6646
        %v7671 = vunpack.c.l.b16 %v6647
        %v7672 = vunpack.c.l.b16 %v6648
        %v7673 = vunpack.c.l.b16 %v6649
        %v7674 = vunpack.c.l.b16 %v6650
        %v7675 = vunpack.c.l.b16 %v6651
        %v7676 = vunpack.c.l.b16 %v6652
        %v7677 = vunpack.c.l.b16 %v6653
        %v7678 = vunpack.c.l.b16 %v6654
        %v7679 = vunpack.c.l.b16 %v6655
        %v7680 = vunpack.c.l.b16 %v6656
        %v7681 = vunpack.c.l.b16 %v6657
        %v7682 = vunpack.c.l.b16 %v6658
        %v7683 = vunpack.c.l.b16 %v6659
        %v7684 = vunpack.c.l.b16 %v6660
        %v7685 = vunpack.c.l.b16 %v6661
        %v7686 = vunpack.c.l.b16 %v6662
        %v7687 = vunpack.c.l.b16 %v6663
        %v7688 = vunpack.c.l.b16 %v6664
        %v7689 = vunpack.c.l.b16 %v6665
        %v7690 = vunpack.c.l.b16 %v6666
        %v7691 = vunpack.c.l.b16 %v6667
        %v7692 = vunpack.c.l.b16 %v6668
        %v7693 = vunpack.c.l.b16 %v6669
        %v7694 = vunpack.c.l.b16 %v6670
        %v7695 = vunpack.c.l.b16 %v6671
        %v7696 = vunpack.c.l.b16 %v6672
        %v7697 = vunpack.c.l.b16 %v6673
        %v7698 = vunpack.c.l.b16 %v6674
        %v7699 = vunpack.c.l.b16 %v6675
        %v7700 = vunpack.c.l.b16 %v6676
        %v7701 = vunpack.c.l.b16 %v6677
        %v7702 = vunpack.c.l.b16 %v6678
        %v7703 = vunpack.c.l.b16 %v6679
        %v7704 = vunpack.c.l.b16 %v6680
        %v7705 = vunpack.c.l.b16 %v6681
        %v7706 = vunpack.c.l.b16 %v6682
        %v7707 = vunpack.c.l.b16 %v6683
        %v7708 = vunpack.c.l.b16 %v6684
        %v7709 = vunpack.c.l.b16 %v6685
        %v7710 = vunpack.c.l.b16 %v6686
        %v7711 = vunpack.c.l.b16 %v6687
        %v7712 = vunpack.c.l.b16 %v6688
        %v7713 = vunpack.c.l.b16 %v6689
        %v7714 = vunpack.c.l.b16 %v6690
        %v7715 = vunpack.c.l.b16 %v6691
        %v7716 = vunpack.c.l.b16 %v6692
        %v7717 = vunpack.c.l.b16 %v6693
        %v7718 = vunpack.c.l.b16 %v6694
        %v7719 = vunpack.c.l.b16 %v6695
        %v7720 = vunpack.c.l.b16 %v6696
        %v7721 = vunpack.c.l.b16 %v6697
        %v7722 = vunpack.c.l.b16 %v6698
        %v7723 = vunpack.c.l.b16 %v6699
        %v7724 = vunpack.c.l.b16 %v6700
        %v7725 = vunpack.c.l.b16 %v6701
        %v7726 = vunpack.c.l.b16 %v6702
        %v7727 = vunpack.c.l.b16 %v6703
        %v7728 = vunpack.c.l.b16 %v6704
        %v7729 = vunpack.c.l.b16 %v6705
        %v7730 = vunpack.c.l.b16 %v6706
        %v7731 = vunpack.c.l.b16 %v6707
        %v7732 = vunpack.c.l.b16 %v6708
        %v7733 = vunpack.c.l.b16 %v6709
        %v7734 = vunpack.c.l.b16 %v6710
        %v7735 = vunpack.c.l.b16 %v6711
        %v7736 = vunpack.c.l.b16 %v6712
        %v7737 = vunpack.c.l.b16 %v6713
        %v7738 = vunpack.c.l.b16 %v6714
        %v7739 = vunpack.c.l.b16 %v6715
        %v7740 = vunpack.c.l.b16 %v6716
        %v7741 = vunpack.c.l.b16 %v6717
        %v7742 = vunpack.c.l.b16 %v6718
        %v7743 = vunpack.c.l.b16 %v6719
        %v7744 = vunpack.c.l.b16 %v6720
        %v7745 = vunpack.c.l.b16 %v6721
        %v7746 = vunpack.c.l.b16 %v6722
        %v7747 = vunpack.c.l.b16 %v6723
        %v7748 = vunpack.c.l.b16 %v6724
        %v7749 = vunpack.c.l.b16 %v6725
        %v7750 = vunpack.c.l.b16 %v6726
        %v7751 = vunpack.c.l.b16 %v6727
        %v7752 = vunpack.c.l.b16 %v6728
        %v7753 = vunpack.c.l.b16 %v6729
        %v7754 = vunpack.c.l.b16 %v6730
        %v7755 = vunpack.c.l.b16 %v6731
        %v7756 = vunpack.c.l.b16 %v6732
        %v7757 = vunpack.c.l.b16 %v6733
        %v7758 = vunpack.c.l.b16 %v6734
        %v7759 = vunpack.c.l.b16 %v6735
        %v7760 = vunpack.c.l.b16 %v6736
        %v7761 = vunpack.c.l.b16 %v6737
        %v7762 = vunpack.c.l.b16 %v6738
        %v7763 = vunpack.c.l.b16 %v6739
        %v7764 = vunpack.c.l.b16 %v6740
        %v7765 = vunpack.c.l.b16 %v6741
        %v7766 = vunpack.c.l.b16 %v6742
        %v7767 = vunpack.c.l.b16 %v6743
        %v7768 = vunpack.c.l.b16 %v6744
        %v7769 = vunpack.c.l.b16 %v6745
        %v7770 = vunpack.c.l.b16 %v6746
        %v7771 = vunpack.c.l.b16 %v6747
        %v7772 = vunpack.c.l.b16 %v6748
        %v7773 = vunpack.c.l.b16 %v6749
        %v7774 = vunpack.c.l.b16 %v6750
        %v7775 = vunpack.c.l.b16 %v6751
        %v7776 = vunpack.c.l.b16 %v6752
        %v7777 = vunpack.c.l.b16 %v6753
        %v7778 = vunpack.c.l.b16 %v6754
        %v7779 = vunpack.c.l.b16 %v6755
        %v7780 = vunpack.c.l.b16 %v6756
        %v7781 = vunpack.c.l.b16 %v6757
        %v7782 = vunpack.c.l.b16 %v6758
        %v7783 = vunpack.c.l.b16 %v6759
        %v7784 = vunpack.c.l.b16 %v6760
        %v7785 = vunpack.c.l.b16 %v6761
        %v7786 = vunpack.c.l.b16 %v6762
        %v7787 = vunpack.c.l.b16 %v6763
        %v7788 = vunpack.c.l.b16 %v6764
        %v7789 = vunpack.c.l.b16 %v6765
        %v7790 = vunpack.c.l.b16 %v6766
        %v7791 = vunpack.c.l.b16 %v6767
        %v7792 = vunpack.c.l.b16 %v6768
        %v7793 = vunpack.c.l.b16 %v6769
        %v7794 = vunpack.c.l.b16 %v6770
        %v7795 = vunpack.c.l.b16 %v6771
        %v7796 = vunpack.c.l.b16 %v6772
        %v7797 = vunpack.c.l.b16 %v6773
        %v7798 = vunpack.c.l.b16 %v6774
        %v7799 = vunpack.c.l.b16 %v6775
        %v7800 = vunpack.c.l.b16 %v6776
        %v7801 = vunpack.c.l.b16 %v6777
        %v7802 = vunpack.c.l.b16 %v6778
        %v7803 = vunpack.c.l.b16 %v6779
        %v7804 = vunpack.c.l.b16 %v6780
        %v7805 = vunpack.c.l.b16 %v6781
        %v7806 = vunpack.c.l.b16 %v6782
        %v7807 = vunpack.c.l.b16 %v6783
        %v7808 = vunpack.c.l.b16 %v6784
        %v7809 = vunpack.c.l.b16 %v6785
        %v7810 = vunpack.c.l.b16 %v6786
        %v7811 = vunpack.c.l.b16 %v6787
        %v7812 = vunpack.c.l.b16 %v6788
        %v7813 = vunpack.c.l.b16 %v6789
        %v7814 = vunpack.c.l.b16 %v6790
        %v7815 = vunpack.c.l.b16 %v6791
        %v7816 = vunpack.c.l.b16 %v6792
        %v7817 = vunpack.c.l.b16 %v6793
        %v7818 = vunpack.c.l.b16 %v6794
        %v7819 = vunpack.c.l.b16 %v6795
        %v7820 = vunpack.c.l.b16 %v6796
        %v7821 = vunpack.c.l.b16 %v6797
        %v7822 = vunpack.c.l.b16 %v6798
        %v7823 = vunpack.c.l.b16 %v6799
        %v7824 = vunpack.c.l.b16 %v6800
        %v7825 = vunpack.c.l.b16 %v6801
        %v7826 = vunpack.c.l.b16 %v6802
        %v7827 = vunpack.c.l.b16 %v6803
        %v7828 = vunpack.c.l.b16 %v6804
        %v7829 = vunpack.c.l.b16 %v6805
        %v7830 = vunpack.c.l.b16 %v6806
        %v7831 = vunpack.c.l.b16 %v6807
        %v7832 = vunpack.c.l.b16 %v6808
        %v7833 = vunpack.c.l.b16 %v6809
        %v7834 = vunpack.c.l.b16 %v6810
        %v7835 = vunpack.c.l.b16 %v6811
        %v7836 = vunpack.c.l.b16 %v6812
        %v7837 = vunpack.c.l.b16 %v6813
        %v7838 = vunpack.c.l.b16 %v6814
        %v7839 = vunpack.c.l.b16 %v6815
        %v7840 = vunpack.c.l.b16 %v6816
        %v7841 = vunpack.c.l.b16 %v6817
        %v7842 = vunpack.c.l.b16 %v6818
        %v7843 = vunpack.c.l.b16 %v6819
        %v7844 = vunpack.c.l.b16 %v6820
        %v7845 = vunpack.c.l.b16 %v6821
        %v7846 = vunpack.c.l.b16 %v6822
        %v7847 = vunpack.c.l.b16 %v6823
        %v7848 = vunpack.c.l.b16 %v6824
        %v7849 = vunpack.c.l.b16 %v6825
        %v7850 = vunpack.c.l.b16 %v6826
        %v7851 = vunpack.c.l.b16 %v6827
        %v7852 = vunpack.c.l.b16 %v6828
        %v7853 = vunpack.c.l.b16 %v6829
        %v7854 = vunpack.c.l.b16 %v6830
        %v7855 = vunpack.c.l.b16 %v6831
        %v7856 = vunpack.c.l.b16 %v6832
        %v7857 = vunpack.c.l.b16 %v6833
        %v7858 = vunpack.c.l.b16 %v6834
        %v7859 = vunpack.c.l.b16 %v6835
        %v7860 = vunpack.c.l.b16 %v6836
        %v7861 = vunpack.c.l.b16 %v6837
        %v7862 = vunpack.c.l.b16 %v6838
        %v7863 = vunpack.c.l.b16 %v6839
        %v7864 = vunpack.c.l.b16 %v6840
        %v7865 = vunpack.c.l.b16 %v6841
        %v7866 = vunpack.c.l.b16 %v6842
        %v7867 = vunpack.c.l.b16 %v6843
        %v7868 = vunpack.c.l.b16 %v6844
        %v7869 = vunpack.c.l.b16 %v6845
        %v7870 = vunpack.c.l.b16 %v6846
        %v7871 = vunpack.c.l.b16 %v6847
        %v7872 = vunpack.c.l.b16 %v6848
        %v7873 = vunpack.c.l.b16 %v6849
        %v7874 = vunpack.c.l.b16 %v6850
        %v7875 = vunpack.c.l.b16 %v6851
        %v7876 = vunpack.c.l.b16 %v6852
        %v7877 = vunpack.c.l.b16 %v6853
        %v7878 = vunpack.c.l.b16 %v6854
        %v7879 = vunpack.c.l.b16 %v6855
        %v7880 = vunpack.c.l.b16 %v6856
        %v7881 = vunpack.c.l.b16 %v6857
        %v7882 = vunpack.c.l.b16 %v6858
        %v7883 = vunpack.c.l.b16 %v6859
        %v7884 = vunpack.c.l.b16 %v6860
        %v7885 = vunpack.c.l.b16 %v6861
        %v7886 = vunpack.c.l.b16 %v6862
        %v7887 = vunpack.c.l.b16 %v6863
        %v7888 = vunpack.c.l.b16 %v6864
        %v7889 = vunpack.c.l.b16 %v6865
        %v7890 = vunpack.c.l.b16 %v6866
        %v7891 = vunpack.c.l.b16 %v6867
        %v7892 = vunpack.c.l.b16 %v6868
        %v7893 = vunpack.c.l.b16 %v6869
        %v7894 = vunpack.c.l.b16 %v6870
        %v7895 = vunpack.c.l.b16 %v6871
        %v7896 = vunpack.c.l.b16 %v6872
        %v7897 = vunpack.c.l.b16 %v6873
        %v7898 = vunpack.c.l.b16 %v6874
        %v7899 = vunpack.c.l.b16 %v6875
        %v7900 = vunpack.c.l.b16 %v6876
        %v7901 = vunpack.c.l.b16 %v6877
        %v7902 = vunpack.c.l.b16 %v6878
        %v7903 = vunpack.c.l.b16 %v6879
        %v7904 = vunpack.c.l.b16 %v6880
        %v7905 = vunpack.c.l.b16 %v6881
        %v7906 = vunpack.c.l.b16 %v6882
        %v7907 = vunpack.c.l.b16 %v6883
        %v7908 = vunpack.c.l.b16 %v6884
        %v7909 = vunpack.c.l.b16 %v6885
        %v7910 = vunpack.c.l.b16 %v6886
        %v7911 = vunpack.c.l.b16 %v6887
        %v7912 = vunpack.c.l.b16 %v6888
        %v7913 = vunpack.c.l.b16 %v6889
        %v7914 = vpack.c.b16 %v7403, %v7402
        %v7915 = vpack.c.b16 %v7405, %v7404
        %v7916 = vpack.c.b16 %v7407, %v7406
        %v7917 = vpack.c.b16 %v7409, %v7408
        %v7918 = vpack.c.b16 %v7411, %v7410
        %v7919 = vpack.c.b16 %v7413, %v7412
        %v7920 = vpack.c.b16 %v7415, %v7414
        %v7921 = vpack.c.b16 %v7417, %v7416
        %v7922 = vpack.c.b16 %v7419, %v7418
        %v7923 = vpack.c.b16 %v7421, %v7420
        %v7924 = vpack.c.b16 %v7423, %v7422
        %v7925 = vpack.c.b16 %v7425, %v7424
        %v7926 = vpack.c.b16 %v7427, %v7426
        %v7927 = vpack.c.b16 %v7429, %v7428
        %v7928 = vpack.c.b16 %v7431, %v7430
        %v7929 = vpack.c.b16 %v7433, %v7432
        %v7930 = vpack.c.b16 %v7435, %v7434
        %v7931 = vpack.c.b16 %v7437, %v7436
        %v7932 = vpack.c.b16 %v7439, %v7438
        %v7933 = vpack.c.b16 %v7441, %v7440
        %v7934 = vpack.c.b16 %v7443, %v7442
        %v7935 = vpack.c.b16 %v7445, %v7444
        %v7936 = vpack.c.b16 %v7447, %v7446
        %v7937 = vpack.c.b16 %v7449, %v7448
        %v7938 = vpack.c.b16 %v7451, %v7450
        %v7939 = vpack.c.b16 %v7453, %v7452
        %v7940 = vpack.c.b16 %v7455, %v7454
        %v7941 = vpack.c.b16 %v7457, %v7456
        %v7942 = vpack.c.b16 %v7459, %v7458
        %v7943 = vpack.c.b16 %v7461, %v7460
        %v7944 = vpack.c.b16 %v7463, %v7462
        %v7945 = vpack.c.b16 %v7465, %v7464
        %v7946 = vpack.c.b16 %v7467, %v7466
        %v7947 = vpack.c.b16 %v7469, %v7468
        %v7948 = vpack.c.b16 %v7471, %v7470
        %v7949 = vpack.c.b16 %v7473, %v7472
        %v7950 = vpack.c.b16 %v7475, %v7474
        %v7951 = vpack.c.b16 %v7477, %v7476
        %v7952 = vpack.c.b16 %v7479, %v7478
        %v7953 = vpack.c.b16 %v7481, %v7480
        %v7954 = vpack.c.b16 %v7483, %v7482
        %v7955 = vpack.c.b16 %v7485, %v7484
        %v7956 = vpack.c.b16 %v7487, %v7486
        %v7957 = vpack.c.b16 %v7489, %v7488
        %v7958 = vpack.c.b16 %v7491, %v7490
        %v7959 = vpack.c.b16 %v7493, %v7492
        %v7960 = vpack.c.b16 %v7495, %v7494
        %v7961 = vpack.c.b16 %v7497, %v7496
        %v7962 = vpack.c.b16 %v7499, %v7498
        %v7963 = vpack.c.b16 %v7501, %v7500
        %v7964 = vpack.c.b16 %v7503, %v7502
        %v7965 = vpack.c.b16 %v7505, %v7504
        %v7966 = vpack.c.b16 %v7507, %v7506
        %v7967 = vpack.c.b16 %v7509, %v7508
        %v7968 = vpack.c.b16 %v7511, %v7510
        %v7969 = vpack.c.b16 %v7513, %v7512
        %v7970 = vpack.c.b16 %v7515, %v7514
        %v7971 = vpack.c.b16 %v7517, %v7516
        %v7972 = vpack.c.b16 %v7519, %v7518
        %v7973 = vpack.c.b16 %v7521, %v7520
        %v7974 = vpack.c.b16 %v7523, %v7522
        %v7975 = vpack.c.b16 %v7525, %v7524
        %v7976 = vpack.c.b16 %v7527, %v7526
        %v7977 = vpack.c.b16 %v7529, %v7528
        %v7978 = vpack.c.b16 %v7531, %v7530
        %v7979 = vpack.c.b16 %v7533, %v7532
        %v7980 = vpack.c.b16 %v7535, %v7534
        %v7981 = vpack.c.b16 %v7537, %v7536
        %v7982 = vpack.c.b16 %v7539, %v7538
        %v7983 = vpack.c.b16 %v7541, %v7540
        %v7984 = vpack.c.b16 %v7543, %v7542
        %v7985 = vpack.c.b16 %v7545, %v7544
        %v7986 = vpack.c.b16 %v7547, %v7546
        %v7987 = vpack.c.b16 %v7549, %v7548
        %v7988 = vpack.c.b16 %v7551, %v7550
        %v7989 = vpack.c.b16 %v7553, %v7552
        %v7990 = vpack.c.b16 %v7555, %v7554
        %v7991 = vpack.c.b16 %v7557, %v7556
        %v7992 = vpack.c.b16 %v7559, %v7558
        %v7993 = vpack.c.b16 %v7561, %v7560
        %v7994 = vpack.c.b16 %v7563, %v7562
        %v7995 = vpack.c.b16 %v7565, %v7564
        %v7996 = vpack.c.b16 %v7567, %v7566
        %v7997 = vpack.c.b16 %v7569, %v7568
        %v7998 = vpack.c.b16 %v7571, %v7570
        %v7999 = vpack.c.b16 %v7573, %v7572
        %v8000 = vpack.c.b16 %v7575, %v7574
        %v8001 = vpack.c.b16 %v7577, %v7576
        %v8002 = vpack.c.b16 %v7579, %v7578
        %v8003 = vpack.c.b16 %v7581, %v7580
        %v8004 = vpack.c.b16 %v7583, %v7582
        %v8005 = vpack.c.b16 %v7585, %v7584
        %v8006 = vpack.c.b16 %v7587, %v7586
        %v8007 = vpack.c.b16 %v7589, %v7588
        %v8008 = vpack.c.b16 %v7591, %v7590
        %v8009 = vpack.c.b16 %v7593, %v7592
        %v8010 = vpack.c.b16 %v7595, %v7594
        %v8011 = vpack.c.b16 %v7597, %v7596
        %v8012 = vpack.c.b16 %v7599, %v7598
        %v8013 = vpack.c.b16 %v7601, %v7600
        %v8014 = vpack.c.b16 %v7603, %v7602
        %v8015 = vpack.c.b16 %v7605, %v7604
        %v8016 = vpack.c.b16 %v7607, %v7606
        %v8017 = vpack.c.b16 %v7609, %v7608
        %v8018 = vpack.c.b16 %v7611, %v7610
        %v8019 = vpack.c.b16 %v7613, %v7612
        %v8020 = vpack.c.b16 %v7615, %v7614
        %v8021 = vpack.c.b16 %v7617, %v7616
        %v8022 = vpack.c.b16 %v7619, %v7618
        %v8023 = vpack.c.b16 %v7621, %v7620
        %v8024 = vpack.c.b16 %v7623, %v7622
        %v8025 = vpack.c.b16 %v7625, %v7624
        %v8026 = vpack.c.b16 %v7627, %v7626
        %v8027 = vpack.c.b16 %v7629, %v7628
        %v8028 = vpack.c.b16 %v7631, %v7630
        %v8029 = vpack.c.b16 %v7633, %v7632
        %v8030 = vpack.c.b16 %v7635, %v7634
        %v8031 = vpack.c.b16 %v7637, %v7636
        %v8032 = vpack.c.b16 %v7639, %v7638
        %v8033 = vpack.c.b16 %v7641, %v7640
        %v8034 = vpack.c.b16 %v7643, %v7642
        %v8035 = vpack.c.b16 %v7645, %v7644
        %v8036 = vpack.c.b16 %v7647, %v7646
        %v8037 = vpack.c.b16 %v7649, %v7648
        %v8038 = vpack.c.b16 %v7651, %v7650
        %v8039 = vpack.c.b16 %v7653, %v7652
        %v8040 = vpack.c.b16 %v7655, %v7654
        %v8041 = vpack.c.b16 %v7657, %v7656
        %v8042 = vpack.c.b16 %v7659, %v7658
        %v8043 = vpack.c.b16 %v7661, %v7660
        %v8044 = vpack.c.b16 %v7663, %v7662
        %v8045 = vpack.c.b16 %v7665, %v7664
        %v8046 = vpack.c.b16 %v7667, %v7666
        %v8047 = vpack.c.b16 %v7669, %v7668
        %v8048 = vpack.c.b16 %v7671, %v7670
        %v8049 = vpack.c.b16 %v7673, %v7672
        %v8050 = vpack.c.b16 %v7675, %v7674
        %v8051 = vpack.c.b16 %v7677, %v7676
        %v8052 = vpack.c.b16 %v7679, %v7678
        %v8053 = vpack.c.b16 %v7681, %v7680
        %v8054 = vpack.c.b16 %v7683, %v7682
        %v8055 = vpack.c.b16 %v7685, %v7684
        %v8056 = vpack.c.b16 %v7687, %v7686
        %v8057 = vpack.c.b16 %v7689, %v7688
        %v8058 = vpack.c.b16 %v7691, %v7690
        %v8059 = vpack.c.b16 %v7693, %v7692
        %v8060 = vpack.c.b16 %v7695, %v7694
        %v8061 = vpack.c.b16 %v7697, %v7696
        %v8062 = vpack.c.b16 %v7699, %v7698
        %v8063 = vpack.c.b16 %v7701, %v7700
        %v8064 = vpack.c.b16 %v7703, %v7702
        %v8065 = vpack.c.b16 %v7705, %v7704
        %v8066 = vpack.c.b16 %v7707, %v7706
        %v8067 = vpack.c.b16 %v7709, %v7708
        %v8068 = vpack.c.b16 %v7711, %v7710
        %v8069 = vpack.c.b16 %v7713, %v7712
        %v8070 = vpack.c.b16 %v7715, %v7714
        %v8071 = vpack.c.b16 %v7717, %v7716
        %v8072 = vpack.c.b16 %v7719, %v7718
        %v8073 = vpack.c.b16 %v7721, %v7720
        %v8074 = vpack.c.b16 %v7723, %v7722
        %v8075 = vpack.c.b16 %v7725, %v7724
        %v8076 = vpack.c.b16 %v7727, %v7726
        %v8077 = vpack.c.b16 %v7729, %v7728
        %v8078 = vpack.c.b16 %v7731, %v7730
        %v8079 = vpack.c.b16 %v7733, %v7732
        %v8080 = vpack.c.b16 %v7735, %v7734
        %v8081 = vpack.c.b16 %v7737, %v7736
        %v8082 = vpack.c.b16 %v7739, %v7738
        %v8083 = vpack.c.b16 %v7741, %v7740
        %v8084 = vpack.c.b16 %v7743, %v7742
        %v8085 = vpack.c.b16 %v7745, %v7744
        %v8086 = vpack.c.b16 %v7747, %v7746
        %v8087 = vpack.c.b16 %v7749, %v7748
        %v8088 = vpack.c.b16 %v7751, %v7750
        %v8089 = vpack.c.b16 %v7753, %v7752
        %v8090 = vpack.c.b16 %v7755, %v7754
        %v8091 = vpack.c.b16 %v7757, %v7756
        %v8092 = vpack.c.b16 %v7759, %v7758
        %v8093 = vpack.c.b16 %v7761, %v7760
        %v8094 = vpack.c.b16 %v7763, %v7762
        %v8095 = vpack.c.b16 %v7765, %v7764
        %v8096 = vpack.c.b16 %v7767, %v7766
        %v8097 = vpack.c.b16 %v7769, %v7768
        %v8098 = vpack.c.b16 %v7771, %v7770
        %v8099 = vpack.c.b16 %v7773, %v7772
        %v8100 = vpack.c.b16 %v7775, %v7774
        %v8101 = vpack.c.b16 %v7777, %v7776
        %v8102 = vpack.c.b16 %v7779, %v7778
        %v8103 = vpack.c.b16 %v7781, %v7780
        %v8104 = vpack.c.b16 %v7783, %v7782
        %v8105 = vpack.c.b16 %v7785, %v7784
        %v8106 = vpack.c.b16 %v7787, %v7786
        %v8107 = vpack.c.b16 %v7789, %v7788
        %v8108 = vpack.c.b16 %v7791, %v7790
        %v8109 = vpack.c.b16 %v7793, %v7792
        %v8110 = vpack.c.b16 %v7795, %v7794
        %v8111 = vpack.c.b16 %v7797, %v7796
        %v8112 = vpack.c.b16 %v7799, %v7798
        %v8113 = vpack.c.b16 %v7801, %v7800
        %v8114 = vpack.c.b16 %v7803, %v7802
        %v8115 = vpack.c.b16 %v7805, %v7804
        %v8116 = vpack.c.b16 %v7807, %v7806
        %v8117 = vpack.c.b16 %v7809, %v7808
        %v8118 = vpack.c.b16 %v7811, %v7810
        %v8119 = vpack.c.b16 %v7813, %v7812
        %v8120 = vpack.c.b16 %v7815, %v7814
        %v8121 = vpack.c.b16 %v7817, %v7816
        %v8122 = vpack.c.b16 %v7819, %v7818
        %v8123 = vpack.c.b16 %v7821, %v7820
        %v8124 = vpack.c.b16 %v7823, %v7822
        %v8125 = vpack.c.b16 %v7825, %v7824
        %v8126 = vpack.c.b16 %v7827, %v7826
        %v8127 = vpack.c.b16 %v7829, %v7828
        %v8128 = vpack.c.b16 %v7831, %v7830
        %v8129 = vpack.c.b16 %v7833, %v7832
        %v8130 = vpack.c.b16 %v7835, %v7834
        %v8131 = vpack.c.b16 %v7837, %v7836
        %v8132 = vpack.c.b16 %v7839, %v7838
        %v8133 = vpack.c.b16 %v7841, %v7840
        %v8134 = vpack.c.b16 %v7843, %v7842
        %v8135 = vpack.c.b16 %v7845, %v7844
        %v8136 = vpack.c.b16 %v7847, %v7846
        %v8137 = vpack.c.b16 %v7849, %v7848
        %v8138 = vpack.c.b16 %v7851, %v7850
        %v8139 = vpack.c.b16 %v7853, %v7852
        %v8140 = vpack.c.b16 %v7855, %v7854
        %v8141 = vpack.c.b16 %v7857, %v7856
        %v8142 = vpack.c.b16 %v7859, %v7858
        %v8143 = vpack.c.b16 %v7861, %v7860
        %v8144 = vpack.c.b16 %v7863, %v7862
        %v8145 = vpack.c.b16 %v7865, %v7864
        %v8146 = vpack.c.b16 %v7867, %v7866
        %v8147 = vpack.c.b16 %v7869, %v7868
        %v8148 = vpack.c.b16 %v7871, %v7870
        %v8149 = vpack.c.b16 %v7873, %v7872
        %v8150 = vpack.c.b16 %v7875, %v7874
        %v8151 = vpack.c.b16 %v7877, %v7876
        %v8152 = vpack.c.b16 %v7879, %v7878
        %v8153 = vpack.c.b16 %v7881, %v7880
        %v8154 = vpack.c.b16 %v7883, %v7882
        %v8155 = vpack.c.b16 %v7885, %v7884
        %v8156 = vpack.c.b16 %v7887, %v7886
        %v8157 = vpack.c.b16 %v7889, %v7888
        %v8158 = vpack.c.b16 %v7891, %v7890
        %v8159 = vpack.c.b16 %v7893, %v7892
        %v8160 = vpack.c.b16 %v7895, %v7894
        %v8161 = vpack.c.b16 %v7897, %v7896
        %v8162 = vpack.c.b16 %v7899, %v7898
        %v8163 = vpack.c.b16 %v7901, %v7900
        %v8164 = vpack.c.b16 %v7903, %v7902
        %v8165 = vpack.c.b16 %v7905, %v7904
        %v8166 = vpack.c.b16 %v7907, %v7906
        %v8167 = vpack.c.b16 %v7909, %v7908
        %v8168 = vpack.c.b16 %v7911, %v7910
        %v8169 = vpack.c.b16 %v7913, %v7912
        %8426 = vmatprep.subr.bf16.mxu0 0
        %8427 = vmatpush1.bf16.msra.mxu0 %v7914
        %8428 = vmatprep.subr.bf16.mxu0 0
        %8429 = vmatpush1.bf16.msra.mxu0 %v7915
        %8430 = vmatprep.subr.bf16.mxu0 0
        %8431 = vmatpush1.bf16.msra.mxu0 %v7916
        %8432 = vmatprep.subr.bf16.mxu0 0
        %8433 = vmatpush1.bf16.msra.mxu0 %v7917
        %8434 = vmatprep.subr.bf16.mxu0 0
        %8435 = vmatpush1.bf16.msra.mxu0 %v7918
        %8436 = vmatprep.subr.bf16.mxu0 0
        %8437 = vmatpush1.bf16.msra.mxu0 %v7919
        %8438 = vmatprep.subr.bf16.mxu0 0
        %8439 = vmatpush1.bf16.msra.mxu0 %v7920
        %8440 = vmatprep.subr.bf16.mxu0 0
        %8441 = vmatpush1.bf16.msra.mxu0 %v7921
        %8442 = vmatprep.subr.bf16.mxu0 0
        %8443 = vmatpush1.bf16.msra.mxu0 %v7922
        %8444 = vmatprep.subr.bf16.mxu0 0
        %8445 = vmatpush1.bf16.msra.mxu0 %v7923
        %8446 = vmatprep.subr.bf16.mxu0 0
        %8447 = vmatpush1.bf16.msra.mxu0 %v7924
        %8448 = vmatprep.subr.bf16.mxu0 0
        %8449 = vmatpush1.bf16.msra.mxu0 %v7925
        %8450 = vmatprep.subr.bf16.mxu0 0
        %8451 = vmatpush1.bf16.msra.mxu0 %v7926
        %8452 = vmatprep.subr.bf16.mxu0 0
        %8453 = vmatpush1.bf16.msra.mxu0 %v7927
        %8454 = vmatprep.subr.bf16.mxu0 0
        %8455 = vmatpush1.bf16.msra.mxu0 %v7928
        %8456 = vmatprep.subr.bf16.mxu0 0
        %8457 = vmatpush1.bf16.msra.mxu0 %v7929
        %8458 = vmatprep.mubr.bf16.mxu0 %v6347
        %8459 = vmatmul.mubr.bf16.gmra.mrb[0].mxu0 %v6346
        %v8460 = vpop.f32.mrb[0].mxu0
        %v8461 = vadd.f32 0.0, %v8460
        %v8462 = vpop.f32.mrb[0].mxu0
        %v8463 = vpop.f32.mrb[0].mxu0
        %v8464 = vpop.f32.mrb[0].mxu0
        %8465 = vdwg.mxu0
        %8466 = vmatprep.subr.bf16.mxu0 0
        %8467 = vmatpush1.bf16.msra.mxu0 %v7930
        %8468 = vmatprep.subr.bf16.mxu0 0
        %8469 = vmatpush1.bf16.msra.mxu0 %v7931
        %8470 = vmatprep.subr.bf16.mxu0 0
        %8471 = vmatpush1.bf16.msra.mxu0 %v7932
        %8472 = vmatprep.subr.bf16.mxu0 0
        %8473 = vmatpush1.bf16.msra.mxu0 %v7933
        %8474 = vmatprep.subr.bf16.mxu0 0
        %8475 = vmatpush1.bf16.msra.mxu0 %v7934
        %8476 = vmatprep.subr.bf16.mxu0 0
        %8477 = vmatpush1.bf16.msra.mxu0 %v7935
        %8478 = vmatprep.subr.bf16.mxu0 0
        %8479 = vmatpush1.bf16.msra.mxu0 %v7936
        %8480 = vmatprep.subr.bf16.mxu0 0
        %8481 = vmatpush1.bf16.msra.mxu0 %v7937
        %8482 = vmatprep.subr.bf16.mxu0 0
        %8483 = vmatpush1.bf16.msra.mxu0 %v7938
        %8484 = vmatprep.subr.bf16.mxu0 0
        %8485 = vmatpush1.bf16.msra.mxu0 %v7939
        %8486 = vmatprep.subr.bf16.mxu0 0
        %8487 = vmatpush1.bf16.msra.mxu0 %v7940
        %8488 = vmatprep.subr.bf16.mxu0 0
        %8489 = vmatpush1.bf16.msra.mxu0 %v7941
        %8490 = vmatprep.subr.bf16.mxu0 0
        %8491 = vmatpush1.bf16.msra.mxu0 %v7942
        %8492 = vmatprep.subr.bf16.mxu0 0
        %8493 = vmatpush1.bf16.msra.mxu0 %v7943
        %8494 = vmatprep.subr.bf16.mxu0 0
        %8495 = vmatpush1.bf16.msra.mxu0 %v7944
        %8496 = vmatprep.subr.bf16.mxu0 0
        %8497 = vmatpush1.bf16.msra.mxu0 %v7945
        %8498 = vmatprep.mubr.bf16.mxu0 %v6349
        %8499 = vmatmul.mubr.bf16.gmra.mrb[0].mxu0 %v6348
        %v8500 = vpop.f32.mrb[0].mxu0
        %v8501 = vadd.f32 %v8461, %v8500
        %v8502 = vpop.f32.mrb[0].mxu0
        %v8503 = vpop.f32.mrb[0].mxu0
        %v8504 = vpop.f32.mrb[0].mxu0
        %8505 = vdwg.mxu0
        %8506 = vmatprep.subr.bf16.mxu0 0
        %8507 = vmatpush1.bf16.msra.mxu0 %v7946
        %8508 = vmatprep.subr.bf16.mxu0 0
        %8509 = vmatpush1.bf16.msra.mxu0 %v7947
        %8510 = vmatprep.subr.bf16.mxu0 0
        %8511 = vmatpush1.bf16.msra.mxu0 %v7948
        %8512 = vmatprep.subr.bf16.mxu0 0
        %8513 = vmatpush1.bf16.msra.mxu0 %v7949
        %8514 = vmatprep.subr.bf16.mxu0 0
        %8515 = vmatpush1.bf16.msra.mxu0 %v7950
        %8516 = vmatprep.subr.bf16.mxu0 0
        %8517 = vmatpush1.bf16.msra.mxu0 %v7951
        %8518 = vmatprep.subr.bf16.mxu0 0
        %8519 = vmatpush1.bf16.msra.mxu0 %v7952
        %8520 = vmatprep.subr.bf16.mxu0 0
        %8521 = vmatpush1.bf16.msra.mxu0 %v7953
        %8522 = vmatprep.subr.bf16.mxu0 0
        %8523 = vmatpush1.bf16.msra.mxu0 %v7954
        %8524 = vmatprep.subr.bf16.mxu0 0
        %8525 = vmatpush1.bf16.msra.mxu0 %v7955
        %8526 = vmatprep.subr.bf16.mxu0 0
        %8527 = vmatpush1.bf16.msra.mxu0 %v7956
        %8528 = vmatprep.subr.bf16.mxu0 0
        %8529 = vmatpush1.bf16.msra.mxu0 %v7957
        %8530 = vmatprep.subr.bf16.mxu0 0
        %8531 = vmatpush1.bf16.msra.mxu0 %v7958
        %8532 = vmatprep.subr.bf16.mxu0 0
        %8533 = vmatpush1.bf16.msra.mxu0 %v7959
        %8534 = vmatprep.subr.bf16.mxu0 0
        %8535 = vmatpush1.bf16.msra.mxu0 %v7960
        %8536 = vmatprep.subr.bf16.mxu0 0
        %8537 = vmatpush1.bf16.msra.mxu0 %v7961
        %8538 = vmatprep.mubr.bf16.mxu0 %v6351
        %8539 = vmatmul.mubr.bf16.gmra.mrb[0].mxu0 %v6350
        %v8540 = vpop.f32.mrb[0].mxu0
        %v8541 = vadd.f32 %v8501, %v8540
        %v8542 = vpop.f32.mrb[0].mxu0
        %v8543 = vpop.f32.mrb[0].mxu0
        %v8544 = vpop.f32.mrb[0].mxu0
        %8545 = vdwg.mxu0
        %8546 = vmatprep.subr.bf16.mxu0 0
        %8547 = vmatpush1.bf16.msra.mxu0 %v7962
        %8548 = vmatprep.subr.bf16.mxu0 0
        %8549 = vmatpush1.bf16.msra.mxu0 %v7963
        %8550 = vmatprep.subr.bf16.mxu0 0
        %8551 = vmatpush1.bf16.msra.mxu0 %v7964
        %8552 = vmatprep.subr.bf16.mxu0 0
        %8553 = vmatpush1.bf16.msra.mxu0 %v7965
        %8554 = vmatprep.subr.bf16.mxu0 0
        %8555 = vmatpush1.bf16.msra.mxu0 %v7966
        %8556 = vmatprep.subr.bf16.mxu0 0
        %8557 = vmatpush1.bf16.msra.mxu0 %v7967
        %8558 = vmatprep.subr.bf16.mxu0 0
        %8559 = vmatpush1.bf16.msra.mxu0 %v7968
        %8560 = vmatprep.subr.bf16.mxu0 0
        %8561 = vmatpush1.bf16.msra.mxu0 %v7969
        %8562 = vmatprep.subr.bf16.mxu0 0
        %8563 = vmatpush1.bf16.msra.mxu0 %v7970
        %8564 = vmatprep.subr.bf16.mxu0 0
        %8565 = vmatpush1.bf16.msra.mxu0 %v7971
        %8566 = vmatprep.subr.bf16.mxu0 0
        %8567 = vmatpush1.bf16.msra.mxu0 %v7972
        %8568 = vmatprep.subr.bf16.mxu0 0
        %8569 = vmatpush1.bf16.msra.mxu0 %v7973
        %8570 = vmatprep.subr.bf16.mxu0 0
        %8571 = vmatpush1.bf16.msra.mxu0 %v7974
        %8572 = vmatprep.subr.bf16.mxu0 0
        %8573 = vmatpush1.bf16.msra.mxu0 %v7975
        %8574 = vmatprep.subr.bf16.mxu0 0
        %8575 = vmatpush1.bf16.msra.mxu0 %v7976
        %8576 = vmatprep.subr.bf16.mxu0 0
        %8577 = vmatpush1.bf16.msra.mxu0 %v7977
        %8578 = vmatprep.mubr.bf16.mxu0 %v6353
        %8579 = vmatmul.mubr.bf16.gmra.mrb[0].mxu0 %v6352
        %v8580 = vpop.f32.mrb[0].mxu0
        %v8581 = vadd.f32 %v8541, %v8580
        %v8582 = vpop.f32.mrb[0].mxu0
        %v8583 = vpop.f32.mrb[0].mxu0
        %v8584 = vpop.f32.mrb[0].mxu0
        %8585 = vdwg.mxu0
        %8586 = vmatprep.subr.bf16.mxu0 0
        %8587 = vmatpush1.bf16.msra.mxu0 %v7978
        %8588 = vmatprep.subr.bf16.mxu0 0
        %8589 = vmatpush1.bf16.msra.mxu0 %v7979
        %8590 = vmatprep.subr.bf16.mxu0 0
        %8591 = vmatpush1.bf16.msra.mxu0 %v7980
        %8592 = vmatprep.subr.bf16.mxu0 0
        %8593 = vmatpush1.bf16.msra.mxu0 %v7981
        %8594 = vmatprep.subr.bf16.mxu0 0
        %8595 = vmatpush1.bf16.msra.mxu0 %v7982
        %8596 = vmatprep.subr.bf16.mxu0 0
        %8597 = vmatpush1.bf16.msra.mxu0 %v7983
        %8598 = vmatprep.subr.bf16.mxu0 0
        %8599 = vmatpush1.bf16.msra.mxu0 %v7984
        %8600 = vmatprep.subr.bf16.mxu0 0
        %8601 = vmatpush1.bf16.msra.mxu0 %v7985
        %8602 = vmatprep.subr.bf16.mxu0 0
        %8603 = vmatpush1.bf16.msra.mxu0 %v7986
        %8604 = vmatprep.subr.bf16.mxu0 0
        %8605 = vmatpush1.bf16.msra.mxu0 %v7987
        %8606 = vmatprep.subr.bf16.mxu0 0
        %8607 = vmatpush1.bf16.msra.mxu0 %v7988
        %8608 = vmatprep.subr.bf16.mxu0 0
        %8609 = vmatpush1.bf16.msra.mxu0 %v7989
        %8610 = vmatprep.subr.bf16.mxu0 0
        %8611 = vmatpush1.bf16.msra.mxu0 %v7990
        %8612 = vmatprep.subr.bf16.mxu0 0
        %8613 = vmatpush1.bf16.msra.mxu0 %v7991
        %8614 = vmatprep.subr.bf16.mxu0 0
        %8615 = vmatpush1.bf16.msra.mxu0 %v7992
        %8616 = vmatprep.subr.bf16.mxu0 0
        %8617 = vmatpush1.bf16.msra.mxu0 %v7993
        %8618 = vmatprep.mubr.bf16.mxu0 %v6355
        %8619 = vmatmul.mubr.bf16.gmra.mrb[0].mxu0 %v6354
        %v8620 = vpop.f32.mrb[0].mxu0
        %v8621 = vadd.f32 %v8581, %v8620
        %v8622 = vpop.f32.mrb[0].mxu0
        %v8623 = vpop.f32.mrb[0].mxu0
        %v8624 = vpop.f32.mrb[0].mxu0
        %8625 = vdwg.mxu0
        %8626 = vmatprep.subr.bf16.mxu0 0
        %8627 = vmatpush1.bf16.msra.mxu0 %v7994
        %8628 = vmatprep.subr.bf16.mxu0 0
        %8629 = vmatpush1.bf16.msra.mxu0 %v7995
        %8630 = vmatprep.subr.bf16.mxu0 0
        %8631 = vmatpush1.bf16.msra.mxu0 %v7996
        %8632 = vmatprep.subr.bf16.mxu0 0
        %8633 = vmatpush1.bf16.msra.mxu0 %v7997
        %8634 = vmatprep.subr.bf16.mxu0 0
        %8635 = vmatpush1.bf16.msra.mxu0 %v7998
        %8636 = vmatprep.subr.bf16.mxu0 0
        %8637 = vmatpush1.bf16.msra.mxu0 %v7999
        %8638 = vmatprep.subr.bf16.mxu0 0
        %8639 = vmatpush1.bf16.msra.mxu0 %v8000
        %8640 = vmatprep.subr.bf16.mxu0 0
        %8641 = vmatpush1.bf16.msra.mxu0 %v8001
        %8642 = vmatprep.subr.bf16.mxu0 0
        %8643 = vmatpush1.bf16.msra.mxu0 %v8002
        %8644 = vmatprep.subr.bf16.mxu0 0
        %8645 = vmatpush1.bf16.msra.mxu0 %v8003
        %8646 = vmatprep.subr.bf16.mxu0 0
        %8647 = vmatpush1.bf16.msra.mxu0 %v8004
        %8648 = vmatprep.subr.bf16.mxu0 0
        %8649 = vmatpush1.bf16.msra.mxu0 %v8005
        %8650 = vmatprep.subr.bf16.mxu0 0
        %8651 = vmatpush1.bf16.msra.mxu0 %v8006
        %8652 = vmatprep.subr.bf16.mxu0 0
        %8653 = vmatpush1.bf16.msra.mxu0 %v8007
        %8654 = vmatprep.subr.bf16.mxu0 0
        %8655 = vmatpush1.bf16.msra.mxu0 %v8008
        %8656 = vmatprep.subr.bf16.mxu0 0
        %8657 = vmatpush1.bf16.msra.mxu0 %v8009
        %8658 = vmatprep.mubr.bf16.mxu0 %v6357
        %8659 = vmatmul.mubr.bf16.gmra.mrb[0].mxu0 %v6356
        %v8660 = vpop.f32.mrb[0].mxu0
        %v8661 = vadd.f32 %v8621, %v8660
        %v8662 = vpop.f32.mrb[0].mxu0
        %v8663 = vpop.f32.mrb[0].mxu0
        %v8664 = vpop.f32.mrb[0].mxu0
        %8665 = vdwg.mxu0
        %8666 = vmatprep.subr.bf16.mxu0 0
        %8667 = vmatpush1.bf16.msra.mxu0 %v8010
        %8668 = vmatprep.subr.bf16.mxu0 0
        %8669 = vmatpush1.bf16.msra.mxu0 %v8011
        %8670 = vmatprep.subr.bf16.mxu0 0
        %8671 = vmatpush1.bf16.msra.mxu0 %v8012
        %8672 = vmatprep.subr.bf16.mxu0 0
        %8673 = vmatpush1.bf16.msra.mxu0 %v8013
        %8674 = vmatprep.subr.bf16.mxu0 0
        %8675 = vmatpush1.bf16.msra.mxu0 %v8014
        %8676 = vmatprep.subr.bf16.mxu0 0
        %8677 = vmatpush1.bf16.msra.mxu0 %v8015
        %8678 = vmatprep.subr.bf16.mxu0 0
        %8679 = vmatpush1.bf16.msra.mxu0 %v8016
        %8680 = vmatprep.subr.bf16.mxu0 0
        %8681 = vmatpush1.bf16.msra.mxu0 %v8017
        %8682 = vmatprep.subr.bf16.mxu0 0
        %8683 = vmatpush1.bf16.msra.mxu0 %v8018
        %8684 = vmatprep.subr.bf16.mxu0 0
        %8685 = vmatpush1.bf16.msra.mxu0 %v8019
        %8686 = vmatprep.subr.bf16.mxu0 0
        %8687 = vmatpush1.bf16.msra.mxu0 %v8020
        %8688 = vmatprep.subr.bf16.mxu0 0
        %8689 = vmatpush1.bf16.msra.mxu0 %v8021
        %8690 = vmatprep.subr.bf16.mxu0 0
        %8691 = vmatpush1.bf16.msra.mxu0 %v8022
        %8692 = vmatprep.subr.bf16.mxu0 0
        %8693 = vmatpush1.bf16.msra.mxu0 %v8023
        %8694 = vmatprep.subr.bf16.mxu0 0
        %8695 = vmatpush1.bf16.msra.mxu0 %v8024
        %8696 = vmatprep.subr.bf16.mxu0 0
        %8697 = vmatpush1.bf16.msra.mxu0 %v8025
        %8698 = vmatprep.mubr.bf16.mxu0 %v6359
        %8699 = vmatmul.mubr.bf16.gmra.mrb[0].mxu0 %v6358
        %v8700 = vpop.f32.mrb[0].mxu0
        %v8701 = vadd.f32 %v8661, %v8700
        %v8702 = vpop.f32.mrb[0].mxu0
        %v8703 = vpop.f32.mrb[0].mxu0
        %v8704 = vpop.f32.mrb[0].mxu0
        %8705 = vdwg.mxu0
        %8706 = vmatprep.subr.bf16.mxu0 0
        %8707 = vmatpush1.bf16.msra.mxu0 %v8026
        %8708 = vmatprep.subr.bf16.mxu0 0
        %8709 = vmatpush1.bf16.msra.mxu0 %v8027
        %8710 = vmatprep.subr.bf16.mxu0 0
        %8711 = vmatpush1.bf16.msra.mxu0 %v8028
        %8712 = vmatprep.subr.bf16.mxu0 0
        %8713 = vmatpush1.bf16.msra.mxu0 %v8029
        %8714 = vmatprep.subr.bf16.mxu0 0
        %8715 = vmatpush1.bf16.msra.mxu0 %v8030
        %8716 = vmatprep.subr.bf16.mxu0 0
        %8717 = vmatpush1.bf16.msra.mxu0 %v8031
        %8718 = vmatprep.subr.bf16.mxu0 0
        %8719 = vmatpush1.bf16.msra.mxu0 %v8032
        %8720 = vmatprep.subr.bf16.mxu0 0
        %8721 = vmatpush1.bf16.msra.mxu0 %v8033
        %8722 = vmatprep.subr.bf16.mxu0 0
        %8723 = vmatpush1.bf16.msra.mxu0 %v8034
        %8724 = vmatprep.subr.bf16.mxu0 0
        %8725 = vmatpush1.bf16.msra.mxu0 %v8035
        %8726 = vmatprep.subr.bf16.mxu0 0
        %8727 = vmatpush1.bf16.msra.mxu0 %v8036
        %8728 = vmatprep.subr.bf16.mxu0 0
        %8729 = vmatpush1.bf16.msra.mxu0 %v8037
        %8730 = vmatprep.subr.bf16.mxu0 0
        %8731 = vmatpush1.bf16.msra.mxu0 %v8038
        %8732 = vmatprep.subr.bf16.mxu0 0
        %8733 = vmatpush1.bf16.msra.mxu0 %v8039
        %8734 = vmatprep.subr.bf16.mxu0 0
        %8735 = vmatpush1.bf16.msra.mxu0 %v8040
        %8736 = vmatprep.subr.bf16.mxu0 0
        %8737 = vmatpush1.bf16.msra.mxu0 %v8041
        %8738 = vmatprep.mubr.bf16.mxu0 %v6361
        %8739 = vmatmul.mubr.bf16.gmra.mrb[0].mxu0 %v6360
        %v8740 = vpop.f32.mrb[0].mxu0
        %v8741 = vadd.f32 %v8701, %v8740
        %v8742 = vpop.f32.mrb[0].mxu0
        %v8743 = vpop.f32.mrb[0].mxu0
        %v8744 = vpop.f32.mrb[0].mxu0
        %8745 = vdwg.mxu0
        %8746 = vmatprep.subr.bf16.mxu0 0
        %8747 = vmatpush1.bf16.msra.mxu0 %v8042
        %8748 = vmatprep.subr.bf16.mxu0 0
        %8749 = vmatpush1.bf16.msra.mxu0 %v8043
        %8750 = vmatprep.subr.bf16.mxu0 0
        %8751 = vmatpush1.bf16.msra.mxu0 %v8044
        %8752 = vmatprep.subr.bf16.mxu0 0
        %8753 = vmatpush1.bf16.msra.mxu0 %v8045
        %8754 = vmatprep.subr.bf16.mxu0 0
        %8755 = vmatpush1.bf16.msra.mxu0 %v8046
        %8756 = vmatprep.subr.bf16.mxu0 0
        %8757 = vmatpush1.bf16.msra.mxu0 %v8047
        %8758 = vmatprep.subr.bf16.mxu0 0
        %8759 = vmatpush1.bf16.msra.mxu0 %v8048
        %8760 = vmatprep.subr.bf16.mxu0 0
        %8761 = vmatpush1.bf16.msra.mxu0 %v8049
        %8762 = vmatprep.subr.bf16.mxu0 0
        %8763 = vmatpush1.bf16.msra.mxu0 %v8050
        %8764 = vmatprep.subr.bf16.mxu0 0
        %8765 = vmatpush1.bf16.msra.mxu0 %v8051
        %8766 = vmatprep.subr.bf16.mxu0 0
        %8767 = vmatpush1.bf16.msra.mxu0 %v8052
        %8768 = vmatprep.subr.bf16.mxu0 0
        %8769 = vmatpush1.bf16.msra.mxu0 %v8053
        %8770 = vmatprep.subr.bf16.mxu0 0
        %8771 = vmatpush1.bf16.msra.mxu0 %v8054
        %8772 = vmatprep.subr.bf16.mxu0 0
        %8773 = vmatpush1.bf16.msra.mxu0 %v8055
        %8774 = vmatprep.subr.bf16.mxu0 0
        %8775 = vmatpush1.bf16.msra.mxu0 %v8056
        %8776 = vmatprep.subr.bf16.mxu0 0
        %8777 = vmatpush1.bf16.msra.mxu0 %v8057
        %8778 = vmatprep.mubr.bf16.mxu0 %v6363
        %8779 = vmatmul.mubr.bf16.gmra.mrb[0].mxu0 %v6362
        %v8780 = vpop.f32.mrb[0].mxu0
        %v8781 = vadd.f32 %v8741, %v8780
        %v8782 = vpop.f32.mrb[0].mxu0
        %v8783 = vpop.f32.mrb[0].mxu0
        %v8784 = vpop.f32.mrb[0].mxu0
        %8785 = vdwg.mxu0
        %8786 = vmatprep.subr.bf16.mxu0 0
        %8787 = vmatpush1.bf16.msra.mxu0 %v8058
        %8788 = vmatprep.subr.bf16.mxu0 0
        %8789 = vmatpush1.bf16.msra.mxu0 %v8059
        %8790 = vmatprep.subr.bf16.mxu0 0
        %8791 = vmatpush1.bf16.msra.mxu0 %v8060
        %8792 = vmatprep.subr.bf16.mxu0 0
        %8793 = vmatpush1.bf16.msra.mxu0 %v8061
        %8794 = vmatprep.subr.bf16.mxu0 0
        %8795 = vmatpush1.bf16.msra.mxu0 %v8062
        %8796 = vmatprep.subr.bf16.mxu0 0
        %8797 = vmatpush1.bf16.msra.mxu0 %v8063
        %8798 = vmatprep.subr.bf16.mxu0 0
        %8799 = vmatpush1.bf16.msra.mxu0 %v8064
        %8800 = vmatprep.subr.bf16.mxu0 0
        %8801 = vmatpush1.bf16.msra.mxu0 %v8065
        %8802 = vmatprep.subr.bf16.mxu0 0
        %8803 = vmatpush1.bf16.msra.mxu0 %v8066
        %8804 = vmatprep.subr.bf16.mxu0 0
        %8805 = vmatpush1.bf16.msra.mxu0 %v8067
        %8806 = vmatprep.subr.bf16.mxu0 0
        %8807 = vmatpush1.bf16.msra.mxu0 %v8068
        %8808 = vmatprep.subr.bf16.mxu0 0
        %8809 = vmatpush1.bf16.msra.mxu0 %v8069
        %8810 = vmatprep.subr.bf16.mxu0 0
        %8811 = vmatpush1.bf16.msra.mxu0 %v8070
        %8812 = vmatprep.subr.bf16.mxu0 0
        %8813 = vmatpush1.bf16.msra.mxu0 %v8071
        %8814 = vmatprep.subr.bf16.mxu0 0
        %8815 = vmatpush1.bf16.msra.mxu0 %v8072
        %8816 = vmatprep.subr.bf16.mxu0 0
        %8817 = vmatpush1.bf16.msra.mxu0 %v8073
        %8818 = vmatprep.mubr.bf16.mxu0 %v6365
        %8819 = vmatmul.mubr.bf16.gmra.mrb[0].mxu0 %v6364
        %v8820 = vpop.f32.mrb[0].mxu0
        %v8821 = vadd.f32 %v8781, %v8820
        %v8822 = vpop.f32.mrb[0].mxu0
        %v8823 = vpop.f32.mrb[0].mxu0
        %v8824 = vpop.f32.mrb[0].mxu0
        %8825 = vdwg.mxu0
        %8826 = vmatprep.subr.bf16.mxu0 0
        %8827 = vmatpush1.bf16.msra.mxu0 %v8074
        %8828 = vmatprep.subr.bf16.mxu0 0
        %8829 = vmatpush1.bf16.msra.mxu0 %v8075
        %8830 = vmatprep.subr.bf16.mxu0 0
        %8831 = vmatpush1.bf16.msra.mxu0 %v8076
        %8832 = vmatprep.subr.bf16.mxu0 0
        %8833 = vmatpush1.bf16.msra.mxu0 %v8077
        %8834 = vmatprep.subr.bf16.mxu0 0
        %8835 = vmatpush1.bf16.msra.mxu0 %v8078
        %8836 = vmatprep.subr.bf16.mxu0 0
        %8837 = vmatpush1.bf16.msra.mxu0 %v8079
        %8838 = vmatprep.subr.bf16.mxu0 0
        %8839 = vmatpush1.bf16.msra.mxu0 %v8080
        %8840 = vmatprep.subr.bf16.mxu0 0
        %8841 = vmatpush1.bf16.msra.mxu0 %v8081
        %8842 = vmatprep.subr.bf16.mxu0 0
        %8843 = vmatpush1.bf16.msra.mxu0 %v8082
        %8844 = vmatprep.subr.bf16.mxu0 0
        %8845 = vmatpush1.bf16.msra.mxu0 %v8083
        %8846 = vmatprep.subr.bf16.mxu0 0
        %8847 = vmatpush1.bf16.msra.mxu0 %v8084
        %8848 = vmatprep.subr.bf16.mxu0 0
        %8849 = vmatpush1.bf16.msra.mxu0 %v8085
        %8850 = vmatprep.subr.bf16.mxu0 0
        %8851 = vmatpush1.bf16.msra.mxu0 %v8086
        %8852 = vmatprep.subr.bf16.mxu0 0
        %8853 = vmatpush1.bf16.msra.mxu0 %v8087
        %8854 = vmatprep.subr.bf16.mxu0 0
        %8855 = vmatpush1.bf16.msra.mxu0 %v8088
        %8856 = vmatprep.subr.bf16.mxu0 0
        %8857 = vmatpush1.bf16.msra.mxu0 %v8089
        %8858 = vmatprep.mubr.bf16.mxu0 %v6367
        %8859 = vmatmul.mubr.bf16.gmra.mrb[0].mxu0 %v6366
        %v8860 = vpop.f32.mrb[0].mxu0
        %v8861 = vadd.f32 %v8821, %v8860
        %v8862 = vpop.f32.mrb[0].mxu0
        %v8863 = vpop.f32.mrb[0].mxu0
        %v8864 = vpop.f32.mrb[0].mxu0
        %8865 = vdwg.mxu0
        %8866 = vmatprep.subr.bf16.mxu0 0
        %8867 = vmatpush1.bf16.msra.mxu0 %v8090
        %8868 = vmatprep.subr.bf16.mxu0 0
        %8869 = vmatpush1.bf16.msra.mxu0 %v8091
        %8870 = vmatprep.subr.bf16.mxu0 0
        %8871 = vmatpush1.bf16.msra.mxu0 %v8092
        %8872 = vmatprep.subr.bf16.mxu0 0
        %8873 = vmatpush1.bf16.msra.mxu0 %v8093
        %8874 = vmatprep.subr.bf16.mxu0 0
        %8875 = vmatpush1.bf16.msra.mxu0 %v8094
        %8876 = vmatprep.subr.bf16.mxu0 0
        %8877 = vmatpush1.bf16.msra.mxu0 %v8095
        %8878 = vmatprep.subr.bf16.mxu0 0
        %8879 = vmatpush1.bf16.msra.mxu0 %v8096
        %8880 = vmatprep.subr.bf16.mxu0 0
        %8881 = vmatpush1.bf16.msra.mxu0 %v8097
        %8882 = vmatprep.subr.bf16.mxu0 0
        %8883 = vmatpush1.bf16.msra.mxu0 %v8098
        %8884 = vmatprep.subr.bf16.mxu0 0
        %8885 = vmatpush1.bf16.msra.mxu0 %v8099
        %8886 = vmatprep.subr.bf16.mxu0 0
        %8887 = vmatpush1.bf16.msra.mxu0 %v8100
        %8888 = vmatprep.subr.bf16.mxu0 0
        %8889 = vmatpush1.bf16.msra.mxu0 %v8101
        %8890 = vmatprep.subr.bf16.mxu0 0
        %8891 = vmatpush1.bf16.msra.mxu0 %v8102
        %8892 = vmatprep.subr.bf16.mxu0 0
        %8893 = vmatpush1.bf16.msra.mxu0 %v8103
        %8894 = vmatprep.subr.bf16.mxu0 0
        %8895 = vmatpush1.bf16.msra.mxu0 %v8104
        %8896 = vmatprep.subr.bf16.mxu0 0
        %8897 = vmatpush1.bf16.msra.mxu0 %v8105
        %8898 = vmatprep.mubr.bf16.mxu0 %v6369
        %8899 = vmatmul.mubr.bf16.gmra.mrb[0].mxu0 %v6368
        %v8900 = vpop.f32.mrb[0].mxu0
        %v8901 = vadd.f32 %v8861, %v8900
        %v8902 = vpop.f32.mrb[0].mxu0
        %v8903 = vpop.f32.mrb[0].mxu0
        %v8904 = vpop.f32.mrb[0].mxu0
        %8905 = vdwg.mxu0
        %8906 = vmatprep.subr.bf16.mxu0 0
        %8907 = vmatpush1.bf16.msra.mxu0 %v8106
        %8908 = vmatprep.subr.bf16.mxu0 0
        %8909 = vmatpush1.bf16.msra.mxu0 %v8107
        %8910 = vmatprep.subr.bf16.mxu0 0
        %8911 = vmatpush1.bf16.msra.mxu0 %v8108
        %8912 = vmatprep.subr.bf16.mxu0 0
        %8913 = vmatpush1.bf16.msra.mxu0 %v8109
        %8914 = vmatprep.subr.bf16.mxu0 0
        %8915 = vmatpush1.bf16.msra.mxu0 %v8110
        %8916 = vmatprep.subr.bf16.mxu0 0
        %8917 = vmatpush1.bf16.msra.mxu0 %v8111
        %8918 = vmatprep.subr.bf16.mxu0 0
        %8919 = vmatpush1.bf16.msra.mxu0 %v8112
        %8920 = vmatprep.subr.bf16.mxu0 0
        %8921 = vmatpush1.bf16.msra.mxu0 %v8113
        %8922 = vmatprep.subr.bf16.mxu0 0
        %8923 = vmatpush1.bf16.msra.mxu0 %v8114
        %8924 = vmatprep.subr.bf16.mxu0 0
        %8925 = vmatpush1.bf16.msra.mxu0 %v8115
        %8926 = vmatprep.subr.bf16.mxu0 0
        %8927 = vmatpush1.bf16.msra.mxu0 %v8116
        %8928 = vmatprep.subr.bf16.mxu0 0
        %8929 = vmatpush1.bf16.msra.mxu0 %v8117
        %8930 = vmatprep.subr.bf16.mxu0 0
        %8931 = vmatpush1.bf16.msra.mxu0 %v8118
        %8932 = vmatprep.subr.bf16.mxu0 0
        %8933 = vmatpush1.bf16.msra.mxu0 %v8119
        %8934 = vmatprep.subr.bf16.mxu0 0
        %8935 = vmatpush1.bf16.msra.mxu0 %v8120
        %8936 = vmatprep.subr.bf16.mxu0 0
        %8937 = vmatpush1.bf16.msra.mxu0 %v8121
        %8938 = vmatprep.mubr.bf16.mxu0 %v6371
        %8939 = vmatmul.mubr.bf16.gmra.mrb[0].mxu0 %v6370
        %v8940 = vpop.f32.mrb[0].mxu0
        %v8941 = vadd.f32 %v8901, %v8940
        %v8942 = vpop.f32.mrb[0].mxu0
        %v8943 = vpop.f32.mrb[0].mxu0
        %v8944 = vpop.f32.mrb[0].mxu0
        %8945 = vdwg.mxu0
        %8946 = vmatprep.subr.bf16.mxu0 0
        %8947 = vmatpush1.bf16.msra.mxu0 %v8122
        %8948 = vmatprep.subr.bf16.mxu0 0
        %8949 = vmatpush1.bf16.msra.mxu0 %v8123
        %8950 = vmatprep.subr.bf16.mxu0 0
        %8951 = vmatpush1.bf16.msra.mxu0 %v8124
        %8952 = vmatprep.subr.bf16.mxu0 0
        %8953 = vmatpush1.bf16.msra.mxu0 %v8125
        %8954 = vmatprep.subr.bf16.mxu0 0
        %8955 = vmatpush1.bf16.msra.mxu0 %v8126
        %8956 = vmatprep.subr.bf16.mxu0 0
        %8957 = vmatpush1.bf16.msra.mxu0 %v8127
        %8958 = vmatprep.subr.bf16.mxu0 0
        %8959 = vmatpush1.bf16.msra.mxu0 %v8128
        %8960 = vmatprep.subr.bf16.mxu0 0
        %8961 = vmatpush1.bf16.msra.mxu0 %v8129
        %8962 = vmatprep.subr.bf16.mxu0 0
        %8963 = vmatpush1.bf16.msra.mxu0 %v8130
        %8964 = vmatprep.subr.bf16.mxu0 0
        %8965 = vmatpush1.bf16.msra.mxu0 %v8131
        %8966 = vmatprep.subr.bf16.mxu0 0
        %8967 = vmatpush1.bf16.msra.mxu0 %v8132
        %8968 = vmatprep.subr.bf16.mxu0 0
        %8969 = vmatpush1.bf16.msra.mxu0 %v8133
        %8970 = vmatprep.subr.bf16.mxu0 0
        %8971 = vmatpush1.bf16.msra.mxu0 %v8134
        %8972 = vmatprep.subr.bf16.mxu0 0
        %8973 = vmatpush1.bf16.msra.mxu0 %v8135
        %8974 = vmatprep.subr.bf16.mxu0 0
        %8975 = vmatpush1.bf16.msra.mxu0 %v8136
        %8976 = vmatprep.subr.bf16.mxu0 0
        %8977 = vmatpush1.bf16.msra.mxu0 %v8137
        %8978 = vmatprep.mubr.bf16.mxu0 %v6373
        %8979 = vmatmul.mubr.bf16.gmra.mrb[0].mxu0 %v6372
        %v8980 = vpop.f32.mrb[0].mxu0
        %v8981 = vadd.f32 %v8941, %v8980
        %v8982 = vpop.f32.mrb[0].mxu0
        %v8983 = vpop.f32.mrb[0].mxu0
        %v8984 = vpop.f32.mrb[0].mxu0
        %8985 = vdwg.mxu0
        %8986 = vmatprep.subr.bf16.mxu0 0
        %8987 = vmatpush1.bf16.msra.mxu0 %v8138
        %8988 = vmatprep.subr.bf16.mxu0 0
        %8989 = vmatpush1.bf16.msra.mxu0 %v8139
        %8990 = vmatprep.subr.bf16.mxu0 0
        %8991 = vmatpush1.bf16.msra.mxu0 %v8140
        %8992 = vmatprep.subr.bf16.mxu0 0
        %8993 = vmatpush1.bf16.msra.mxu0 %v8141
        %8994 = vmatprep.subr.bf16.mxu0 0
        %8995 = vmatpush1.bf16.msra.mxu0 %v8142
        %8996 = vmatprep.subr.bf16.mxu0 0
        %8997 = vmatpush1.bf16.msra.mxu0 %v8143
        %8998 = vmatprep.subr.bf16.mxu0 0
        %8999 = vmatpush1.bf16.msra.mxu0 %v8144
        %9000 = vmatprep.subr.bf16.mxu0 0
        %9001 = vmatpush1.bf16.msra.mxu0 %v8145
        %9002 = vmatprep.subr.bf16.mxu0 0
        %9003 = vmatpush1.bf16.msra.mxu0 %v8146
        %9004 = vmatprep.subr.bf16.mxu0 0
        %9005 = vmatpush1.bf16.msra.mxu0 %v8147
        %9006 = vmatprep.subr.bf16.mxu0 0
        %9007 = vmatpush1.bf16.msra.mxu0 %v8148
        %9008 = vmatprep.subr.bf16.mxu0 0
        %9009 = vmatpush1.bf16.msra.mxu0 %v8149
        %9010 = vmatprep.subr.bf16.mxu0 0
        %9011 = vmatpush1.bf16.msra.mxu0 %v8150
        %9012 = vmatprep.subr.bf16.mxu0 0
        %9013 = vmatpush1.bf16.msra.mxu0 %v8151
        %9014 = vmatprep.subr.bf16.mxu0 0
        %9015 = vmatpush1.bf16.msra.mxu0 %v8152
        %9016 = vmatprep.subr.bf16.mxu0 0
        %9017 = vmatpush1.bf16.msra.mxu0 %v8153
        %9018 = vmatprep.mubr.bf16.mxu0 %v6375
        %9019 = vmatmul.mubr.bf16.gmra.mrb[0].mxu0 %v6374
        %v9020 = vpop.f32.mrb[0].mxu0
        %v9021 = vadd.f32 %v8981, %v9020
        %v9022 = vpop.f32.mrb[0].mxu0
        %v9023 = vpop.f32.mrb[0].mxu0
        %v9024 = vpop.f32.mrb[0].mxu0
        %9025 = vdwg.mxu0
        %9026 = vmatprep.subr.bf16.mxu0 0
        %9027 = vmatpush1.bf16.msra.mxu0 %v8154
        %9028 = vmatprep.subr.bf16.mxu0 0
        %9029 = vmatpush1.bf16.msra.mxu0 %v8155
        %9030 = vmatprep.subr.bf16.mxu0 0
        %9031 = vmatpush1.bf16.msra.mxu0 %v8156
        %9032 = vmatprep.subr.bf16.mxu0 0
        %9033 = vmatpush1.bf16.msra.mxu0 %v8157
        %9034 = vmatprep.subr.bf16.mxu0 0
        %9035 = vmatpush1.bf16.msra.mxu0 %v8158
        %9036 = vmatprep.subr.bf16.mxu0 0
        %9037 = vmatpush1.bf16.msra.mxu0 %v8159
        %9038 = vmatprep.subr.bf16.mxu0 0
        %9039 = vmatpush1.bf16.msra.mxu0 %v8160
        %9040 = vmatprep.subr.bf16.mxu0 0
        %9041 = vmatpush1.bf16.msra.mxu0 %v8161
        %9042 = vmatprep.subr.bf16.mxu0 0
        %9043 = vmatpush1.bf16.msra.mxu0 %v8162
        %9044 = vmatprep.subr.bf16.mxu0 0
        %9045 = vmatpush1.bf16.msra.mxu0 %v8163
        %9046 = vmatprep.subr.bf16.mxu0 0
        %9047 = vmatpush1.bf16.msra.mxu0 %v8164
        %9048 = vmatprep.subr.bf16.mxu0 0
        %9049 = vmatpush1.bf16.msra.mxu0 %v8165
        %9050 = vmatprep.subr.bf16.mxu0 0
        %9051 = vmatpush1.bf16.msra.mxu0 %v8166
        %9052 = vmatprep.subr.bf16.mxu0 0
        %9053 = vmatpush1.bf16.msra.mxu0 %v8167
        %9054 = vmatprep.subr.bf16.mxu0 0
        %9055 = vmatpush1.bf16.msra.mxu0 %v8168
        %9056 = vmatprep.subr.bf16.mxu0 0
        %9057 = vmatpush1.bf16.msra.mxu0 %v8169
        %9058 = vmatprep.mubr.bf16.mxu0 %v6377
        %9059 = vmatmul.mubr.bf16.gmra.mrb[0].mxu0 %v6376
        %v9060 = vpop.f32.mrb[0].mxu0
        %v9061 = vadd.f32 %v9021, %v9060
        %v9062 = vpop.f32.mrb[0].mxu0
        %v9063 = vpop.f32.mrb[0].mxu0
        %v9064 = vpop.f32.mrb[0].mxu0
        %9065 = vdwg.mxu0
        %v9066 = vmul.f32 %v9061, 0.00390625
        %v9067 = vld [vmem:[#allocation14] sm:$0x1]
        %v9069 = vlaneseq
        %v9070 = vshrl.u32 %v9069, 7
        %v9071 = vsub.s32 0, %v9070
        %v9072 = vrot.slane %v9067, %v9071
        %v9074 = vadd.f32 %v9066, %v9072
        %v9075 = vmax.f32 %v9074, 0.0
        %v9076 = vld [vmem:[%s12 + $0x80] sm:$0xff]
        %v9077 = vld [vmem:[%s12 + $0x88] sm:$0xff]
        %v9078 = vld [vmem:[%s12 + $0x90] sm:$0xff]
        %v9079 = vld [vmem:[%s12 + $0x98] sm:$0xff]
        %v9080 = vld [vmem:[%s12 + $0xa0] sm:$0xff]
        %v9081 = vld [vmem:[%s12 + $0xa8] sm:$0xff]
        %v9082 = vld [vmem:[%s12 + $0xb0] sm:$0xff]
        %v9083 = vld [vmem:[%s12 + $0xb8] sm:$0xff]
        %v9084 = vld [vmem:[%s12 + $0xc0] sm:$0xff]
        %v9085 = vld [vmem:[%s12 + $0xc8] sm:$0xff]
        %v9086 = vld [vmem:[%s12 + $0xd0] sm:$0xff]
        %v9087 = vld [vmem:[%s12 + $0xd8] sm:$0xff]
        %v9088 = vld [vmem:[%s12 + $0xe0] sm:$0xff]
        %v9089 = vld [vmem:[%s12 + $0xe8] sm:$0xff]
        %v9090 = vld [vmem:[%s12 + $0xf0] sm:$0xff]
        %v9091 = vld [vmem:[%s12 + $0xf8] sm:$0xff]
        %9092 = vmatprep.subr.mxu0 0.0
        %9093 = vmatpush1.msra.mxu0 %v9076
        %9094 = vmatprep.subr.mxu0 0.0
        %9095 = vmatpush1.msra.mxu0 %v9077
        %9096 = vmatprep.subr.mxu0 0.0
        %9097 = vmatpush1.msra.mxu0 %v9078
        %9098 = vmatprep.subr.mxu0 0.0
        %9099 = vmatpush1.msra.mxu0 %v9079
        %9100 = vmatprep.subr.mxu0 0.0
        %9101 = vmatpush1.msra.mxu0 %v9080
        %9102 = vmatprep.subr.mxu0 0.0
        %9103 = vmatpush1.msra.mxu0 %v9081
        %9104 = vmatprep.subr.mxu0 0.0
        %9105 = vmatpush1.msra.mxu0 %v9082
        %9106 = vmatprep.subr.mxu0 0.0
        %9107 = vmatpush1.msra.mxu0 %v9083
        %9108 = vmatprep.subr.mxu0 0.0
        %9109 = vmatpush1.msra.mxu0 %v9084
        %9110 = vmatprep.subr.mxu0 0.0
        %9111 = vmatpush1.msra.mxu0 %v9085
        %9112 = vmatprep.subr.mxu0 0.0
        %9113 = vmatpush1.msra.mxu0 %v9086
        %9114 = vmatprep.subr.mxu0 0.0
        %9115 = vmatpush1.msra.mxu0 %v9087
        %9116 = vmatprep.subr.mxu0 0.0
        %9117 = vmatpush1.msra.mxu0 %v9088
        %9118 = vmatprep.subr.mxu0 0.0
        %9119 = vmatpush1.msra.mxu0 %v9089
        %9120 = vmatprep.subr.mxu0 0.0
        %9121 = vmatpush1.msra.mxu0 %v9090
        %9122 = vmatprep.subr.mxu0 0.0
        %9123 = vmatpush1.msra.mxu0 %v9091
        %9124 = vmatprep.subr.mxu0 0.0
        %9125 = vmatpush1.msra.mxu0 0.0
        %9126 = vmatprep.subr.mxu0 0.0
        %9127 = vmatpush1.msra.mxu0 0.0
        %9128 = vmatprep.subr.mxu0 0.0
        %9129 = vmatpush1.msra.mxu0 0.0
        %9130 = vmatprep.subr.mxu0 0.0
        %9131 = vmatpush1.msra.mxu0 0.0
        %9132 = vmatprep.subr.mxu0 0.0
        %9133 = vmatpush1.msra.mxu0 0.0
        %9134 = vmatprep.subr.mxu0 0.0
        %9135 = vmatpush1.msra.mxu0 0.0
        %9136 = vmatprep.subr.mxu0 0.0
        %9137 = vmatpush1.msra.mxu0 0.0
        %9138 = vmatprep.subr.mxu0 0.0
        %9139 = vmatpush1.msra.mxu0 0.0
        %9140 = vmatprep.subr.mxu0 0.0
        %9141 = vmatpush1.msra.mxu0 0.0
        %9142 = vmatprep.subr.mxu0 0.0
        %9143 = vmatpush1.msra.mxu0 0.0
        %9144 = vmatprep.subr.mxu0 0.0
        %9145 = vmatpush1.msra.mxu0 0.0
        %9146 = vmatprep.subr.mxu0 0.0
        %9147 = vmatpush1.msra.mxu0 0.0
        %9148 = vmatprep.subr.mxu0 0.0
        %9149 = vmatpush1.msra.mxu0 0.0
        %9150 = vmatprep.subr.mxu0 0.0
        %9151 = vmatpush1.msra.mxu0 0.0
        %9152 = vmatprep.subr.mxu0 0.0
        %9153 = vmatpush1.msra.mxu0 0.0
        %9154 = vmatprep.subr.mxu0 0.0
        %9155 = vmatpush1.msra.mxu0 0.0
        %9156 = vmatprep.mubr.f32.mxu0 0.0
        %9157 = vmatmul.mubr.f32.gmra.mrb[0].mxu0 %v9075
        %v9158 = vpop.f32.mrb[0].mxu0
        %v9159 = vadd.f32 0.0, %v9158
        %v9160 = vpop.f32.mrb[0].mxu0
        %9161 = vdwg.mxu0
        %v9162 = vadd.f32 %v6313, %v9159
        %v9163 = vld [vmem:[%s601] sm:$0xff]
        %v9164 = vld [vmem:[%s601 + $0x8] sm:$0xff]
        %v9165 = vld [vmem:[%s601 + $0x10] sm:$0xff]
        %v9166 = vld [vmem:[%s601 + $0x18] sm:$0xff]
        %v9167 = vld [vmem:[%s601 + $0x20] sm:$0xff]
        %v9168 = vld [vmem:[%s601 + $0x28] sm:$0xff]
        %v9169 = vld [vmem:[%s601 + $0x30] sm:$0xff]
        %v9170 = vld [vmem:[%s601 + $0x38] sm:$0xff]
        %v9171 = vld [vmem:[%s601 + $0x40] sm:$0xff]
        %v9172 = vld [vmem:[%s601 + $0x48] sm:$0xff]
        %v9173 = vld [vmem:[%s601 + $0x50] sm:$0xff]
        %v9174 = vld [vmem:[%s601 + $0x58] sm:$0xff]
        %v9175 = vld [vmem:[%s601 + $0x60] sm:$0xff]
        %v9176 = vld [vmem:[%s601 + $0x68] sm:$0xff]
        %v9177 = vld [vmem:[%s601 + $0x70] sm:$0xff]
        %v9178 = vld [vmem:[%s601 + $0x78] sm:$0xff]
        %v9179 = vpack.c.bf16 %v9163, %v9163
        %v9180 = vpack.c.bf16 %v9164, %v9164
        %v9181 = vpack.c.bf16 %v9165, %v9165
        %v9182 = vpack.c.bf16 %v9166, %v9166
        %v9183 = vpack.c.bf16 %v9167, %v9167
        %v9184 = vpack.c.bf16 %v9168, %v9168
        %v9185 = vpack.c.bf16 %v9169, %v9169
        %v9186 = vpack.c.bf16 %v9170, %v9170
        %v9187 = vpack.c.bf16 %v9171, %v9171
        %v9188 = vpack.c.bf16 %v9172, %v9172
        %v9189 = vpack.c.bf16 %v9173, %v9173
        %v9190 = vpack.c.bf16 %v9174, %v9174
        %v9191 = vpack.c.bf16 %v9175, %v9175
        %v9192 = vpack.c.bf16 %v9176, %v9176
        %v9193 = vpack.c.bf16 %v9177, %v9177
        %v9194 = vpack.c.bf16 %v9178, %v9178
        %v9195 = vld [vmem:[#allocation16] sm:$0xf]
        %v9196 = vld [vmem:[#allocation16 + $0x4] sm:$0xf]
        %v9197 = vld [vmem:[#allocation16 + $0x8] sm:$0xf]
        %v9198 = vld [vmem:[#allocation16 + $0xc] sm:$0xf]
        %v9199 = vld [vmem:[#allocation16 + $0x10] sm:$0xf]
        %v9200 = vld [vmem:[#allocation16 + $0x14] sm:$0xf]
        %v9201 = vld [vmem:[#allocation16 + $0x18] sm:$0xf]
        %v9202 = vld [vmem:[#allocation16 + $0x1c] sm:$0xf]
        %v9203 = vld [vmem:[#allocation16 + $0x20] sm:$0xf]
        %v9204 = vld [vmem:[#allocation16 + $0x24] sm:$0xf]
        %v9205 = vld [vmem:[#allocation16 + $0x28] sm:$0xf]
        %v9206 = vld [vmem:[#allocation16 + $0x2c] sm:$0xf]
        %v9207 = vld [vmem:[#allocation16 + $0x30] sm:$0xf]
        %v9208 = vld [vmem:[#allocation16 + $0x34] sm:$0xf]
        %v9209 = vld [vmem:[#allocation16 + $0x38] sm:$0xf]
        %v9210 = vld [vmem:[#allocation16 + $0x3c] sm:$0xf]
        %v9211 = vld [vmem:[#allocation16 + $0x40] sm:$0xf]
        %v9212 = vld [vmem:[#allocation16 + $0x44] sm:$0xf]
        %v9213 = vld [vmem:[#allocation16 + $0x48] sm:$0xf]
        %v9214 = vld [vmem:[#allocation16 + $0x4c] sm:$0xf]
        %v9215 = vld [vmem:[#allocation16 + $0x50] sm:$0xf]
        %v9216 = vld [vmem:[#allocation16 + $0x54] sm:$0xf]
        %v9217 = vld [vmem:[#allocation16 + $0x58] sm:$0xf]
        %v9218 = vld [vmem:[#allocation16 + $0x5c] sm:$0xf]
        %v9219 = vld [vmem:[#allocation16 + $0x60] sm:$0xf]
        %v9220 = vld [vmem:[#allocation16 + $0x64] sm:$0xf]
        %v9221 = vld [vmem:[#allocation16 + $0x68] sm:$0xf]
        %v9222 = vld [vmem:[#allocation16 + $0x6c] sm:$0xf]
        %v9223 = vld [vmem:[#allocation16 + $0x70] sm:$0xf]
        %v9224 = vld [vmem:[#allocation16 + $0x74] sm:$0xf]
        %v9225 = vld [vmem:[#allocation16 + $0x78] sm:$0xf]
        %v9226 = vld [vmem:[#allocation16 + $0x7c] sm:$0xf]
        %v9227 = vld [vmem:[#allocation16 + $0x80] sm:$0xf]
        %v9228 = vld [vmem:[#allocation16 + $0x84] sm:$0xf]
        %v9229 = vld [vmem:[#allocation16 + $0x88] sm:$0xf]
        %v9230 = vld [vmem:[#allocation16 + $0x8c] sm:$0xf]
        %v9231 = vld [vmem:[#allocation16 + $0x90] sm:$0xf]
        %v9232 = vld [vmem:[#allocation16 + $0x94] sm:$0xf]
        %v9233 = vld [vmem:[#allocation16 + $0x98] sm:$0xf]
        %v9234 = vld [vmem:[#allocation16 + $0x9c] sm:$0xf]
        %v9235 = vld [vmem:[#allocation16 + $0xa0] sm:$0xf]
        %v9236 = vld [vmem:[#allocation16 + $0xa4] sm:$0xf]
        %v9237 = vld [vmem:[#allocation16 + $0xa8] sm:$0xf]
        %v9238 = vld [vmem:[#allocation16 + $0xac] sm:$0xf]
        %v9239 = vld [vmem:[#allocation16 + $0xb0] sm:$0xf]
        %v9240 = vld [vmem:[#allocation16 + $0xb4] sm:$0xf]
        %v9241 = vld [vmem:[#allocation16 + $0xb8] sm:$0xf]
        %v9242 = vld [vmem:[#allocation16 + $0xbc] sm:$0xf]
        %v9243 = vld [vmem:[#allocation16 + $0xc0] sm:$0xf]
        %v9244 = vld [vmem:[#allocation16 + $0xc4] sm:$0xf]
        %v9245 = vld [vmem:[#allocation16 + $0xc8] sm:$0xf]
        %v9246 = vld [vmem:[#allocation16 + $0xcc] sm:$0xf]
        %v9247 = vld [vmem:[#allocation16 + $0xd0] sm:$0xf]
        %v9248 = vld [vmem:[#allocation16 + $0xd4] sm:$0xf]
        %v9249 = vld [vmem:[#allocation16 + $0xd8] sm:$0xf]
        %v9250 = vld [vmem:[#allocation16 + $0xdc] sm:$0xf]
        %v9251 = vld [vmem:[#allocation16 + $0xe0] sm:$0xf]
        %v9252 = vld [vmem:[#allocation16 + $0xe4] sm:$0xf]
        %v9253 = vld [vmem:[#allocation16 + $0xe8] sm:$0xf]
        %v9254 = vld [vmem:[#allocation16 + $0xec] sm:$0xf]
        %v9255 = vld [vmem:[#allocation16 + $0xf0] sm:$0xf]
        %v9256 = vld [vmem:[#allocation16 + $0xf4] sm:$0xf]
        %v9257 = vld [vmem:[#allocation16 + $0xf8] sm:$0xf]
        %v9258 = vld [vmem:[#allocation16 + $0xfc] sm:$0xf]
        %v9259 = vld [vmem:[#allocation16 + $0x100] sm:$0xf]
        %v9260 = vld [vmem:[#allocation16 + $0x104] sm:$0xf]
        %v9261 = vld [vmem:[#allocation16 + $0x108] sm:$0xf]
        %v9262 = vld [vmem:[#allocation16 + $0x10c] sm:$0xf]
        %v9263 = vld [vmem:[#allocation16 + $0x110] sm:$0xf]
        %v9264 = vld [vmem:[#allocation16 + $0x114] sm:$0xf]
        %v9265 = vld [vmem:[#allocation16 + $0x118] sm:$0xf]
        %v9266 = vld [vmem:[#allocation16 + $0x11c] sm:$0xf]
        %v9267 = vld [vmem:[#allocation16 + $0x120] sm:$0xf]
        %v9268 = vld [vmem:[#allocation16 + $0x124] sm:$0xf]
        %v9269 = vld [vmem:[#allocation16 + $0x128] sm:$0xf]
        %v9270 = vld [vmem:[#allocation16 + $0x12c] sm:$0xf]
        %v9271 = vld [vmem:[#allocation16 + $0x130] sm:$0xf]
        %v9272 = vld [vmem:[#allocation16 + $0x134] sm:$0xf]
        %v9273 = vld [vmem:[#allocation16 + $0x138] sm:$0xf]
        %v9274 = vld [vmem:[#allocation16 + $0x13c] sm:$0xf]
        %v9275 = vld [vmem:[#allocation16 + $0x140] sm:$0xf]
        %v9276 = vld [vmem:[#allocation16 + $0x144] sm:$0xf]
        %v9277 = vld [vmem:[#allocation16 + $0x148] sm:$0xf]
        %v9278 = vld [vmem:[#allocation16 + $0x14c] sm:$0xf]
        %v9279 = vld [vmem:[#allocation16 + $0x150] sm:$0xf]
        %v9280 = vld [vmem:[#allocation16 + $0x154] sm:$0xf]
        %v9281 = vld [vmem:[#allocation16 + $0x158] sm:$0xf]
        %v9282 = vld [vmem:[#allocation16 + $0x15c] sm:$0xf]
        %v9283 = vld [vmem:[#allocation16 + $0x160] sm:$0xf]
        %v9284 = vld [vmem:[#allocation16 + $0x164] sm:$0xf]
        %v9285 = vld [vmem:[#allocation16 + $0x168] sm:$0xf]
        %v9286 = vld [vmem:[#allocation16 + $0x16c] sm:$0xf]
        %v9287 = vld [vmem:[#allocation16 + $0x170] sm:$0xf]
        %v9288 = vld [vmem:[#allocation16 + $0x174] sm:$0xf]
        %v9289 = vld [vmem:[#allocation16 + $0x178] sm:$0xf]
        %v9290 = vld [vmem:[#allocation16 + $0x17c] sm:$0xf]
        %v9291 = vld [vmem:[#allocation16 + $0x180] sm:$0xf]
        %v9292 = vld [vmem:[#allocation16 + $0x184] sm:$0xf]
        %v9293 = vld [vmem:[#allocation16 + $0x188] sm:$0xf]
        %v9294 = vld [vmem:[#allocation16 + $0x18c] sm:$0xf]
        %v9295 = vld [vmem:[#allocation16 + $0x190] sm:$0xf]
        %v9296 = vld [vmem:[#allocation16 + $0x194] sm:$0xf]
        %v9297 = vld [vmem:[#allocation16 + $0x198] sm:$0xf]
        %v9298 = vld [vmem:[#allocation16 + $0x19c] sm:$0xf]
        %v9299 = vld [vmem:[#allocation16 + $0x1a0] sm:$0xf]
        %v9300 = vld [vmem:[#allocation16 + $0x1a4] sm:$0xf]
        %v9301 = vld [vmem:[#allocation16 + $0x1a8] sm:$0xf]
        %v9302 = vld [vmem:[#allocation16 + $0x1ac] sm:$0xf]
        %v9303 = vld [vmem:[#allocation16 + $0x1b0] sm:$0xf]
        %v9304 = vld [vmem:[#allocation16 + $0x1b4] sm:$0xf]
        %v9305 = vld [vmem:[#allocation16 + $0x1b8] sm:$0xf]
        %v9306 = vld [vmem:[#allocation16 + $0x1bc] sm:$0xf]
        %v9307 = vld [vmem:[#allocation16 + $0x1c0] sm:$0xf]
        %v9308 = vld [vmem:[#allocation16 + $0x1c4] sm:$0xf]
        %v9309 = vld [vmem:[#allocation16 + $0x1c8] sm:$0xf]
        %v9310 = vld [vmem:[#allocation16 + $0x1cc] sm:$0xf]
        %v9311 = vld [vmem:[#allocation16 + $0x1d0] sm:$0xf]
        %v9312 = vld [vmem:[#allocation16 + $0x1d4] sm:$0xf]
        %v9313 = vld [vmem:[#allocation16 + $0x1d8] sm:$0xf]
        %v9314 = vld [vmem:[#allocation16 + $0x1dc] sm:$0xf]
        %v9315 = vld [vmem:[#allocation16 + $0x1e0] sm:$0xf]
        %v9316 = vld [vmem:[#allocation16 + $0x1e4] sm:$0xf]
        %v9317 = vld [vmem:[#allocation16 + $0x1e8] sm:$0xf]
        %v9318 = vld [vmem:[#allocation16 + $0x1ec] sm:$0xf]
        %v9319 = vld [vmem:[#allocation16 + $0x1f0] sm:$0xf]
        %v9320 = vld [vmem:[#allocation16 + $0x1f4] sm:$0xf]
        %v9321 = vld [vmem:[#allocation16 + $0x1f8] sm:$0xf]
        %v9322 = vld [vmem:[#allocation16 + $0x1fc] sm:$0xf]
        %v9323 = vld [vmem:[#allocation16 + $0x200] sm:$0xf]
        %v9324 = vld [vmem:[#allocation16 + $0x204] sm:$0xf]
        %v9325 = vld [vmem:[#allocation16 + $0x208] sm:$0xf]
        %v9326 = vld [vmem:[#allocation16 + $0x20c] sm:$0xf]
        %v9327 = vld [vmem:[#allocation16 + $0x210] sm:$0xf]
        %v9328 = vld [vmem:[#allocation16 + $0x214] sm:$0xf]
        %v9329 = vld [vmem:[#allocation16 + $0x218] sm:$0xf]
        %v9330 = vld [vmem:[#allocation16 + $0x21c] sm:$0xf]
        %v9331 = vld [vmem:[#allocation16 + $0x220] sm:$0xf]
        %v9332 = vld [vmem:[#allocation16 + $0x224] sm:$0xf]
        %v9333 = vld [vmem:[#allocation16 + $0x228] sm:$0xf]
        %v9334 = vld [vmem:[#allocation16 + $0x22c] sm:$0xf]
        %v9335 = vld [vmem:[#allocation16 + $0x230] sm:$0xf]
        %v9336 = vld [vmem:[#allocation16 + $0x234] sm:$0xf]
        %v9337 = vld [vmem:[#allocation16 + $0x238] sm:$0xf]
        %v9338 = vld [vmem:[#allocation16 + $0x23c] sm:$0xf]
        %v9339 = vld [vmem:[#allocation16 + $0x240] sm:$0xf]
        %v9340 = vld [vmem:[#allocation16 + $0x244] sm:$0xf]
        %v9341 = vld [vmem:[#allocation16 + $0x248] sm:$0xf]
        %v9342 = vld [vmem:[#allocation16 + $0x24c] sm:$0xf]
        %v9343 = vld [vmem:[#allocation16 + $0x250] sm:$0xf]
        %v9344 = vld [vmem:[#allocation16 + $0x254] sm:$0xf]
        %v9345 = vld [vmem:[#allocation16 + $0x258] sm:$0xf]
        %v9346 = vld [vmem:[#allocation16 + $0x25c] sm:$0xf]
        %v9347 = vld [vmem:[#allocation16 + $0x260] sm:$0xf]
        %v9348 = vld [vmem:[#allocation16 + $0x264] sm:$0xf]
        %v9349 = vld [vmem:[#allocation16 + $0x268] sm:$0xf]
        %v9350 = vld [vmem:[#allocation16 + $0x26c] sm:$0xf]
        %v9351 = vld [vmem:[#allocation16 + $0x270] sm:$0xf]
        %v9352 = vld [vmem:[#allocation16 + $0x274] sm:$0xf]
        %v9353 = vld [vmem:[#allocation16 + $0x278] sm:$0xf]
        %v9354 = vld [vmem:[#allocation16 + $0x27c] sm:$0xf]
        %v9355 = vld [vmem:[#allocation16 + $0x280] sm:$0xf]
        %v9356 = vld [vmem:[#allocation16 + $0x284] sm:$0xf]
        %v9357 = vld [vmem:[#allocation16 + $0x288] sm:$0xf]
        %v9358 = vld [vmem:[#allocation16 + $0x28c] sm:$0xf]
        %v9359 = vld [vmem:[#allocation16 + $0x290] sm:$0xf]
        %v9360 = vld [vmem:[#allocation16 + $0x294] sm:$0xf]
        %v9361 = vld [vmem:[#allocation16 + $0x298] sm:$0xf]
        %v9362 = vld [vmem:[#allocation16 + $0x29c] sm:$0xf]
        %v9363 = vld [vmem:[#allocation16 + $0x2a0] sm:$0xf]
        %v9364 = vld [vmem:[#allocation16 + $0x2a4] sm:$0xf]
        %v9365 = vld [vmem:[#allocation16 + $0x2a8] sm:$0xf]
        %v9366 = vld [vmem:[#allocation16 + $0x2ac] sm:$0xf]
        %v9367 = vld [vmem:[#allocation16 + $0x2b0] sm:$0xf]
        %v9368 = vld [vmem:[#allocation16 + $0x2b4] sm:$0xf]
        %v9369 = vld [vmem:[#allocation16 + $0x2b8] sm:$0xf]
        %v9370 = vld [vmem:[#allocation16 + $0x2bc] sm:$0xf]
        %v9371 = vld [vmem:[#allocation16 + $0x2c0] sm:$0xf]
        %v9372 = vld [vmem:[#allocation16 + $0x2c4] sm:$0xf]
        %v9373 = vld [vmem:[#allocation16 + $0x2c8] sm:$0xf]
        %v9374 = vld [vmem:[#allocation16 + $0x2cc] sm:$0xf]
        %v9375 = vld [vmem:[#allocation16 + $0x2d0] sm:$0xf]
        %v9376 = vld [vmem:[#allocation16 + $0x2d4] sm:$0xf]
        %v9377 = vld [vmem:[#allocation16 + $0x2d8] sm:$0xf]
        %v9378 = vld [vmem:[#allocation16 + $0x2dc] sm:$0xf]
        %v9379 = vld [vmem:[#allocation16 + $0x2e0] sm:$0xf]
        %v9380 = vld [vmem:[#allocation16 + $0x2e4] sm:$0xf]
        %v9381 = vld [vmem:[#allocation16 + $0x2e8] sm:$0xf]
        %v9382 = vld [vmem:[#allocation16 + $0x2ec] sm:$0xf]
        %v9383 = vld [vmem:[#allocation16 + $0x2f0] sm:$0xf]
        %v9384 = vld [vmem:[#allocation16 + $0x2f4] sm:$0xf]
        %v9385 = vld [vmem:[#allocation16 + $0x2f8] sm:$0xf]
        %v9386 = vld [vmem:[#allocation16 + $0x2fc] sm:$0xf]
        %v9387 = vld [vmem:[#allocation16 + $0x300] sm:$0xf]
        %v9388 = vld [vmem:[#allocation16 + $0x304] sm:$0xf]
        %v9389 = vld [vmem:[#allocation16 + $0x308] sm:$0xf]
        %v9390 = vld [vmem:[#allocation16 + $0x30c] sm:$0xf]
        %v9391 = vld [vmem:[#allocation16 + $0x310] sm:$0xf]
        %v9392 = vld [vmem:[#allocation16 + $0x314] sm:$0xf]
        %v9393 = vld [vmem:[#allocation16 + $0x318] sm:$0xf]
        %v9394 = vld [vmem:[#allocation16 + $0x31c] sm:$0xf]
        %v9395 = vld [vmem:[#allocation16 + $0x320] sm:$0xf]
        %v9396 = vld [vmem:[#allocation16 + $0x324] sm:$0xf]
        %v9397 = vld [vmem:[#allocation16 + $0x328] sm:$0xf]
        %v9398 = vld [vmem:[#allocation16 + $0x32c] sm:$0xf]
        %v9399 = vld [vmem:[#allocation16 + $0x330] sm:$0xf]
        %v9400 = vld [vmem:[#allocation16 + $0x334] sm:$0xf]
        %v9401 = vld [vmem:[#allocation16 + $0x338] sm:$0xf]
        %v9402 = vld [vmem:[#allocation16 + $0x33c] sm:$0xf]
        %v9403 = vld [vmem:[#allocation16 + $0x340] sm:$0xf]
        %v9404 = vld [vmem:[#allocation16 + $0x344] sm:$0xf]
        %v9405 = vld [vmem:[#allocation16 + $0x348] sm:$0xf]
        %v9406 = vld [vmem:[#allocation16 + $0x34c] sm:$0xf]
        %v9407 = vld [vmem:[#allocation16 + $0x350] sm:$0xf]
        %v9408 = vld [vmem:[#allocation16 + $0x354] sm:$0xf]
        %v9409 = vld [vmem:[#allocation16 + $0x358] sm:$0xf]
        %v9410 = vld [vmem:[#allocation16 + $0x35c] sm:$0xf]
        %v9411 = vld [vmem:[#allocation16 + $0x360] sm:$0xf]
        %v9412 = vld [vmem:[#allocation16 + $0x364] sm:$0xf]
        %v9413 = vld [vmem:[#allocation16 + $0x368] sm:$0xf]
        %v9414 = vld [vmem:[#allocation16 + $0x36c] sm:$0xf]
        %v9415 = vld [vmem:[#allocation16 + $0x370] sm:$0xf]
        %v9416 = vld [vmem:[#allocation16 + $0x374] sm:$0xf]
        %v9417 = vld [vmem:[#allocation16 + $0x378] sm:$0xf]
        %v9418 = vld [vmem:[#allocation16 + $0x37c] sm:$0xf]
        %v9419 = vld [vmem:[#allocation16 + $0x380] sm:$0xf]
        %v9420 = vld [vmem:[#allocation16 + $0x384] sm:$0xf]
        %v9421 = vld [vmem:[#allocation16 + $0x388] sm:$0xf]
        %v9422 = vld [vmem:[#allocation16 + $0x38c] sm:$0xf]
        %v9423 = vld [vmem:[#allocation16 + $0x390] sm:$0xf]
        %v9424 = vld [vmem:[#allocation16 + $0x394] sm:$0xf]
        %v9425 = vld [vmem:[#allocation16 + $0x398] sm:$0xf]
        %v9426 = vld [vmem:[#allocation16 + $0x39c] sm:$0xf]
        %v9427 = vld [vmem:[#allocation16 + $0x3a0] sm:$0xf]
        %v9428 = vld [vmem:[#allocation16 + $0x3a4] sm:$0xf]
        %v9429 = vld [vmem:[#allocation16 + $0x3a8] sm:$0xf]
        %v9430 = vld [vmem:[#allocation16 + $0x3ac] sm:$0xf]
        %v9431 = vld [vmem:[#allocation16 + $0x3b0] sm:$0xf]
        %v9432 = vld [vmem:[#allocation16 + $0x3b4] sm:$0xf]
        %v9433 = vld [vmem:[#allocation16 + $0x3b8] sm:$0xf]
        %v9434 = vld [vmem:[#allocation16 + $0x3bc] sm:$0xf]
        %v9435 = vld [vmem:[#allocation16 + $0x3c0] sm:$0xf]
        %v9436 = vld [vmem:[#allocation16 + $0x3c4] sm:$0xf]
        %v9437 = vld [vmem:[#allocation16 + $0x3c8] sm:$0xf]
        %v9438 = vld [vmem:[#allocation16 + $0x3cc] sm:$0xf]
        %v9439 = vld [vmem:[#allocation16 + $0x3d0] sm:$0xf]
        %v9440 = vld [vmem:[#allocation16 + $0x3d4] sm:$0xf]
        %v9441 = vld [vmem:[#allocation16 + $0x3d8] sm:$0xf]
        %v9442 = vld [vmem:[#allocation16 + $0x3dc] sm:$0xf]
        %v9443 = vld [vmem:[#allocation16 + $0x3e0] sm:$0xf]
        %v9444 = vld [vmem:[#allocation16 + $0x3e4] sm:$0xf]
        %v9445 = vld [vmem:[#allocation16 + $0x3e8] sm:$0xf]
        %v9446 = vld [vmem:[#allocation16 + $0x3ec] sm:$0xf]
        %v9447 = vld [vmem:[#allocation16 + $0x3f0] sm:$0xf]
        %v9448 = vld [vmem:[#allocation16 + $0x3f4] sm:$0xf]
        %v9449 = vld [vmem:[#allocation16 + $0x3f8] sm:$0xf]
        %v9450 = vld [vmem:[#allocation16 + $0x3fc] sm:$0xf]
        %v9707 = vunpack.c.l.b16 %v9195
        %v9708 = vunpack.c.l.b16 %v9196
        %v9709 = vunpack.c.l.b16 %v9197
        %v9710 = vunpack.c.l.b16 %v9198
        %v9711 = vunpack.c.l.b16 %v9199
        %v9712 = vunpack.c.l.b16 %v9200
        %v9713 = vunpack.c.l.b16 %v9201
        %v9714 = vunpack.c.l.b16 %v9202
        %v9715 = vunpack.c.l.b16 %v9203
        %v9716 = vunpack.c.l.b16 %v9204
        %v9717 = vunpack.c.l.b16 %v9205
        %v9718 = vunpack.c.l.b16 %v9206
        %v9719 = vunpack.c.l.b16 %v9207
        %v9720 = vunpack.c.l.b16 %v9208
        %v9721 = vunpack.c.l.b16 %v9209
        %v9722 = vunpack.c.l.b16 %v9210
        %v9723 = vunpack.c.l.b16 %v9211
        %v9724 = vunpack.c.l.b16 %v9212
        %v9725 = vunpack.c.l.b16 %v9213
        %v9726 = vunpack.c.l.b16 %v9214
        %v9727 = vunpack.c.l.b16 %v9215
        %v9728 = vunpack.c.l.b16 %v9216
        %v9729 = vunpack.c.l.b16 %v9217
        %v9730 = vunpack.c.l.b16 %v9218
        %v9731 = vunpack.c.l.b16 %v9219
        %v9732 = vunpack.c.l.b16 %v9220
        %v9733 = vunpack.c.l.b16 %v9221
        %v9734 = vunpack.c.l.b16 %v9222
        %v9735 = vunpack.c.l.b16 %v9223
        %v9736 = vunpack.c.l.b16 %v9224
        %v9737 = vunpack.c.l.b16 %v9225
        %v9738 = vunpack.c.l.b16 %v9226
        %v9739 = vunpack.c.l.b16 %v9227
        %v9740 = vunpack.c.l.b16 %v9228
        %v9741 = vunpack.c.l.b16 %v9229
        %v9742 = vunpack.c.l.b16 %v9230
        %v9743 = vunpack.c.l.b16 %v9231
        %v9744 = vunpack.c.l.b16 %v9232
        %v9745 = vunpack.c.l.b16 %v9233
        %v9746 = vunpack.c.l.b16 %v9234
        %v9747 = vunpack.c.l.b16 %v9235
        %v9748 = vunpack.c.l.b16 %v9236
        %v9749 = vunpack.c.l.b16 %v9237
        %v9750 = vunpack.c.l.b16 %v9238
        %v9751 = vunpack.c.l.b16 %v9239
        %v9752 = vunpack.c.l.b16 %v9240
        %v9753 = vunpack.c.l.b16 %v9241
        %v9754 = vunpack.c.l.b16 %v9242
        %v9755 = vunpack.c.l.b16 %v9243
        %v9756 = vunpack.c.l.b16 %v9244
        %v9757 = vunpack.c.l.b16 %v9245
        %v9758 = vunpack.c.l.b16 %v9246
        %v9759 = vunpack.c.l.b16 %v9247
        %v9760 = vunpack.c.l.b16 %v9248
        %v9761 = vunpack.c.l.b16 %v9249
        %v9762 = vunpack.c.l.b16 %v9250
        %v9763 = vunpack.c.l.b16 %v9251
        %v9764 = vunpack.c.l.b16 %v9252
        %v9765 = vunpack.c.l.b16 %v9253
        %v9766 = vunpack.c.l.b16 %v9254
        %v9767 = vunpack.c.l.b16 %v9255
        %v9768 = vunpack.c.l.b16 %v9256
        %v9769 = vunpack.c.l.b16 %v9257
        %v9770 = vunpack.c.l.b16 %v9258
        %v9771 = vunpack.c.l.b16 %v9259
        %v9772 = vunpack.c.l.b16 %v9260
        %v9773 = vunpack.c.l.b16 %v9261
        %v9774 = vunpack.c.l.b16 %v9262
        %v9775 = vunpack.c.l.b16 %v9263
        %v9776 = vunpack.c.l.b16 %v9264
        %v9777 = vunpack.c.l.b16 %v9265
        %v9778 = vunpack.c.l.b16 %v9266
        %v9779 = vunpack.c.l.b16 %v9267
        %v9780 = vunpack.c.l.b16 %v9268
        %v9781 = vunpack.c.l.b16 %v9269
        %v9782 = vunpack.c.l.b16 %v9270
        %v9783 = vunpack.c.l.b16 %v9271
        %v9784 = vunpack.c.l.b16 %v9272
        %v9785 = vunpack.c.l.b16 %v9273
        %v9786 = vunpack.c.l.b16 %v9274
        %v9787 = vunpack.c.l.b16 %v9275
        %v9788 = vunpack.c.l.b16 %v9276
        %v9789 = vunpack.c.l.b16 %v9277
        %v9790 = vunpack.c.l.b16 %v9278
        %v9791 = vunpack.c.l.b16 %v9279
        %v9792 = vunpack.c.l.b16 %v9280
        %v9793 = vunpack.c.l.b16 %v9281
        %v9794 = vunpack.c.l.b16 %v9282
        %v9795 = vunpack.c.l.b16 %v9283
        %v9796 = vunpack.c.l.b16 %v9284
        %v9797 = vunpack.c.l.b16 %v9285
        %v9798 = vunpack.c.l.b16 %v9286
        %v9799 = vunpack.c.l.b16 %v9287
        %v9800 = vunpack.c.l.b16 %v9288
        %v9801 = vunpack.c.l.b16 %v9289
        %v9802 = vunpack.c.l.b16 %v9290
        %v9803 = vunpack.c.l.b16 %v9291
        %v9804 = vunpack.c.l.b16 %v9292
        %v9805 = vunpack.c.l.b16 %v9293
        %v9806 = vunpack.c.l.b16 %v9294
        %v9807 = vunpack.c.l.b16 %v9295
        %v9808 = vunpack.c.l.b16 %v9296
        %v9809 = vunpack.c.l.b16 %v9297
        %v9810 = vunpack.c.l.b16 %v9298
        %v9811 = vunpack.c.l.b16 %v9299
        %v9812 = vunpack.c.l.b16 %v9300
        %v9813 = vunpack.c.l.b16 %v9301
        %v9814 = vunpack.c.l.b16 %v9302
        %v9815 = vunpack.c.l.b16 %v9303
        %v9816 = vunpack.c.l.b16 %v9304
        %v9817 = vunpack.c.l.b16 %v9305
        %v9818 = vunpack.c.l.b16 %v9306
        %v9819 = vunpack.c.l.b16 %v9307
        %v9820 = vunpack.c.l.b16 %v9308
        %v9821 = vunpack.c.l.b16 %v9309
        %v9822 = vunpack.c.l.b16 %v9310
        %v9823 = vunpack.c.l.b16 %v9311
        %v9824 = vunpack.c.l.b16 %v9312
        %v9825 = vunpack.c.l.b16 %v9313
        %v9826 = vunpack.c.l.b16 %v9314
        %v9827 = vunpack.c.l.b16 %v9315
        %v9828 = vunpack.c.l.b16 %v9316
        %v9829 = vunpack.c.l.b16 %v9317
        %v9830 = vunpack.c.l.b16 %v9318
        %v9831 = vunpack.c.l.b16 %v9319
        %v9832 = vunpack.c.l.b16 %v9320
        %v9833 = vunpack.c.l.b16 %v9321
        %v9834 = vunpack.c.l.b16 %v9322
        %v9835 = vunpack.c.l.b16 %v9323
        %v9836 = vunpack.c.l.b16 %v9324
        %v9837 = vunpack.c.l.b16 %v9325
        %v9838 = vunpack.c.l.b16 %v9326
        %v9839 = vunpack.c.l.b16 %v9327
        %v9840 = vunpack.c.l.b16 %v9328
        %v9841 = vunpack.c.l.b16 %v9329
        %v9842 = vunpack.c.l.b16 %v9330
        %v9843 = vunpack.c.l.b16 %v9331
        %v9844 = vunpack.c.l.b16 %v9332
        %v9845 = vunpack.c.l.b16 %v9333
        %v9846 = vunpack.c.l.b16 %v9334
        %v9847 = vunpack.c.l.b16 %v9335
        %v9848 = vunpack.c.l.b16 %v9336
        %v9849 = vunpack.c.l.b16 %v9337
        %v9850 = vunpack.c.l.b16 %v9338
        %v9851 = vunpack.c.l.b16 %v9339
        %v9852 = vunpack.c.l.b16 %v9340
        %v9853 = vunpack.c.l.b16 %v9341
        %v9854 = vunpack.c.l.b16 %v9342
        %v9855 = vunpack.c.l.b16 %v9343
        %v9856 = vunpack.c.l.b16 %v9344
        %v9857 = vunpack.c.l.b16 %v9345
        %v9858 = vunpack.c.l.b16 %v9346
        %v9859 = vunpack.c.l.b16 %v9347
        %v9860 = vunpack.c.l.b16 %v9348
        %v9861 = vunpack.c.l.b16 %v9349
        %v9862 = vunpack.c.l.b16 %v9350
        %v9863 = vunpack.c.l.b16 %v9351
        %v9864 = vunpack.c.l.b16 %v9352
        %v9865 = vunpack.c.l.b16 %v9353
        %v9866 = vunpack.c.l.b16 %v9354
        %v9867 = vunpack.c.l.b16 %v9355
        %v9868 = vunpack.c.l.b16 %v9356
        %v9869 = vunpack.c.l.b16 %v9357
        %v9870 = vunpack.c.l.b16 %v9358
        %v9871 = vunpack.c.l.b16 %v9359
        %v9872 = vunpack.c.l.b16 %v9360
        %v9873 = vunpack.c.l.b16 %v9361
        %v9874 = vunpack.c.l.b16 %v9362
        %v9875 = vunpack.c.l.b16 %v9363
        %v9876 = vunpack.c.l.b16 %v9364
        %v9877 = vunpack.c.l.b16 %v9365
        %v9878 = vunpack.c.l.b16 %v9366
        %v9879 = vunpack.c.l.b16 %v9367
        %v9880 = vunpack.c.l.b16 %v9368
        %v9881 = vunpack.c.l.b16 %v9369
        %v9882 = vunpack.c.l.b16 %v9370
        %v9883 = vunpack.c.l.b16 %v9371
        %v9884 = vunpack.c.l.b16 %v9372
        %v9885 = vunpack.c.l.b16 %v9373
        %v9886 = vunpack.c.l.b16 %v9374
        %v9887 = vunpack.c.l.b16 %v9375
        %v9888 = vunpack.c.l.b16 %v9376
        %v9889 = vunpack.c.l.b16 %v9377
        %v9890 = vunpack.c.l.b16 %v9378
        %v9891 = vunpack.c.l.b16 %v9379
        %v9892 = vunpack.c.l.b16 %v9380
        %v9893 = vunpack.c.l.b16 %v9381
        %v9894 = vunpack.c.l.b16 %v9382
        %v9895 = vunpack.c.l.b16 %v9383
        %v9896 = vunpack.c.l.b16 %v9384
        %v9897 = vunpack.c.l.b16 %v9385
        %v9898 = vunpack.c.l.b16 %v9386
        %v9899 = vunpack.c.l.b16 %v9387
        %v9900 = vunpack.c.l.b16 %v9388
        %v9901 = vunpack.c.l.b16 %v9389
        %v9902 = vunpack.c.l.b16 %v9390
        %v9903 = vunpack.c.l.b16 %v9391
        %v9904 = vunpack.c.l.b16 %v9392
        %v9905 = vunpack.c.l.b16 %v9393
        %v9906 = vunpack.c.l.b16 %v9394
        %v9907 = vunpack.c.l.b16 %v9395
        %v9908 = vunpack.c.l.b16 %v9396
        %v9909 = vunpack.c.l.b16 %v9397
        %v9910 = vunpack.c.l.b16 %v9398
        %v9911 = vunpack.c.l.b16 %v9399
        %v9912 = vunpack.c.l.b16 %v9400
        %v9913 = vunpack.c.l.b16 %v9401
        %v9914 = vunpack.c.l.b16 %v9402
        %v9915 = vunpack.c.l.b16 %v9403
        %v9916 = vunpack.c.l.b16 %v9404
        %v9917 = vunpack.c.l.b16 %v9405
        %v9918 = vunpack.c.l.b16 %v9406
        %v9919 = vunpack.c.l.b16 %v9407
        %v9920 = vunpack.c.l.b16 %v9408
        %v9921 = vunpack.c.l.b16 %v9409
        %v9922 = vunpack.c.l.b16 %v9410
        %v9923 = vunpack.c.l.b16 %v9411
        %v9924 = vunpack.c.l.b16 %v9412
        %v9925 = vunpack.c.l.b16 %v9413
        %v9926 = vunpack.c.l.b16 %v9414
        %v9927 = vunpack.c.l.b16 %v9415
        %v9928 = vunpack.c.l.b16 %v9416
        %v9929 = vunpack.c.l.b16 %v9417
        %v9930 = vunpack.c.l.b16 %v9418
        %v9931 = vunpack.c.l.b16 %v9419
        %v9932 = vunpack.c.l.b16 %v9420
        %v9933 = vunpack.c.l.b16 %v9421
        %v9934 = vunpack.c.l.b16 %v9422
        %v9935 = vunpack.c.l.b16 %v9423
        %v9936 = vunpack.c.l.b16 %v9424
        %v9937 = vunpack.c.l.b16 %v9425
        %v9938 = vunpack.c.l.b16 %v9426
        %v9939 = vunpack.c.l.b16 %v9427
        %v9940 = vunpack.c.l.b16 %v9428
        %v9941 = vunpack.c.l.b16 %v9429
        %v9942 = vunpack.c.l.b16 %v9430
        %v9943 = vunpack.c.l.b16 %v9431
        %v9944 = vunpack.c.l.b16 %v9432
        %v9945 = vunpack.c.l.b16 %v9433
        %v9946 = vunpack.c.l.b16 %v9434
        %v9947 = vunpack.c.l.b16 %v9435
        %v9948 = vunpack.c.l.b16 %v9436
        %v9949 = vunpack.c.l.b16 %v9437
        %v9950 = vunpack.c.l.b16 %v9438
        %v9951 = vunpack.c.l.b16 %v9439
        %v9952 = vunpack.c.l.b16 %v9440
        %v9953 = vunpack.c.l.b16 %v9441
        %v9954 = vunpack.c.l.b16 %v9442
        %v9955 = vunpack.c.l.b16 %v9443
        %v9956 = vunpack.c.l.b16 %v9444
        %v9957 = vunpack.c.l.b16 %v9445
        %v9958 = vunpack.c.l.b16 %v9446
        %v9959 = vunpack.c.l.b16 %v9447
        %v9960 = vunpack.c.l.b16 %v9448
        %v9961 = vunpack.c.l.b16 %v9449
        %v9962 = vunpack.c.l.b16 %v9450
        %v9963 = vpack.c.b16 %v9708, %v9707
        %v9964 = vpack.c.b16 %v9710, %v9709
        %v9965 = vpack.c.b16 %v9712, %v9711
        %v9966 = vpack.c.b16 %v9714, %v9713
        %v9967 = vpack.c.b16 %v9716, %v9715
        %v9968 = vpack.c.b16 %v9718, %v9717
        %v9969 = vpack.c.b16 %v9720, %v9719
        %v9970 = vpack.c.b16 %v9722, %v9721
        %v9971 = vpack.c.b16 %v9724, %v9723
        %v9972 = vpack.c.b16 %v9726, %v9725
        %v9973 = vpack.c.b16 %v9728, %v9727
        %v9974 = vpack.c.b16 %v9730, %v9729
        %v9975 = vpack.c.b16 %v9732, %v9731
        %v9976 = vpack.c.b16 %v9734, %v9733
        %v9977 = vpack.c.b16 %v9736, %v9735
        %v9978 = vpack.c.b16 %v9738, %v9737
        %v9979 = vpack.c.b16 %v9740, %v9739
        %v9980 = vpack.c.b16 %v9742, %v9741
        %v9981 = vpack.c.b16 %v9744, %v9743
        %v9982 = vpack.c.b16 %v9746, %v9745
        %v9983 = vpack.c.b16 %v9748, %v9747
        %v9984 = vpack.c.b16 %v9750, %v9749
        %v9985 = vpack.c.b16 %v9752, %v9751
        %v9986 = vpack.c.b16 %v9754, %v9753
        %v9987 = vpack.c.b16 %v9756, %v9755
        %v9988 = vpack.c.b16 %v9758, %v9757
        %v9989 = vpack.c.b16 %v9760, %v9759
        %v9990 = vpack.c.b16 %v9762, %v9761
        %v9991 = vpack.c.b16 %v9764, %v9763
        %v9992 = vpack.c.b16 %v9766, %v9765
        %v9993 = vpack.c.b16 %v9768, %v9767
        %v9994 = vpack.c.b16 %v9770, %v9769
        %v9995 = vpack.c.b16 %v9772, %v9771
        %v9996 = vpack.c.b16 %v9774, %v9773
        %v9997 = vpack.c.b16 %v9776, %v9775
        %v9998 = vpack.c.b16 %v9778, %v9777
        %v9999 = vpack.c.b16 %v9780, %v9779
        %v10000 = vpack.c.b16 %v9782, %v9781
        %v10001 = vpack.c.b16 %v9784, %v9783
        %v10002 = vpack.c.b16 %v9786, %v9785
        %v10003 = vpack.c.b16 %v9788, %v9787
        %v10004 = vpack.c.b16 %v9790, %v9789
        %v10005 = vpack.c.b16 %v9792, %v9791
        %v10006 = vpack.c.b16 %v9794, %v9793
        %v10007 = vpack.c.b16 %v9796, %v9795
        %v10008 = vpack.c.b16 %v9798, %v9797
        %v10009 = vpack.c.b16 %v9800, %v9799
        %v10010 = vpack.c.b16 %v9802, %v9801
        %v10011 = vpack.c.b16 %v9804, %v9803
        %v10012 = vpack.c.b16 %v9806, %v9805
        %v10013 = vpack.c.b16 %v9808, %v9807
        %v10014 = vpack.c.b16 %v9810, %v9809
        %v10015 = vpack.c.b16 %v9812, %v9811
        %v10016 = vpack.c.b16 %v9814, %v9813
        %v10017 = vpack.c.b16 %v9816, %v9815
        %v10018 = vpack.c.b16 %v9818, %v9817
        %v10019 = vpack.c.b16 %v9820, %v9819
        %v10020 = vpack.c.b16 %v9822, %v9821
        %v10021 = vpack.c.b16 %v9824, %v9823
        %v10022 = vpack.c.b16 %v9826, %v9825
        %v10023 = vpack.c.b16 %v9828, %v9827
        %v10024 = vpack.c.b16 %v9830, %v9829
        %v10025 = vpack.c.b16 %v9832, %v9831
        %v10026 = vpack.c.b16 %v9834, %v9833
        %v10027 = vpack.c.b16 %v9836, %v9835
        %v10028 = vpack.c.b16 %v9838, %v9837
        %v10029 = vpack.c.b16 %v9840, %v9839
        %v10030 = vpack.c.b16 %v9842, %v9841
        %v10031 = vpack.c.b16 %v9844, %v9843
        %v10032 = vpack.c.b16 %v9846, %v9845
        %v10033 = vpack.c.b16 %v9848, %v9847
        %v10034 = vpack.c.b16 %v9850, %v9849
        %v10035 = vpack.c.b16 %v9852, %v9851
        %v10036 = vpack.c.b16 %v9854, %v9853
        %v10037 = vpack.c.b16 %v9856, %v9855
        %v10038 = vpack.c.b16 %v9858, %v9857
        %v10039 = vpack.c.b16 %v9860, %v9859
        %v10040 = vpack.c.b16 %v9862, %v9861
        %v10041 = vpack.c.b16 %v9864, %v9863
        %v10042 = vpack.c.b16 %v9866, %v9865
        %v10043 = vpack.c.b16 %v9868, %v9867
        %v10044 = vpack.c.b16 %v9870, %v9869
        %v10045 = vpack.c.b16 %v9872, %v9871
        %v10046 = vpack.c.b16 %v9874, %v9873
        %v10047 = vpack.c.b16 %v9876, %v9875
        %v10048 = vpack.c.b16 %v9878, %v9877
        %v10049 = vpack.c.b16 %v9880, %v9879
        %v10050 = vpack.c.b16 %v9882, %v9881
        %v10051 = vpack.c.b16 %v9884, %v9883
        %v10052 = vpack.c.b16 %v9886, %v9885
        %v10053 = vpack.c.b16 %v9888, %v9887
        %v10054 = vpack.c.b16 %v9890, %v9889
        %v10055 = vpack.c.b16 %v9892, %v9891
        %v10056 = vpack.c.b16 %v9894, %v9893
        %v10057 = vpack.c.b16 %v9896, %v9895
        %v10058 = vpack.c.b16 %v9898, %v9897
        %v10059 = vpack.c.b16 %v9900, %v9899
        %v10060 = vpack.c.b16 %v9902, %v9901
        %v10061 = vpack.c.b16 %v9904, %v9903
        %v10062 = vpack.c.b16 %v9906, %v9905
        %v10063 = vpack.c.b16 %v9908, %v9907
        %v10064 = vpack.c.b16 %v9910, %v9909
        %v10065 = vpack.c.b16 %v9912, %v9911
        %v10066 = vpack.c.b16 %v9914, %v9913
        %v10067 = vpack.c.b16 %v9916, %v9915
        %v10068 = vpack.c.b16 %v9918, %v9917
        %v10069 = vpack.c.b16 %v9920, %v9919
        %v10070 = vpack.c.b16 %v9922, %v9921
        %v10071 = vpack.c.b16 %v9924, %v9923
        %v10072 = vpack.c.b16 %v9926, %v9925
        %v10073 = vpack.c.b16 %v9928, %v9927
        %v10074 = vpack.c.b16 %v9930, %v9929
        %v10075 = vpack.c.b16 %v9932, %v9931
        %v10076 = vpack.c.b16 %v9934, %v9933
        %v10077 = vpack.c.b16 %v9936, %v9935
        %v10078 = vpack.c.b16 %v9938, %v9937
        %v10079 = vpack.c.b16 %v9940, %v9939
        %v10080 = vpack.c.b16 %v9942, %v9941
        %v10081 = vpack.c.b16 %v9944, %v9943
        %v10082 = vpack.c.b16 %v9946, %v9945
        %v10083 = vpack.c.b16 %v9948, %v9947
        %v10084 = vpack.c.b16 %v9950, %v9949
        %v10085 = vpack.c.b16 %v9952, %v9951
        %v10086 = vpack.c.b16 %v9954, %v9953
        %v10087 = vpack.c.b16 %v9956, %v9955
        %v10088 = vpack.c.b16 %v9958, %v9957
        %v10089 = vpack.c.b16 %v9960, %v9959
        %v10090 = vpack.c.b16 %v9962, %v9961
        %10219 = vmatprep.subr.bf16.mxu0 0
        %10220 = vmatpush1.bf16.msra.mxu0 %v9963
        %10221 = vmatprep.subr.bf16.mxu0 0
        %10222 = vmatpush1.bf16.msra.mxu0 %v9964
        %10223 = vmatprep.subr.bf16.mxu0 0
        %10224 = vmatpush1.bf16.msra.mxu0 %v9965
        %10225 = vmatprep.subr.bf16.mxu0 0
        %10226 = vmatpush1.bf16.msra.mxu0 %v9966
        %10227 = vmatprep.subr.bf16.mxu0 0
        %10228 = vmatpush1.bf16.msra.mxu0 %v9967
        %10229 = vmatprep.subr.bf16.mxu0 0
        %10230 = vmatpush1.bf16.msra.mxu0 %v9968
        %10231 = vmatprep.subr.bf16.mxu0 0
        %10232 = vmatpush1.bf16.msra.mxu0 %v9969
        %10233 = vmatprep.subr.bf16.mxu0 0
        %10234 = vmatpush1.bf16.msra.mxu0 %v9970
        %10235 = vmatprep.subr.bf16.mxu0 0
        %10236 = vmatpush1.bf16.msra.mxu0 %v9971
        %10237 = vmatprep.subr.bf16.mxu0 0
        %10238 = vmatpush1.bf16.msra.mxu0 %v9972
        %10239 = vmatprep.subr.bf16.mxu0 0
        %10240 = vmatpush1.bf16.msra.mxu0 %v9973
        %10241 = vmatprep.subr.bf16.mxu0 0
        %10242 = vmatpush1.bf16.msra.mxu0 %v9974
        %10243 = vmatprep.subr.bf16.mxu0 0
        %10244 = vmatpush1.bf16.msra.mxu0 %v9975
        %10245 = vmatprep.subr.bf16.mxu0 0
        %10246 = vmatpush1.bf16.msra.mxu0 %v9976
        %10247 = vmatprep.subr.bf16.mxu0 0
        %10248 = vmatpush1.bf16.msra.mxu0 %v9977
        %10249 = vmatprep.subr.bf16.mxu0 0
        %10250 = vmatpush1.bf16.msra.mxu0 %v9978
        %10251 = vmatprep.mubr.bf16.mxu0 %v9180
        %10252 = vmatmul.mubr.bf16.gmra.mrb[0].mxu0 %v9179
        %v10253 = vpop.f32.mrb[0].mxu0
        %v10254 = vadd.f32 0.0, %v10253
        %v10255 = vpop.f32.mrb[0].mxu0
        %v10256 = vpop.f32.mrb[0].mxu0
        %v10257 = vpop.f32.mrb[0].mxu0
        %10258 = vdwg.mxu0
        %10259 = vmatprep.subr.bf16.mxu0 0
        %10260 = vmatpush1.bf16.msra.mxu0 %v9979
        %10261 = vmatprep.subr.bf16.mxu0 0
        %10262 = vmatpush1.bf16.msra.mxu0 %v9980
        %10263 = vmatprep.subr.bf16.mxu0 0
        %10264 = vmatpush1.bf16.msra.mxu0 %v9981
        %10265 = vmatprep.subr.bf16.mxu0 0
        %10266 = vmatpush1.bf16.msra.mxu0 %v9982
        %10267 = vmatprep.subr.bf16.mxu0 0
        %10268 = vmatpush1.bf16.msra.mxu0 %v9983
        %10269 = vmatprep.subr.bf16.mxu0 0
        %10270 = vmatpush1.bf16.msra.mxu0 %v9984
        %10271 = vmatprep.subr.bf16.mxu0 0
        %10272 = vmatpush1.bf16.msra.mxu0 %v9985
        %10273 = vmatprep.subr.bf16.mxu0 0
        %10274 = vmatpush1.bf16.msra.mxu0 %v9986
        %10275 = vmatprep.subr.bf16.mxu0 0
        %10276 = vmatpush1.bf16.msra.mxu0 %v9987
        %10277 = vmatprep.subr.bf16.mxu0 0
        %10278 = vmatpush1.bf16.msra.mxu0 %v9988
        %10279 = vmatprep.subr.bf16.mxu0 0
        %10280 = vmatpush1.bf16.msra.mxu0 %v9989
        %10281 = vmatprep.subr.bf16.mxu0 0
        %10282 = vmatpush1.bf16.msra.mxu0 %v9990
        %10283 = vmatprep.subr.bf16.mxu0 0
        %10284 = vmatpush1.bf16.msra.mxu0 %v9991
        %10285 = vmatprep.subr.bf16.mxu0 0
        %10286 = vmatpush1.bf16.msra.mxu0 %v9992
        %10287 = vmatprep.subr.bf16.mxu0 0
        %10288 = vmatpush1.bf16.msra.mxu0 %v9993
        %10289 = vmatprep.subr.bf16.mxu0 0
        %10290 = vmatpush1.bf16.msra.mxu0 %v9994
        %10291 = vmatprep.mubr.bf16.mxu0 %v9182
        %10292 = vmatmul.mubr.bf16.gmra.mrb[0].mxu0 %v9181
        %v10293 = vpop.f32.mrb[0].mxu0
        %v10294 = vadd.f32 %v10254, %v10293
        %v10295 = vpop.f32.mrb[0].mxu0
        %v10296 = vpop.f32.mrb[0].mxu0
        %v10297 = vpop.f32.mrb[0].mxu0
        %10298 = vdwg.mxu0
        %10299 = vmatprep.subr.bf16.mxu0 0
        %10300 = vmatpush1.bf16.msra.mxu0 %v9995
        %10301 = vmatprep.subr.bf16.mxu0 0
        %10302 = vmatpush1.bf16.msra.mxu0 %v9996
        %10303 = vmatprep.subr.bf16.mxu0 0
        %10304 = vmatpush1.bf16.msra.mxu0 %v9997
        %10305 = vmatprep.subr.bf16.mxu0 0
        %10306 = vmatpush1.bf16.msra.mxu0 %v9998
        %10307 = vmatprep.subr.bf16.mxu0 0
        %10308 = vmatpush1.bf16.msra.mxu0 %v9999
        %10309 = vmatprep.subr.bf16.mxu0 0
        %10310 = vmatpush1.bf16.msra.mxu0 %v10000
        %10311 = vmatprep.subr.bf16.mxu0 0
        %10312 = vmatpush1.bf16.msra.mxu0 %v10001
        %10313 = vmatprep.subr.bf16.mxu0 0
        %10314 = vmatpush1.bf16.msra.mxu0 %v10002
        %10315 = vmatprep.subr.bf16.mxu0 0
        %10316 = vmatpush1.bf16.msra.mxu0 %v10003
        %10317 = vmatprep.subr.bf16.mxu0 0
        %10318 = vmatpush1.bf16.msra.mxu0 %v10004
        %10319 = vmatprep.subr.bf16.mxu0 0
        %10320 = vmatpush1.bf16.msra.mxu0 %v10005
        %10321 = vmatprep.subr.bf16.mxu0 0
        %10322 = vmatpush1.bf16.msra.mxu0 %v10006
        %10323 = vmatprep.subr.bf16.mxu0 0
        %10324 = vmatpush1.bf16.msra.mxu0 %v10007
        %10325 = vmatprep.subr.bf16.mxu0 0
        %10326 = vmatpush1.bf16.msra.mxu0 %v10008
        %10327 = vmatprep.subr.bf16.mxu0 0
        %10328 = vmatpush1.bf16.msra.mxu0 %v10009
        %10329 = vmatprep.subr.bf16.mxu0 0
        %10330 = vmatpush1.bf16.msra.mxu0 %v10010
        %10331 = vmatprep.mubr.bf16.mxu0 %v9184
        %10332 = vmatmul.mubr.bf16.gmra.mrb[0].mxu0 %v9183
        %v10333 = vpop.f32.mrb[0].mxu0
        %v10334 = vadd.f32 %v10294, %v10333
        %v10335 = vpop.f32.mrb[0].mxu0
        %v10336 = vpop.f32.mrb[0].mxu0
        %v10337 = vpop.f32.mrb[0].mxu0
        %10338 = vdwg.mxu0
        %10339 = vmatprep.subr.bf16.mxu0 0
        %10340 = vmatpush1.bf16.msra.mxu0 %v10011
        %10341 = vmatprep.subr.bf16.mxu0 0
        %10342 = vmatpush1.bf16.msra.mxu0 %v10012
        %10343 = vmatprep.subr.bf16.mxu0 0
        %10344 = vmatpush1.bf16.msra.mxu0 %v10013
        %10345 = vmatprep.subr.bf16.mxu0 0
        %10346 = vmatpush1.bf16.msra.mxu0 %v10014
        %10347 = vmatprep.subr.bf16.mxu0 0
        %10348 = vmatpush1.bf16.msra.mxu0 %v10015
        %10349 = vmatprep.subr.bf16.mxu0 0
        %10350 = vmatpush1.bf16.msra.mxu0 %v10016
        %10351 = vmatprep.subr.bf16.mxu0 0
        %10352 = vmatpush1.bf16.msra.mxu0 %v10017
        %10353 = vmatprep.subr.bf16.mxu0 0
        %10354 = vmatpush1.bf16.msra.mxu0 %v10018
        %10355 = vmatprep.subr.bf16.mxu0 0
        %10356 = vmatpush1.bf16.msra.mxu0 %v10019
        %10357 = vmatprep.subr.bf16.mxu0 0
        %10358 = vmatpush1.bf16.msra.mxu0 %v10020
        %10359 = vmatprep.subr.bf16.mxu0 0
        %10360 = vmatpush1.bf16.msra.mxu0 %v10021
        %10361 = vmatprep.subr.bf16.mxu0 0
        %10362 = vmatpush1.bf16.msra.mxu0 %v10022
        %10363 = vmatprep.subr.bf16.mxu0 0
        %10364 = vmatpush1.bf16.msra.mxu0 %v10023
        %10365 = vmatprep.subr.bf16.mxu0 0
        %10366 = vmatpush1.bf16.msra.mxu0 %v10024
        %10367 = vmatprep.subr.bf16.mxu0 0
        %10368 = vmatpush1.bf16.msra.mxu0 %v10025
        %10369 = vmatprep.subr.bf16.mxu0 0
        %10370 = vmatpush1.bf16.msra.mxu0 %v10026
        %10371 = vmatprep.mubr.bf16.mxu0 %v9186
        %10372 = vmatmul.mubr.bf16.gmra.mrb[0].mxu0 %v9185
        %v10373 = vpop.f32.mrb[0].mxu0
        %v10374 = vadd.f32 %v10334, %v10373
        %v10375 = vpop.f32.mrb[0].mxu0
        %v10376 = vpop.f32.mrb[0].mxu0
        %v10377 = vpop.f32.mrb[0].mxu0
        %10378 = vdwg.mxu0
        %10379 = vmatprep.subr.bf16.mxu0 0
        %10380 = vmatpush1.bf16.msra.mxu0 %v10027
        %10381 = vmatprep.subr.bf16.mxu0 0
        %10382 = vmatpush1.bf16.msra.mxu0 %v10028
        %10383 = vmatprep.subr.bf16.mxu0 0
        %10384 = vmatpush1.bf16.msra.mxu0 %v10029
        %10385 = vmatprep.subr.bf16.mxu0 0
        %10386 = vmatpush1.bf16.msra.mxu0 %v10030
        %10387 = vmatprep.subr.bf16.mxu0 0
        %10388 = vmatpush1.bf16.msra.mxu0 %v10031
        %10389 = vmatprep.subr.bf16.mxu0 0
        %10390 = vmatpush1.bf16.msra.mxu0 %v10032
        %10391 = vmatprep.subr.bf16.mxu0 0
        %10392 = vmatpush1.bf16.msra.mxu0 %v10033
        %10393 = vmatprep.subr.bf16.mxu0 0
        %10394 = vmatpush1.bf16.msra.mxu0 %v10034
        %10395 = vmatprep.subr.bf16.mxu0 0
        %10396 = vmatpush1.bf16.msra.mxu0 %v10035
        %10397 = vmatprep.subr.bf16.mxu0 0
        %10398 = vmatpush1.bf16.msra.mxu0 %v10036
        %10399 = vmatprep.subr.bf16.mxu0 0
        %10400 = vmatpush1.bf16.msra.mxu0 %v10037
        %10401 = vmatprep.subr.bf16.mxu0 0
        %10402 = vmatpush1.bf16.msra.mxu0 %v10038
        %10403 = vmatprep.subr.bf16.mxu0 0
        %10404 = vmatpush1.bf16.msra.mxu0 %v10039
        %10405 = vmatprep.subr.bf16.mxu0 0
        %10406 = vmatpush1.bf16.msra.mxu0 %v10040
        %10407 = vmatprep.subr.bf16.mxu0 0
        %10408 = vmatpush1.bf16.msra.mxu0 %v10041
        %10409 = vmatprep.subr.bf16.mxu0 0
        %10410 = vmatpush1.bf16.msra.mxu0 %v10042
        %10411 = vmatprep.mubr.bf16.mxu0 %v9188
        %10412 = vmatmul.mubr.bf16.gmra.mrb[0].mxu0 %v9187
        %v10413 = vpop.f32.mrb[0].mxu0
        %v10414 = vadd.f32 %v10374, %v10413
        %v10415 = vpop.f32.mrb[0].mxu0
        %v10416 = vpop.f32.mrb[0].mxu0
        %v10417 = vpop.f32.mrb[0].mxu0
        %10418 = vdwg.mxu0
        %10419 = vmatprep.subr.bf16.mxu0 0
        %10420 = vmatpush1.bf16.msra.mxu0 %v10043
        %10421 = vmatprep.subr.bf16.mxu0 0
        %10422 = vmatpush1.bf16.msra.mxu0 %v10044
        %10423 = vmatprep.subr.bf16.mxu0 0
        %10424 = vmatpush1.bf16.msra.mxu0 %v10045
        %10425 = vmatprep.subr.bf16.mxu0 0
        %10426 = vmatpush1.bf16.msra.mxu0 %v10046
        %10427 = vmatprep.subr.bf16.mxu0 0
        %10428 = vmatpush1.bf16.msra.mxu0 %v10047
        %10429 = vmatprep.subr.bf16.mxu0 0
        %10430 = vmatpush1.bf16.msra.mxu0 %v10048
        %10431 = vmatprep.subr.bf16.mxu0 0
        %10432 = vmatpush1.bf16.msra.mxu0 %v10049
        %10433 = vmatprep.subr.bf16.mxu0 0
        %10434 = vmatpush1.bf16.msra.mxu0 %v10050
        %10435 = vmatprep.subr.bf16.mxu0 0
        %10436 = vmatpush1.bf16.msra.mxu0 %v10051
        %10437 = vmatprep.subr.bf16.mxu0 0
        %10438 = vmatpush1.bf16.msra.mxu0 %v10052
        %10439 = vmatprep.subr.bf16.mxu0 0
        %10440 = vmatpush1.bf16.msra.mxu0 %v10053
        %10441 = vmatprep.subr.bf16.mxu0 0
        %10442 = vmatpush1.bf16.msra.mxu0 %v10054
        %10443 = vmatprep.subr.bf16.mxu0 0
        %10444 = vmatpush1.bf16.msra.mxu0 %v10055
        %10445 = vmatprep.subr.bf16.mxu0 0
        %10446 = vmatpush1.bf16.msra.mxu0 %v10056
        %10447 = vmatprep.subr.bf16.mxu0 0
        %10448 = vmatpush1.bf16.msra.mxu0 %v10057
        %10449 = vmatprep.subr.bf16.mxu0 0
        %10450 = vmatpush1.bf16.msra.mxu0 %v10058
        %10451 = vmatprep.mubr.bf16.mxu0 %v9190
        %10452 = vmatmul.mubr.bf16.gmra.mrb[0].mxu0 %v9189
        %v10453 = vpop.f32.mrb[0].mxu0
        %v10454 = vadd.f32 %v10414, %v10453
        %v10455 = vpop.f32.mrb[0].mxu0
        %v10456 = vpop.f32.mrb[0].mxu0
        %v10457 = vpop.f32.mrb[0].mxu0
        %10458 = vdwg.mxu0
        %10459 = vmatprep.subr.bf16.mxu0 0
        %10460 = vmatpush1.bf16.msra.mxu0 %v10059
        %10461 = vmatprep.subr.bf16.mxu0 0
        %10462 = vmatpush1.bf16.msra.mxu0 %v10060
        %10463 = vmatprep.subr.bf16.mxu0 0
        %10464 = vmatpush1.bf16.msra.mxu0 %v10061
        %10465 = vmatprep.subr.bf16.mxu0 0
        %10466 = vmatpush1.bf16.msra.mxu0 %v10062
        %10467 = vmatprep.subr.bf16.mxu0 0
        %10468 = vmatpush1.bf16.msra.mxu0 %v10063
        %10469 = vmatprep.subr.bf16.mxu0 0
        %10470 = vmatpush1.bf16.msra.mxu0 %v10064
        %10471 = vmatprep.subr.bf16.mxu0 0
        %10472 = vmatpush1.bf16.msra.mxu0 %v10065
        %10473 = vmatprep.subr.bf16.mxu0 0
        %10474 = vmatpush1.bf16.msra.mxu0 %v10066
        %10475 = vmatprep.subr.bf16.mxu0 0
        %10476 = vmatpush1.bf16.msra.mxu0 %v10067
        %10477 = vmatprep.subr.bf16.mxu0 0
        %10478 = vmatpush1.bf16.msra.mxu0 %v10068
        %10479 = vmatprep.subr.bf16.mxu0 0
        %10480 = vmatpush1.bf16.msra.mxu0 %v10069
        %10481 = vmatprep.subr.bf16.mxu0 0
        %10482 = vmatpush1.bf16.msra.mxu0 %v10070
        %10483 = vmatprep.subr.bf16.mxu0 0
        %10484 = vmatpush1.bf16.msra.mxu0 %v10071
        %10485 = vmatprep.subr.bf16.mxu0 0
        %10486 = vmatpush1.bf16.msra.mxu0 %v10072
        %10487 = vmatprep.subr.bf16.mxu0 0
        %10488 = vmatpush1.bf16.msra.mxu0 %v10073
        %10489 = vmatprep.subr.bf16.mxu0 0
        %10490 = vmatpush1.bf16.msra.mxu0 %v10074
        %10491 = vmatprep.mubr.bf16.mxu0 %v9192
        %10492 = vmatmul.mubr.bf16.gmra.mrb[0].mxu0 %v9191
        %v10493 = vpop.f32.mrb[0].mxu0
        %v10494 = vadd.f32 %v10454, %v10493
        %v10495 = vpop.f32.mrb[0].mxu0
        %v10496 = vpop.f32.mrb[0].mxu0
        %v10497 = vpop.f32.mrb[0].mxu0
        %10498 = vdwg.mxu0
        %10499 = vmatprep.subr.bf16.mxu0 0
        %10500 = vmatpush1.bf16.msra.mxu0 %v10075
        %10501 = vmatprep.subr.bf16.mxu0 0
        %10502 = vmatpush1.bf16.msra.mxu0 %v10076
        %10503 = vmatprep.subr.bf16.mxu0 0
        %10504 = vmatpush1.bf16.msra.mxu0 %v10077
        %10505 = vmatprep.subr.bf16.mxu0 0
        %10506 = vmatpush1.bf16.msra.mxu0 %v10078
        %10507 = vmatprep.subr.bf16.mxu0 0
        %10508 = vmatpush1.bf16.msra.mxu0 %v10079
        %10509 = vmatprep.subr.bf16.mxu0 0
        %10510 = vmatpush1.bf16.msra.mxu0 %v10080
        %10511 = vmatprep.subr.bf16.mxu0 0
        %10512 = vmatpush1.bf16.msra.mxu0 %v10081
        %10513 = vmatprep.subr.bf16.mxu0 0
        %10514 = vmatpush1.bf16.msra.mxu0 %v10082
        %10515 = vmatprep.subr.bf16.mxu0 0
        %10516 = vmatpush1.bf16.msra.mxu0 %v10083
        %10517 = vmatprep.subr.bf16.mxu0 0
        %10518 = vmatpush1.bf16.msra.mxu0 %v10084
        %10519 = vmatprep.subr.bf16.mxu0 0
        %10520 = vmatpush1.bf16.msra.mxu0 %v10085
        %10521 = vmatprep.subr.bf16.mxu0 0
        %10522 = vmatpush1.bf16.msra.mxu0 %v10086
        %10523 = vmatprep.subr.bf16.mxu0 0
        %10524 = vmatpush1.bf16.msra.mxu0 %v10087
        %10525 = vmatprep.subr.bf16.mxu0 0
        %10526 = vmatpush1.bf16.msra.mxu0 %v10088
        %10527 = vmatprep.subr.bf16.mxu0 0
        %10528 = vmatpush1.bf16.msra.mxu0 %v10089
        %10529 = vmatprep.subr.bf16.mxu0 0
        %10530 = vmatpush1.bf16.msra.mxu0 %v10090
        %10531 = vmatprep.mubr.bf16.mxu0 %v9194
        %10532 = vmatmul.mubr.bf16.gmra.mrb[0].mxu0 %v9193
        %v10533 = vpop.f32.mrb[0].mxu0
        %v10534 = vadd.f32 %v10494, %v10533
        %v10535 = vpop.f32.mrb[0].mxu0
        %v10536 = vpop.f32.mrb[0].mxu0
        %v10537 = vpop.f32.mrb[0].mxu0
        %10538 = vdwg.mxu0
        %v10539 = vmul.f32 %v10534, 0.015625
        %v10540 = vld [vmem:[#allocation17] sm:$0x1]
        %v10542 = vlaneseq
        %v10543 = vshrl.u32 %v10542, 7
        %v10544 = vsub.s32 0, %v10543
        %v10545 = vrot.slane %v10540, %v10544
        %v10547 = vadd.f32 %v10539, %v10545
        %v10548 = vmax.f32 %v10547, 0.0
        %v10549 = vld [vmem:[%s12 + $0x100] sm:$0xff]
        %v10550 = vld [vmem:[%s12 + $0x108] sm:$0xff]
        %v10551 = vld [vmem:[%s12 + $0x110] sm:$0xff]
        %v10552 = vld [vmem:[%s12 + $0x118] sm:$0xff]
        %v10553 = vld [vmem:[%s12 + $0x120] sm:$0xff]
        %v10554 = vld [vmem:[%s12 + $0x128] sm:$0xff]
        %v10555 = vld [vmem:[%s12 + $0x130] sm:$0xff]
        %v10556 = vld [vmem:[%s12 + $0x138] sm:$0xff]
        %v10557 = vld [vmem:[%s12 + $0x140] sm:$0xff]
        %v10558 = vld [vmem:[%s12 + $0x148] sm:$0xff]
        %v10559 = vld [vmem:[%s12 + $0x150] sm:$0xff]
        %v10560 = vld [vmem:[%s12 + $0x158] sm:$0xff]
        %v10561 = vld [vmem:[%s12 + $0x160] sm:$0xff]
        %v10562 = vld [vmem:[%s12 + $0x168] sm:$0xff]
        %v10563 = vld [vmem:[%s12 + $0x170] sm:$0xff]
        %v10564 = vld [vmem:[%s12 + $0x178] sm:$0xff]
        %10565 = vmatprep.subr.mxu0 0.0
        %10566 = vmatpush1.msra.mxu0 %v10549
        %10567 = vmatprep.subr.mxu0 0.0
        %10568 = vmatpush1.msra.mxu0 %v10550
        %10569 = vmatprep.subr.mxu0 0.0
        %10570 = vmatpush1.msra.mxu0 %v10551
        %10571 = vmatprep.subr.mxu0 0.0
        %10572 = vmatpush1.msra.mxu0 %v10552
        %10573 = vmatprep.subr.mxu0 0.0
        %10574 = vmatpush1.msra.mxu0 %v10553
        %10575 = vmatprep.subr.mxu0 0.0
        %10576 = vmatpush1.msra.mxu0 %v10554
        %10577 = vmatprep.subr.mxu0 0.0
        %10578 = vmatpush1.msra.mxu0 %v10555
        %10579 = vmatprep.subr.mxu0 0.0
        %10580 = vmatpush1.msra.mxu0 %v10556
        %10581 = vmatprep.subr.mxu0 0.0
        %10582 = vmatpush1.msra.mxu0 %v10557
        %10583 = vmatprep.subr.mxu0 0.0
        %10584 = vmatpush1.msra.mxu0 %v10558
        %10585 = vmatprep.subr.mxu0 0.0
        %10586 = vmatpush1.msra.mxu0 %v10559
        %10587 = vmatprep.subr.mxu0 0.0
        %10588 = vmatpush1.msra.mxu0 %v10560
        %10589 = vmatprep.subr.mxu0 0.0
        %10590 = vmatpush1.msra.mxu0 %v10561
        %10591 = vmatprep.subr.mxu0 0.0
        %10592 = vmatpush1.msra.mxu0 %v10562
        %10593 = vmatprep.subr.mxu0 0.0
        %10594 = vmatpush1.msra.mxu0 %v10563
        %10595 = vmatprep.subr.mxu0 0.0
        %10596 = vmatpush1.msra.mxu0 %v10564
        %10597 = vmatprep.subr.mxu0 0.0
        %10598 = vmatpush1.msra.mxu0 0.0
        %10599 = vmatprep.subr.mxu0 0.0
        %10600 = vmatpush1.msra.mxu0 0.0
        %10601 = vmatprep.subr.mxu0 0.0
        %10602 = vmatpush1.msra.mxu0 0.0
        %10603 = vmatprep.subr.mxu0 0.0
        %10604 = vmatpush1.msra.mxu0 0.0
        %10605 = vmatprep.subr.mxu0 0.0
        %10606 = vmatpush1.msra.mxu0 0.0
        %10607 = vmatprep.subr.mxu0 0.0
        %10608 = vmatpush1.msra.mxu0 0.0
        %10609 = vmatprep.subr.mxu0 0.0
        %10610 = vmatpush1.msra.mxu0 0.0
        %10611 = vmatprep.subr.mxu0 0.0
        %10612 = vmatpush1.msra.mxu0 0.0
        %10613 = vmatprep.subr.mxu0 0.0
        %10614 = vmatpush1.msra.mxu0 0.0
        %10615 = vmatprep.subr.mxu0 0.0
        %10616 = vmatpush1.msra.mxu0 0.0
        %10617 = vmatprep.subr.mxu0 0.0
        %10618 = vmatpush1.msra.mxu0 0.0
        %10619 = vmatprep.subr.mxu0 0.0
        %10620 = vmatpush1.msra.mxu0 0.0
        %10621 = vmatprep.subr.mxu0 0.0
        %10622 = vmatpush1.msra.mxu0 0.0
        %10623 = vmatprep.subr.mxu0 0.0
        %10624 = vmatpush1.msra.mxu0 0.0
        %10625 = vmatprep.subr.mxu0 0.0
        %10626 = vmatpush1.msra.mxu0 0.0
        %10627 = vmatprep.subr.mxu0 0.0
        %10628 = vmatpush1.msra.mxu0 0.0
        %10629 = vmatprep.mubr.f32.mxu0 0.0
        %10630 = vmatmul.mubr.f32.gmra.mrb[0].mxu0 %v10548
        %v10631 = vpop.f32.mrb[0].mxu0
        %v10632 = vadd.f32 0.0, %v10631
        %v10633 = vpop.f32.mrb[0].mxu0
        %10634 = vdwg.mxu0
        %v10635 = vadd.f32 %v9162, %v10632
        %v10636 = vld [vmem:[%s610] sm:$0xff]
        %v10637 = vld [vmem:[%s610 + $0x8] sm:$0xff]
        %v10638 = vld [vmem:[%s610 + $0x10] sm:$0xff]
        %v10639 = vld [vmem:[%s610 + $0x18] sm:$0xff]
        %v10640 = vld [vmem:[%s610 + $0x20] sm:$0xff]
        %v10641 = vld [vmem:[%s610 + $0x28] sm:$0xff]
        %v10642 = vld [vmem:[%s610 + $0x30] sm:$0xff]
        %v10643 = vld [vmem:[%s610 + $0x38] sm:$0xff]
        %v10644 = vpack.c.bf16 %v10636, %v10636
        %v10645 = vpack.c.bf16 %v10637, %v10637
        %v10646 = vpack.c.bf16 %v10638, %v10638
        %v10647 = vpack.c.bf16 %v10639, %v10639
        %v10648 = vpack.c.bf16 %v10640, %v10640
        %v10649 = vpack.c.bf16 %v10641, %v10641
        %v10650 = vpack.c.bf16 %v10642, %v10642
        %v10651 = vpack.c.bf16 %v10643, %v10643
        %v10652 = vld [vmem:[#allocation19] sm:$0xf]
        %v10653 = vld [vmem:[#allocation19 + $0x4] sm:$0xf]
        %v10654 = vld [vmem:[#allocation19 + $0x8] sm:$0xf]
        %v10655 = vld [vmem:[#allocation19 + $0xc] sm:$0xf]
        %v10656 = vld [vmem:[#allocation19 + $0x10] sm:$0xf]
        %v10657 = vld [vmem:[#allocation19 + $0x14] sm:$0xf]
        %v10658 = vld [vmem:[#allocation19 + $0x18] sm:$0xf]
        %v10659 = vld [vmem:[#allocation19 + $0x1c] sm:$0xf]
        %v10660 = vld [vmem:[#allocation19 + $0x20] sm:$0xf]
        %v10661 = vld [vmem:[#allocation19 + $0x24] sm:$0xf]
        %v10662 = vld [vmem:[#allocation19 + $0x28] sm:$0xf]
        %v10663 = vld [vmem:[#allocation19 + $0x2c] sm:$0xf]
        %v10664 = vld [vmem:[#allocation19 + $0x30] sm:$0xf]
        %v10665 = vld [vmem:[#allocation19 + $0x34] sm:$0xf]
        %v10666 = vld [vmem:[#allocation19 + $0x38] sm:$0xf]
        %v10667 = vld [vmem:[#allocation19 + $0x3c] sm:$0xf]
        %v10668 = vld [vmem:[#allocation19 + $0x40] sm:$0xf]
        %v10669 = vld [vmem:[#allocation19 + $0x44] sm:$0xf]
        %v10670 = vld [vmem:[#allocation19 + $0x48] sm:$0xf]
        %v10671 = vld [vmem:[#allocation19 + $0x4c] sm:$0xf]
        %v10672 = vld [vmem:[#allocation19 + $0x50] sm:$0xf]
        %v10673 = vld [vmem:[#allocation19 + $0x54] sm:$0xf]
        %v10674 = vld [vmem:[#allocation19 + $0x58] sm:$0xf]
        %v10675 = vld [vmem:[#allocation19 + $0x5c] sm:$0xf]
        %v10676 = vld [vmem:[#allocation19 + $0x60] sm:$0xf]
        %v10677 = vld [vmem:[#allocation19 + $0x64] sm:$0xf]
        %v10678 = vld [vmem:[#allocation19 + $0x68] sm:$0xf]
        %v10679 = vld [vmem:[#allocation19 + $0x6c] sm:$0xf]
        %v10680 = vld [vmem:[#allocation19 + $0x70] sm:$0xf]
        %v10681 = vld [vmem:[#allocation19 + $0x74] sm:$0xf]
        %v10682 = vld [vmem:[#allocation19 + $0x78] sm:$0xf]
        %v10683 = vld [vmem:[#allocation19 + $0x7c] sm:$0xf]
        %v10684 = vld [vmem:[#allocation19 + $0x80] sm:$0xf]
        %v10685 = vld [vmem:[#allocation19 + $0x84] sm:$0xf]
        %v10686 = vld [vmem:[#allocation19 + $0x88] sm:$0xf]
        %v10687 = vld [vmem:[#allocation19 + $0x8c] sm:$0xf]
        %v10688 = vld [vmem:[#allocation19 + $0x90] sm:$0xf]
        %v10689 = vld [vmem:[#allocation19 + $0x94] sm:$0xf]
        %v10690 = vld [vmem:[#allocation19 + $0x98] sm:$0xf]
        %v10691 = vld [vmem:[#allocation19 + $0x9c] sm:$0xf]
        %v10692 = vld [vmem:[#allocation19 + $0xa0] sm:$0xf]
        %v10693 = vld [vmem:[#allocation19 + $0xa4] sm:$0xf]
        %v10694 = vld [vmem:[#allocation19 + $0xa8] sm:$0xf]
        %v10695 = vld [vmem:[#allocation19 + $0xac] sm:$0xf]
        %v10696 = vld [vmem:[#allocation19 + $0xb0] sm:$0xf]
        %v10697 = vld [vmem:[#allocation19 + $0xb4] sm:$0xf]
        %v10698 = vld [vmem:[#allocation19 + $0xb8] sm:$0xf]
        %v10699 = vld [vmem:[#allocation19 + $0xbc] sm:$0xf]
        %v10700 = vld [vmem:[#allocation19 + $0xc0] sm:$0xf]
        %v10701 = vld [vmem:[#allocation19 + $0xc4] sm:$0xf]
        %v10702 = vld [vmem:[#allocation19 + $0xc8] sm:$0xf]
        %v10703 = vld [vmem:[#allocation19 + $0xcc] sm:$0xf]
        %v10704 = vld [vmem:[#allocation19 + $0xd0] sm:$0xf]
        %v10705 = vld [vmem:[#allocation19 + $0xd4] sm:$0xf]
        %v10706 = vld [vmem:[#allocation19 + $0xd8] sm:$0xf]
        %v10707 = vld [vmem:[#allocation19 + $0xdc] sm:$0xf]
        %v10708 = vld [vmem:[#allocation19 + $0xe0] sm:$0xf]
        %v10709 = vld [vmem:[#allocation19 + $0xe4] sm:$0xf]
        %v10710 = vld [vmem:[#allocation19 + $0xe8] sm:$0xf]
        %v10711 = vld [vmem:[#allocation19 + $0xec] sm:$0xf]
        %v10712 = vld [vmem:[#allocation19 + $0xf0] sm:$0xf]
        %v10713 = vld [vmem:[#allocation19 + $0xf4] sm:$0xf]
        %v10714 = vld [vmem:[#allocation19 + $0xf8] sm:$0xf]
        %v10715 = vld [vmem:[#allocation19 + $0xfc] sm:$0xf]
        %v10716 = vld [vmem:[#allocation19 + $0x100] sm:$0xf]
        %v10717 = vld [vmem:[#allocation19 + $0x104] sm:$0xf]
        %v10718 = vld [vmem:[#allocation19 + $0x108] sm:$0xf]
        %v10719 = vld [vmem:[#allocation19 + $0x10c] sm:$0xf]
        %v10720 = vld [vmem:[#allocation19 + $0x110] sm:$0xf]
        %v10721 = vld [vmem:[#allocation19 + $0x114] sm:$0xf]
        %v10722 = vld [vmem:[#allocation19 + $0x118] sm:$0xf]
        %v10723 = vld [vmem:[#allocation19 + $0x11c] sm:$0xf]
        %v10724 = vld [vmem:[#allocation19 + $0x120] sm:$0xf]
        %v10725 = vld [vmem:[#allocation19 + $0x124] sm:$0xf]
        %v10726 = vld [vmem:[#allocation19 + $0x128] sm:$0xf]
        %v10727 = vld [vmem:[#allocation19 + $0x12c] sm:$0xf]
        %v10728 = vld [vmem:[#allocation19 + $0x130] sm:$0xf]
        %v10729 = vld [vmem:[#allocation19 + $0x134] sm:$0xf]
        %v10730 = vld [vmem:[#allocation19 + $0x138] sm:$0xf]
        %v10731 = vld [vmem:[#allocation19 + $0x13c] sm:$0xf]
        %v10732 = vld [vmem:[#allocation19 + $0x140] sm:$0xf]
        %v10733 = vld [vmem:[#allocation19 + $0x144] sm:$0xf]
        %v10734 = vld [vmem:[#allocation19 + $0x148] sm:$0xf]
        %v10735 = vld [vmem:[#allocation19 + $0x14c] sm:$0xf]
        %v10736 = vld [vmem:[#allocation19 + $0x150] sm:$0xf]
        %v10737 = vld [vmem:[#allocation19 + $0x154] sm:$0xf]
        %v10738 = vld [vmem:[#allocation19 + $0x158] sm:$0xf]
        %v10739 = vld [vmem:[#allocation19 + $0x15c] sm:$0xf]
        %v10740 = vld [vmem:[#allocation19 + $0x160] sm:$0xf]
        %v10741 = vld [vmem:[#allocation19 + $0x164] sm:$0xf]
        %v10742 = vld [vmem:[#allocation19 + $0x168] sm:$0xf]
        %v10743 = vld [vmem:[#allocation19 + $0x16c] sm:$0xf]
        %v10744 = vld [vmem:[#allocation19 + $0x170] sm:$0xf]
        %v10745 = vld [vmem:[#allocation19 + $0x174] sm:$0xf]
        %v10746 = vld [vmem:[#allocation19 + $0x178] sm:$0xf]
        %v10747 = vld [vmem:[#allocation19 + $0x17c] sm:$0xf]
        %v10748 = vld [vmem:[#allocation19 + $0x180] sm:$0xf]
        %v10749 = vld [vmem:[#allocation19 + $0x184] sm:$0xf]
        %v10750 = vld [vmem:[#allocation19 + $0x188] sm:$0xf]
        %v10751 = vld [vmem:[#allocation19 + $0x18c] sm:$0xf]
        %v10752 = vld [vmem:[#allocation19 + $0x190] sm:$0xf]
        %v10753 = vld [vmem:[#allocation19 + $0x194] sm:$0xf]
        %v10754 = vld [vmem:[#allocation19 + $0x198] sm:$0xf]
        %v10755 = vld [vmem:[#allocation19 + $0x19c] sm:$0xf]
        %v10756 = vld [vmem:[#allocation19 + $0x1a0] sm:$0xf]
        %v10757 = vld [vmem:[#allocation19 + $0x1a4] sm:$0xf]
        %v10758 = vld [vmem:[#allocation19 + $0x1a8] sm:$0xf]
        %v10759 = vld [vmem:[#allocation19 + $0x1ac] sm:$0xf]
        %v10760 = vld [vmem:[#allocation19 + $0x1b0] sm:$0xf]
        %v10761 = vld [vmem:[#allocation19 + $0x1b4] sm:$0xf]
        %v10762 = vld [vmem:[#allocation19 + $0x1b8] sm:$0xf]
        %v10763 = vld [vmem:[#allocation19 + $0x1bc] sm:$0xf]
        %v10764 = vld [vmem:[#allocation19 + $0x1c0] sm:$0xf]
        %v10765 = vld [vmem:[#allocation19 + $0x1c4] sm:$0xf]
        %v10766 = vld [vmem:[#allocation19 + $0x1c8] sm:$0xf]
        %v10767 = vld [vmem:[#allocation19 + $0x1cc] sm:$0xf]
        %v10768 = vld [vmem:[#allocation19 + $0x1d0] sm:$0xf]
        %v10769 = vld [vmem:[#allocation19 + $0x1d4] sm:$0xf]
        %v10770 = vld [vmem:[#allocation19 + $0x1d8] sm:$0xf]
        %v10771 = vld [vmem:[#allocation19 + $0x1dc] sm:$0xf]
        %v10772 = vld [vmem:[#allocation19 + $0x1e0] sm:$0xf]
        %v10773 = vld [vmem:[#allocation19 + $0x1e4] sm:$0xf]
        %v10774 = vld [vmem:[#allocation19 + $0x1e8] sm:$0xf]
        %v10775 = vld [vmem:[#allocation19 + $0x1ec] sm:$0xf]
        %v10776 = vld [vmem:[#allocation19 + $0x1f0] sm:$0xf]
        %v10777 = vld [vmem:[#allocation19 + $0x1f4] sm:$0xf]
        %v10778 = vld [vmem:[#allocation19 + $0x1f8] sm:$0xf]
        %v10779 = vld [vmem:[#allocation19 + $0x1fc] sm:$0xf]
        %v10908 = vunpack.c.l.b16 %v10652
        %v10909 = vunpack.c.l.b16 %v10653
        %v10910 = vunpack.c.l.b16 %v10654
        %v10911 = vunpack.c.l.b16 %v10655
        %v10912 = vunpack.c.l.b16 %v10656
        %v10913 = vunpack.c.l.b16 %v10657
        %v10914 = vunpack.c.l.b16 %v10658
        %v10915 = vunpack.c.l.b16 %v10659
        %v10916 = vunpack.c.l.b16 %v10660
        %v10917 = vunpack.c.l.b16 %v10661
        %v10918 = vunpack.c.l.b16 %v10662
        %v10919 = vunpack.c.l.b16 %v10663
        %v10920 = vunpack.c.l.b16 %v10664
        %v10921 = vunpack.c.l.b16 %v10665
        %v10922 = vunpack.c.l.b16 %v10666
        %v10923 = vunpack.c.l.b16 %v10667
        %v10924 = vunpack.c.l.b16 %v10668
        %v10925 = vunpack.c.l.b16 %v10669
        %v10926 = vunpack.c.l.b16 %v10670
        %v10927 = vunpack.c.l.b16 %v10671
        %v10928 = vunpack.c.l.b16 %v10672
        %v10929 = vunpack.c.l.b16 %v10673
        %v10930 = vunpack.c.l.b16 %v10674
        %v10931 = vunpack.c.l.b16 %v10675
        %v10932 = vunpack.c.l.b16 %v10676
        %v10933 = vunpack.c.l.b16 %v10677
        %v10934 = vunpack.c.l.b16 %v10678
        %v10935 = vunpack.c.l.b16 %v10679
        %v10936 = vunpack.c.l.b16 %v10680
        %v10937 = vunpack.c.l.b16 %v10681
        %v10938 = vunpack.c.l.b16 %v10682
        %v10939 = vunpack.c.l.b16 %v10683
        %v10940 = vunpack.c.l.b16 %v10684
        %v10941 = vunpack.c.l.b16 %v10685
        %v10942 = vunpack.c.l.b16 %v10686
        %v10943 = vunpack.c.l.b16 %v10687
        %v10944 = vunpack.c.l.b16 %v10688
        %v10945 = vunpack.c.l.b16 %v10689
        %v10946 = vunpack.c.l.b16 %v10690
        %v10947 = vunpack.c.l.b16 %v10691
        %v10948 = vunpack.c.l.b16 %v10692
        %v10949 = vunpack.c.l.b16 %v10693
        %v10950 = vunpack.c.l.b16 %v10694
        %v10951 = vunpack.c.l.b16 %v10695
        %v10952 = vunpack.c.l.b16 %v10696
        %v10953 = vunpack.c.l.b16 %v10697
        %v10954 = vunpack.c.l.b16 %v10698
        %v10955 = vunpack.c.l.b16 %v10699
        %v10956 = vunpack.c.l.b16 %v10700
        %v10957 = vunpack.c.l.b16 %v10701
        %v10958 = vunpack.c.l.b16 %v10702
        %v10959 = vunpack.c.l.b16 %v10703
        %v10960 = vunpack.c.l.b16 %v10704
        %v10961 = vunpack.c.l.b16 %v10705
        %v10962 = vunpack.c.l.b16 %v10706
        %v10963 = vunpack.c.l.b16 %v10707
        %v10964 = vunpack.c.l.b16 %v10708
        %v10965 = vunpack.c.l.b16 %v10709
        %v10966 = vunpack.c.l.b16 %v10710
        %v10967 = vunpack.c.l.b16 %v10711
        %v10968 = vunpack.c.l.b16 %v10712
        %v10969 = vunpack.c.l.b16 %v10713
        %v10970 = vunpack.c.l.b16 %v10714
        %v10971 = vunpack.c.l.b16 %v10715
        %v10972 = vunpack.c.l.b16 %v10716
        %v10973 = vunpack.c.l.b16 %v10717
        %v10974 = vunpack.c.l.b16 %v10718
        %v10975 = vunpack.c.l.b16 %v10719
        %v10976 = vunpack.c.l.b16 %v10720
        %v10977 = vunpack.c.l.b16 %v10721
        %v10978 = vunpack.c.l.b16 %v10722
        %v10979 = vunpack.c.l.b16 %v10723
        %v10980 = vunpack.c.l.b16 %v10724
        %v10981 = vunpack.c.l.b16 %v10725
        %v10982 = vunpack.c.l.b16 %v10726
        %v10983 = vunpack.c.l.b16 %v10727
        %v10984 = vunpack.c.l.b16 %v10728
        %v10985 = vunpack.c.l.b16 %v10729
        %v10986 = vunpack.c.l.b16 %v10730
        %v10987 = vunpack.c.l.b16 %v10731
        %v10988 = vunpack.c.l.b16 %v10732
        %v10989 = vunpack.c.l.b16 %v10733
        %v10990 = vunpack.c.l.b16 %v10734
        %v10991 = vunpack.c.l.b16 %v10735
        %v10992 = vunpack.c.l.b16 %v10736
        %v10993 = vunpack.c.l.b16 %v10737
        %v10994 = vunpack.c.l.b16 %v10738
        %v10995 = vunpack.c.l.b16 %v10739
        %v10996 = vunpack.c.l.b16 %v10740
        %v10997 = vunpack.c.l.b16 %v10741
        %v10998 = vunpack.c.l.b16 %v10742
        %v10999 = vunpack.c.l.b16 %v10743
        %v11000 = vunpack.c.l.b16 %v10744
        %v11001 = vunpack.c.l.b16 %v10745
        %v11002 = vunpack.c.l.b16 %v10746
        %v11003 = vunpack.c.l.b16 %v10747
        %v11004 = vunpack.c.l.b16 %v10748
        %v11005 = vunpack.c.l.b16 %v10749
        %v11006 = vunpack.c.l.b16 %v10750
        %v11007 = vunpack.c.l.b16 %v10751
        %v11008 = vunpack.c.l.b16 %v10752
        %v11009 = vunpack.c.l.b16 %v10753
        %v11010 = vunpack.c.l.b16 %v10754
        %v11011 = vunpack.c.l.b16 %v10755
        %v11012 = vunpack.c.l.b16 %v10756
        %v11013 = vunpack.c.l.b16 %v10757
        %v11014 = vunpack.c.l.b16 %v10758
        %v11015 = vunpack.c.l.b16 %v10759
        %v11016 = vunpack.c.l.b16 %v10760
        %v11017 = vunpack.c.l.b16 %v10761
        %v11018 = vunpack.c.l.b16 %v10762
        %v11019 = vunpack.c.l.b16 %v10763
        %v11020 = vunpack.c.l.b16 %v10764
        %v11021 = vunpack.c.l.b16 %v10765
        %v11022 = vunpack.c.l.b16 %v10766
        %v11023 = vunpack.c.l.b16 %v10767
        %v11024 = vunpack.c.l.b16 %v10768
        %v11025 = vunpack.c.l.b16 %v10769
        %v11026 = vunpack.c.l.b16 %v10770
        %v11027 = vunpack.c.l.b16 %v10771
        %v11028 = vunpack.c.l.b16 %v10772
        %v11029 = vunpack.c.l.b16 %v10773
        %v11030 = vunpack.c.l.b16 %v10774
        %v11031 = vunpack.c.l.b16 %v10775
        %v11032 = vunpack.c.l.b16 %v10776
        %v11033 = vunpack.c.l.b16 %v10777
        %v11034 = vunpack.c.l.b16 %v10778
        %v11035 = vunpack.c.l.b16 %v10779
        %v11036 = vpack.c.b16 %v10909, %v10908
        %v11037 = vpack.c.b16 %v10911, %v10910
        %v11038 = vpack.c.b16 %v10913, %v10912
        %v11039 = vpack.c.b16 %v10915, %v10914
        %v11040 = vpack.c.b16 %v10917, %v10916
        %v11041 = vpack.c.b16 %v10919, %v10918
        %v11042 = vpack.c.b16 %v10921, %v10920
        %v11043 = vpack.c.b16 %v10923, %v10922
        %v11044 = vpack.c.b16 %v10925, %v10924
        %v11045 = vpack.c.b16 %v10927, %v10926
        %v11046 = vpack.c.b16 %v10929, %v10928
        %v11047 = vpack.c.b16 %v10931, %v10930
        %v11048 = vpack.c.b16 %v10933, %v10932
        %v11049 = vpack.c.b16 %v10935, %v10934
        %v11050 = vpack.c.b16 %v10937, %v10936
        %v11051 = vpack.c.b16 %v10939, %v10938
        %v11052 = vpack.c.b16 %v10941, %v10940
        %v11053 = vpack.c.b16 %v10943, %v10942
        %v11054 = vpack.c.b16 %v10945, %v10944
        %v11055 = vpack.c.b16 %v10947, %v10946
        %v11056 = vpack.c.b16 %v10949, %v10948
        %v11057 = vpack.c.b16 %v10951, %v10950
        %v11058 = vpack.c.b16 %v10953, %v10952
        %v11059 = vpack.c.b16 %v10955, %v10954
        %v11060 = vpack.c.b16 %v10957, %v10956
        %v11061 = vpack.c.b16 %v10959, %v10958
        %v11062 = vpack.c.b16 %v10961, %v10960
        %v11063 = vpack.c.b16 %v10963, %v10962
        %v11064 = vpack.c.b16 %v10965, %v10964
        %v11065 = vpack.c.b16 %v10967, %v10966
        %v11066 = vpack.c.b16 %v10969, %v10968
        %v11067 = vpack.c.b16 %v10971, %v10970
        %v11068 = vpack.c.b16 %v10973, %v10972
        %v11069 = vpack.c.b16 %v10975, %v10974
        %v11070 = vpack.c.b16 %v10977, %v10976
        %v11071 = vpack.c.b16 %v10979, %v10978
        %v11072 = vpack.c.b16 %v10981, %v10980
        %v11073 = vpack.c.b16 %v10983, %v10982
        %v11074 = vpack.c.b16 %v10985, %v10984
        %v11075 = vpack.c.b16 %v10987, %v10986
        %v11076 = vpack.c.b16 %v10989, %v10988
        %v11077 = vpack.c.b16 %v10991, %v10990
        %v11078 = vpack.c.b16 %v10993, %v10992
        %v11079 = vpack.c.b16 %v10995, %v10994
        %v11080 = vpack.c.b16 %v10997, %v10996
        %v11081 = vpack.c.b16 %v10999, %v10998
        %v11082 = vpack.c.b16 %v11001, %v11000
        %v11083 = vpack.c.b16 %v11003, %v11002
        %v11084 = vpack.c.b16 %v11005, %v11004
        %v11085 = vpack.c.b16 %v11007, %v11006
        %v11086 = vpack.c.b16 %v11009, %v11008
        %v11087 = vpack.c.b16 %v11011, %v11010
        %v11088 = vpack.c.b16 %v11013, %v11012
        %v11089 = vpack.c.b16 %v11015, %v11014
        %v11090 = vpack.c.b16 %v11017, %v11016
        %v11091 = vpack.c.b16 %v11019, %v11018
        %v11092 = vpack.c.b16 %v11021, %v11020
        %v11093 = vpack.c.b16 %v11023, %v11022
        %v11094 = vpack.c.b16 %v11025, %v11024
        %v11095 = vpack.c.b16 %v11027, %v11026
        %v11096 = vpack.c.b16 %v11029, %v11028
        %v11097 = vpack.c.b16 %v11031, %v11030
        %v11098 = vpack.c.b16 %v11033, %v11032
        %v11099 = vpack.c.b16 %v11035, %v11034
        %11164 = vmatprep.subr.bf16.mxu0 0
        %11165 = vmatpush1.bf16.msra.mxu0 %v11036
        %11166 = vmatprep.subr.bf16.mxu0 0
        %11167 = vmatpush1.bf16.msra.mxu0 %v11037
        %11168 = vmatprep.subr.bf16.mxu0 0
        %11169 = vmatpush1.bf16.msra.mxu0 %v11038
        %11170 = vmatprep.subr.bf16.mxu0 0
        %11171 = vmatpush1.bf16.msra.mxu0 %v11039
        %11172 = vmatprep.subr.bf16.mxu0 0
        %11173 = vmatpush1.bf16.msra.mxu0 %v11040
        %11174 = vmatprep.subr.bf16.mxu0 0
        %11175 = vmatpush1.bf16.msra.mxu0 %v11041
        %11176 = vmatprep.subr.bf16.mxu0 0
        %11177 = vmatpush1.bf16.msra.mxu0 %v11042
        %11178 = vmatprep.subr.bf16.mxu0 0
        %11179 = vmatpush1.bf16.msra.mxu0 %v11043
        %11180 = vmatprep.subr.bf16.mxu0 0
        %11181 = vmatpush1.bf16.msra.mxu0 %v11044
        %11182 = vmatprep.subr.bf16.mxu0 0
        %11183 = vmatpush1.bf16.msra.mxu0 %v11045
        %11184 = vmatprep.subr.bf16.mxu0 0
        %11185 = vmatpush1.bf16.msra.mxu0 %v11046
        %11186 = vmatprep.subr.bf16.mxu0 0
        %11187 = vmatpush1.bf16.msra.mxu0 %v11047
        %11188 = vmatprep.subr.bf16.mxu0 0
        %11189 = vmatpush1.bf16.msra.mxu0 %v11048
        %11190 = vmatprep.subr.bf16.mxu0 0
        %11191 = vmatpush1.bf16.msra.mxu0 %v11049
        %11192 = vmatprep.subr.bf16.mxu0 0
        %11193 = vmatpush1.bf16.msra.mxu0 %v11050
        %11194 = vmatprep.subr.bf16.mxu0 0
        %11195 = vmatpush1.bf16.msra.mxu0 %v11051
        %11196 = vmatprep.mubr.bf16.mxu0 %v10645
        %11197 = vmatmul.mubr.bf16.gmra.mrb[0].mxu0 %v10644
        %v11198 = vpop.f32.mrb[0].mxu0
        %v11199 = vadd.f32 0.0, %v11198
        %v11200 = vpop.f32.mrb[0].mxu0
        %v11201 = vpop.f32.mrb[0].mxu0
        %v11202 = vpop.f32.mrb[0].mxu0
        %11203 = vdwg.mxu0
        %11204 = vmatprep.subr.bf16.mxu0 0
        %11205 = vmatpush1.bf16.msra.mxu0 %v11052
        %11206 = vmatprep.subr.bf16.mxu0 0
        %11207 = vmatpush1.bf16.msra.mxu0 %v11053
        %11208 = vmatprep.subr.bf16.mxu0 0
        %11209 = vmatpush1.bf16.msra.mxu0 %v11054
        %11210 = vmatprep.subr.bf16.mxu0 0
        %11211 = vmatpush1.bf16.msra.mxu0 %v11055
        %11212 = vmatprep.subr.bf16.mxu0 0
        %11213 = vmatpush1.bf16.msra.mxu0 %v11056
        %11214 = vmatprep.subr.bf16.mxu0 0
        %11215 = vmatpush1.bf16.msra.mxu0 %v11057
        %11216 = vmatprep.subr.bf16.mxu0 0
        %11217 = vmatpush1.bf16.msra.mxu0 %v11058
        %11218 = vmatprep.subr.bf16.mxu0 0
        %11219 = vmatpush1.bf16.msra.mxu0 %v11059
        %11220 = vmatprep.subr.bf16.mxu0 0
        %11221 = vmatpush1.bf16.msra.mxu0 %v11060
        %11222 = vmatprep.subr.bf16.mxu0 0
        %11223 = vmatpush1.bf16.msra.mxu0 %v11061
        %11224 = vmatprep.subr.bf16.mxu0 0
        %11225 = vmatpush1.bf16.msra.mxu0 %v11062
        %11226 = vmatprep.subr.bf16.mxu0 0
        %11227 = vmatpush1.bf16.msra.mxu0 %v11063
        %11228 = vmatprep.subr.bf16.mxu0 0
        %11229 = vmatpush1.bf16.msra.mxu0 %v11064
        %11230 = vmatprep.subr.bf16.mxu0 0
        %11231 = vmatpush1.bf16.msra.mxu0 %v11065
        %11232 = vmatprep.subr.bf16.mxu0 0
        %11233 = vmatpush1.bf16.msra.mxu0 %v11066
        %11234 = vmatprep.subr.bf16.mxu0 0
        %11235 = vmatpush1.bf16.msra.mxu0 %v11067
        %11236 = vmatprep.mubr.bf16.mxu0 %v10647
        %11237 = vmatmul.mubr.bf16.gmra.mrb[0].mxu0 %v10646
        %v11238 = vpop.f32.mrb[0].mxu0
        %v11239 = vadd.f32 %v11199, %v11238
        %v11240 = vpop.f32.mrb[0].mxu0
        %v11241 = vpop.f32.mrb[0].mxu0
        %v11242 = vpop.f32.mrb[0].mxu0
        %11243 = vdwg.mxu0
        %11244 = vmatprep.subr.bf16.mxu0 0
        %11245 = vmatpush1.bf16.msra.mxu0 %v11068
        %11246 = vmatprep.subr.bf16.mxu0 0
        %11247 = vmatpush1.bf16.msra.mxu0 %v11069
        %11248 = vmatprep.subr.bf16.mxu0 0
        %11249 = vmatpush1.bf16.msra.mxu0 %v11070
        %11250 = vmatprep.subr.bf16.mxu0 0
        %11251 = vmatpush1.bf16.msra.mxu0 %v11071
        %11252 = vmatprep.subr.bf16.mxu0 0
        %11253 = vmatpush1.bf16.msra.mxu0 %v11072
        %11254 = vmatprep.subr.bf16.mxu0 0
        %11255 = vmatpush1.bf16.msra.mxu0 %v11073
        %11256 = vmatprep.subr.bf16.mxu0 0
        %11257 = vmatpush1.bf16.msra.mxu0 %v11074
        %11258 = vmatprep.subr.bf16.mxu0 0
        %11259 = vmatpush1.bf16.msra.mxu0 %v11075
        %11260 = vmatprep.subr.bf16.mxu0 0
        %11261 = vmatpush1.bf16.msra.mxu0 %v11076
        %11262 = vmatprep.subr.bf16.mxu0 0
        %11263 = vmatpush1.bf16.msra.mxu0 %v11077
        %11264 = vmatprep.subr.bf16.mxu0 0
        %11265 = vmatpush1.bf16.msra.mxu0 %v11078
        %11266 = vmatprep.subr.bf16.mxu0 0
        %11267 = vmatpush1.bf16.msra.mxu0 %v11079
        %11268 = vmatprep.subr.bf16.mxu0 0
        %11269 = vmatpush1.bf16.msra.mxu0 %v11080
        %11270 = vmatprep.subr.bf16.mxu0 0
        %11271 = vmatpush1.bf16.msra.mxu0 %v11081
        %11272 = vmatprep.subr.bf16.mxu0 0
        %11273 = vmatpush1.bf16.msra.mxu0 %v11082
        %11274 = vmatprep.subr.bf16.mxu0 0
        %11275 = vmatpush1.bf16.msra.mxu0 %v11083
        %11276 = vmatprep.mubr.bf16.mxu0 %v10649
        %11277 = vmatmul.mubr.bf16.gmra.mrb[0].mxu0 %v10648
        %v11278 = vpop.f32.mrb[0].mxu0
        %v11279 = vadd.f32 %v11239, %v11278
        %v11280 = vpop.f32.mrb[0].mxu0
        %v11281 = vpop.f32.mrb[0].mxu0
        %v11282 = vpop.f32.mrb[0].mxu0
        %11283 = vdwg.mxu0
        %11284 = vmatprep.subr.bf16.mxu0 0
        %11285 = vmatpush1.bf16.msra.mxu0 %v11084
        %11286 = vmatprep.subr.bf16.mxu0 0
        %11287 = vmatpush1.bf16.msra.mxu0 %v11085
        %11288 = vmatprep.subr.bf16.mxu0 0
        %11289 = vmatpush1.bf16.msra.mxu0 %v11086
        %11290 = vmatprep.subr.bf16.mxu0 0
        %11291 = vmatpush1.bf16.msra.mxu0 %v11087
        %11292 = vmatprep.subr.bf16.mxu0 0
        %11293 = vmatpush1.bf16.msra.mxu0 %v11088
        %11294 = vmatprep.subr.bf16.mxu0 0
        %11295 = vmatpush1.bf16.msra.mxu0 %v11089
        %11296 = vmatprep.subr.bf16.mxu0 0
        %11297 = vmatpush1.bf16.msra.mxu0 %v11090
        %11298 = vmatprep.subr.bf16.mxu0 0
        %11299 = vmatpush1.bf16.msra.mxu0 %v11091
        %11300 = vmatprep.subr.bf16.mxu0 0
        %11301 = vmatpush1.bf16.msra.mxu0 %v11092
        %11302 = vmatprep.subr.bf16.mxu0 0
        %11303 = vmatpush1.bf16.msra.mxu0 %v11093
        %11304 = vmatprep.subr.bf16.mxu0 0
        %11305 = vmatpush1.bf16.msra.mxu0 %v11094
        %11306 = vmatprep.subr.bf16.mxu0 0
        %11307 = vmatpush1.bf16.msra.mxu0 %v11095
        %11308 = vmatprep.subr.bf16.mxu0 0
        %11309 = vmatpush1.bf16.msra.mxu0 %v11096
        %11310 = vmatprep.subr.bf16.mxu0 0
        %11311 = vmatpush1.bf16.msra.mxu0 %v11097
        %11312 = vmatprep.subr.bf16.mxu0 0
        %11313 = vmatpush1.bf16.msra.mxu0 %v11098
        %11314 = vmatprep.subr.bf16.mxu0 0
        %11315 = vmatpush1.bf16.msra.mxu0 %v11099
        %11316 = vmatprep.mubr.bf16.mxu0 %v10651
        %11317 = vmatmul.mubr.bf16.gmra.mrb[0].mxu0 %v10650
        %v11318 = vpop.f32.mrb[0].mxu0
        %v11319 = vadd.f32 %v11279, %v11318
        %v11320 = vpop.f32.mrb[0].mxu0
        %v11321 = vpop.f32.mrb[0].mxu0
        %v11322 = vpop.f32.mrb[0].mxu0
        %11323 = vdwg.mxu0
        %v11324 = vmul.f32 %v11319, 0.0625
        %v11325 = vld [vmem:[#allocation20] sm:$0x1]
        %v11327 = vlaneseq
        %v11328 = vshrl.u32 %v11327, 7
        %v11329 = vsub.s32 0, %v11328
        %v11330 = vrot.slane %v11325, %v11329
        %v11332 = vadd.f32 %v11324, %v11330
        %v11333 = vmax.f32 %v11332, 0.0
        %v11334 = vld [vmem:[%s12 + $0x180] sm:$0xff]
        %v11335 = vld [vmem:[%s12 + $0x188] sm:$0xff]
        %v11336 = vld [vmem:[%s12 + $0x190] sm:$0xff]
        %v11337 = vld [vmem:[%s12 + $0x198] sm:$0xff]
        %v11338 = vld [vmem:[%s12 + $0x1a0] sm:$0xff]
        %v11339 = vld [vmem:[%s12 + $0x1a8] sm:$0xff]
        %v11340 = vld [vmem:[%s12 + $0x1b0] sm:$0xff]
        %v11341 = vld [vmem:[%s12 + $0x1b8] sm:$0xff]
        %v11342 = vld [vmem:[%s12 + $0x1c0] sm:$0xff]
        %v11343 = vld [vmem:[%s12 + $0x1c8] sm:$0xff]
        %v11344 = vld [vmem:[%s12 + $0x1d0] sm:$0xff]
        %v11345 = vld [vmem:[%s12 + $0x1d8] sm:$0xff]
        %v11346 = vld [vmem:[%s12 + $0x1e0] sm:$0xff]
        %v11347 = vld [vmem:[%s12 + $0x1e8] sm:$0xff]
        %v11348 = vld [vmem:[%s12 + $0x1f0] sm:$0xff]
        %v11349 = vld [vmem:[%s12 + $0x1f8] sm:$0xff]
        %11350 = vmatprep.subr.mxu0 0.0
        %11351 = vmatpush1.msra.mxu0 %v11334
        %11352 = vmatprep.subr.mxu0 0.0
        %11353 = vmatpush1.msra.mxu0 %v11335
        %11354 = vmatprep.subr.mxu0 0.0
        %11355 = vmatpush1.msra.mxu0 %v11336
        %11356 = vmatprep.subr.mxu0 0.0
        %11357 = vmatpush1.msra.mxu0 %v11337
        %11358 = vmatprep.subr.mxu0 0.0
        %11359 = vmatpush1.msra.mxu0 %v11338
        %11360 = vmatprep.subr.mxu0 0.0
        %11361 = vmatpush1.msra.mxu0 %v11339
        %11362 = vmatprep.subr.mxu0 0.0
        %11363 = vmatpush1.msra.mxu0 %v11340
        %11364 = vmatprep.subr.mxu0 0.0
        %11365 = vmatpush1.msra.mxu0 %v11341
        %11366 = vmatprep.subr.mxu0 0.0
        %11367 = vmatpush1.msra.mxu0 %v11342
        %11368 = vmatprep.subr.mxu0 0.0
        %11369 = vmatpush1.msra.mxu0 %v11343
        %11370 = vmatprep.subr.mxu0 0.0
        %11371 = vmatpush1.msra.mxu0 %v11344
        %11372 = vmatprep.subr.mxu0 0.0
        %11373 = vmatpush1.msra.mxu0 %v11345
        %11374 = vmatprep.subr.mxu0 0.0
        %11375 = vmatpush1.msra.mxu0 %v11346
        %11376 = vmatprep.subr.mxu0 0.0
        %11377 = vmatpush1.msra.mxu0 %v11347
        %11378 = vmatprep.subr.mxu0 0.0
        %11379 = vmatpush1.msra.mxu0 %v11348
        %11380 = vmatprep.subr.mxu0 0.0
        %11381 = vmatpush1.msra.mxu0 %v11349
        %11382 = vmatprep.subr.mxu0 0.0
        %11383 = vmatpush1.msra.mxu0 0.0
        %11384 = vmatprep.subr.mxu0 0.0
        %11385 = vmatpush1.msra.mxu0 0.0
        %11386 = vmatprep.subr.mxu0 0.0
        %11387 = vmatpush1.msra.mxu0 0.0
        %11388 = vmatprep.subr.mxu0 0.0
        %11389 = vmatpush1.msra.mxu0 0.0
        %11390 = vmatprep.subr.mxu0 0.0
        %11391 = vmatpush1.msra.mxu0 0.0
        %11392 = vmatprep.subr.mxu0 0.0
        %11393 = vmatpush1.msra.mxu0 0.0
        %11394 = vmatprep.subr.mxu0 0.0
        %11395 = vmatpush1.msra.mxu0 0.0
        %11396 = vmatprep.subr.mxu0 0.0
        %11397 = vmatpush1.msra.mxu0 0.0
        %11398 = vmatprep.subr.mxu0 0.0
        %11399 = vmatpush1.msra.mxu0 0.0
        %11400 = vmatprep.subr.mxu0 0.0
        %11401 = vmatpush1.msra.mxu0 0.0
        %11402 = vmatprep.subr.mxu0 0.0
        %11403 = vmatpush1.msra.mxu0 0.0
        %11404 = vmatprep.subr.mxu0 0.0
        %11405 = vmatpush1.msra.mxu0 0.0
        %11406 = vmatprep.subr.mxu0 0.0
        %11407 = vmatpush1.msra.mxu0 0.0
        %11408 = vmatprep.subr.mxu0 0.0
        %11409 = vmatpush1.msra.mxu0 0.0
        %11410 = vmatprep.subr.mxu0 0.0
        %11411 = vmatpush1.msra.mxu0 0.0
        %11412 = vmatprep.subr.mxu0 0.0
        %11413 = vmatpush1.msra.mxu0 0.0
        %11414 = vmatprep.mubr.f32.mxu0 0.0
        %11415 = vmatmul.mubr.f32.gmra.mrb[0].mxu0 %v11333
        %v11416 = vpop.f32.mrb[0].mxu0
        %v11417 = vadd.f32 0.0, %v11416
        %v11418 = vpop.f32.mrb[0].mxu0
        %11419 = vdwg.mxu0
        %v11420 = vadd.f32 %v10635, %v11417
        %vm11421 = vcmask 7168
        %11422 = vst.msk [vmem:[%s704] sm:$0xff] %vm11421, %v11420
        %p11423 = scmp.lt.s32.totalorder %s40, 1
        %s11424 = scalar_select %p11423, %s40, 1
        %s11425 = smul.addr %s11424, 8
        %s11426 = scalar_lea.vmem %s14, %s11425
        // Predicated region
        $region125: #{tpu_custom_call.1} parent=75 // pred_check
          %p11427 = pneg %p372
        $region126: #{tpu_custom_call.1} parent=75 // pred_check_branch
          %11429 = sbr.rel (%p11427) target = $region128
        $region127: #{tpu_custom_call.1} parent=75 // pred_region
          _
        $region128: #{tpu_custom_call.1} parent=75 // pred_fallthru
          _
      $region76: #{tpu_custom_call.1} parent=5 // pred_fallthru
        _
      %p11430 = scmp.le.s32.totalorder 2, %s35
      // Predicated region
      $region129: #{tpu_custom_call.1} parent=5 // pred_check
        %p11431 = pneg %p11430
      $region130: #{tpu_custom_call.1} parent=5 // pred_check_branch
        %11433 = sbr.rel (%p11431) target = $region132
      $region131: #{tpu_custom_call.1} parent=5 // pred_region
        %s11434 = ssub.s32 %s35, 2
        // Predicated region
        $region133: #{tpu_custom_call.1} parent=131 // pred_check
          %p11435 = pneg %p378
        $region134: #{tpu_custom_call.1} parent=131 // pred_check_branch
          %11437 = sbr.rel (%p11435) target = $region136
        $region135: #{tpu_custom_call.1} parent=131 // pred_region
          %p11438 = scmp.lt.s32.totalorder %s41, 1
          %s11439 = scalar_select %p11438, %s41, 1
          %s11440 = smul.addr %s11439, 8
          %s11441 = scalar_lea.vmem %s14, %s11440
        $region136: #{tpu_custom_call.1} parent=131 // pred_fallthru
          _
      $region132: #{tpu_custom_call.1} parent=5 // pred_fallthru
        _
    $region6: #{tpu_custom_call.1} parent=1 // loop_footer
      %s39 = sadd.s32 1, %s35
    $region7: #{tpu_custom_call.1} parent=1 // loop_footer_branch
      %34 = sbr.rel target = $region3
    $region8: #{tpu_custom_call.1} parent=1 // loop_exit
      _
    %11442 = vsyncpa [#allocation4], 1
    %s11443 = scalar_lea.sflag [#allocation4], 1
    %11444 = vsyncpa %s11443, 1
    %11445 = vsyncpa [#allocation6], 1
    %s11446 = scalar_lea.sflag [#allocation6], 1
    %11447 = vsyncpa %s11446, 1
    %11448 = vsyncpa [#allocation9], 1
    %s11449 = scalar_lea.sflag [#allocation9], 1
    %11450 = vsyncpa %s11449, 1
    %11451 = vsyncpa [#allocation12], 1
    %11452 = vsyncpa [#allocation15], 1
    %11453 = vsyncpa [#allocation18], 1
    %11454 = vsyncpa [#allocation21], 1

</llo_original>
